<compile_context>
chip_gen: v7x
topology: tpu7x:2x2x1
jax: 0.10.0
libtpu: 0.0.40
codegen_flags: <defaults>
</compile_context>

<pallas_src>
import jax
import jax.numpy as jnp
from jax import lax
from jax.experimental import pallas as pl
from jax.experimental.pallas import tpu as pltpu

KH = KW = 3   # MaxPool2d(3): 3x3 window
SH = SW = 3   # default stride == kernel_size

_MB = 1024 * 1024
_FUSE_MAX_W = 512          # above this the gather matmuls stop hiding under the DMA
_MAX_UNROLL_OUT_ROWS = 32  # single-band static unroll cap
_BAND_OUT_ROWS = 16        # multi-band band height (multiple of 8 -> (8,128)-legal)


def _cdiv(a, b):
    return -(-a // b)


def _rup(a, b):
    return _cdiv(a, b) * b


def _vmem_capacity_bytes():
    """Generation-aware VMEM capacity (v7x = 64 MiB, v5e/v6e = 128 MiB)."""
    try:
        info = pltpu.get_tpu_info()
        for attr in ("vmem_capacity_bytes", "vmem_capacity", "vmem_bytes"):
            v = getattr(info, attr, None)
            if v:
                return int(v)
    except Exception:
        pass
    return 64 * _MB   # conservative (v7x-safe) default


def _make_fused_kernel(TH_OUT, num_bands, rows_last, tail_rows, r_cols, OW):
    """Fused 3x3 ceil-mode maxpool over a (B, TH_IN, W) block -> (B, TH_OUT, OW)."""
    last_local = rows_last - 1

    def kernel(s_ref, x_ref, o_ref):
        # One-hot column-selection matrices (fetched once; constant index_map).
        s0 = s_ref[0]
        s1 = s_ref[1]
        s2 = s_ref[2]
        col = lax.broadcasted_iota(jnp.int32, (1, OW), 1)
        not_last_col = col < (OW - 1)

        def reduce_cols(acc):
            # acc: (B, W) f32 row-maxes.  g_dc[:, k] == acc[:, 3k + dc] (exact gather
            # via one-hot matmul); ragged right window masked on the last column.
            out = jnp.dot(acc, s0, precision=lax.Precision.HIGHEST,
                          preferred_element_type=jnp.float32)
            for dc, sm in ((1, s1), (2, s2)):
                g = jnp.dot(acc, sm, precision=lax.Precision.HIGHEST,
                            preferred_element_type=jnp.float32)
                m = jnp.maximum(out, g)
                out = m if dc < r_cols else jnp.where(not_last_col, m, out)
            return out

        def compute_row(t, n_rows):
            r0 = SH * t
            acc = x_ref[:, r0, :].astype(jnp.float32)
            for d in range(1, n_rows):
                acc = jnp.maximum(acc, x_ref[:, r0 + d, :].astype(jnp.float32))
            o_ref[:, t, :] = reduce_cols(acc).astype(o_ref.dtype)

        for t in range(TH_OUT):
            if t != last_local or tail_rows == KH:
                # Full 3-row window.  (Rows past the valid range in the last band are
                # computed on undefined data and dropped by Pallas' boundary handling.)
                compute_row(t, KH)
            elif num_bands == 1:
                compute_row(t, tail_rows)
            else:
                jb = pl.program_id(1)

                @pl.when(jb == num_bands - 1)
                def _(t=t):
                    compute_row(t, tail_rows)

                @pl.when(jb < num_bands - 1)
                def _(t=t):
                    compute_row(t, KH)

    return kernel


def _make_row_kernel(TH_OUT, num_bands, rows_last, tail_rows):
    """Fallback path: KH (row) reduction only; (B, TH_IN, W) -> (B, TH_OUT, W)."""
    last_local = rows_last - 1

    def kernel(x_ref, o_ref):
        def compute_row(t, n_rows):
            r0 = SH * t
            acc = x_ref[:, r0, :]
            for d in range(1, n_rows):
                acc = jnp.maximum(acc, x_ref[:, r0 + d, :])
            o_ref[:, t, :] = acc

        for t in range(TH_OUT):
            if t != last_local or tail_rows == KH:
                compute_row(t, KH)
            elif num_bands == 1:
                compute_row(t, tail_rows)
            else:
                jb = pl.program_id(1)

                @pl.when(jb == num_bands - 1)
                def _(t=t):
                    compute_row(t, tail_rows)

                @pl.when(jb < num_bands - 1)
                def _(t=t):
                    compute_row(t, KH)

    return kernel


def maxpool2d_ceil(x):
    """MaxPool2d(kernel_size=3, stride=3, padding=0, ceil_mode=True) on NCHW."""
    N, C, H, W = x.shape
    if H < KH or W < KW:
        raise ValueError(
            f"Input spatial dims ({H},{W}) must be >= kernel size {KH}x{KW}")

    # ceil_mode output sizes (pad=0 -> last window always starts inside the input).
    OH = _cdiv(H - KH, SH) + 1
    OW = _cdiv(W - KW, SW) + 1
    NC = N * C
    tail_rows = H - SH * (OH - 1)        # 1..3 rows in the last (ragged) row window
    r_cols = W - SW * (OW - 1)           # 1..3 cols in the last (ragged) col window

    x3 = x.reshape(NC, H, W)             # free, contiguous reshape (no copy)
    dtype = x.dtype
    itemsize = jnp.dtype(dtype).itemsize
    fused = (W <= _FUSE_MAX_W) and (dtype == jnp.float32 or dtype == jnp.bfloat16)

    # ---- row-band tiling along H (bounds VMEM and kernel unroll for large H) ----
    if OH <= _MAX_UNROLL_OUT_ROWS:
        TH_OUT, TH_IN, num_bands = OH, H, 1
    else:
        TH_OUT = _BAND_OUT_ROWS
        TH_IN = KH * TH_OUT
        num_bands = _cdiv(OH, TH_OUT)
    rows_last = OH - (num_bands - 1) * TH_OUT

    # ---- padding-aware, generation-aware plane batching -------------------------
    pack = {1: 32, 2: 16, 4: 8}.get(itemsize, 8)     # sublane packing per dtype
    Wp = _rup(W, 128)
    OWp = _rup(OW, 128)
    cap = _vmem_capacity_bytes()
    vmem_limit = max(16 * _MB, int(min(64 * _MB, 0.45 * cap)))
    in_blk = _rup(TH_IN, pack) * Wp * itemsize                         # per plane
    out_blk = _rup(TH_OUT, pack) * (OWp if fused else Wp) * itemsize   # per plane
    s_bytes = (KW * _rup(W, 8) * OWp * 4) if fused else 0
    budget = int(0.7 * vmem_limit) - 3 * s_bytes
    B_vmem = max(1, budget // max(2 * (in_blk + out_blk), 1))
    target_raw = 8 * _MB if cap > 100 * _MB else 4 * _MB               # DMA granularity
    B_tgt = max(1, target_raw // max(TH_IN * W * itemsize, 1))
    B = int(max(1, min(NC, B_vmem, B_tgt)))
    grid = (_cdiv(NC, B), num_bands)

    compiler_params = pltpu.CompilerParams(
        dimension_semantics=("parallel", "parallel"),
        vmem_limit_bytes=vmem_limit,
    )

    if fused:
        # One-hot selection matrices S[dc, w, k] = (w == 3k + dc), built once in XLA
        # (tiny) and kept resident in VMEM (constant index_map).
        w_idx = jnp.arange(W, dtype=jnp.int32)[:, None]
        k_idx = jnp.arange(OW, dtype=jnp.int32)[None, :]
        sel = jnp.stack([(w_idx == (SW * k_idx + dc)).astype(jnp.float32)
                         for dc in range(KW)])                      # (3, W, OW)

        out3 = pl.pallas_call(
            _make_fused_kernel(TH_OUT, num_bands, rows_last, tail_rows, r_cols, OW),
            out_shape=jax.ShapeDtypeStruct((NC, OH, OW), dtype),
            grid_spec=pltpu.PrefetchScalarGridSpec(
                num_scalar_prefetch=0,
                grid=grid,
                in_specs=[
                    pl.BlockSpec((KW, W, OW), lambda i, j: (0, 0, 0)),
                    pl.BlockSpec((B, TH_IN, W), lambda i, j: (i, j, 0)),
                ],
                out_specs=pl.BlockSpec((B, TH_OUT, OW), lambda i, j: (i, j, 0)),
            ),
            compiler_params=compiler_params,
            cost_estimate=pl.CostEstimate(
                flops=2 * NC * H * W + 2 * KW * NC * OH * W * OW,
                transcendentals=0,
                bytes_accessed=itemsize * (NC * H * W + NC * OH * OW) + 4 * KW * W * OW,
            ),
        )(sel, x3)
        return out3.reshape(N, C, OH, OW)

    # ---- fallback: row-reduction kernel + fused XLA column reduce (no jnp.pad) ----
    rowmax = pl.pallas_call(
        _make_row_kernel(TH_OUT, num_bands, rows_last, tail_rows),
        out_shape=jax.ShapeDtypeStruct((NC, OH, W), dtype),
        grid_spec=pltpu.PrefetchScalarGridSpec(
            num_scalar_prefetch=0,
            grid=grid,
            in_specs=[pl.BlockSpec((B, TH_IN, W), lambda i, j: (i, j, 0))],
            out_specs=pl.BlockSpec((B, TH_OUT, W), lambda i, j: (i, j, 0)),
        ),
        compiler_params=compiler_params,
        cost_estimate=pl.CostEstimate(
            flops=2 * NC * H * W,
            transcendentals=0,
            bytes_accessed=itemsize * (NC * H * W + NC * OH * W),
        ),
    )(x3)
    n_full = (W - KW) // SW + 1                     # column windows fully in bounds
    full = rowmax[:, :, :n_full * KW].reshape(NC, OH, n_full, KW).max(axis=-1)
    if n_full < OW:                                 # ragged right window (1-2 cols)
        tail = rowmax[:, :, n_full * KW:].max(axis=-1, keepdims=True)
        full = jnp.concatenate([full, tail], axis=-1)
    return full.reshape(N, C, OH, OW)


class James:
    """JAX/Pallas port of the PyTorch `James` module.

    The original module also constructs maxpool2 (ceil_mode=False), but forward()
    only applies maxpool1 (MaxPool2d(3, ceil_mode=True)); there are no parameters.
    """

    def __call__(self, x):
        return maxpool2d_ceil(x)


def _reference(x):
    """Pure-JAX reference with identical ceil_mode semantics (float inputs)."""
    N, C, H, W = x.shape
    OH = _cdiv(H - KH, SH) + 1
    OW = _cdiv(W - KW, SW) + 1
    H_pad = (OH - 1) * SH + KH
    W_pad = (OW - 1) * SW + KW
    xp = jnp.pad(x, ((0, 0), (0, 0), (0, H_pad - H), (0, W_pad - W)),
                 constant_values=-jnp.inf)
    return xp.reshape(N, C, OH, KH, OW, KW).max(axis=(3, 5))


if __name__ == "__main__":
    key = jax.random.PRNGKey(0)
    model = James()
    fwd = jax.jit(lambda t: model(t))

    # 1) Divisible spatial dims (fused path, single band).
    x1 = jax.random.normal(key, (2, 4, 16, 16), dtype=jnp.float32)
    y1 = jax.block_until_ready(fwd(x1))
    assert y1.shape == (2, 4, 6, 6), y1.shape
    assert jnp.allclose(y1, _reference(x1)), "maxpool mismatch (16x16)"

    # 2) Ragged bottom (17 -> 2-row last window) and ragged right edge (fused path).
    x2 = jax.random.normal(jax.random.PRNGKey(1), (2, 3, 17, 20), dtype=jnp.float32)
    y2 = jax.block_until_ready(fwd(x2))
    assert y2.shape == (2, 3, 6, 7), y2.shape
    assert jnp.allclose(y2, _reference(x2)), "maxpool mismatch (17x20)"

    # 3) Large H -> multi-band grid + pl.when ragged last band (fused path).
    x3 = jax.random.normal(jax.random.PRNGKey(2), (1, 2, 200, 64), dtype=jnp.float32)
    y3 = jax.block_until_ready(fwd(x3))
    assert y3.shape == (1, 2, 67, 22), y3.shape
    assert jnp.allclose(y3, _reference(x3)), "maxpool mismatch (200x64)"

    # 4) Wide W -> fallback two-pass path with ragged right edge.
    x4 = jax.random.normal(jax.random.PRNGKey(3), (1, 2, 9, 602), dtype=jnp.float32)
    y4 = jax.block_until_ready(fwd(x4))
    assert y4.shape == (1, 2, 3, 201), y4.shape
    assert jnp.allclose(y4, _reference(x4)), "maxpool mismatch (9x602)"

    print("KERNEL_OK")
</pallas_src>

<mosaic_0001>
module attributes {stable_mosaic.version = 11 : i64} {
  func.func @kernel(%arg0: i32, %arg1: i32, %arg2: memref<3x16x6xf32, #tpu.memory_space<vmem>>, %arg3: memref<8x16x16xf32, #tpu.memory_space<vmem>>, %arg4: memref<8x6x6xf32, #tpu.memory_space<vmem>>) attributes {dimension_semantics = [#tpu.dimension_semantics<parallel>, #tpu.dimension_semantics<parallel>], iteration_bounds = array<i64: 1, 1>, scalar_prefetch = 0 : i64, scratch_operands = 0 : i64, tpu.core_type = #tpu.core_type<tc>, window_params = [{pipeline_mode = #tpu.pipeline_mode<synchronous>, transform_indices = @transform_0, window_bounds = array<i64: 3, 16, 6>}, {transform_indices = @transform_1, window_bounds = array<i64: 8, 16, 16>}, {transform_indices = @transform_2, window_bounds = array<i64: 8, 6, 6>}]} {
    %c0 = arith.constant 0 : index
    %c0_0 = arith.constant 0 : index
    %c0_1 = arith.constant 0 : index
    %0 = vector.load %arg2[%c0, %c0_0, %c0_1] : memref<3x16x6xf32, #tpu.memory_space<vmem>>, vector<1x16x6xf32>
    %1 = vector.shape_cast %0 : vector<1x16x6xf32> to vector<16x6xf32>
    %c1 = arith.constant 1 : index
    %c0_2 = arith.constant 0 : index
    %c0_3 = arith.constant 0 : index
    %2 = vector.load %arg2[%c1, %c0_2, %c0_3] : memref<3x16x6xf32, #tpu.memory_space<vmem>>, vector<1x16x6xf32>
    %3 = vector.shape_cast %2 : vector<1x16x6xf32> to vector<16x6xf32>
    %c2 = arith.constant 2 : index
    %c0_4 = arith.constant 0 : index
    %c0_5 = arith.constant 0 : index
    %4 = vector.load %arg2[%c2, %c0_4, %c0_5] : memref<3x16x6xf32, #tpu.memory_space<vmem>>, vector<1x16x6xf32>
    %5 = vector.shape_cast %4 : vector<1x16x6xf32> to vector<16x6xf32>
    %6 = tpu.iota {dimensions = array<i32: 1>} : vector<1x6xi32>
    %c5_i32 = arith.constant 5 : i32
    %7 = vector.broadcast %c5_i32 : i32 to vector<1x6xi32>
    %8 = arith.cmpi slt, %6, %7 : vector<1x6xi32>
    %c0_6 = arith.constant 0 : index
    %c0_7 = arith.constant 0 : index
    %c0_8 = arith.constant 0 : index
    %9 = vector.load %arg3[%c0_6, %c0_7, %c0_8] : memref<8x16x16xf32, #tpu.memory_space<vmem>>, vector<8x1x16xf32>
    %10 = vector.shape_cast %9 : vector<8x1x16xf32> to vector<8x16xf32>
    %c0_9 = arith.constant 0 : index
    %c1_10 = arith.constant 1 : index
    %c0_11 = arith.constant 0 : index
    %11 = vector.load %arg3[%c0_9, %c1_10, %c0_11] : memref<8x16x16xf32, #tpu.memory_space<vmem>>, vector<8x1x16xf32>
    %12 = vector.shape_cast %11 : vector<8x1x16xf32> to vector<8x16xf32>
    %13 = arith.maximumf %10, %12 : vector<8x16xf32>
    %c0_12 = arith.constant 0 : index
    %c2_13 = arith.constant 2 : index
    %c0_14 = arith.constant 0 : index
    %14 = vector.load %arg3[%c0_12, %c2_13, %c0_14] : memref<8x16x16xf32, #tpu.memory_space<vmem>>, vector<8x1x16xf32>
    %15 = vector.shape_cast %14 : vector<8x1x16xf32> to vector<8x16xf32>
    %16 = arith.maximumf %13, %15 : vector<8x16xf32>
    %cst = arith.constant dense<0.000000e+00> : vector<8x6xf32>
    %17 = tpu.matmul %16, %1, %cst {dimension_numbers = #tpu.dot_dimension_numbers<[1], [0], [0], [1], [0, 0, 1, 1], [], []>, precision = #tpu.contract_precision<fp32>} : vector<8x16xf32>, vector<16x6xf32>, vector<8x6xf32> -> vector<8x6xf32>
    %cst_15 = arith.constant dense<0.000000e+00> : vector<8x6xf32>
    %18 = tpu.matmul %16, %3, %cst_15 {dimension_numbers = #tpu.dot_dimension_numbers<[1], [0], [0], [1], [0, 0, 1, 1], [], []>, precision = #tpu.contract_precision<fp32>} : vector<8x16xf32>, vector<16x6xf32>, vector<8x6xf32> -> vector<8x6xf32>
    %19 = arith.maximumf %17, %18 : vector<8x6xf32>
    %20 = vector.shape_cast %8 : vector<1x6xi1> to vector<1x6xi1>
    %21 = vector.broadcast %20 : vector<1x6xi1> to vector<8x6xi1>
    %22 = arith.select %21, %19, %17 : vector<8x6xi1>, vector<8x6xf32>
    %cst_16 = arith.constant dense<0.000000e+00> : vector<8x6xf32>
    %23 = tpu.matmul %16, %5, %cst_16 {dimension_numbers = #tpu.dot_dimension_numbers<[1], [0], [0], [1], [0, 0, 1, 1], [], []>, precision = #tpu.contract_precision<fp32>} : vector<8x16xf32>, vector<16x6xf32>, vector<8x6xf32> -> vector<8x6xf32>
    %24 = arith.maximumf %22, %23 : vector<8x6xf32>
    %25 = vector.shape_cast %8 : vector<1x6xi1> to vector<1x6xi1>
    %26 = vector.broadcast %25 : vector<1x6xi1> to vector<8x6xi1>
    %27 = arith.select %26, %24, %22 : vector<8x6xi1>, vector<8x6xf32>
    %c0_17 = arith.constant 0 : index
    %c0_18 = arith.constant 0 : index
    %c0_19 = arith.constant 0 : index
    %28 = vector.load %arg4[%c0_17, %c0_18, %c0_19] : memref<8x6x6xf32, #tpu.memory_space<vmem>>, vector<8x1x6xf32>
    %29 = vector.shape_cast %28 : vector<8x1x6xf32> to vector<8x6xf32>
    %30 = vector.shape_cast %27 : vector<8x6xf32> to vector<8x1x6xf32>
    tpu.vector_store %arg4[%c0_17, %c0_18, %c0_19], %30 {strides = array<i32>} : memref<8x6x6xf32, #tpu.memory_space<vmem>>, vector<8x1x6xf32>,
    %c0_20 = arith.constant 0 : index
    %c3 = arith.constant 3 : index
    %c0_21 = arith.constant 0 : index
    %31 = vector.load %arg3[%c0_20, %c3, %c0_21] : memref<8x16x16xf32, #tpu.memory_space<vmem>>, vector<8x1x16xf32>
    %32 = vector.shape_cast %31 : vector<8x1x16xf32> to vector<8x16xf32>
    %c0_22 = arith.constant 0 : index
    %c4 = arith.constant 4 : index
    %c0_23 = arith.constant 0 : index
    %33 = vector.load %arg3[%c0_22, %c4, %c0_23] : memref<8x16x16xf32, #tpu.memory_space<vmem>>, vector<8x1x16xf32>
    %34 = vector.shape_cast %33 : vector<8x1x16xf32> to vector<8x16xf32>
    %35 = arith.maximumf %32, %34 : vector<8x16xf32>
    %c0_24 = arith.constant 0 : index
    %c5 = arith.constant 5 : index
    %c0_25 = arith.constant 0 : index
    %36 = vector.load %arg3[%c0_24, %c5, %c0_25] : memref<8x16x16xf32, #tpu.memory_space<vmem>>, vector<8x1x16xf32>
    %37 = vector.shape_cast %36 : vector<8x1x16xf32> to vector<8x16xf32>
    %38 = arith.maximumf %35, %37 : vector<8x16xf32>
    %cst_26 = arith.constant dense<0.000000e+00> : vector<8x6xf32>
    %39 = tpu.matmul %38, %1, %cst_26 {dimension_numbers = #tpu.dot_dimension_numbers<[1], [0], [0], [1], [0, 0, 1, 1], [], []>, precision = #tpu.contract_precision<fp32>} : vector<8x16xf32>, vector<16x6xf32>, vector<8x6xf32> -> vector<8x6xf32>
    %cst_27 = arith.constant dense<0.000000e+00> : vector<8x6xf32>
    %40 = tpu.matmul %38, %3, %cst_27 {dimension_numbers = #tpu.dot_dimension_numbers<[1], [0], [0], [1], [0, 0, 1, 1], [], []>, precision = #tpu.contract_precision<fp32>} : vector<8x16xf32>, vector<16x6xf32>, vector<8x6xf32> -> vector<8x6xf32>
    %41 = arith.maximumf %39, %40 : vector<8x6xf32>
    %42 = vector.shape_cast %8 : vector<1x6xi1> to vector<1x6xi1>
    %43 = vector.broadcast %42 : vector<1x6xi1> to vector<8x6xi1>
    %44 = arith.select %43, %41, %39 : vector<8x6xi1>, vector<8x6xf32>
    %cst_28 = arith.constant dense<0.000000e+00> : vector<8x6xf32>
    %45 = tpu.matmul %38, %5, %cst_28 {dimension_numbers = #tpu.dot_dimension_numbers<[1], [0], [0], [1], [0, 0, 1, 1], [], []>, precision = #tpu.contract_precision<fp32>} : vector<8x16xf32>, vector<16x6xf32>, vector<8x6xf32> -> vector<8x6xf32>
    %46 = arith.maximumf %44, %45 : vector<8x6xf32>
    %47 = vector.shape_cast %8 : vector<1x6xi1> to vector<1x6xi1>
    %48 = vector.broadcast %47 : vector<1x6xi1> to vector<8x6xi1>
    %49 = arith.select %48, %46, %44 : vector<8x6xi1>, vector<8x6xf32>
    %c0_29 = arith.constant 0 : index
    %c1_30 = arith.constant 1 : index
    %c0_31 = arith.constant 0 : index
    %50 = vector.load %arg4[%c0_29, %c1_30, %c0_31] : memref<8x6x6xf32, #tpu.memory_space<vmem>>, vector<8x1x6xf32>
    %51 = vector.shape_cast %50 : vector<8x1x6xf32> to vector<8x6xf32>
    %52 = vector.shape_cast %49 : vector<8x6xf32> to vector<8x1x6xf32>
    tpu.vector_store %arg4[%c0_29, %c1_30, %c0_31], %52 {strides = array<i32>} : memref<8x6x6xf32, #tpu.memory_space<vmem>>, vector<8x1x6xf32>,
    %c0_32 = arith.constant 0 : index
    %c6 = arith.constant 6 : index
    %c0_33 = arith.constant 0 : index
    %53 = vector.load %arg3[%c0_32, %c6, %c0_33] : memref<8x16x16xf32, #tpu.memory_space<vmem>>, vector<8x1x16xf32>
    %54 = vector.shape_cast %53 : vector<8x1x16xf32> to vector<8x16xf32>
    %c0_34 = arith.constant 0 : index
    %c7 = arith.constant 7 : index
    %c0_35 = arith.constant 0 : index
    %55 = vector.load %arg3[%c0_34, %c7, %c0_35] : memref<8x16x16xf32, #tpu.memory_space<vmem>>, vector<8x1x16xf32>
    %56 = vector.shape_cast %55 : vector<8x1x16xf32> to vector<8x16xf32>
    %57 = arith.maximumf %54, %56 : vector<8x16xf32>
    %c0_36 = arith.constant 0 : index
    %c8 = arith.constant 8 : index
    %c0_37 = arith.constant 0 : index
    %58 = vector.load %arg3[%c0_36, %c8, %c0_37] : memref<8x16x16xf32, #tpu.memory_space<vmem>>, vector<8x1x16xf32>
    %59 = vector.shape_cast %58 : vector<8x1x16xf32> to vector<8x16xf32>
    %60 = arith.maximumf %57, %59 : vector<8x16xf32>
    %cst_38 = arith.constant dense<0.000000e+00> : vector<8x6xf32>
    %61 = tpu.matmul %60, %1, %cst_38 {dimension_numbers = #tpu.dot_dimension_numbers<[1], [0], [0], [1], [0, 0, 1, 1], [], []>, precision = #tpu.contract_precision<fp32>} : vector<8x16xf32>, vector<16x6xf32>, vector<8x6xf32> -> vector<8x6xf32>
    %cst_39 = arith.constant dense<0.000000e+00> : vector<8x6xf32>
    %62 = tpu.matmul %60, %3, %cst_39 {dimension_numbers = #tpu.dot_dimension_numbers<[1], [0], [0], [1], [0, 0, 1, 1], [], []>, precision = #tpu.contract_precision<fp32>} : vector<8x16xf32>, vector<16x6xf32>, vector<8x6xf32> -> vector<8x6xf32>
    %63 = arith.maximumf %61, %62 : vector<8x6xf32>
    %64 = vector.shape_cast %8 : vector<1x6xi1> to vector<1x6xi1>
    %65 = vector.broadcast %64 : vector<1x6xi1> to vector<8x6xi1>
    %66 = arith.select %65, %63, %61 : vector<8x6xi1>, vector<8x6xf32>
    %cst_40 = arith.constant dense<0.000000e+00> : vector<8x6xf32>
    %67 = tpu.matmul %60, %5, %cst_40 {dimension_numbers = #tpu.dot_dimension_numbers<[1], [0], [0], [1], [0, 0, 1, 1], [], []>, precision = #tpu.contract_precision<fp32>} : vector<8x16xf32>, vector<16x6xf32>, vector<8x6xf32> -> vector<8x6xf32>
    %68 = arith.maximumf %66, %67 : vector<8x6xf32>
    %69 = vector.shape_cast %8 : vector<1x6xi1> to vector<1x6xi1>
    %70 = vector.broadcast %69 : vector<1x6xi1> to vector<8x6xi1>
    %71 = arith.select %70, %68, %66 : vector<8x6xi1>, vector<8x6xf32>
    %c0_41 = arith.constant 0 : index
    %c2_42 = arith.constant 2 : index
    %c0_43 = arith.constant 0 : index
    %72 = vector.load %arg4[%c0_41, %c2_42, %c0_43] : memref<8x6x6xf32, #tpu.memory_space<vmem>>, vector<8x1x6xf32>
    %73 = vector.shape_cast %72 : vector<8x1x6xf32> to vector<8x6xf32>
    %74 = vector.shape_cast %71 : vector<8x6xf32> to vector<8x1x6xf32>
    tpu.vector_store %arg4[%c0_41, %c2_42, %c0_43], %74 {strides = array<i32>} : memref<8x6x6xf32, #tpu.memory_space<vmem>>, vector<8x1x6xf32>,
    %c0_44 = arith.constant 0 : index
    %c9 = arith.constant 9 : index
    %c0_45 = arith.constant 0 : index
    %75 = vector.load %arg3[%c0_44, %c9, %c0_45] : memref<8x16x16xf32, #tpu.memory_space<vmem>>, vector<8x1x16xf32>
    %76 = vector.shape_cast %75 : vector<8x1x16xf32> to vector<8x16xf32>
    %c0_46 = arith.constant 0 : index
    %c10 = arith.constant 10 : index
    %c0_47 = arith.constant 0 : index
    %77 = vector.load %arg3[%c0_46, %c10, %c0_47] : memref<8x16x16xf32, #tpu.memory_space<vmem>>, vector<8x1x16xf32>
    %78 = vector.shape_cast %77 : vector<8x1x16xf32> to vector<8x16xf32>
    %79 = arith.maximumf %76, %78 : vector<8x16xf32>
    %c0_48 = arith.constant 0 : index
    %c11 = arith.constant 11 : index
    %c0_49 = arith.constant 0 : index
    %80 = vector.load %arg3[%c0_48, %c11, %c0_49] : memref<8x16x16xf32, #tpu.memory_space<vmem>>, vector<8x1x16xf32>
    %81 = vector.shape_cast %80 : vector<8x1x16xf32> to vector<8x16xf32>
    %82 = arith.maximumf %79, %81 : vector<8x16xf32>
    %cst_50 = arith.constant dense<0.000000e+00> : vector<8x6xf32>
    %83 = tpu.matmul %82, %1, %cst_50 {dimension_numbers = #tpu.dot_dimension_numbers<[1], [0], [0], [1], [0, 0, 1, 1], [], []>, precision = #tpu.contract_precision<fp32>} : vector<8x16xf32>, vector<16x6xf32>, vector<8x6xf32> -> vector<8x6xf32>
    %cst_51 = arith.constant dense<0.000000e+00> : vector<8x6xf32>
    %84 = tpu.matmul %82, %3, %cst_51 {dimension_numbers = #tpu.dot_dimension_numbers<[1], [0], [0], [1], [0, 0, 1, 1], [], []>, precision = #tpu.contract_precision<fp32>} : vector<8x16xf32>, vector<16x6xf32>, vector<8x6xf32> -> vector<8x6xf32>
    %85 = arith.maximumf %83, %84 : vector<8x6xf32>
    %86 = vector.shape_cast %8 : vector<1x6xi1> to vector<1x6xi1>
    %87 = vector.broadcast %86 : vector<1x6xi1> to vector<8x6xi1>
    %88 = arith.select %87, %85, %83 : vector<8x6xi1>, vector<8x6xf32>
    %cst_52 = arith.constant dense<0.000000e+00> : vector<8x6xf32>
    %89 = tpu.matmul %82, %5, %cst_52 {dimension_numbers = #tpu.dot_dimension_numbers<[1], [0], [0], [1], [0, 0, 1, 1], [], []>, precision = #tpu.contract_precision<fp32>} : vector<8x16xf32>, vector<16x6xf32>, vector<8x6xf32> -> vector<8x6xf32>
    %90 = arith.maximumf %88, %89 : vector<8x6xf32>
    %91 = vector.shape_cast %8 : vector<1x6xi1> to vector<1x6xi1>
    %92 = vector.broadcast %91 : vector<1x6xi1> to vector<8x6xi1>
    %93 = arith.select %92, %90, %88 : vector<8x6xi1>, vector<8x6xf32>
    %c0_53 = arith.constant 0 : index
    %c3_54 = arith.constant 3 : index
    %c0_55 = arith.constant 0 : index
    %94 = vector.load %arg4[%c0_53, %c3_54, %c0_55] : memref<8x6x6xf32, #tpu.memory_space<vmem>>, vector<8x1x6xf32>
    %95 = vector.shape_cast %94 : vector<8x1x6xf32> to vector<8x6xf32>
    %96 = vector.shape_cast %93 : vector<8x6xf32> to vector<8x1x6xf32>
    tpu.vector_store %arg4[%c0_53, %c3_54, %c0_55], %96 {strides = array<i32>} : memref<8x6x6xf32, #tpu.memory_space<vmem>>, vector<8x1x6xf32>,
    %c0_56 = arith.constant 0 : index
    %c12 = arith.constant 12 : index
    %c0_57 = arith.constant 0 : index
    %97 = vector.load %arg3[%c0_56, %c12, %c0_57] : memref<8x16x16xf32, #tpu.memory_space<vmem>>, vector<8x1x16xf32>
    %98 = vector.shape_cast %97 : vector<8x1x16xf32> to vector<8x16xf32>
    %c0_58 = arith.constant 0 : index
    %c13 = arith.constant 13 : index
    %c0_59 = arith.constant 0 : index
    %99 = vector.load %arg3[%c0_58, %c13, %c0_59] : memref<8x16x16xf32, #tpu.memory_space<vmem>>, vector<8x1x16xf32>
    %100 = vector.shape_cast %99 : vector<8x1x16xf32> to vector<8x16xf32>
    %101 = arith.maximumf %98, %100 : vector<8x16xf32>
    %c0_60 = arith.constant 0 : index
    %c14 = arith.constant 14 : index
    %c0_61 = arith.constant 0 : index
    %102 = vector.load %arg3[%c0_60, %c14, %c0_61] : memref<8x16x16xf32, #tpu.memory_space<vmem>>, vector<8x1x16xf32>
    %103 = vector.shape_cast %102 : vector<8x1x16xf32> to vector<8x16xf32>
    %104 = arith.maximumf %101, %103 : vector<8x16xf32>
    %cst_62 = arith.constant dense<0.000000e+00> : vector<8x6xf32>
    %105 = tpu.matmul %104, %1, %cst_62 {dimension_numbers = #tpu.dot_dimension_numbers<[1], [0], [0], [1], [0, 0, 1, 1], [], []>, precision = #tpu.contract_precision<fp32>} : vector<8x16xf32>, vector<16x6xf32>, vector<8x6xf32> -> vector<8x6xf32>
    %cst_63 = arith.constant dense<0.000000e+00> : vector<8x6xf32>
    %106 = tpu.matmul %104, %3, %cst_63 {dimension_numbers = #tpu.dot_dimension_numbers<[1], [0], [0], [1], [0, 0, 1, 1], [], []>, precision = #tpu.contract_precision<fp32>} : vector<8x16xf32>, vector<16x6xf32>, vector<8x6xf32> -> vector<8x6xf32>
    %107 = arith.maximumf %105, %106 : vector<8x6xf32>
    %108 = vector.shape_cast %8 : vector<1x6xi1> to vector<1x6xi1>
    %109 = vector.broadcast %108 : vector<1x6xi1> to vector<8x6xi1>
    %110 = arith.select %109, %107, %105 : vector<8x6xi1>, vector<8x6xf32>
    %cst_64 = arith.constant dense<0.000000e+00> : vector<8x6xf32>
    %111 = tpu.matmul %104, %5, %cst_64 {dimension_numbers = #tpu.dot_dimension_numbers<[1], [0], [0], [1], [0, 0, 1, 1], [], []>, precision = #tpu.contract_precision<fp32>} : vector<8x16xf32>, vector<16x6xf32>, vector<8x6xf32> -> vector<8x6xf32>
    %112 = arith.maximumf %110, %111 : vector<8x6xf32>
    %113 = vector.shape_cast %8 : vector<1x6xi1> to vector<1x6xi1>
    %114 = vector.broadcast %113 : vector<1x6xi1> to vector<8x6xi1>
    %115 = arith.select %114, %112, %110 : vector<8x6xi1>, vector<8x6xf32>
    %c0_65 = arith.constant 0 : index
    %c4_66 = arith.constant 4 : index
    %c0_67 = arith.constant 0 : index
    %116 = vector.load %arg4[%c0_65, %c4_66, %c0_67] : memref<8x6x6xf32, #tpu.memory_space<vmem>>, vector<8x1x6xf32>
    %117 = vector.shape_cast %116 : vector<8x1x6xf32> to vector<8x6xf32>
    %118 = vector.shape_cast %115 : vector<8x6xf32> to vector<8x1x6xf32>
    tpu.vector_store %arg4[%c0_65, %c4_66, %c0_67], %118 {strides = array<i32>} : memref<8x6x6xf32, #tpu.memory_space<vmem>>, vector<8x1x6xf32>,
    %c0_68 = arith.constant 0 : index
    %c15 = arith.constant 15 : index
    %c0_69 = arith.constant 0 : index
    %119 = vector.load %arg3[%c0_68, %c15, %c0_69] : memref<8x16x16xf32, #tpu.memory_space<vmem>>, vector<8x1x16xf32>
    %120 = vector.shape_cast %119 : vector<8x1x16xf32> to vector<8x16xf32>
    %cst_70 = arith.constant dense<0.000000e+00> : vector<8x6xf32>
    %121 = tpu.matmul %120, %1, %cst_70 {dimension_numbers = #tpu.dot_dimension_numbers<[1], [0], [0], [1], [0, 0, 1, 1], [], []>, precision = #tpu.contract_precision<fp32>} : vector<8x16xf32>, vector<16x6xf32>, vector<8x6xf32> -> vector<8x6xf32>
    %cst_71 = arith.constant dense<0.000000e+00> : vector<8x6xf32>
    %122 = tpu.matmul %120, %3, %cst_71 {dimension_numbers = #tpu.dot_dimension_numbers<[1], [0], [0], [1], [0, 0, 1, 1], [], []>, precision = #tpu.contract_precision<fp32>} : vector<8x16xf32>, vector<16x6xf32>, vector<8x6xf32> -> vector<8x6xf32>
    %123 = arith.maximumf %121, %122 : vector<8x6xf32>
    %124 = vector.shape_cast %8 : vector<1x6xi1> to vector<1x6xi1>
    %125 = vector.broadcast %124 : vector<1x6xi1> to vector<8x6xi1>
    %126 = arith.select %125, %123, %121 : vector<8x6xi1>, vector<8x6xf32>
    %cst_72 = arith.constant dense<0.000000e+00> : vector<8x6xf32>
    %127 = tpu.matmul %120, %5, %cst_72 {dimension_numbers = #tpu.dot_dimension_numbers<[1], [0], [0], [1], [0, 0, 1, 1], [], []>, precision = #tpu.contract_precision<fp32>} : vector<8x16xf32>, vector<16x6xf32>, vector<8x6xf32> -> vector<8x6xf32>
    %128 = arith.maximumf %126, %127 : vector<8x6xf32>
    %129 = vector.shape_cast %8 : vector<1x6xi1> to vector<1x6xi1>
    %130 = vector.broadcast %129 : vector<1x6xi1> to vector<8x6xi1>
    %131 = arith.select %130, %128, %126 : vector<8x6xi1>, vector<8x6xf32>
    %c0_73 = arith.constant 0 : index
    %c5_74 = arith.constant 5 : index
    %c0_75 = arith.constant 0 : index
    %132 = vector.load %arg4[%c0_73, %c5_74, %c0_75] : memref<8x6x6xf32, #tpu.memory_space<vmem>>, vector<8x1x6xf32>
    %133 = vector.shape_cast %132 : vector<8x1x6xf32> to vector<8x6xf32>
    %134 = vector.shape_cast %131 : vector<8x6xf32> to vector<8x1x6xf32>
    tpu.vector_store %arg4[%c0_73, %c5_74, %c0_75], %134 {strides = array<i32>} : memref<8x6x6xf32, #tpu.memory_space<vmem>>, vector<8x1x6xf32>,
    return
  }
  func.func @transform_0(%arg0: i32, %arg1: i32) -> (i32, i32, i32) {
    %c0_i32 = arith.constant 0 : i32
    %c0_i32_0 = arith.constant 0 : i32
    %c0_i32_1 = arith.constant 0 : i32
    %c0_i32_2 = arith.constant 0 : i32
    return %c0_i32, %c0_i32_0, %c0_i32_1 : i32, i32, i32
  }
  func.func @transform_1(%arg0: i32, %arg1: i32) -> (i32, i32, i32) {
    %c0_i32 = arith.constant 0 : i32
    %c0_i32_0 = arith.constant 0 : i32
    return %arg0, %arg1, %c0_i32 : i32, i32, i32
  }
  func.func @transform_2(%arg0: i32, %arg1: i32) -> (i32, i32, i32) {
    %c0_i32 = arith.constant 0 : i32
    %c0_i32_0 = arith.constant 0 : i32
    return %arg0, %arg1, %c0_i32 : i32, i32, i32
  }
}

</mosaic_0001>

<llo_original>
// kernel: _lambda_.1
$region0: #{_lambda_.1}
  #allocation0 [shape = 'u32[]', space=smem, size = 0x4, offset = 0x4, fixed_abs, tag = 'smem constant byte address 0x4 - core index']
  #allocation1 [shape = 'u32[144,128]{1,0:T(1,128)}', space=vmem, size = 0x12000, scoped, tag = 'internal scratch']
  %s0 = inlined_call_operand.vmem [shape: f32[3,16,6], index: 0, kind: input, shape index: {}]
  %s1 = inlined_call_operand.hbm [shape: f32[8,16,16], index: 1, kind: input, shape index: {}]
  %s2 = inlined_call_operand.vmem [shape: f32[8,6,6], index: 2, kind: output, shape index: {}]
  %s3 = sld [smem:[#allocation0]]
  $region22: #{_lambda_.1} parent=0
    _
  %s5 = ssub.s32 1, %s3
  %s6 = scalar_select 0, %s5, %s3
  $region1: #{_lambda_.1} parent=0
    #allocation2 [shape = 'u8[65536]{0}', space=vmem, size = 0x10000, scoped, tag = 'input window, operand 1, single buffered']
    #allocation3 [shape = 's32[1]{0}', space=sflag, size = 0x4, scoped, tag = 'scoped memory for _lambda_.1']
    %7 = vsyncpa [#allocation3], 0
    // Predicated region
    $region2: #{_lambda_.1} parent=1 // pred_check
      _
    $region3: #{_lambda_.1} parent=1 // pred_check_branch
      %9 = sbr.rel (0) target = $region5
    $region4: #{_lambda_.1} parent=1 // pred_region
      _
    $region5: #{_lambda_.1} parent=1 // pred_fallthru
      _
    // Predicated region
    $region6: #{_lambda_.1} parent=1 // pred_check
      _
    $region7: #{_lambda_.1} parent=1 // pred_check_branch
      %11 = sbr.rel (0) target = $region9
    $region8: #{_lambda_.1} parent=1 // pred_region
      %s13 = ssub.s32 2048, 2048
      %14 = vsyncadd [#allocation3], %s13
      %s15 = sshll.u32 [#allocation2], 4
      %s16 = int_to_ptr.vmem [resolvable:$true] %s15
      %21 = dma.hbm_to_vmem [thread:$0]  %s1, 2048, %s16, [#allocation3], 128, 128, 8
    $region9: #{_lambda_.1} parent=1 // pred_fallthru
      _
    // Predicated region
    $region10: #{_lambda_.1} parent=1 // pred_check
      _
    $region11: #{_lambda_.1} parent=1 // pred_check_branch
      %23 = sbr.rel (0) target = $region13
    $region12: #{_lambda_.1} parent=1 // pred_region
      %24 = dma.done [#allocation3], 2048
    $region13: #{_lambda_.1} parent=1 // pred_fallthru
      _
    %v25 = vld [vmem:[%s0] sm:$0xff]
    %v26 = vld [vmem:[%s0 + $0x8] sm:$0xff]
    %s27 = scalar_lea.vmem %s0, 16
    %v28 = vld [vmem:[%s27] sm:$0xff]
    %v29 = vld [vmem:[%s27 + $0x8] sm:$0xff]
    %s30 = scalar_lea.vmem %s0, 32
    %v31 = vld [vmem:[%s30] sm:$0xff]
    %v32 = vld [vmem:[%s30 + $0x8] sm:$0xff]
    %v33 = vlaneseq
    %v34 = vand.u32 %v33, 127
    %vm35 = vcmp.lt.s32.totalorder %v34, 5
    %v36 = vld [vmem:[#allocation2] sm:$0x1]
    %v37 = vld [vmem:[#allocation2 + $0x10] sm:$0x1]
    %v38 = vld [vmem:[#allocation2 + $0x20] sm:$0x1]
    %v39 = vld [vmem:[#allocation2 + $0x30] sm:$0x1]
    %v40 = vld [vmem:[#allocation2 + $0x40] sm:$0x1]
    %v41 = vld [vmem:[#allocation2 + $0x50] sm:$0x1]
    %v42 = vld [vmem:[#allocation2 + $0x60] sm:$0x1]
    %v43 = vld [vmem:[#allocation2 + $0x70] sm:$0x1]
    %v44 = vld [vmem:[#allocation2 + $0x1] sm:$0x1]
    %v45 = vld [vmem:[#allocation2 + $0x11] sm:$0x1]
    %v46 = vld [vmem:[#allocation2 + $0x21] sm:$0x1]
    %v47 = vld [vmem:[#allocation2 + $0x31] sm:$0x1]
    %v48 = vld [vmem:[#allocation2 + $0x41] sm:$0x1]
    %v49 = vld [vmem:[#allocation2 + $0x51] sm:$0x1]
    %v50 = vld [vmem:[#allocation2 + $0x61] sm:$0x1]
    %v51 = vld [vmem:[#allocation2 + $0x71] sm:$0x1]
    %v52 = vmax.f32 %v36, %v44
    %v53 = vmax.f32 %v37, %v45
    %v54 = vmax.f32 %v38, %v46
    %v55 = vmax.f32 %v39, %v47
    %v56 = vmax.f32 %v40, %v48
    %v57 = vmax.f32 %v41, %v49
    %v58 = vmax.f32 %v42, %v50
    %v59 = vmax.f32 %v43, %v51
    %v60 = vld [vmem:[#allocation2 + $0x2] sm:$0x1]
    %v61 = vld [vmem:[#allocation2 + $0x12] sm:$0x1]
    %v62 = vld [vmem:[#allocation2 + $0x22] sm:$0x1]
    %v63 = vld [vmem:[#allocation2 + $0x32] sm:$0x1]
    %v64 = vld [vmem:[#allocation2 + $0x42] sm:$0x1]
    %v65 = vld [vmem:[#allocation2 + $0x52] sm:$0x1]
    %v66 = vld [vmem:[#allocation2 + $0x62] sm:$0x1]
    %v67 = vld [vmem:[#allocation2 + $0x72] sm:$0x1]
    %v68 = vmax.f32 %v52, %v60
    %v69 = vmax.f32 %v53, %v61
    %v70 = vmax.f32 %v54, %v62
    %v71 = vmax.f32 %v55, %v63
    %v72 = vmax.f32 %v56, %v64
    %v73 = vmax.f32 %v57, %v65
    %v74 = vmax.f32 %v58, %v66
    %v75 = vmax.f32 %v59, %v67
    %v84 = vrot.slane %v69, 7
    %vm85 = vcmask 1041409
    %v86 = vsel %vm85, %v84, %v68
    %v87 = vrot.slane %v70, 6
    %vm88 = vcmask 1042434
    %v89 = vsel %vm88, %v87, %v86
    %v90 = vrot.slane %v71, 5
    %vm91 = vcmask 1043459
    %v92 = vsel %vm91, %v90, %v89
    %v93 = vrot.slane %v72, 4
    %vm94 = vcmask 1044484
    %v95 = vsel %vm94, %v93, %v92
    %v96 = vrot.slane %v73, 3
    %vm97 = vcmask 1045509
    %v98 = vsel %vm97, %v96, %v95
    %v99 = vrot.slane %v74, 2
    %vm100 = vcmask 1046534
    %v101 = vsel %vm100, %v99, %v98
    %v102 = vrot.slane %v75, 1
    %vm103 = vcmask 1047559
    %v104 = vsel %vm103, %v102, %v101
    %vm105 = vcmask 130048
    %v106 = vsel %vm105, %v104, 0
    %108 = vmatprep.subr.mxu0 0.0
    %v109 = vand.u32 %v25, 4294901760
    %110 = vmatpush1.msra.mxu0 %v109
    %111 = vmatprep.subr.mxu0 0.0
    %v112 = vand.u32 %v26, 4294901760
    %113 = vmatpush1.msra.mxu0 %v112
    %114 = vmatprep.subr.mxu0 0.0
    %115 = vmatpush1.msra.mxu0 0.0
    %116 = vmatprep.subr.mxu0 0.0
    %117 = vmatpush1.msra.mxu0 0.0
    %118 = vmatprep.subr.mxu0 0.0
    %119 = vmatpush1.msra.mxu0 0.0
    %120 = vmatprep.subr.mxu0 0.0
    %121 = vmatpush1.msra.mxu0 0.0
    %122 = vmatprep.subr.mxu0 0.0
    %123 = vmatpush1.msra.mxu0 0.0
    %124 = vmatprep.subr.mxu0 0.0
    %125 = vmatpush1.msra.mxu0 0.0
    %126 = vmatprep.subr.mxu0 0.0
    %127 = vmatpush1.msra.mxu0 0.0
    %128 = vmatprep.subr.mxu0 0.0
    %129 = vmatpush1.msra.mxu0 0.0
    %130 = vmatprep.subr.mxu0 0.0
    %131 = vmatpush1.msra.mxu0 0.0
    %132 = vmatprep.subr.mxu0 0.0
    %133 = vmatpush1.msra.mxu0 0.0
    %134 = vmatprep.subr.mxu0 0.0
    %135 = vmatpush1.msra.mxu0 0.0
    %136 = vmatprep.subr.mxu0 0.0
    %137 = vmatpush1.msra.mxu0 0.0
    %138 = vmatprep.subr.mxu0 0.0
    %139 = vmatpush1.msra.mxu0 0.0
    %140 = vmatprep.subr.mxu0 0.0
    %141 = vmatpush1.msra.mxu0 0.0
    %142 = vmatprep.subr.mxu0 0.0
    %143 = vmatpush1.msra.mxu0 0.0
    %144 = vmatprep.subr.mxu0 0.0
    %145 = vmatpush1.msra.mxu0 0.0
    %146 = vmatprep.subr.mxu0 0.0
    %147 = vmatpush1.msra.mxu0 0.0
    %148 = vmatprep.subr.mxu0 0.0
    %149 = vmatpush1.msra.mxu0 0.0
    %150 = vmatprep.subr.mxu0 0.0
    %151 = vmatpush1.msra.mxu0 0.0
    %152 = vmatprep.subr.mxu0 0.0
    %153 = vmatpush1.msra.mxu0 0.0
    %154 = vmatprep.subr.mxu0 0.0
    %155 = vmatpush1.msra.mxu0 0.0
    %156 = vmatprep.subr.mxu0 0.0
    %157 = vmatpush1.msra.mxu0 0.0
    %158 = vmatprep.subr.mxu0 0.0
    %159 = vmatpush1.msra.mxu0 0.0
    %160 = vmatprep.subr.mxu0 0.0
    %161 = vmatpush1.msra.mxu0 0.0
    %162 = vmatprep.subr.mxu0 0.0
    %163 = vmatpush1.msra.mxu0 0.0
    %164 = vmatprep.subr.mxu0 0.0
    %165 = vmatpush1.msra.mxu0 0.0
    %166 = vmatprep.subr.mxu0 0.0
    %167 = vmatpush1.msra.mxu0 0.0
    %168 = vmatprep.subr.mxu0 0.0
    %169 = vmatpush1.msra.mxu0 0.0
    %170 = vmatprep.subr.mxu0 0.0
    %171 = vmatpush1.msra.mxu0 0.0
    %172 = vmatprep.subr.mxu0 0.0
    %173 = vmatpush1.msra.mxu0 0.0
    %174 = vmatprep.mubr.f32.mxu0 0.0
    %v175 = vand.u32 %v106, 4294901760
    %v176 = vsub.f32 %v106, %v175
    %v177 = vand.u32 %v176, 4294901760
    %v178 = vsub.f32 %v176, %v177
    %v179 = vand.u32 %v178, 4294901760
    %180 = vmatmul.mubr.f32.gmra.mrb[0].mxu0 %v179
    %v181 = vpop.f32.mrb[0].mxu0
    %v182 = vadd.f32 0.0, %v181
    %v183 = vpop.f32.mrb[0].mxu0
    %184 = vdwg.mxu0
    %185 = vmatprep.subr.mxu0 0.0
    %v186 = vand.u32 %v25, 4294901760
    %v187 = vsub.f32 %v25, %v186
    %v188 = vand.u32 %v187, 4294901760
    %v189 = vsub.f32 %v187, %v188
    %v190 = vand.u32 %v189, 4294901760
    %191 = vmatpush1.msra.mxu0 %v190
    %192 = vmatprep.subr.mxu0 0.0
    %v193 = vand.u32 %v26, 4294901760
    %v194 = vsub.f32 %v26, %v193
    %v195 = vand.u32 %v194, 4294901760
    %v196 = vsub.f32 %v194, %v195
    %v197 = vand.u32 %v196, 4294901760
    %198 = vmatpush1.msra.mxu0 %v197
    %199 = vmatprep.subr.mxu0 0.0
    %200 = vmatpush1.msra.mxu0 0.0
    %201 = vmatprep.subr.mxu0 0.0
    %202 = vmatpush1.msra.mxu0 0.0
    %203 = vmatprep.subr.mxu0 0.0
    %204 = vmatpush1.msra.mxu0 0.0
    %205 = vmatprep.subr.mxu0 0.0
    %206 = vmatpush1.msra.mxu0 0.0
    %207 = vmatprep.subr.mxu0 0.0
    %208 = vmatpush1.msra.mxu0 0.0
    %209 = vmatprep.subr.mxu0 0.0
    %210 = vmatpush1.msra.mxu0 0.0
    %211 = vmatprep.subr.mxu0 0.0
    %212 = vmatpush1.msra.mxu0 0.0
    %213 = vmatprep.subr.mxu0 0.0
    %214 = vmatpush1.msra.mxu0 0.0
    %215 = vmatprep.subr.mxu0 0.0
    %216 = vmatpush1.msra.mxu0 0.0
    %217 = vmatprep.subr.mxu0 0.0
    %218 = vmatpush1.msra.mxu0 0.0
    %219 = vmatprep.subr.mxu0 0.0
    %220 = vmatpush1.msra.mxu0 0.0
    %221 = vmatprep.subr.mxu0 0.0
    %222 = vmatpush1.msra.mxu0 0.0
    %223 = vmatprep.subr.mxu0 0.0
    %224 = vmatpush1.msra.mxu0 0.0
    %225 = vmatprep.subr.mxu0 0.0
    %226 = vmatpush1.msra.mxu0 0.0
    %227 = vmatprep.subr.mxu0 0.0
    %228 = vmatpush1.msra.mxu0 0.0
    %229 = vmatprep.subr.mxu0 0.0
    %230 = vmatpush1.msra.mxu0 0.0
    %231 = vmatprep.subr.mxu0 0.0
    %232 = vmatpush1.msra.mxu0 0.0
    %233 = vmatprep.subr.mxu0 0.0
    %234 = vmatpush1.msra.mxu0 0.0
    %235 = vmatprep.subr.mxu0 0.0
    %236 = vmatpush1.msra.mxu0 0.0
    %237 = vmatprep.subr.mxu0 0.0
    %238 = vmatpush1.msra.mxu0 0.0
    %239 = vmatprep.subr.mxu0 0.0
    %240 = vmatpush1.msra.mxu0 0.0
    %241 = vmatprep.subr.mxu0 0.0
    %242 = vmatpush1.msra.mxu0 0.0
    %243 = vmatprep.subr.mxu0 0.0
    %244 = vmatpush1.msra.mxu0 0.0
    %245 = vmatprep.subr.mxu0 0.0
    %246 = vmatpush1.msra.mxu0 0.0
    %247 = vmatprep.subr.mxu0 0.0
    %248 = vmatpush1.msra.mxu0 0.0
    %249 = vmatprep.subr.mxu0 0.0
    %250 = vmatpush1.msra.mxu0 0.0
    %251 = vmatprep.subr.mxu0 0.0
    %252 = vmatpush1.msra.mxu0 0.0
    %253 = vmatprep.subr.mxu0 0.0
    %254 = vmatpush1.msra.mxu0 0.0
    %255 = vmatprep.subr.mxu0 0.0
    %256 = vmatpush1.msra.mxu0 0.0
    %257 = vmatprep.subr.mxu0 0.0
    %258 = vmatpush1.msra.mxu0 0.0
    %259 = vmatprep.mubr.f32.mxu0 0.0
    %v260 = vand.u32 %v106, 4294901760
    %261 = vmatmul.mubr.f32.gmra.mrb[0].mxu0 %v260
    %v262 = vpop.f32.mrb[0].mxu0
    %v263 = vadd.f32 %v182, %v262
    %v264 = vpop.f32.mrb[0].mxu0
    %265 = vdwg.mxu0
    %266 = vmatprep.subr.mxu0 0.0
    %v267 = vand.u32 %v25, 4294901760
    %v268 = vsub.f32 %v25, %v267
    %269 = vmatpush1.msra.mxu0 %v268
    %270 = vmatprep.subr.mxu0 0.0
    %v271 = vand.u32 %v26, 4294901760
    %v272 = vsub.f32 %v26, %v271
    %273 = vmatpush1.msra.mxu0 %v272
    %274 = vmatprep.subr.mxu0 0.0
    %275 = vmatpush1.msra.mxu0 0.0
    %276 = vmatprep.subr.mxu0 0.0
    %277 = vmatpush1.msra.mxu0 0.0
    %278 = vmatprep.subr.mxu0 0.0
    %279 = vmatpush1.msra.mxu0 0.0
    %280 = vmatprep.subr.mxu0 0.0
    %281 = vmatpush1.msra.mxu0 0.0
    %282 = vmatprep.subr.mxu0 0.0
    %283 = vmatpush1.msra.mxu0 0.0
    %284 = vmatprep.subr.mxu0 0.0
    %285 = vmatpush1.msra.mxu0 0.0
    %286 = vmatprep.subr.mxu0 0.0
    %287 = vmatpush1.msra.mxu0 0.0
    %288 = vmatprep.subr.mxu0 0.0
    %289 = vmatpush1.msra.mxu0 0.0
    %290 = vmatprep.subr.mxu0 0.0
    %291 = vmatpush1.msra.mxu0 0.0
    %292 = vmatprep.subr.mxu0 0.0
    %293 = vmatpush1.msra.mxu0 0.0
    %294 = vmatprep.subr.mxu0 0.0
    %295 = vmatpush1.msra.mxu0 0.0
    %296 = vmatprep.subr.mxu0 0.0
    %297 = vmatpush1.msra.mxu0 0.0
    %298 = vmatprep.subr.mxu0 0.0
    %299 = vmatpush1.msra.mxu0 0.0
    %300 = vmatprep.subr.mxu0 0.0
    %301 = vmatpush1.msra.mxu0 0.0
    %302 = vmatprep.subr.mxu0 0.0
    %303 = vmatpush1.msra.mxu0 0.0
    %304 = vmatprep.subr.mxu0 0.0
    %305 = vmatpush1.msra.mxu0 0.0
    %306 = vmatprep.subr.mxu0 0.0
    %307 = vmatpush1.msra.mxu0 0.0
    %308 = vmatprep.subr.mxu0 0.0
    %309 = vmatpush1.msra.mxu0 0.0
    %310 = vmatprep.subr.mxu0 0.0
    %311 = vmatpush1.msra.mxu0 0.0
    %312 = vmatprep.subr.mxu0 0.0
    %313 = vmatpush1.msra.mxu0 0.0
    %314 = vmatprep.subr.mxu0 0.0
    %315 = vmatpush1.msra.mxu0 0.0
    %316 = vmatprep.subr.mxu0 0.0
    %317 = vmatpush1.msra.mxu0 0.0
    %318 = vmatprep.subr.mxu0 0.0
    %319 = vmatpush1.msra.mxu0 0.0
    %320 = vmatprep.subr.mxu0 0.0
    %321 = vmatpush1.msra.mxu0 0.0
    %322 = vmatprep.subr.mxu0 0.0
    %323 = vmatpush1.msra.mxu0 0.0
    %324 = vmatprep.subr.mxu0 0.0
    %325 = vmatpush1.msra.mxu0 0.0
    %326 = vmatprep.subr.mxu0 0.0
    %327 = vmatpush1.msra.mxu0 0.0
    %328 = vmatprep.subr.mxu0 0.0
    %329 = vmatpush1.msra.mxu0 0.0
    %330 = vmatprep.subr.mxu0 0.0
    %331 = vmatpush1.msra.mxu0 0.0
    %332 = vmatprep.subr.mxu0 0.0
    %333 = vmatpush1.msra.mxu0 0.0
    %334 = vmatprep.mubr.f32.mxu0 0.0
    %v335 = vand.u32 %v106, 4294901760
    %v336 = vsub.f32 %v106, %v335
    %337 = vmatmul.mubr.f32.gmra.mrb[0].mxu0 %v336
    %v338 = vpop.f32.mrb[0].mxu0
    %v339 = vadd.f32 %v263, %v338
    %v340 = vpop.f32.mrb[0].mxu0
    %341 = vdwg.mxu0
    %342 = vmatprep.subr.mxu0 0.0
    %v343 = vand.u32 %v25, 4294901760
    %344 = vmatpush1.msra.mxu0 %v343
    %345 = vmatprep.subr.mxu0 0.0
    %v346 = vand.u32 %v26, 4294901760
    %347 = vmatpush1.msra.mxu0 %v346
    %348 = vmatprep.subr.mxu0 0.0
    %349 = vmatpush1.msra.mxu0 0.0
    %350 = vmatprep.subr.mxu0 0.0
    %351 = vmatpush1.msra.mxu0 0.0
    %352 = vmatprep.subr.mxu0 0.0
    %353 = vmatpush1.msra.mxu0 0.0
    %354 = vmatprep.subr.mxu0 0.0
    %355 = vmatpush1.msra.mxu0 0.0
    %356 = vmatprep.subr.mxu0 0.0
    %357 = vmatpush1.msra.mxu0 0.0
    %358 = vmatprep.subr.mxu0 0.0
    %359 = vmatpush1.msra.mxu0 0.0
    %360 = vmatprep.subr.mxu0 0.0
    %361 = vmatpush1.msra.mxu0 0.0
    %362 = vmatprep.subr.mxu0 0.0
    %363 = vmatpush1.msra.mxu0 0.0
    %364 = vmatprep.subr.mxu0 0.0
    %365 = vmatpush1.msra.mxu0 0.0
    %366 = vmatprep.subr.mxu0 0.0
    %367 = vmatpush1.msra.mxu0 0.0
    %368 = vmatprep.subr.mxu0 0.0
    %369 = vmatpush1.msra.mxu0 0.0
    %370 = vmatprep.subr.mxu0 0.0
    %371 = vmatpush1.msra.mxu0 0.0
    %372 = vmatprep.subr.mxu0 0.0
    %373 = vmatpush1.msra.mxu0 0.0
    %374 = vmatprep.subr.mxu0 0.0
    %375 = vmatpush1.msra.mxu0 0.0
    %376 = vmatprep.subr.mxu0 0.0
    %377 = vmatpush1.msra.mxu0 0.0
    %378 = vmatprep.subr.mxu0 0.0
    %379 = vmatpush1.msra.mxu0 0.0
    %380 = vmatprep.subr.mxu0 0.0
    %381 = vmatpush1.msra.mxu0 0.0
    %382 = vmatprep.subr.mxu0 0.0
    %383 = vmatpush1.msra.mxu0 0.0
    %384 = vmatprep.subr.mxu0 0.0
    %385 = vmatpush1.msra.mxu0 0.0
    %386 = vmatprep.subr.mxu0 0.0
    %387 = vmatpush1.msra.mxu0 0.0
    %388 = vmatprep.subr.mxu0 0.0
    %389 = vmatpush1.msra.mxu0 0.0
    %390 = vmatprep.subr.mxu0 0.0
    %391 = vmatpush1.msra.mxu0 0.0
    %392 = vmatprep.subr.mxu0 0.0
    %393 = vmatpush1.msra.mxu0 0.0
    %394 = vmatprep.subr.mxu0 0.0
    %395 = vmatpush1.msra.mxu0 0.0
    %396 = vmatprep.subr.mxu0 0.0
    %397 = vmatpush1.msra.mxu0 0.0
    %398 = vmatprep.subr.mxu0 0.0
    %399 = vmatpush1.msra.mxu0 0.0
    %400 = vmatprep.subr.mxu0 0.0
    %401 = vmatpush1.msra.mxu0 0.0
    %402 = vmatprep.subr.mxu0 0.0
    %403 = vmatpush1.msra.mxu0 0.0
    %404 = vmatprep.subr.mxu0 0.0
    %405 = vmatpush1.msra.mxu0 0.0
    %406 = vmatprep.subr.mxu0 0.0
    %407 = vmatpush1.msra.mxu0 0.0
    %408 = vmatprep.mubr.f32.mxu0 0.0
    %v409 = vand.u32 %v106, 4294901760
    %v410 = vsub.f32 %v106, %v409
    %v411 = vand.u32 %v410, 4294901760
    %412 = vmatmul.mubr.f32.gmra.mrb[0].mxu0 %v411
    %v413 = vpop.f32.mrb[0].mxu0
    %v414 = vadd.f32 %v339, %v413
    %v415 = vpop.f32.mrb[0].mxu0
    %416 = vdwg.mxu0
    %417 = vmatprep.subr.mxu0 0.0
    %v418 = vand.u32 %v25, 4294901760
    %v419 = vsub.f32 %v25, %v418
    %v420 = vand.u32 %v419, 4294901760
    %421 = vmatpush1.msra.mxu0 %v420
    %422 = vmatprep.subr.mxu0 0.0
    %v423 = vand.u32 %v26, 4294901760
    %v424 = vsub.f32 %v26, %v423
    %v425 = vand.u32 %v424, 4294901760
    %426 = vmatpush1.msra.mxu0 %v425
    %427 = vmatprep.subr.mxu0 0.0
    %428 = vmatpush1.msra.mxu0 0.0
    %429 = vmatprep.subr.mxu0 0.0
    %430 = vmatpush1.msra.mxu0 0.0
    %431 = vmatprep.subr.mxu0 0.0
    %432 = vmatpush1.msra.mxu0 0.0
    %433 = vmatprep.subr.mxu0 0.0
    %434 = vmatpush1.msra.mxu0 0.0
    %435 = vmatprep.subr.mxu0 0.0
    %436 = vmatpush1.msra.mxu0 0.0
    %437 = vmatprep.subr.mxu0 0.0
    %438 = vmatpush1.msra.mxu0 0.0
    %439 = vmatprep.subr.mxu0 0.0
    %440 = vmatpush1.msra.mxu0 0.0
    %441 = vmatprep.subr.mxu0 0.0
    %442 = vmatpush1.msra.mxu0 0.0
    %443 = vmatprep.subr.mxu0 0.0
    %444 = vmatpush1.msra.mxu0 0.0
    %445 = vmatprep.subr.mxu0 0.0
    %446 = vmatpush1.msra.mxu0 0.0
    %447 = vmatprep.subr.mxu0 0.0
    %448 = vmatpush1.msra.mxu0 0.0
    %449 = vmatprep.subr.mxu0 0.0
    %450 = vmatpush1.msra.mxu0 0.0
    %451 = vmatprep.subr.mxu0 0.0
    %452 = vmatpush1.msra.mxu0 0.0
    %453 = vmatprep.subr.mxu0 0.0
    %454 = vmatpush1.msra.mxu0 0.0
    %455 = vmatprep.subr.mxu0 0.0
    %456 = vmatpush1.msra.mxu0 0.0
    %457 = vmatprep.subr.mxu0 0.0
    %458 = vmatpush1.msra.mxu0 0.0
    %459 = vmatprep.subr.mxu0 0.0
    %460 = vmatpush1.msra.mxu0 0.0
    %461 = vmatprep.subr.mxu0 0.0
    %462 = vmatpush1.msra.mxu0 0.0
    %463 = vmatprep.subr.mxu0 0.0
    %464 = vmatpush1.msra.mxu0 0.0
    %465 = vmatprep.subr.mxu0 0.0
    %466 = vmatpush1.msra.mxu0 0.0
    %467 = vmatprep.subr.mxu0 0.0
    %468 = vmatpush1.msra.mxu0 0.0
    %469 = vmatprep.subr.mxu0 0.0
    %470 = vmatpush1.msra.mxu0 0.0
    %471 = vmatprep.subr.mxu0 0.0
    %472 = vmatpush1.msra.mxu0 0.0
    %473 = vmatprep.subr.mxu0 0.0
    %474 = vmatpush1.msra.mxu0 0.0
    %475 = vmatprep.subr.mxu0 0.0
    %476 = vmatpush1.msra.mxu0 0.0
    %477 = vmatprep.subr.mxu0 0.0
    %478 = vmatpush1.msra.mxu0 0.0
    %479 = vmatprep.subr.mxu0 0.0
    %480 = vmatpush1.msra.mxu0 0.0
    %481 = vmatprep.subr.mxu0 0.0
    %482 = vmatpush1.msra.mxu0 0.0
    %483 = vmatprep.subr.mxu0 0.0
    %484 = vmatpush1.msra.mxu0 0.0
    %485 = vmatprep.subr.mxu0 0.0
    %486 = vmatpush1.msra.mxu0 0.0
    %487 = vmatprep.mubr.f32.mxu0 0.0
    %v488 = vand.u32 %v106, 4294901760
    %489 = vmatmul.mubr.f32.gmra.mrb[0].mxu0 %v488
    %v490 = vpop.f32.mrb[0].mxu0
    %v491 = vadd.f32 %v414, %v490
    %v492 = vpop.f32.mrb[0].mxu0
    %493 = vdwg.mxu0
    %494 = vmatprep.subr.mxu0 0.0
    %v495 = vand.u32 %v25, 4294901760
    %496 = vmatpush1.msra.mxu0 %v495
    %497 = vmatprep.subr.mxu0 0.0
    %v498 = vand.u32 %v26, 4294901760
    %499 = vmatpush1.msra.mxu0 %v498
    %500 = vmatprep.subr.mxu0 0.0
    %501 = vmatpush1.msra.mxu0 0.0
    %502 = vmatprep.subr.mxu0 0.0
    %503 = vmatpush1.msra.mxu0 0.0
    %504 = vmatprep.subr.mxu0 0.0
    %505 = vmatpush1.msra.mxu0 0.0
    %506 = vmatprep.subr.mxu0 0.0
    %507 = vmatpush1.msra.mxu0 0.0
    %508 = vmatprep.subr.mxu0 0.0
    %509 = vmatpush1.msra.mxu0 0.0
    %510 = vmatprep.subr.mxu0 0.0
    %511 = vmatpush1.msra.mxu0 0.0
    %512 = vmatprep.subr.mxu0 0.0
    %513 = vmatpush1.msra.mxu0 0.0
    %514 = vmatprep.subr.mxu0 0.0
    %515 = vmatpush1.msra.mxu0 0.0
    %516 = vmatprep.subr.mxu0 0.0
    %517 = vmatpush1.msra.mxu0 0.0
    %518 = vmatprep.subr.mxu0 0.0
    %519 = vmatpush1.msra.mxu0 0.0
    %520 = vmatprep.subr.mxu0 0.0
    %521 = vmatpush1.msra.mxu0 0.0
    %522 = vmatprep.subr.mxu0 0.0
    %523 = vmatpush1.msra.mxu0 0.0
    %524 = vmatprep.subr.mxu0 0.0
    %525 = vmatpush1.msra.mxu0 0.0
    %526 = vmatprep.subr.mxu0 0.0
    %527 = vmatpush1.msra.mxu0 0.0
    %528 = vmatprep.subr.mxu0 0.0
    %529 = vmatpush1.msra.mxu0 0.0
    %530 = vmatprep.subr.mxu0 0.0
    %531 = vmatpush1.msra.mxu0 0.0
    %532 = vmatprep.subr.mxu0 0.0
    %533 = vmatpush1.msra.mxu0 0.0
    %534 = vmatprep.subr.mxu0 0.0
    %535 = vmatpush1.msra.mxu0 0.0
    %536 = vmatprep.subr.mxu0 0.0
    %537 = vmatpush1.msra.mxu0 0.0
    %538 = vmatprep.subr.mxu0 0.0
    %539 = vmatpush1.msra.mxu0 0.0
    %540 = vmatprep.subr.mxu0 0.0
    %541 = vmatpush1.msra.mxu0 0.0
    %542 = vmatprep.subr.mxu0 0.0
    %543 = vmatpush1.msra.mxu0 0.0
    %544 = vmatprep.subr.mxu0 0.0
    %545 = vmatpush1.msra.mxu0 0.0
    %546 = vmatprep.subr.mxu0 0.0
    %547 = vmatpush1.msra.mxu0 0.0
    %548 = vmatprep.subr.mxu0 0.0
    %549 = vmatpush1.msra.mxu0 0.0
    %550 = vmatprep.subr.mxu0 0.0
    %551 = vmatpush1.msra.mxu0 0.0
    %552 = vmatprep.subr.mxu0 0.0
    %553 = vmatpush1.msra.mxu0 0.0
    %554 = vmatprep.subr.mxu0 0.0
    %555 = vmatpush1.msra.mxu0 0.0
    %556 = vmatprep.subr.mxu0 0.0
    %557 = vmatpush1.msra.mxu0 0.0
    %558 = vmatprep.subr.mxu0 0.0
    %559 = vmatpush1.msra.mxu0 0.0
    %560 = vmatprep.mubr.f32.mxu0 0.0
    %v561 = vand.u32 %v106, 4294901760
    %562 = vmatmul.mubr.f32.gmra.mrb[0].mxu0 %v561
    %v563 = vpop.f32.mrb[0].mxu0
    %v564 = vadd.f32 %v491, %v563
    %v565 = vpop.f32.mrb[0].mxu0
    %566 = vdwg.mxu0
    %567 = vmatprep.subr.mxu0 0.0
    %v568 = vand.u32 %v28, 4294901760
    %569 = vmatpush1.msra.mxu0 %v568
    %570 = vmatprep.subr.mxu0 0.0
    %v571 = vand.u32 %v29, 4294901760
    %572 = vmatpush1.msra.mxu0 %v571
    %573 = vmatprep.subr.mxu0 0.0
    %574 = vmatpush1.msra.mxu0 0.0
    %575 = vmatprep.subr.mxu0 0.0
    %576 = vmatpush1.msra.mxu0 0.0
    %577 = vmatprep.subr.mxu0 0.0
    %578 = vmatpush1.msra.mxu0 0.0
    %579 = vmatprep.subr.mxu0 0.0
    %580 = vmatpush1.msra.mxu0 0.0
    %581 = vmatprep.subr.mxu0 0.0
    %582 = vmatpush1.msra.mxu0 0.0
    %583 = vmatprep.subr.mxu0 0.0
    %584 = vmatpush1.msra.mxu0 0.0
    %585 = vmatprep.subr.mxu0 0.0
    %586 = vmatpush1.msra.mxu0 0.0
    %587 = vmatprep.subr.mxu0 0.0
    %588 = vmatpush1.msra.mxu0 0.0
    %589 = vmatprep.subr.mxu0 0.0
    %590 = vmatpush1.msra.mxu0 0.0
    %591 = vmatprep.subr.mxu0 0.0
    %592 = vmatpush1.msra.mxu0 0.0
    %593 = vmatprep.subr.mxu0 0.0
    %594 = vmatpush1.msra.mxu0 0.0
    %595 = vmatprep.subr.mxu0 0.0
    %596 = vmatpush1.msra.mxu0 0.0
    %597 = vmatprep.subr.mxu0 0.0
    %598 = vmatpush1.msra.mxu0 0.0
    %599 = vmatprep.subr.mxu0 0.0
    %600 = vmatpush1.msra.mxu0 0.0
    %601 = vmatprep.subr.mxu0 0.0
    %602 = vmatpush1.msra.mxu0 0.0
    %603 = vmatprep.subr.mxu0 0.0
    %604 = vmatpush1.msra.mxu0 0.0
    %605 = vmatprep.subr.mxu0 0.0
    %606 = vmatpush1.msra.mxu0 0.0
    %607 = vmatprep.subr.mxu0 0.0
    %608 = vmatpush1.msra.mxu0 0.0
    %609 = vmatprep.subr.mxu0 0.0
    %610 = vmatpush1.msra.mxu0 0.0
    %611 = vmatprep.subr.mxu0 0.0
    %612 = vmatpush1.msra.mxu0 0.0
    %613 = vmatprep.subr.mxu0 0.0
    %614 = vmatpush1.msra.mxu0 0.0
    %615 = vmatprep.subr.mxu0 0.0
    %616 = vmatpush1.msra.mxu0 0.0
    %617 = vmatprep.subr.mxu0 0.0
    %618 = vmatpush1.msra.mxu0 0.0
    %619 = vmatprep.subr.mxu0 0.0
    %620 = vmatpush1.msra.mxu0 0.0
    %621 = vmatprep.subr.mxu0 0.0
    %622 = vmatpush1.msra.mxu0 0.0
    %623 = vmatprep.subr.mxu0 0.0
    %624 = vmatpush1.msra.mxu0 0.0
    %625 = vmatprep.subr.mxu0 0.0
    %626 = vmatpush1.msra.mxu0 0.0
    %627 = vmatprep.subr.mxu0 0.0
    %628 = vmatpush1.msra.mxu0 0.0
    %629 = vmatprep.subr.mxu0 0.0
    %630 = vmatpush1.msra.mxu0 0.0
    %631 = vmatprep.subr.mxu0 0.0
    %632 = vmatpush1.msra.mxu0 0.0
    %633 = vmatprep.mubr.f32.mxu0 0.0
    %v634 = vand.u32 %v106, 4294901760
    %v635 = vsub.f32 %v106, %v634
    %v636 = vand.u32 %v635, 4294901760
    %v637 = vsub.f32 %v635, %v636
    %v638 = vand.u32 %v637, 4294901760
    %639 = vmatmul.mubr.f32.gmra.mrb[0].mxu0 %v638
    %v640 = vpop.f32.mrb[0].mxu0
    %v641 = vadd.f32 0.0, %v640
    %v642 = vpop.f32.mrb[0].mxu0
    %643 = vdwg.mxu0
    %644 = vmatprep.subr.mxu0 0.0
    %v645 = vand.u32 %v28, 4294901760
    %v646 = vsub.f32 %v28, %v645
    %v647 = vand.u32 %v646, 4294901760
    %v648 = vsub.f32 %v646, %v647
    %v649 = vand.u32 %v648, 4294901760
    %650 = vmatpush1.msra.mxu0 %v649
    %651 = vmatprep.subr.mxu0 0.0
    %v652 = vand.u32 %v29, 4294901760
    %v653 = vsub.f32 %v29, %v652
    %v654 = vand.u32 %v653, 4294901760
    %v655 = vsub.f32 %v653, %v654
    %v656 = vand.u32 %v655, 4294901760
    %657 = vmatpush1.msra.mxu0 %v656
    %658 = vmatprep.subr.mxu0 0.0
    %659 = vmatpush1.msra.mxu0 0.0
    %660 = vmatprep.subr.mxu0 0.0
    %661 = vmatpush1.msra.mxu0 0.0
    %662 = vmatprep.subr.mxu0 0.0
    %663 = vmatpush1.msra.mxu0 0.0
    %664 = vmatprep.subr.mxu0 0.0
    %665 = vmatpush1.msra.mxu0 0.0
    %666 = vmatprep.subr.mxu0 0.0
    %667 = vmatpush1.msra.mxu0 0.0
    %668 = vmatprep.subr.mxu0 0.0
    %669 = vmatpush1.msra.mxu0 0.0
    %670 = vmatprep.subr.mxu0 0.0
    %671 = vmatpush1.msra.mxu0 0.0
    %672 = vmatprep.subr.mxu0 0.0
    %673 = vmatpush1.msra.mxu0 0.0
    %674 = vmatprep.subr.mxu0 0.0
    %675 = vmatpush1.msra.mxu0 0.0
    %676 = vmatprep.subr.mxu0 0.0
    %677 = vmatpush1.msra.mxu0 0.0
    %678 = vmatprep.subr.mxu0 0.0
    %679 = vmatpush1.msra.mxu0 0.0
    %680 = vmatprep.subr.mxu0 0.0
    %681 = vmatpush1.msra.mxu0 0.0
    %682 = vmatprep.subr.mxu0 0.0
    %683 = vmatpush1.msra.mxu0 0.0
    %684 = vmatprep.subr.mxu0 0.0
    %685 = vmatpush1.msra.mxu0 0.0
    %686 = vmatprep.subr.mxu0 0.0
    %687 = vmatpush1.msra.mxu0 0.0
    %688 = vmatprep.subr.mxu0 0.0
    %689 = vmatpush1.msra.mxu0 0.0
    %690 = vmatprep.subr.mxu0 0.0
    %691 = vmatpush1.msra.mxu0 0.0
    %692 = vmatprep.subr.mxu0 0.0
    %693 = vmatpush1.msra.mxu0 0.0
    %694 = vmatprep.subr.mxu0 0.0
    %695 = vmatpush1.msra.mxu0 0.0
    %696 = vmatprep.subr.mxu0 0.0
    %697 = vmatpush1.msra.mxu0 0.0
    %698 = vmatprep.subr.mxu0 0.0
    %699 = vmatpush1.msra.mxu0 0.0
    %700 = vmatprep.subr.mxu0 0.0
    %701 = vmatpush1.msra.mxu0 0.0
    %702 = vmatprep.subr.mxu0 0.0
    %703 = vmatpush1.msra.mxu0 0.0
    %704 = vmatprep.subr.mxu0 0.0
    %705 = vmatpush1.msra.mxu0 0.0
    %706 = vmatprep.subr.mxu0 0.0
    %707 = vmatpush1.msra.mxu0 0.0
    %708 = vmatprep.subr.mxu0 0.0
    %709 = vmatpush1.msra.mxu0 0.0
    %710 = vmatprep.subr.mxu0 0.0
    %711 = vmatpush1.msra.mxu0 0.0
    %712 = vmatprep.subr.mxu0 0.0
    %713 = vmatpush1.msra.mxu0 0.0
    %714 = vmatprep.subr.mxu0 0.0
    %715 = vmatpush1.msra.mxu0 0.0
    %716 = vmatprep.subr.mxu0 0.0
    %717 = vmatpush1.msra.mxu0 0.0
    %718 = vmatprep.mubr.f32.mxu0 0.0
    %v719 = vand.u32 %v106, 4294901760
    %720 = vmatmul.mubr.f32.gmra.mrb[0].mxu0 %v719
    %v721 = vpop.f32.mrb[0].mxu0
    %v722 = vadd.f32 %v641, %v721
    %v723 = vpop.f32.mrb[0].mxu0
    %724 = vdwg.mxu0
    %725 = vmatprep.subr.mxu0 0.0
    %v726 = vand.u32 %v28, 4294901760
    %v727 = vsub.f32 %v28, %v726
    %728 = vmatpush1.msra.mxu0 %v727
    %729 = vmatprep.subr.mxu0 0.0
    %v730 = vand.u32 %v29, 4294901760
    %v731 = vsub.f32 %v29, %v730
    %732 = vmatpush1.msra.mxu0 %v731
    %733 = vmatprep.subr.mxu0 0.0
    %734 = vmatpush1.msra.mxu0 0.0
    %735 = vmatprep.subr.mxu0 0.0
    %736 = vmatpush1.msra.mxu0 0.0
    %737 = vmatprep.subr.mxu0 0.0
    %738 = vmatpush1.msra.mxu0 0.0
    %739 = vmatprep.subr.mxu0 0.0
    %740 = vmatpush1.msra.mxu0 0.0
    %741 = vmatprep.subr.mxu0 0.0
    %742 = vmatpush1.msra.mxu0 0.0
    %743 = vmatprep.subr.mxu0 0.0
    %744 = vmatpush1.msra.mxu0 0.0
    %745 = vmatprep.subr.mxu0 0.0
    %746 = vmatpush1.msra.mxu0 0.0
    %747 = vmatprep.subr.mxu0 0.0
    %748 = vmatpush1.msra.mxu0 0.0
    %749 = vmatprep.subr.mxu0 0.0
    %750 = vmatpush1.msra.mxu0 0.0
    %751 = vmatprep.subr.mxu0 0.0
    %752 = vmatpush1.msra.mxu0 0.0
    %753 = vmatprep.subr.mxu0 0.0
    %754 = vmatpush1.msra.mxu0 0.0
    %755 = vmatprep.subr.mxu0 0.0
    %756 = vmatpush1.msra.mxu0 0.0
    %757 = vmatprep.subr.mxu0 0.0
    %758 = vmatpush1.msra.mxu0 0.0
    %759 = vmatprep.subr.mxu0 0.0
    %760 = vmatpush1.msra.mxu0 0.0
    %761 = vmatprep.subr.mxu0 0.0
    %762 = vmatpush1.msra.mxu0 0.0
    %763 = vmatprep.subr.mxu0 0.0
    %764 = vmatpush1.msra.mxu0 0.0
    %765 = vmatprep.subr.mxu0 0.0
    %766 = vmatpush1.msra.mxu0 0.0
    %767 = vmatprep.subr.mxu0 0.0
    %768 = vmatpush1.msra.mxu0 0.0
    %769 = vmatprep.subr.mxu0 0.0
    %770 = vmatpush1.msra.mxu0 0.0
    %771 = vmatprep.subr.mxu0 0.0
    %772 = vmatpush1.msra.mxu0 0.0
    %773 = vmatprep.subr.mxu0 0.0
    %774 = vmatpush1.msra.mxu0 0.0
    %775 = vmatprep.subr.mxu0 0.0
    %776 = vmatpush1.msra.mxu0 0.0
    %777 = vmatprep.subr.mxu0 0.0
    %778 = vmatpush1.msra.mxu0 0.0
    %779 = vmatprep.subr.mxu0 0.0
    %780 = vmatpush1.msra.mxu0 0.0
    %781 = vmatprep.subr.mxu0 0.0
    %782 = vmatpush1.msra.mxu0 0.0
    %783 = vmatprep.subr.mxu0 0.0
    %784 = vmatpush1.msra.mxu0 0.0
    %785 = vmatprep.subr.mxu0 0.0
    %786 = vmatpush1.msra.mxu0 0.0
    %787 = vmatprep.subr.mxu0 0.0
    %788 = vmatpush1.msra.mxu0 0.0
    %789 = vmatprep.subr.mxu0 0.0
    %790 = vmatpush1.msra.mxu0 0.0
    %791 = vmatprep.subr.mxu0 0.0
    %792 = vmatpush1.msra.mxu0 0.0
    %793 = vmatprep.mubr.f32.mxu0 0.0
    %v794 = vand.u32 %v106, 4294901760
    %v795 = vsub.f32 %v106, %v794
    %796 = vmatmul.mubr.f32.gmra.mrb[0].mxu0 %v795
    %v797 = vpop.f32.mrb[0].mxu0
    %v798 = vadd.f32 %v722, %v797
    %v799 = vpop.f32.mrb[0].mxu0
    %800 = vdwg.mxu0
    %801 = vmatprep.subr.mxu0 0.0
    %v802 = vand.u32 %v28, 4294901760
    %803 = vmatpush1.msra.mxu0 %v802
    %804 = vmatprep.subr.mxu0 0.0
    %v805 = vand.u32 %v29, 4294901760
    %806 = vmatpush1.msra.mxu0 %v805
    %807 = vmatprep.subr.mxu0 0.0
    %808 = vmatpush1.msra.mxu0 0.0
    %809 = vmatprep.subr.mxu0 0.0
    %810 = vmatpush1.msra.mxu0 0.0
    %811 = vmatprep.subr.mxu0 0.0
    %812 = vmatpush1.msra.mxu0 0.0
    %813 = vmatprep.subr.mxu0 0.0
    %814 = vmatpush1.msra.mxu0 0.0
    %815 = vmatprep.subr.mxu0 0.0
    %816 = vmatpush1.msra.mxu0 0.0
    %817 = vmatprep.subr.mxu0 0.0
    %818 = vmatpush1.msra.mxu0 0.0
    %819 = vmatprep.subr.mxu0 0.0
    %820 = vmatpush1.msra.mxu0 0.0
    %821 = vmatprep.subr.mxu0 0.0
    %822 = vmatpush1.msra.mxu0 0.0
    %823 = vmatprep.subr.mxu0 0.0
    %824 = vmatpush1.msra.mxu0 0.0
    %825 = vmatprep.subr.mxu0 0.0
    %826 = vmatpush1.msra.mxu0 0.0
    %827 = vmatprep.subr.mxu0 0.0
    %828 = vmatpush1.msra.mxu0 0.0
    %829 = vmatprep.subr.mxu0 0.0
    %830 = vmatpush1.msra.mxu0 0.0
    %831 = vmatprep.subr.mxu0 0.0
    %832 = vmatpush1.msra.mxu0 0.0
    %833 = vmatprep.subr.mxu0 0.0
    %834 = vmatpush1.msra.mxu0 0.0
    %835 = vmatprep.subr.mxu0 0.0
    %836 = vmatpush1.msra.mxu0 0.0
    %837 = vmatprep.subr.mxu0 0.0
    %838 = vmatpush1.msra.mxu0 0.0
    %839 = vmatprep.subr.mxu0 0.0
    %840 = vmatpush1.msra.mxu0 0.0
    %841 = vmatprep.subr.mxu0 0.0
    %842 = vmatpush1.msra.mxu0 0.0
    %843 = vmatprep.subr.mxu0 0.0
    %844 = vmatpush1.msra.mxu0 0.0
    %845 = vmatprep.subr.mxu0 0.0
    %846 = vmatpush1.msra.mxu0 0.0
    %847 = vmatprep.subr.mxu0 0.0
    %848 = vmatpush1.msra.mxu0 0.0
    %849 = vmatprep.subr.mxu0 0.0
    %850 = vmatpush1.msra.mxu0 0.0
    %851 = vmatprep.subr.mxu0 0.0
    %852 = vmatpush1.msra.mxu0 0.0
    %853 = vmatprep.subr.mxu0 0.0
    %854 = vmatpush1.msra.mxu0 0.0
    %855 = vmatprep.subr.mxu0 0.0
    %856 = vmatpush1.msra.mxu0 0.0
    %857 = vmatprep.subr.mxu0 0.0
    %858 = vmatpush1.msra.mxu0 0.0
    %859 = vmatprep.subr.mxu0 0.0
    %860 = vmatpush1.msra.mxu0 0.0
    %861 = vmatprep.subr.mxu0 0.0
    %862 = vmatpush1.msra.mxu0 0.0
    %863 = vmatprep.subr.mxu0 0.0
    %864 = vmatpush1.msra.mxu0 0.0
    %865 = vmatprep.subr.mxu0 0.0
    %866 = vmatpush1.msra.mxu0 0.0
    %867 = vmatprep.mubr.f32.mxu0 0.0
    %v868 = vand.u32 %v106, 4294901760
    %v869 = vsub.f32 %v106, %v868
    %v870 = vand.u32 %v869, 4294901760
    %871 = vmatmul.mubr.f32.gmra.mrb[0].mxu0 %v870
    %v872 = vpop.f32.mrb[0].mxu0
    %v873 = vadd.f32 %v798, %v872
    %v874 = vpop.f32.mrb[0].mxu0
    %875 = vdwg.mxu0
    %876 = vmatprep.subr.mxu0 0.0
    %v877 = vand.u32 %v28, 4294901760
    %v878 = vsub.f32 %v28, %v877
    %v879 = vand.u32 %v878, 4294901760
    %880 = vmatpush1.msra.mxu0 %v879
    %881 = vmatprep.subr.mxu0 0.0
    %v882 = vand.u32 %v29, 4294901760
    %v883 = vsub.f32 %v29, %v882
    %v884 = vand.u32 %v883, 4294901760
    %885 = vmatpush1.msra.mxu0 %v884
    %886 = vmatprep.subr.mxu0 0.0
    %887 = vmatpush1.msra.mxu0 0.0
    %888 = vmatprep.subr.mxu0 0.0
    %889 = vmatpush1.msra.mxu0 0.0
    %890 = vmatprep.subr.mxu0 0.0
    %891 = vmatpush1.msra.mxu0 0.0
    %892 = vmatprep.subr.mxu0 0.0
    %893 = vmatpush1.msra.mxu0 0.0
    %894 = vmatprep.subr.mxu0 0.0
    %895 = vmatpush1.msra.mxu0 0.0
    %896 = vmatprep.subr.mxu0 0.0
    %897 = vmatpush1.msra.mxu0 0.0
    %898 = vmatprep.subr.mxu0 0.0
    %899 = vmatpush1.msra.mxu0 0.0
    %900 = vmatprep.subr.mxu0 0.0
    %901 = vmatpush1.msra.mxu0 0.0
    %902 = vmatprep.subr.mxu0 0.0
    %903 = vmatpush1.msra.mxu0 0.0
    %904 = vmatprep.subr.mxu0 0.0
    %905 = vmatpush1.msra.mxu0 0.0
    %906 = vmatprep.subr.mxu0 0.0
    %907 = vmatpush1.msra.mxu0 0.0
    %908 = vmatprep.subr.mxu0 0.0
    %909 = vmatpush1.msra.mxu0 0.0
    %910 = vmatprep.subr.mxu0 0.0
    %911 = vmatpush1.msra.mxu0 0.0
    %912 = vmatprep.subr.mxu0 0.0
    %913 = vmatpush1.msra.mxu0 0.0
    %914 = vmatprep.subr.mxu0 0.0
    %915 = vmatpush1.msra.mxu0 0.0
    %916 = vmatprep.subr.mxu0 0.0
    %917 = vmatpush1.msra.mxu0 0.0
    %918 = vmatprep.subr.mxu0 0.0
    %919 = vmatpush1.msra.mxu0 0.0
    %920 = vmatprep.subr.mxu0 0.0
    %921 = vmatpush1.msra.mxu0 0.0
    %922 = vmatprep.subr.mxu0 0.0
    %923 = vmatpush1.msra.mxu0 0.0
    %924 = vmatprep.subr.mxu0 0.0
    %925 = vmatpush1.msra.mxu0 0.0
    %926 = vmatprep.subr.mxu0 0.0
    %927 = vmatpush1.msra.mxu0 0.0
    %928 = vmatprep.subr.mxu0 0.0
    %929 = vmatpush1.msra.mxu0 0.0
    %930 = vmatprep.subr.mxu0 0.0
    %931 = vmatpush1.msra.mxu0 0.0
    %932 = vmatprep.subr.mxu0 0.0
    %933 = vmatpush1.msra.mxu0 0.0
    %934 = vmatprep.subr.mxu0 0.0
    %935 = vmatpush1.msra.mxu0 0.0
    %936 = vmatprep.subr.mxu0 0.0
    %937 = vmatpush1.msra.mxu0 0.0
    %938 = vmatprep.subr.mxu0 0.0
    %939 = vmatpush1.msra.mxu0 0.0
    %940 = vmatprep.subr.mxu0 0.0
    %941 = vmatpush1.msra.mxu0 0.0
    %942 = vmatprep.subr.mxu0 0.0
    %943 = vmatpush1.msra.mxu0 0.0
    %944 = vmatprep.subr.mxu0 0.0
    %945 = vmatpush1.msra.mxu0 0.0
    %946 = vmatprep.mubr.f32.mxu0 0.0
    %v947 = vand.u32 %v106, 4294901760
    %948 = vmatmul.mubr.f32.gmra.mrb[0].mxu0 %v947
    %v949 = vpop.f32.mrb[0].mxu0
    %v950 = vadd.f32 %v873, %v949
    %v951 = vpop.f32.mrb[0].mxu0
    %952 = vdwg.mxu0
    %953 = vmatprep.subr.mxu0 0.0
    %v954 = vand.u32 %v28, 4294901760
    %955 = vmatpush1.msra.mxu0 %v954
    %956 = vmatprep.subr.mxu0 0.0
    %v957 = vand.u32 %v29, 4294901760
    %958 = vmatpush1.msra.mxu0 %v957
    %959 = vmatprep.subr.mxu0 0.0
    %960 = vmatpush1.msra.mxu0 0.0
    %961 = vmatprep.subr.mxu0 0.0
    %962 = vmatpush1.msra.mxu0 0.0
    %963 = vmatprep.subr.mxu0 0.0
    %964 = vmatpush1.msra.mxu0 0.0
    %965 = vmatprep.subr.mxu0 0.0
    %966 = vmatpush1.msra.mxu0 0.0
    %967 = vmatprep.subr.mxu0 0.0
    %968 = vmatpush1.msra.mxu0 0.0
    %969 = vmatprep.subr.mxu0 0.0
    %970 = vmatpush1.msra.mxu0 0.0
    %971 = vmatprep.subr.mxu0 0.0
    %972 = vmatpush1.msra.mxu0 0.0
    %973 = vmatprep.subr.mxu0 0.0
    %974 = vmatpush1.msra.mxu0 0.0
    %975 = vmatprep.subr.mxu0 0.0
    %976 = vmatpush1.msra.mxu0 0.0
    %977 = vmatprep.subr.mxu0 0.0
    %978 = vmatpush1.msra.mxu0 0.0
    %979 = vmatprep.subr.mxu0 0.0
    %980 = vmatpush1.msra.mxu0 0.0
    %981 = vmatprep.subr.mxu0 0.0
    %982 = vmatpush1.msra.mxu0 0.0
    %983 = vmatprep.subr.mxu0 0.0
    %984 = vmatpush1.msra.mxu0 0.0
    %985 = vmatprep.subr.mxu0 0.0
    %986 = vmatpush1.msra.mxu0 0.0
    %987 = vmatprep.subr.mxu0 0.0
    %988 = vmatpush1.msra.mxu0 0.0
    %989 = vmatprep.subr.mxu0 0.0
    %990 = vmatpush1.msra.mxu0 0.0
    %991 = vmatprep.subr.mxu0 0.0
    %992 = vmatpush1.msra.mxu0 0.0
    %993 = vmatprep.subr.mxu0 0.0
    %994 = vmatpush1.msra.mxu0 0.0
    %995 = vmatprep.subr.mxu0 0.0
    %996 = vmatpush1.msra.mxu0 0.0
    %997 = vmatprep.subr.mxu0 0.0
    %998 = vmatpush1.msra.mxu0 0.0
    %999 = vmatprep.subr.mxu0 0.0
    %1000 = vmatpush1.msra.mxu0 0.0
    %1001 = vmatprep.subr.mxu0 0.0
    %1002 = vmatpush1.msra.mxu0 0.0
    %1003 = vmatprep.subr.mxu0 0.0
    %1004 = vmatpush1.msra.mxu0 0.0
    %1005 = vmatprep.subr.mxu0 0.0
    %1006 = vmatpush1.msra.mxu0 0.0
    %1007 = vmatprep.subr.mxu0 0.0
    %1008 = vmatpush1.msra.mxu0 0.0
    %1009 = vmatprep.subr.mxu0 0.0
    %1010 = vmatpush1.msra.mxu0 0.0
    %1011 = vmatprep.subr.mxu0 0.0
    %1012 = vmatpush1.msra.mxu0 0.0
    %1013 = vmatprep.subr.mxu0 0.0
    %1014 = vmatpush1.msra.mxu0 0.0
    %1015 = vmatprep.subr.mxu0 0.0
    %1016 = vmatpush1.msra.mxu0 0.0
    %1017 = vmatprep.subr.mxu0 0.0
    %1018 = vmatpush1.msra.mxu0 0.0
    %1019 = vmatprep.mubr.f32.mxu0 0.0
    %v1020 = vand.u32 %v106, 4294901760
    %1021 = vmatmul.mubr.f32.gmra.mrb[0].mxu0 %v1020
    %v1022 = vpop.f32.mrb[0].mxu0
    %v1023 = vadd.f32 %v950, %v1022
    %v1024 = vpop.f32.mrb[0].mxu0
    %1025 = vdwg.mxu0
    %v1026 = vmax.f32 %v564, %v1023
    %v1027 = vsel %vm35, 1, 0
    %vm1028 = vcmp.eq.s32.totalorder %v1027, 1
    %v1029 = vsel %vm1028, %v1026, %v564
    %1030 = vmatprep.subr.mxu0 0.0
    %v1031 = vand.u32 %v31, 4294901760
    %1032 = vmatpush1.msra.mxu0 %v1031
    %1033 = vmatprep.subr.mxu0 0.0
    %v1034 = vand.u32 %v32, 4294901760
    %1035 = vmatpush1.msra.mxu0 %v1034
    %1036 = vmatprep.subr.mxu0 0.0
    %1037 = vmatpush1.msra.mxu0 0.0
    %1038 = vmatprep.subr.mxu0 0.0
    %1039 = vmatpush1.msra.mxu0 0.0
    %1040 = vmatprep.subr.mxu0 0.0
    %1041 = vmatpush1.msra.mxu0 0.0
    %1042 = vmatprep.subr.mxu0 0.0
    %1043 = vmatpush1.msra.mxu0 0.0
    %1044 = vmatprep.subr.mxu0 0.0
    %1045 = vmatpush1.msra.mxu0 0.0
    %1046 = vmatprep.subr.mxu0 0.0
    %1047 = vmatpush1.msra.mxu0 0.0
    %1048 = vmatprep.subr.mxu0 0.0
    %1049 = vmatpush1.msra.mxu0 0.0
    %1050 = vmatprep.subr.mxu0 0.0
    %1051 = vmatpush1.msra.mxu0 0.0
    %1052 = vmatprep.subr.mxu0 0.0
    %1053 = vmatpush1.msra.mxu0 0.0
    %1054 = vmatprep.subr.mxu0 0.0
    %1055 = vmatpush1.msra.mxu0 0.0
    %1056 = vmatprep.subr.mxu0 0.0
    %1057 = vmatpush1.msra.mxu0 0.0
    %1058 = vmatprep.subr.mxu0 0.0
    %1059 = vmatpush1.msra.mxu0 0.0
    %1060 = vmatprep.subr.mxu0 0.0
    %1061 = vmatpush1.msra.mxu0 0.0
    %1062 = vmatprep.subr.mxu0 0.0
    %1063 = vmatpush1.msra.mxu0 0.0
    %1064 = vmatprep.subr.mxu0 0.0
    %1065 = vmatpush1.msra.mxu0 0.0
    %1066 = vmatprep.subr.mxu0 0.0
    %1067 = vmatpush1.msra.mxu0 0.0
    %1068 = vmatprep.subr.mxu0 0.0
    %1069 = vmatpush1.msra.mxu0 0.0
    %1070 = vmatprep.subr.mxu0 0.0
    %1071 = vmatpush1.msra.mxu0 0.0
    %1072 = vmatprep.subr.mxu0 0.0
    %1073 = vmatpush1.msra.mxu0 0.0
    %1074 = vmatprep.subr.mxu0 0.0
    %1075 = vmatpush1.msra.mxu0 0.0
    %1076 = vmatprep.subr.mxu0 0.0
    %1077 = vmatpush1.msra.mxu0 0.0
    %1078 = vmatprep.subr.mxu0 0.0
    %1079 = vmatpush1.msra.mxu0 0.0
    %1080 = vmatprep.subr.mxu0 0.0
    %1081 = vmatpush1.msra.mxu0 0.0
    %1082 = vmatprep.subr.mxu0 0.0
    %1083 = vmatpush1.msra.mxu0 0.0
    %1084 = vmatprep.subr.mxu0 0.0
    %1085 = vmatpush1.msra.mxu0 0.0
    %1086 = vmatprep.subr.mxu0 0.0
    %1087 = vmatpush1.msra.mxu0 0.0
    %1088 = vmatprep.subr.mxu0 0.0
    %1089 = vmatpush1.msra.mxu0 0.0
    %1090 = vmatprep.subr.mxu0 0.0
    %1091 = vmatpush1.msra.mxu0 0.0
    %1092 = vmatprep.subr.mxu0 0.0
    %1093 = vmatpush1.msra.mxu0 0.0
    %1094 = vmatprep.subr.mxu0 0.0
    %1095 = vmatpush1.msra.mxu0 0.0
    %1096 = vmatprep.mubr.f32.mxu0 0.0
    %v1097 = vand.u32 %v106, 4294901760
    %v1098 = vsub.f32 %v106, %v1097
    %v1099 = vand.u32 %v1098, 4294901760
    %v1100 = vsub.f32 %v1098, %v1099
    %v1101 = vand.u32 %v1100, 4294901760
    %1102 = vmatmul.mubr.f32.gmra.mrb[0].mxu0 %v1101
    %v1103 = vpop.f32.mrb[0].mxu0
    %v1104 = vadd.f32 0.0, %v1103
    %v1105 = vpop.f32.mrb[0].mxu0
    %1106 = vdwg.mxu0
    %1107 = vmatprep.subr.mxu0 0.0
    %v1108 = vand.u32 %v31, 4294901760
    %v1109 = vsub.f32 %v31, %v1108
    %v1110 = vand.u32 %v1109, 4294901760
    %v1111 = vsub.f32 %v1109, %v1110
    %v1112 = vand.u32 %v1111, 4294901760
    %1113 = vmatpush1.msra.mxu0 %v1112
    %1114 = vmatprep.subr.mxu0 0.0
    %v1115 = vand.u32 %v32, 4294901760
    %v1116 = vsub.f32 %v32, %v1115
    %v1117 = vand.u32 %v1116, 4294901760
    %v1118 = vsub.f32 %v1116, %v1117
    %v1119 = vand.u32 %v1118, 4294901760
    %1120 = vmatpush1.msra.mxu0 %v1119
    %1121 = vmatprep.subr.mxu0 0.0
    %1122 = vmatpush1.msra.mxu0 0.0
    %1123 = vmatprep.subr.mxu0 0.0
    %1124 = vmatpush1.msra.mxu0 0.0
    %1125 = vmatprep.subr.mxu0 0.0
    %1126 = vmatpush1.msra.mxu0 0.0
    %1127 = vmatprep.subr.mxu0 0.0
    %1128 = vmatpush1.msra.mxu0 0.0
    %1129 = vmatprep.subr.mxu0 0.0
    %1130 = vmatpush1.msra.mxu0 0.0
    %1131 = vmatprep.subr.mxu0 0.0
    %1132 = vmatpush1.msra.mxu0 0.0
    %1133 = vmatprep.subr.mxu0 0.0
    %1134 = vmatpush1.msra.mxu0 0.0
    %1135 = vmatprep.subr.mxu0 0.0
    %1136 = vmatpush1.msra.mxu0 0.0
    %1137 = vmatprep.subr.mxu0 0.0
    %1138 = vmatpush1.msra.mxu0 0.0
    %1139 = vmatprep.subr.mxu0 0.0
    %1140 = vmatpush1.msra.mxu0 0.0
    %1141 = vmatprep.subr.mxu0 0.0
    %1142 = vmatpush1.msra.mxu0 0.0
    %1143 = vmatprep.subr.mxu0 0.0
    %1144 = vmatpush1.msra.mxu0 0.0
    %1145 = vmatprep.subr.mxu0 0.0
    %1146 = vmatpush1.msra.mxu0 0.0
    %1147 = vmatprep.subr.mxu0 0.0
    %1148 = vmatpush1.msra.mxu0 0.0
    %1149 = vmatprep.subr.mxu0 0.0
    %1150 = vmatpush1.msra.mxu0 0.0
    %1151 = vmatprep.subr.mxu0 0.0
    %1152 = vmatpush1.msra.mxu0 0.0
    %1153 = vmatprep.subr.mxu0 0.0
    %1154 = vmatpush1.msra.mxu0 0.0
    %1155 = vmatprep.subr.mxu0 0.0
    %1156 = vmatpush1.msra.mxu0 0.0
    %1157 = vmatprep.subr.mxu0 0.0
    %1158 = vmatpush1.msra.mxu0 0.0
    %1159 = vmatprep.subr.mxu0 0.0
    %1160 = vmatpush1.msra.mxu0 0.0
    %1161 = vmatprep.subr.mxu0 0.0
    %1162 = vmatpush1.msra.mxu0 0.0
    %1163 = vmatprep.subr.mxu0 0.0
    %1164 = vmatpush1.msra.mxu0 0.0
    %1165 = vmatprep.subr.mxu0 0.0
    %1166 = vmatpush1.msra.mxu0 0.0
    %1167 = vmatprep.subr.mxu0 0.0
    %1168 = vmatpush1.msra.mxu0 0.0
    %1169 = vmatprep.subr.mxu0 0.0
    %1170 = vmatpush1.msra.mxu0 0.0
    %1171 = vmatprep.subr.mxu0 0.0
    %1172 = vmatpush1.msra.mxu0 0.0
    %1173 = vmatprep.subr.mxu0 0.0
    %1174 = vmatpush1.msra.mxu0 0.0
    %1175 = vmatprep.subr.mxu0 0.0
    %1176 = vmatpush1.msra.mxu0 0.0
    %1177 = vmatprep.subr.mxu0 0.0
    %1178 = vmatpush1.msra.mxu0 0.0
    %1179 = vmatprep.subr.mxu0 0.0
    %1180 = vmatpush1.msra.mxu0 0.0
    %1181 = vmatprep.mubr.f32.mxu0 0.0
    %v1182 = vand.u32 %v106, 4294901760
    %1183 = vmatmul.mubr.f32.gmra.mrb[0].mxu0 %v1182
    %v1184 = vpop.f32.mrb[0].mxu0
    %v1185 = vadd.f32 %v1104, %v1184
    %v1186 = vpop.f32.mrb[0].mxu0
    %1187 = vdwg.mxu0
    %1188 = vmatprep.subr.mxu0 0.0
    %v1189 = vand.u32 %v31, 4294901760
    %v1190 = vsub.f32 %v31, %v1189
    %1191 = vmatpush1.msra.mxu0 %v1190
    %1192 = vmatprep.subr.mxu0 0.0
    %v1193 = vand.u32 %v32, 4294901760
    %v1194 = vsub.f32 %v32, %v1193
    %1195 = vmatpush1.msra.mxu0 %v1194
    %1196 = vmatprep.subr.mxu0 0.0
    %1197 = vmatpush1.msra.mxu0 0.0
    %1198 = vmatprep.subr.mxu0 0.0
    %1199 = vmatpush1.msra.mxu0 0.0
    %1200 = vmatprep.subr.mxu0 0.0
    %1201 = vmatpush1.msra.mxu0 0.0
    %1202 = vmatprep.subr.mxu0 0.0
    %1203 = vmatpush1.msra.mxu0 0.0
    %1204 = vmatprep.subr.mxu0 0.0
    %1205 = vmatpush1.msra.mxu0 0.0
    %1206 = vmatprep.subr.mxu0 0.0
    %1207 = vmatpush1.msra.mxu0 0.0
    %1208 = vmatprep.subr.mxu0 0.0
    %1209 = vmatpush1.msra.mxu0 0.0
    %1210 = vmatprep.subr.mxu0 0.0
    %1211 = vmatpush1.msra.mxu0 0.0
    %1212 = vmatprep.subr.mxu0 0.0
    %1213 = vmatpush1.msra.mxu0 0.0
    %1214 = vmatprep.subr.mxu0 0.0
    %1215 = vmatpush1.msra.mxu0 0.0
    %1216 = vmatprep.subr.mxu0 0.0
    %1217 = vmatpush1.msra.mxu0 0.0
    %1218 = vmatprep.subr.mxu0 0.0
    %1219 = vmatpush1.msra.mxu0 0.0
    %1220 = vmatprep.subr.mxu0 0.0
    %1221 = vmatpush1.msra.mxu0 0.0
    %1222 = vmatprep.subr.mxu0 0.0
    %1223 = vmatpush1.msra.mxu0 0.0
    %1224 = vmatprep.subr.mxu0 0.0
    %1225 = vmatpush1.msra.mxu0 0.0
    %1226 = vmatprep.subr.mxu0 0.0
    %1227 = vmatpush1.msra.mxu0 0.0
    %1228 = vmatprep.subr.mxu0 0.0
    %1229 = vmatpush1.msra.mxu0 0.0
    %1230 = vmatprep.subr.mxu0 0.0
    %1231 = vmatpush1.msra.mxu0 0.0
    %1232 = vmatprep.subr.mxu0 0.0
    %1233 = vmatpush1.msra.mxu0 0.0
    %1234 = vmatprep.subr.mxu0 0.0
    %1235 = vmatpush1.msra.mxu0 0.0
    %1236 = vmatprep.subr.mxu0 0.0
    %1237 = vmatpush1.msra.mxu0 0.0
    %1238 = vmatprep.subr.mxu0 0.0
    %1239 = vmatpush1.msra.mxu0 0.0
    %1240 = vmatprep.subr.mxu0 0.0
    %1241 = vmatpush1.msra.mxu0 0.0
    %1242 = vmatprep.subr.mxu0 0.0
    %1243 = vmatpush1.msra.mxu0 0.0
    %1244 = vmatprep.subr.mxu0 0.0
    %1245 = vmatpush1.msra.mxu0 0.0
    %1246 = vmatprep.subr.mxu0 0.0
    %1247 = vmatpush1.msra.mxu0 0.0
    %1248 = vmatprep.subr.mxu0 0.0
    %1249 = vmatpush1.msra.mxu0 0.0
    %1250 = vmatprep.subr.mxu0 0.0
    %1251 = vmatpush1.msra.mxu0 0.0
    %1252 = vmatprep.subr.mxu0 0.0
    %1253 = vmatpush1.msra.mxu0 0.0
    %1254 = vmatprep.subr.mxu0 0.0
    %1255 = vmatpush1.msra.mxu0 0.0
    %1256 = vmatprep.mubr.f32.mxu0 0.0
    %v1257 = vand.u32 %v106, 4294901760
    %v1258 = vsub.f32 %v106, %v1257
    %1259 = vmatmul.mubr.f32.gmra.mrb[0].mxu0 %v1258
    %v1260 = vpop.f32.mrb[0].mxu0
    %v1261 = vadd.f32 %v1185, %v1260
    %v1262 = vpop.f32.mrb[0].mxu0
    %1263 = vdwg.mxu0
    %1264 = vmatprep.subr.mxu0 0.0
    %v1265 = vand.u32 %v31, 4294901760
    %1266 = vmatpush1.msra.mxu0 %v1265
    %1267 = vmatprep.subr.mxu0 0.0
    %v1268 = vand.u32 %v32, 4294901760
    %1269 = vmatpush1.msra.mxu0 %v1268
    %1270 = vmatprep.subr.mxu0 0.0
    %1271 = vmatpush1.msra.mxu0 0.0
    %1272 = vmatprep.subr.mxu0 0.0
    %1273 = vmatpush1.msra.mxu0 0.0
    %1274 = vmatprep.subr.mxu0 0.0
    %1275 = vmatpush1.msra.mxu0 0.0
    %1276 = vmatprep.subr.mxu0 0.0
    %1277 = vmatpush1.msra.mxu0 0.0
    %1278 = vmatprep.subr.mxu0 0.0
    %1279 = vmatpush1.msra.mxu0 0.0
    %1280 = vmatprep.subr.mxu0 0.0
    %1281 = vmatpush1.msra.mxu0 0.0
    %1282 = vmatprep.subr.mxu0 0.0
    %1283 = vmatpush1.msra.mxu0 0.0
    %1284 = vmatprep.subr.mxu0 0.0
    %1285 = vmatpush1.msra.mxu0 0.0
    %1286 = vmatprep.subr.mxu0 0.0
    %1287 = vmatpush1.msra.mxu0 0.0
    %1288 = vmatprep.subr.mxu0 0.0
    %1289 = vmatpush1.msra.mxu0 0.0
    %1290 = vmatprep.subr.mxu0 0.0
    %1291 = vmatpush1.msra.mxu0 0.0
    %1292 = vmatprep.subr.mxu0 0.0
    %1293 = vmatpush1.msra.mxu0 0.0
    %1294 = vmatprep.subr.mxu0 0.0
    %1295 = vmatpush1.msra.mxu0 0.0
    %1296 = vmatprep.subr.mxu0 0.0
    %1297 = vmatpush1.msra.mxu0 0.0
    %1298 = vmatprep.subr.mxu0 0.0
    %1299 = vmatpush1.msra.mxu0 0.0
    %1300 = vmatprep.subr.mxu0 0.0
    %1301 = vmatpush1.msra.mxu0 0.0
    %1302 = vmatprep.subr.mxu0 0.0
    %1303 = vmatpush1.msra.mxu0 0.0
    %1304 = vmatprep.subr.mxu0 0.0
    %1305 = vmatpush1.msra.mxu0 0.0
    %1306 = vmatprep.subr.mxu0 0.0
    %1307 = vmatpush1.msra.mxu0 0.0
    %1308 = vmatprep.subr.mxu0 0.0
    %1309 = vmatpush1.msra.mxu0 0.0
    %1310 = vmatprep.subr.mxu0 0.0
    %1311 = vmatpush1.msra.mxu0 0.0
    %1312 = vmatprep.subr.mxu0 0.0
    %1313 = vmatpush1.msra.mxu0 0.0
    %1314 = vmatprep.subr.mxu0 0.0
    %1315 = vmatpush1.msra.mxu0 0.0
    %1316 = vmatprep.subr.mxu0 0.0
    %1317 = vmatpush1.msra.mxu0 0.0
    %1318 = vmatprep.subr.mxu0 0.0
    %1319 = vmatpush1.msra.mxu0 0.0
    %1320 = vmatprep.subr.mxu0 0.0
    %1321 = vmatpush1.msra.mxu0 0.0
    %1322 = vmatprep.subr.mxu0 0.0
    %1323 = vmatpush1.msra.mxu0 0.0
    %1324 = vmatprep.subr.mxu0 0.0
    %1325 = vmatpush1.msra.mxu0 0.0
    %1326 = vmatprep.subr.mxu0 0.0
    %1327 = vmatpush1.msra.mxu0 0.0
    %1328 = vmatprep.subr.mxu0 0.0
    %1329 = vmatpush1.msra.mxu0 0.0
    %1330 = vmatprep.mubr.f32.mxu0 0.0
    %v1331 = vand.u32 %v106, 4294901760
    %v1332 = vsub.f32 %v106, %v1331
    %v1333 = vand.u32 %v1332, 4294901760
    %1334 = vmatmul.mubr.f32.gmra.mrb[0].mxu0 %v1333
    %v1335 = vpop.f32.mrb[0].mxu0
    %v1336 = vadd.f32 %v1261, %v1335
    %v1337 = vpop.f32.mrb[0].mxu0
    %1338 = vdwg.mxu0
    %1339 = vmatprep.subr.mxu0 0.0
    %v1340 = vand.u32 %v31, 4294901760
    %v1341 = vsub.f32 %v31, %v1340
    %v1342 = vand.u32 %v1341, 4294901760
    %1343 = vmatpush1.msra.mxu0 %v1342
    %1344 = vmatprep.subr.mxu0 0.0
    %v1345 = vand.u32 %v32, 4294901760
    %v1346 = vsub.f32 %v32, %v1345
    %v1347 = vand.u32 %v1346, 4294901760
    %1348 = vmatpush1.msra.mxu0 %v1347
    %1349 = vmatprep.subr.mxu0 0.0
    %1350 = vmatpush1.msra.mxu0 0.0
    %1351 = vmatprep.subr.mxu0 0.0
    %1352 = vmatpush1.msra.mxu0 0.0
    %1353 = vmatprep.subr.mxu0 0.0
    %1354 = vmatpush1.msra.mxu0 0.0
    %1355 = vmatprep.subr.mxu0 0.0
    %1356 = vmatpush1.msra.mxu0 0.0
    %1357 = vmatprep.subr.mxu0 0.0
    %1358 = vmatpush1.msra.mxu0 0.0
    %1359 = vmatprep.subr.mxu0 0.0
    %1360 = vmatpush1.msra.mxu0 0.0
    %1361 = vmatprep.subr.mxu0 0.0
    %1362 = vmatpush1.msra.mxu0 0.0
    %1363 = vmatprep.subr.mxu0 0.0
    %1364 = vmatpush1.msra.mxu0 0.0
    %1365 = vmatprep.subr.mxu0 0.0
    %1366 = vmatpush1.msra.mxu0 0.0
    %1367 = vmatprep.subr.mxu0 0.0
    %1368 = vmatpush1.msra.mxu0 0.0
    %1369 = vmatprep.subr.mxu0 0.0
    %1370 = vmatpush1.msra.mxu0 0.0
    %1371 = vmatprep.subr.mxu0 0.0
    %1372 = vmatpush1.msra.mxu0 0.0
    %1373 = vmatprep.subr.mxu0 0.0
    %1374 = vmatpush1.msra.mxu0 0.0
    %1375 = vmatprep.subr.mxu0 0.0
    %1376 = vmatpush1.msra.mxu0 0.0
    %1377 = vmatprep.subr.mxu0 0.0
    %1378 = vmatpush1.msra.mxu0 0.0
    %1379 = vmatprep.subr.mxu0 0.0
    %1380 = vmatpush1.msra.mxu0 0.0
    %1381 = vmatprep.subr.mxu0 0.0
    %1382 = vmatpush1.msra.mxu0 0.0
    %1383 = vmatprep.subr.mxu0 0.0
    %1384 = vmatpush1.msra.mxu0 0.0
    %1385 = vmatprep.subr.mxu0 0.0
    %1386 = vmatpush1.msra.mxu0 0.0
    %1387 = vmatprep.subr.mxu0 0.0
    %1388 = vmatpush1.msra.mxu0 0.0
    %1389 = vmatprep.subr.mxu0 0.0
    %1390 = vmatpush1.msra.mxu0 0.0
    %1391 = vmatprep.subr.mxu0 0.0
    %1392 = vmatpush1.msra.mxu0 0.0
    %1393 = vmatprep.subr.mxu0 0.0
    %1394 = vmatpush1.msra.mxu0 0.0
    %1395 = vmatprep.subr.mxu0 0.0
    %1396 = vmatpush1.msra.mxu0 0.0
    %1397 = vmatprep.subr.mxu0 0.0
    %1398 = vmatpush1.msra.mxu0 0.0
    %1399 = vmatprep.subr.mxu0 0.0
    %1400 = vmatpush1.msra.mxu0 0.0
    %1401 = vmatprep.subr.mxu0 0.0
    %1402 = vmatpush1.msra.mxu0 0.0
    %1403 = vmatprep.subr.mxu0 0.0
    %1404 = vmatpush1.msra.mxu0 0.0
    %1405 = vmatprep.subr.mxu0 0.0
    %1406 = vmatpush1.msra.mxu0 0.0
    %1407 = vmatprep.subr.mxu0 0.0
    %1408 = vmatpush1.msra.mxu0 0.0
    %1409 = vmatprep.mubr.f32.mxu0 0.0
    %v1410 = vand.u32 %v106, 4294901760
    %1411 = vmatmul.mubr.f32.gmra.mrb[0].mxu0 %v1410
    %v1412 = vpop.f32.mrb[0].mxu0
    %v1413 = vadd.f32 %v1336, %v1412
    %v1414 = vpop.f32.mrb[0].mxu0
    %1415 = vdwg.mxu0
    %1416 = vmatprep.subr.mxu0 0.0
    %v1417 = vand.u32 %v31, 4294901760
    %1418 = vmatpush1.msra.mxu0 %v1417
    %1419 = vmatprep.subr.mxu0 0.0
    %v1420 = vand.u32 %v32, 4294901760
    %1421 = vmatpush1.msra.mxu0 %v1420
    %1422 = vmatprep.subr.mxu0 0.0
    %1423 = vmatpush1.msra.mxu0 0.0
    %1424 = vmatprep.subr.mxu0 0.0
    %1425 = vmatpush1.msra.mxu0 0.0
    %1426 = vmatprep.subr.mxu0 0.0
    %1427 = vmatpush1.msra.mxu0 0.0
    %1428 = vmatprep.subr.mxu0 0.0
    %1429 = vmatpush1.msra.mxu0 0.0
    %1430 = vmatprep.subr.mxu0 0.0
    %1431 = vmatpush1.msra.mxu0 0.0
    %1432 = vmatprep.subr.mxu0 0.0
    %1433 = vmatpush1.msra.mxu0 0.0
    %1434 = vmatprep.subr.mxu0 0.0
    %1435 = vmatpush1.msra.mxu0 0.0
    %1436 = vmatprep.subr.mxu0 0.0
    %1437 = vmatpush1.msra.mxu0 0.0
    %1438 = vmatprep.subr.mxu0 0.0
    %1439 = vmatpush1.msra.mxu0 0.0
    %1440 = vmatprep.subr.mxu0 0.0
    %1441 = vmatpush1.msra.mxu0 0.0
    %1442 = vmatprep.subr.mxu0 0.0
    %1443 = vmatpush1.msra.mxu0 0.0
    %1444 = vmatprep.subr.mxu0 0.0
    %1445 = vmatpush1.msra.mxu0 0.0
    %1446 = vmatprep.subr.mxu0 0.0
    %1447 = vmatpush1.msra.mxu0 0.0
    %1448 = vmatprep.subr.mxu0 0.0
    %1449 = vmatpush1.msra.mxu0 0.0
    %1450 = vmatprep.subr.mxu0 0.0
    %1451 = vmatpush1.msra.mxu0 0.0
    %1452 = vmatprep.subr.mxu0 0.0
    %1453 = vmatpush1.msra.mxu0 0.0
    %1454 = vmatprep.subr.mxu0 0.0
    %1455 = vmatpush1.msra.mxu0 0.0
    %1456 = vmatprep.subr.mxu0 0.0
    %1457 = vmatpush1.msra.mxu0 0.0
    %1458 = vmatprep.subr.mxu0 0.0
    %1459 = vmatpush1.msra.mxu0 0.0
    %1460 = vmatprep.subr.mxu0 0.0
    %1461 = vmatpush1.msra.mxu0 0.0
    %1462 = vmatprep.subr.mxu0 0.0
    %1463 = vmatpush1.msra.mxu0 0.0
    %1464 = vmatprep.subr.mxu0 0.0
    %1465 = vmatpush1.msra.mxu0 0.0
    %1466 = vmatprep.subr.mxu0 0.0
    %1467 = vmatpush1.msra.mxu0 0.0
    %1468 = vmatprep.subr.mxu0 0.0
    %1469 = vmatpush1.msra.mxu0 0.0
    %1470 = vmatprep.subr.mxu0 0.0
    %1471 = vmatpush1.msra.mxu0 0.0
    %1472 = vmatprep.subr.mxu0 0.0
    %1473 = vmatpush1.msra.mxu0 0.0
    %1474 = vmatprep.subr.mxu0 0.0
    %1475 = vmatpush1.msra.mxu0 0.0
    %1476 = vmatprep.subr.mxu0 0.0
    %1477 = vmatpush1.msra.mxu0 0.0
    %1478 = vmatprep.subr.mxu0 0.0
    %1479 = vmatpush1.msra.mxu0 0.0
    %1480 = vmatprep.subr.mxu0 0.0
    %1481 = vmatpush1.msra.mxu0 0.0
    %1482 = vmatprep.mubr.f32.mxu0 0.0
    %v1483 = vand.u32 %v106, 4294901760
    %1484 = vmatmul.mubr.f32.gmra.mrb[0].mxu0 %v1483
    %v1485 = vpop.f32.mrb[0].mxu0
    %v1486 = vadd.f32 %v1413, %v1485
    %v1487 = vpop.f32.mrb[0].mxu0
    %1488 = vdwg.mxu0
    %v1489 = vmax.f32 %v1029, %v1486
    %v1490 = vsel %vm1028, %v1489, %v564
    %v1492 = vcombine.high %v1490, %v1490
    %v1494 = vunpack.c.l.s4 1966171168
    %v1495 = vunpack.c.0.s8 %v1494
    %v1496 = vlaneseq
    %v1497 = vshrl.u32 %v1496, 7
    %v1498 = vsub.s32 %v1495, %v1497
    %v1499 = vrot.slane %v1490, %v1498
    %v1501 = vunpack.c.l.s4 1966171168
    %v1502 = vunpack.c.0.s8 %v1501
    %v1503 = vlaneseq
    %v1504 = vshrl.u32 %v1503, 7
    %v1505 = vsub.s32 %v1502, %v1504
    %v1506 = vrot.slane %v1492, %v1505
    %v1507 = vcombine.high %v1499, %v1499
    %v1508 = vcombine.high %v1506, %v1506
    %v1510 = vunpack.c.l.s4 1966171168
    %v1511 = vunpack.c.0.s8 %v1510
    %v1512 = vlaneseq
    %v1513 = vshrl.u32 %v1512, 7
    %v1514 = vsub.s32 %v1511, %v1513
    %v1515 = vrot.slane %v1499, %v1514
    %v1517 = vunpack.c.l.s4 1966171168
    %v1518 = vunpack.c.0.s8 %v1517
    %v1519 = vlaneseq
    %v1520 = vshrl.u32 %v1519, 7
    %v1521 = vsub.s32 %v1518, %v1520
    %v1522 = vrot.slane %v1506, %v1521
    %v1524 = vunpack.c.l.s4 1966171168
    %v1525 = vunpack.c.0.s8 %v1524
    %v1526 = vlaneseq
    %v1527 = vshrl.u32 %v1526, 7
    %v1528 = vsub.s32 %v1525, %v1527
    %v1529 = vrot.slane %v1507, %v1528
    %v1531 = vunpack.c.l.s4 1966171168
    %v1532 = vunpack.c.0.s8 %v1531
    %v1533 = vlaneseq
    %v1534 = vshrl.u32 %v1533, 7
    %v1535 = vsub.s32 %v1532, %v1534
    %v1536 = vrot.slane %v1508, %v1535
    %v1537 = vcombine.high %v1515, %v1515
    %v1538 = vcombine.high %v1522, %v1522
    %v1539 = vcombine.high %v1529, %v1529
    %v1540 = vcombine.high %v1536, %v1536
    %vm1549 = vcmask 40960
    %1550 = vst.msk [vmem:[%s2] sm:$0x1] %vm1549, %v1515
    %1551 = vst.msk [vmem:[%s2 + $0x8] sm:$0x1] %vm1549, %v1529
    %1552 = vst.msk [vmem:[%s2 + $0x10] sm:$0x1] %vm1549, %v1537
    %1553 = vst.msk [vmem:[%s2 + $0x18] sm:$0x1] %vm1549, %v1539
    %1554 = vst.msk [vmem:[%s2 + $0x20] sm:$0x1] %vm1549, %v1522
    %1555 = vst.msk [vmem:[%s2 + $0x28] sm:$0x1] %vm1549, %v1536
    %1556 = vst.msk [vmem:[%s2 + $0x30] sm:$0x1] %vm1549, %v1538
    %1557 = vst.msk [vmem:[%s2 + $0x38] sm:$0x1] %vm1549, %v1540
    %v1558 = vld [vmem:[#allocation2 + $0x3] sm:$0x1]
    %v1559 = vld [vmem:[#allocation2 + $0x13] sm:$0x1]
    %v1560 = vld [vmem:[#allocation2 + $0x23] sm:$0x1]
    %v1561 = vld [vmem:[#allocation2 + $0x33] sm:$0x1]
    %v1562 = vld [vmem:[#allocation2 + $0x43] sm:$0x1]
    %v1563 = vld [vmem:[#allocation2 + $0x53] sm:$0x1]
    %v1564 = vld [vmem:[#allocation2 + $0x63] sm:$0x1]
    %v1565 = vld [vmem:[#allocation2 + $0x73] sm:$0x1]
    %v1566 = vld [vmem:[#allocation2 + $0x4] sm:$0x1]
    %v1567 = vld [vmem:[#allocation2 + $0x14] sm:$0x1]
    %v1568 = vld [vmem:[#allocation2 + $0x24] sm:$0x1]
    %v1569 = vld [vmem:[#allocation2 + $0x34] sm:$0x1]
    %v1570 = vld [vmem:[#allocation2 + $0x44] sm:$0x1]
    %v1571 = vld [vmem:[#allocation2 + $0x54] sm:$0x1]
    %v1572 = vld [vmem:[#allocation2 + $0x64] sm:$0x1]
    %v1573 = vld [vmem:[#allocation2 + $0x74] sm:$0x1]
    %v1574 = vmax.f32 %v1558, %v1566
    %v1575 = vmax.f32 %v1559, %v1567
    %v1576 = vmax.f32 %v1560, %v1568
    %v1577 = vmax.f32 %v1561, %v1569
    %v1578 = vmax.f32 %v1562, %v1570
    %v1579 = vmax.f32 %v1563, %v1571
    %v1580 = vmax.f32 %v1564, %v1572
    %v1581 = vmax.f32 %v1565, %v1573
    %v1582 = vld [vmem:[#allocation2 + $0x5] sm:$0x1]
    %v1583 = vld [vmem:[#allocation2 + $0x15] sm:$0x1]
    %v1584 = vld [vmem:[#allocation2 + $0x25] sm:$0x1]
    %v1585 = vld [vmem:[#allocation2 + $0x35] sm:$0x1]
    %v1586 = vld [vmem:[#allocation2 + $0x45] sm:$0x1]
    %v1587 = vld [vmem:[#allocation2 + $0x55] sm:$0x1]
    %v1588 = vld [vmem:[#allocation2 + $0x65] sm:$0x1]
    %v1589 = vld [vmem:[#allocation2 + $0x75] sm:$0x1]
    %v1590 = vmax.f32 %v1574, %v1582
    %v1591 = vmax.f32 %v1575, %v1583
    %v1592 = vmax.f32 %v1576, %v1584
    %v1593 = vmax.f32 %v1577, %v1585
    %v1594 = vmax.f32 %v1578, %v1586
    %v1595 = vmax.f32 %v1579, %v1587
    %v1596 = vmax.f32 %v1580, %v1588
    %v1597 = vmax.f32 %v1581, %v1589
    %v1606 = vrot.slane %v1591, 7
    %v1607 = vsel %vm85, %v1606, %v1590
    %v1608 = vrot.slane %v1592, 6
    %v1609 = vsel %vm88, %v1608, %v1607
    %v1610 = vrot.slane %v1593, 5
    %v1611 = vsel %vm91, %v1610, %v1609
    %v1612 = vrot.slane %v1594, 4
    %v1613 = vsel %vm94, %v1612, %v1611
    %v1614 = vrot.slane %v1595, 3
    %v1615 = vsel %vm97, %v1614, %v1613
    %v1616 = vrot.slane %v1596, 2
    %v1617 = vsel %vm100, %v1616, %v1615
    %v1618 = vrot.slane %v1597, 1
    %v1619 = vsel %vm103, %v1618, %v1617
    %v1620 = vsel %vm105, %v1619, 0
    %1622 = vmatprep.subr.mxu0 0.0
    %v1623 = vand.u32 %v25, 4294901760
    %1624 = vmatpush1.msra.mxu0 %v1623
    %1625 = vmatprep.subr.mxu0 0.0
    %v1626 = vand.u32 %v26, 4294901760
    %1627 = vmatpush1.msra.mxu0 %v1626
    %1628 = vmatprep.subr.mxu0 0.0
    %1629 = vmatpush1.msra.mxu0 0.0
    %1630 = vmatprep.subr.mxu0 0.0
    %1631 = vmatpush1.msra.mxu0 0.0
    %1632 = vmatprep.subr.mxu0 0.0
    %1633 = vmatpush1.msra.mxu0 0.0
    %1634 = vmatprep.subr.mxu0 0.0
    %1635 = vmatpush1.msra.mxu0 0.0
    %1636 = vmatprep.subr.mxu0 0.0
    %1637 = vmatpush1.msra.mxu0 0.0
    %1638 = vmatprep.subr.mxu0 0.0
    %1639 = vmatpush1.msra.mxu0 0.0
    %1640 = vmatprep.subr.mxu0 0.0
    %1641 = vmatpush1.msra.mxu0 0.0
    %1642 = vmatprep.subr.mxu0 0.0
    %1643 = vmatpush1.msra.mxu0 0.0
    %1644 = vmatprep.subr.mxu0 0.0
    %1645 = vmatpush1.msra.mxu0 0.0
    %1646 = vmatprep.subr.mxu0 0.0
    %1647 = vmatpush1.msra.mxu0 0.0
    %1648 = vmatprep.subr.mxu0 0.0
    %1649 = vmatpush1.msra.mxu0 0.0
    %1650 = vmatprep.subr.mxu0 0.0
    %1651 = vmatpush1.msra.mxu0 0.0
    %1652 = vmatprep.subr.mxu0 0.0
    %1653 = vmatpush1.msra.mxu0 0.0
    %1654 = vmatprep.subr.mxu0 0.0
    %1655 = vmatpush1.msra.mxu0 0.0
    %1656 = vmatprep.subr.mxu0 0.0
    %1657 = vmatpush1.msra.mxu0 0.0
    %1658 = vmatprep.subr.mxu0 0.0
    %1659 = vmatpush1.msra.mxu0 0.0
    %1660 = vmatprep.subr.mxu0 0.0
    %1661 = vmatpush1.msra.mxu0 0.0
    %1662 = vmatprep.subr.mxu0 0.0
    %1663 = vmatpush1.msra.mxu0 0.0
    %1664 = vmatprep.subr.mxu0 0.0
    %1665 = vmatpush1.msra.mxu0 0.0
    %1666 = vmatprep.subr.mxu0 0.0
    %1667 = vmatpush1.msra.mxu0 0.0
    %1668 = vmatprep.subr.mxu0 0.0
    %1669 = vmatpush1.msra.mxu0 0.0
    %1670 = vmatprep.subr.mxu0 0.0
    %1671 = vmatpush1.msra.mxu0 0.0
    %1672 = vmatprep.subr.mxu0 0.0
    %1673 = vmatpush1.msra.mxu0 0.0
    %1674 = vmatprep.subr.mxu0 0.0
    %1675 = vmatpush1.msra.mxu0 0.0
    %1676 = vmatprep.subr.mxu0 0.0
    %1677 = vmatpush1.msra.mxu0 0.0
    %1678 = vmatprep.subr.mxu0 0.0
    %1679 = vmatpush1.msra.mxu0 0.0
    %1680 = vmatprep.subr.mxu0 0.0
    %1681 = vmatpush1.msra.mxu0 0.0
    %1682 = vmatprep.subr.mxu0 0.0
    %1683 = vmatpush1.msra.mxu0 0.0
    %1684 = vmatprep.subr.mxu0 0.0
    %1685 = vmatpush1.msra.mxu0 0.0
    %1686 = vmatprep.subr.mxu0 0.0
    %1687 = vmatpush1.msra.mxu0 0.0
    %1688 = vmatprep.mubr.f32.mxu0 0.0
    %v1689 = vand.u32 %v1620, 4294901760
    %v1690 = vsub.f32 %v1620, %v1689
    %v1691 = vand.u32 %v1690, 4294901760
    %v1692 = vsub.f32 %v1690, %v1691
    %v1693 = vand.u32 %v1692, 4294901760
    %1694 = vmatmul.mubr.f32.gmra.mrb[0].mxu0 %v1693
    %v1695 = vpop.f32.mrb[0].mxu0
    %v1696 = vadd.f32 0.0, %v1695
    %v1697 = vpop.f32.mrb[0].mxu0
    %1698 = vdwg.mxu0
    %1699 = vmatprep.subr.mxu0 0.0
    %v1700 = vand.u32 %v25, 4294901760
    %v1701 = vsub.f32 %v25, %v1700
    %v1702 = vand.u32 %v1701, 4294901760
    %v1703 = vsub.f32 %v1701, %v1702
    %v1704 = vand.u32 %v1703, 4294901760
    %1705 = vmatpush1.msra.mxu0 %v1704
    %1706 = vmatprep.subr.mxu0 0.0
    %v1707 = vand.u32 %v26, 4294901760
    %v1708 = vsub.f32 %v26, %v1707
    %v1709 = vand.u32 %v1708, 4294901760
    %v1710 = vsub.f32 %v1708, %v1709
    %v1711 = vand.u32 %v1710, 4294901760
    %1712 = vmatpush1.msra.mxu0 %v1711
    %1713 = vmatprep.subr.mxu0 0.0
    %1714 = vmatpush1.msra.mxu0 0.0
    %1715 = vmatprep.subr.mxu0 0.0
    %1716 = vmatpush1.msra.mxu0 0.0
    %1717 = vmatprep.subr.mxu0 0.0
    %1718 = vmatpush1.msra.mxu0 0.0
    %1719 = vmatprep.subr.mxu0 0.0
    %1720 = vmatpush1.msra.mxu0 0.0
    %1721 = vmatprep.subr.mxu0 0.0
    %1722 = vmatpush1.msra.mxu0 0.0
    %1723 = vmatprep.subr.mxu0 0.0
    %1724 = vmatpush1.msra.mxu0 0.0
    %1725 = vmatprep.subr.mxu0 0.0
    %1726 = vmatpush1.msra.mxu0 0.0
    %1727 = vmatprep.subr.mxu0 0.0
    %1728 = vmatpush1.msra.mxu0 0.0
    %1729 = vmatprep.subr.mxu0 0.0
    %1730 = vmatpush1.msra.mxu0 0.0
    %1731 = vmatprep.subr.mxu0 0.0
    %1732 = vmatpush1.msra.mxu0 0.0
    %1733 = vmatprep.subr.mxu0 0.0
    %1734 = vmatpush1.msra.mxu0 0.0
    %1735 = vmatprep.subr.mxu0 0.0
    %1736 = vmatpush1.msra.mxu0 0.0
    %1737 = vmatprep.subr.mxu0 0.0
    %1738 = vmatpush1.msra.mxu0 0.0
    %1739 = vmatprep.subr.mxu0 0.0
    %1740 = vmatpush1.msra.mxu0 0.0
    %1741 = vmatprep.subr.mxu0 0.0
    %1742 = vmatpush1.msra.mxu0 0.0
    %1743 = vmatprep.subr.mxu0 0.0
    %1744 = vmatpush1.msra.mxu0 0.0
    %1745 = vmatprep.subr.mxu0 0.0
    %1746 = vmatpush1.msra.mxu0 0.0
    %1747 = vmatprep.subr.mxu0 0.0
    %1748 = vmatpush1.msra.mxu0 0.0
    %1749 = vmatprep.subr.mxu0 0.0
    %1750 = vmatpush1.msra.mxu0 0.0
    %1751 = vmatprep.subr.mxu0 0.0
    %1752 = vmatpush1.msra.mxu0 0.0
    %1753 = vmatprep.subr.mxu0 0.0
    %1754 = vmatpush1.msra.mxu0 0.0
    %1755 = vmatprep.subr.mxu0 0.0
    %1756 = vmatpush1.msra.mxu0 0.0
    %1757 = vmatprep.subr.mxu0 0.0
    %1758 = vmatpush1.msra.mxu0 0.0
    %1759 = vmatprep.subr.mxu0 0.0
    %1760 = vmatpush1.msra.mxu0 0.0
    %1761 = vmatprep.subr.mxu0 0.0
    %1762 = vmatpush1.msra.mxu0 0.0
    %1763 = vmatprep.subr.mxu0 0.0
    %1764 = vmatpush1.msra.mxu0 0.0
    %1765 = vmatprep.subr.mxu0 0.0
    %1766 = vmatpush1.msra.mxu0 0.0
    %1767 = vmatprep.subr.mxu0 0.0
    %1768 = vmatpush1.msra.mxu0 0.0
    %1769 = vmatprep.subr.mxu0 0.0
    %1770 = vmatpush1.msra.mxu0 0.0
    %1771 = vmatprep.subr.mxu0 0.0
    %1772 = vmatpush1.msra.mxu0 0.0
    %1773 = vmatprep.mubr.f32.mxu0 0.0
    %v1774 = vand.u32 %v1620, 4294901760
    %1775 = vmatmul.mubr.f32.gmra.mrb[0].mxu0 %v1774
    %v1776 = vpop.f32.mrb[0].mxu0
    %v1777 = vadd.f32 %v1696, %v1776
    %v1778 = vpop.f32.mrb[0].mxu0
    %1779 = vdwg.mxu0
    %1780 = vmatprep.subr.mxu0 0.0
    %v1781 = vand.u32 %v25, 4294901760
    %v1782 = vsub.f32 %v25, %v1781
    %1783 = vmatpush1.msra.mxu0 %v1782
    %1784 = vmatprep.subr.mxu0 0.0
    %v1785 = vand.u32 %v26, 4294901760
    %v1786 = vsub.f32 %v26, %v1785
    %1787 = vmatpush1.msra.mxu0 %v1786
    %1788 = vmatprep.subr.mxu0 0.0
    %1789 = vmatpush1.msra.mxu0 0.0
    %1790 = vmatprep.subr.mxu0 0.0
    %1791 = vmatpush1.msra.mxu0 0.0
    %1792 = vmatprep.subr.mxu0 0.0
    %1793 = vmatpush1.msra.mxu0 0.0
    %1794 = vmatprep.subr.mxu0 0.0
    %1795 = vmatpush1.msra.mxu0 0.0
    %1796 = vmatprep.subr.mxu0 0.0
    %1797 = vmatpush1.msra.mxu0 0.0
    %1798 = vmatprep.subr.mxu0 0.0
    %1799 = vmatpush1.msra.mxu0 0.0
    %1800 = vmatprep.subr.mxu0 0.0
    %1801 = vmatpush1.msra.mxu0 0.0
    %1802 = vmatprep.subr.mxu0 0.0
    %1803 = vmatpush1.msra.mxu0 0.0
    %1804 = vmatprep.subr.mxu0 0.0
    %1805 = vmatpush1.msra.mxu0 0.0
    %1806 = vmatprep.subr.mxu0 0.0
    %1807 = vmatpush1.msra.mxu0 0.0
    %1808 = vmatprep.subr.mxu0 0.0
    %1809 = vmatpush1.msra.mxu0 0.0
    %1810 = vmatprep.subr.mxu0 0.0
    %1811 = vmatpush1.msra.mxu0 0.0
    %1812 = vmatprep.subr.mxu0 0.0
    %1813 = vmatpush1.msra.mxu0 0.0
    %1814 = vmatprep.subr.mxu0 0.0
    %1815 = vmatpush1.msra.mxu0 0.0
    %1816 = vmatprep.subr.mxu0 0.0
    %1817 = vmatpush1.msra.mxu0 0.0
    %1818 = vmatprep.subr.mxu0 0.0
    %1819 = vmatpush1.msra.mxu0 0.0
    %1820 = vmatprep.subr.mxu0 0.0
    %1821 = vmatpush1.msra.mxu0 0.0
    %1822 = vmatprep.subr.mxu0 0.0
    %1823 = vmatpush1.msra.mxu0 0.0
    %1824 = vmatprep.subr.mxu0 0.0
    %1825 = vmatpush1.msra.mxu0 0.0
    %1826 = vmatprep.subr.mxu0 0.0
    %1827 = vmatpush1.msra.mxu0 0.0
    %1828 = vmatprep.subr.mxu0 0.0
    %1829 = vmatpush1.msra.mxu0 0.0
    %1830 = vmatprep.subr.mxu0 0.0
    %1831 = vmatpush1.msra.mxu0 0.0
    %1832 = vmatprep.subr.mxu0 0.0
    %1833 = vmatpush1.msra.mxu0 0.0
    %1834 = vmatprep.subr.mxu0 0.0
    %1835 = vmatpush1.msra.mxu0 0.0
    %1836 = vmatprep.subr.mxu0 0.0
    %1837 = vmatpush1.msra.mxu0 0.0
    %1838 = vmatprep.subr.mxu0 0.0
    %1839 = vmatpush1.msra.mxu0 0.0
    %1840 = vmatprep.subr.mxu0 0.0
    %1841 = vmatpush1.msra.mxu0 0.0
    %1842 = vmatprep.subr.mxu0 0.0
    %1843 = vmatpush1.msra.mxu0 0.0
    %1844 = vmatprep.subr.mxu0 0.0
    %1845 = vmatpush1.msra.mxu0 0.0
    %1846 = vmatprep.subr.mxu0 0.0
    %1847 = vmatpush1.msra.mxu0 0.0
    %1848 = vmatprep.mubr.f32.mxu0 0.0
    %v1849 = vand.u32 %v1620, 4294901760
    %v1850 = vsub.f32 %v1620, %v1849
    %1851 = vmatmul.mubr.f32.gmra.mrb[0].mxu0 %v1850
    %v1852 = vpop.f32.mrb[0].mxu0
    %v1853 = vadd.f32 %v1777, %v1852
    %v1854 = vpop.f32.mrb[0].mxu0
    %1855 = vdwg.mxu0
    %1856 = vmatprep.subr.mxu0 0.0
    %v1857 = vand.u32 %v25, 4294901760
    %1858 = vmatpush1.msra.mxu0 %v1857
    %1859 = vmatprep.subr.mxu0 0.0
    %v1860 = vand.u32 %v26, 4294901760
    %1861 = vmatpush1.msra.mxu0 %v1860
    %1862 = vmatprep.subr.mxu0 0.0
    %1863 = vmatpush1.msra.mxu0 0.0
    %1864 = vmatprep.subr.mxu0 0.0
    %1865 = vmatpush1.msra.mxu0 0.0
    %1866 = vmatprep.subr.mxu0 0.0
    %1867 = vmatpush1.msra.mxu0 0.0
    %1868 = vmatprep.subr.mxu0 0.0
    %1869 = vmatpush1.msra.mxu0 0.0
    %1870 = vmatprep.subr.mxu0 0.0
    %1871 = vmatpush1.msra.mxu0 0.0
    %1872 = vmatprep.subr.mxu0 0.0
    %1873 = vmatpush1.msra.mxu0 0.0
    %1874 = vmatprep.subr.mxu0 0.0
    %1875 = vmatpush1.msra.mxu0 0.0
    %1876 = vmatprep.subr.mxu0 0.0
    %1877 = vmatpush1.msra.mxu0 0.0
    %1878 = vmatprep.subr.mxu0 0.0
    %1879 = vmatpush1.msra.mxu0 0.0
    %1880 = vmatprep.subr.mxu0 0.0
    %1881 = vmatpush1.msra.mxu0 0.0
    %1882 = vmatprep.subr.mxu0 0.0
    %1883 = vmatpush1.msra.mxu0 0.0
    %1884 = vmatprep.subr.mxu0 0.0
    %1885 = vmatpush1.msra.mxu0 0.0
    %1886 = vmatprep.subr.mxu0 0.0
    %1887 = vmatpush1.msra.mxu0 0.0
    %1888 = vmatprep.subr.mxu0 0.0
    %1889 = vmatpush1.msra.mxu0 0.0
    %1890 = vmatprep.subr.mxu0 0.0
    %1891 = vmatpush1.msra.mxu0 0.0
    %1892 = vmatprep.subr.mxu0 0.0
    %1893 = vmatpush1.msra.mxu0 0.0
    %1894 = vmatprep.subr.mxu0 0.0
    %1895 = vmatpush1.msra.mxu0 0.0
    %1896 = vmatprep.subr.mxu0 0.0
    %1897 = vmatpush1.msra.mxu0 0.0
    %1898 = vmatprep.subr.mxu0 0.0
    %1899 = vmatpush1.msra.mxu0 0.0
    %1900 = vmatprep.subr.mxu0 0.0
    %1901 = vmatpush1.msra.mxu0 0.0
    %1902 = vmatprep.subr.mxu0 0.0
    %1903 = vmatpush1.msra.mxu0 0.0
    %1904 = vmatprep.subr.mxu0 0.0
    %1905 = vmatpush1.msra.mxu0 0.0
    %1906 = vmatprep.subr.mxu0 0.0
    %1907 = vmatpush1.msra.mxu0 0.0
    %1908 = vmatprep.subr.mxu0 0.0
    %1909 = vmatpush1.msra.mxu0 0.0
    %1910 = vmatprep.subr.mxu0 0.0
    %1911 = vmatpush1.msra.mxu0 0.0
    %1912 = vmatprep.subr.mxu0 0.0
    %1913 = vmatpush1.msra.mxu0 0.0
    %1914 = vmatprep.subr.mxu0 0.0
    %1915 = vmatpush1.msra.mxu0 0.0
    %1916 = vmatprep.subr.mxu0 0.0
    %1917 = vmatpush1.msra.mxu0 0.0
    %1918 = vmatprep.subr.mxu0 0.0
    %1919 = vmatpush1.msra.mxu0 0.0
    %1920 = vmatprep.subr.mxu0 0.0
    %1921 = vmatpush1.msra.mxu0 0.0
    %1922 = vmatprep.mubr.f32.mxu0 0.0
    %v1923 = vand.u32 %v1620, 4294901760
    %v1924 = vsub.f32 %v1620, %v1923
    %v1925 = vand.u32 %v1924, 4294901760
    %1926 = vmatmul.mubr.f32.gmra.mrb[0].mxu0 %v1925
    %v1927 = vpop.f32.mrb[0].mxu0
    %v1928 = vadd.f32 %v1853, %v1927
    %v1929 = vpop.f32.mrb[0].mxu0
    %1930 = vdwg.mxu0
    %1931 = vmatprep.subr.mxu0 0.0
    %v1932 = vand.u32 %v25, 4294901760
    %v1933 = vsub.f32 %v25, %v1932
    %v1934 = vand.u32 %v1933, 4294901760
    %1935 = vmatpush1.msra.mxu0 %v1934
    %1936 = vmatprep.subr.mxu0 0.0
    %v1937 = vand.u32 %v26, 4294901760
    %v1938 = vsub.f32 %v26, %v1937
    %v1939 = vand.u32 %v1938, 4294901760
    %1940 = vmatpush1.msra.mxu0 %v1939
    %1941 = vmatprep.subr.mxu0 0.0
    %1942 = vmatpush1.msra.mxu0 0.0
    %1943 = vmatprep.subr.mxu0 0.0
    %1944 = vmatpush1.msra.mxu0 0.0
    %1945 = vmatprep.subr.mxu0 0.0
    %1946 = vmatpush1.msra.mxu0 0.0
    %1947 = vmatprep.subr.mxu0 0.0
    %1948 = vmatpush1.msra.mxu0 0.0
    %1949 = vmatprep.subr.mxu0 0.0
    %1950 = vmatpush1.msra.mxu0 0.0
    %1951 = vmatprep.subr.mxu0 0.0
    %1952 = vmatpush1.msra.mxu0 0.0
    %1953 = vmatprep.subr.mxu0 0.0
    %1954 = vmatpush1.msra.mxu0 0.0
    %1955 = vmatprep.subr.mxu0 0.0
    %1956 = vmatpush1.msra.mxu0 0.0
    %1957 = vmatprep.subr.mxu0 0.0
    %1958 = vmatpush1.msra.mxu0 0.0
    %1959 = vmatprep.subr.mxu0 0.0
    %1960 = vmatpush1.msra.mxu0 0.0
    %1961 = vmatprep.subr.mxu0 0.0
    %1962 = vmatpush1.msra.mxu0 0.0
    %1963 = vmatprep.subr.mxu0 0.0
    %1964 = vmatpush1.msra.mxu0 0.0
    %1965 = vmatprep.subr.mxu0 0.0
    %1966 = vmatpush1.msra.mxu0 0.0
    %1967 = vmatprep.subr.mxu0 0.0
    %1968 = vmatpush1.msra.mxu0 0.0
    %1969 = vmatprep.subr.mxu0 0.0
    %1970 = vmatpush1.msra.mxu0 0.0
    %1971 = vmatprep.subr.mxu0 0.0
    %1972 = vmatpush1.msra.mxu0 0.0
    %1973 = vmatprep.subr.mxu0 0.0
    %1974 = vmatpush1.msra.mxu0 0.0
    %1975 = vmatprep.subr.mxu0 0.0
    %1976 = vmatpush1.msra.mxu0 0.0
    %1977 = vmatprep.subr.mxu0 0.0
    %1978 = vmatpush1.msra.mxu0 0.0
    %1979 = vmatprep.subr.mxu0 0.0
    %1980 = vmatpush1.msra.mxu0 0.0
    %1981 = vmatprep.subr.mxu0 0.0
    %1982 = vmatpush1.msra.mxu0 0.0
    %1983 = vmatprep.subr.mxu0 0.0
    %1984 = vmatpush1.msra.mxu0 0.0
    %1985 = vmatprep.subr.mxu0 0.0
    %1986 = vmatpush1.msra.mxu0 0.0
    %1987 = vmatprep.subr.mxu0 0.0
    %1988 = vmatpush1.msra.mxu0 0.0
    %1989 = vmatprep.subr.mxu0 0.0
    %1990 = vmatpush1.msra.mxu0 0.0
    %1991 = vmatprep.subr.mxu0 0.0
    %1992 = vmatpush1.msra.mxu0 0.0
    %1993 = vmatprep.subr.mxu0 0.0
    %1994 = vmatpush1.msra.mxu0 0.0
    %1995 = vmatprep.subr.mxu0 0.0
    %1996 = vmatpush1.msra.mxu0 0.0
    %1997 = vmatprep.subr.mxu0 0.0
    %1998 = vmatpush1.msra.mxu0 0.0
    %1999 = vmatprep.subr.mxu0 0.0
    %2000 = vmatpush1.msra.mxu0 0.0
    %2001 = vmatprep.mubr.f32.mxu0 0.0
    %v2002 = vand.u32 %v1620, 4294901760
    %2003 = vmatmul.mubr.f32.gmra.mrb[0].mxu0 %v2002
    %v2004 = vpop.f32.mrb[0].mxu0
    %v2005 = vadd.f32 %v1928, %v2004
    %v2006 = vpop.f32.mrb[0].mxu0
    %2007 = vdwg.mxu0
    %2008 = vmatprep.subr.mxu0 0.0
    %v2009 = vand.u32 %v25, 4294901760
    %2010 = vmatpush1.msra.mxu0 %v2009
    %2011 = vmatprep.subr.mxu0 0.0
    %v2012 = vand.u32 %v26, 4294901760
    %2013 = vmatpush1.msra.mxu0 %v2012
    %2014 = vmatprep.subr.mxu0 0.0
    %2015 = vmatpush1.msra.mxu0 0.0
    %2016 = vmatprep.subr.mxu0 0.0
    %2017 = vmatpush1.msra.mxu0 0.0
    %2018 = vmatprep.subr.mxu0 0.0
    %2019 = vmatpush1.msra.mxu0 0.0
    %2020 = vmatprep.subr.mxu0 0.0
    %2021 = vmatpush1.msra.mxu0 0.0
    %2022 = vmatprep.subr.mxu0 0.0
    %2023 = vmatpush1.msra.mxu0 0.0
    %2024 = vmatprep.subr.mxu0 0.0
    %2025 = vmatpush1.msra.mxu0 0.0
    %2026 = vmatprep.subr.mxu0 0.0
    %2027 = vmatpush1.msra.mxu0 0.0
    %2028 = vmatprep.subr.mxu0 0.0
    %2029 = vmatpush1.msra.mxu0 0.0
    %2030 = vmatprep.subr.mxu0 0.0
    %2031 = vmatpush1.msra.mxu0 0.0
    %2032 = vmatprep.subr.mxu0 0.0
    %2033 = vmatpush1.msra.mxu0 0.0
    %2034 = vmatprep.subr.mxu0 0.0
    %2035 = vmatpush1.msra.mxu0 0.0
    %2036 = vmatprep.subr.mxu0 0.0
    %2037 = vmatpush1.msra.mxu0 0.0
    %2038 = vmatprep.subr.mxu0 0.0
    %2039 = vmatpush1.msra.mxu0 0.0
    %2040 = vmatprep.subr.mxu0 0.0
    %2041 = vmatpush1.msra.mxu0 0.0
    %2042 = vmatprep.subr.mxu0 0.0
    %2043 = vmatpush1.msra.mxu0 0.0
    %2044 = vmatprep.subr.mxu0 0.0
    %2045 = vmatpush1.msra.mxu0 0.0
    %2046 = vmatprep.subr.mxu0 0.0
    %2047 = vmatpush1.msra.mxu0 0.0
    %2048 = vmatprep.subr.mxu0 0.0
    %2049 = vmatpush1.msra.mxu0 0.0
    %2050 = vmatprep.subr.mxu0 0.0
    %2051 = vmatpush1.msra.mxu0 0.0
    %2052 = vmatprep.subr.mxu0 0.0
    %2053 = vmatpush1.msra.mxu0 0.0
    %2054 = vmatprep.subr.mxu0 0.0
    %2055 = vmatpush1.msra.mxu0 0.0
    %2056 = vmatprep.subr.mxu0 0.0
    %2057 = vmatpush1.msra.mxu0 0.0
    %2058 = vmatprep.subr.mxu0 0.0
    %2059 = vmatpush1.msra.mxu0 0.0
    %2060 = vmatprep.subr.mxu0 0.0
    %2061 = vmatpush1.msra.mxu0 0.0
    %2062 = vmatprep.subr.mxu0 0.0
    %2063 = vmatpush1.msra.mxu0 0.0
    %2064 = vmatprep.subr.mxu0 0.0
    %2065 = vmatpush1.msra.mxu0 0.0
    %2066 = vmatprep.subr.mxu0 0.0
    %2067 = vmatpush1.msra.mxu0 0.0
    %2068 = vmatprep.subr.mxu0 0.0
    %2069 = vmatpush1.msra.mxu0 0.0
    %2070 = vmatprep.subr.mxu0 0.0
    %2071 = vmatpush1.msra.mxu0 0.0
    %2072 = vmatprep.subr.mxu0 0.0
    %2073 = vmatpush1.msra.mxu0 0.0
    %2074 = vmatprep.mubr.f32.mxu0 0.0
    %v2075 = vand.u32 %v1620, 4294901760
    %2076 = vmatmul.mubr.f32.gmra.mrb[0].mxu0 %v2075
    %v2077 = vpop.f32.mrb[0].mxu0
    %v2078 = vadd.f32 %v2005, %v2077
    %v2079 = vpop.f32.mrb[0].mxu0
    %2080 = vdwg.mxu0
    %2081 = vmatprep.subr.mxu0 0.0
    %v2082 = vand.u32 %v28, 4294901760
    %2083 = vmatpush1.msra.mxu0 %v2082
    %2084 = vmatprep.subr.mxu0 0.0
    %v2085 = vand.u32 %v29, 4294901760
    %2086 = vmatpush1.msra.mxu0 %v2085
    %2087 = vmatprep.subr.mxu0 0.0
    %2088 = vmatpush1.msra.mxu0 0.0
    %2089 = vmatprep.subr.mxu0 0.0
    %2090 = vmatpush1.msra.mxu0 0.0
    %2091 = vmatprep.subr.mxu0 0.0
    %2092 = vmatpush1.msra.mxu0 0.0
    %2093 = vmatprep.subr.mxu0 0.0
    %2094 = vmatpush1.msra.mxu0 0.0
    %2095 = vmatprep.subr.mxu0 0.0
    %2096 = vmatpush1.msra.mxu0 0.0
    %2097 = vmatprep.subr.mxu0 0.0
    %2098 = vmatpush1.msra.mxu0 0.0
    %2099 = vmatprep.subr.mxu0 0.0
    %2100 = vmatpush1.msra.mxu0 0.0
    %2101 = vmatprep.subr.mxu0 0.0
    %2102 = vmatpush1.msra.mxu0 0.0
    %2103 = vmatprep.subr.mxu0 0.0
    %2104 = vmatpush1.msra.mxu0 0.0
    %2105 = vmatprep.subr.mxu0 0.0
    %2106 = vmatpush1.msra.mxu0 0.0
    %2107 = vmatprep.subr.mxu0 0.0
    %2108 = vmatpush1.msra.mxu0 0.0
    %2109 = vmatprep.subr.mxu0 0.0
    %2110 = vmatpush1.msra.mxu0 0.0
    %2111 = vmatprep.subr.mxu0 0.0
    %2112 = vmatpush1.msra.mxu0 0.0
    %2113 = vmatprep.subr.mxu0 0.0
    %2114 = vmatpush1.msra.mxu0 0.0
    %2115 = vmatprep.subr.mxu0 0.0
    %2116 = vmatpush1.msra.mxu0 0.0
    %2117 = vmatprep.subr.mxu0 0.0
    %2118 = vmatpush1.msra.mxu0 0.0
    %2119 = vmatprep.subr.mxu0 0.0
    %2120 = vmatpush1.msra.mxu0 0.0
    %2121 = vmatprep.subr.mxu0 0.0
    %2122 = vmatpush1.msra.mxu0 0.0
    %2123 = vmatprep.subr.mxu0 0.0
    %2124 = vmatpush1.msra.mxu0 0.0
    %2125 = vmatprep.subr.mxu0 0.0
    %2126 = vmatpush1.msra.mxu0 0.0
    %2127 = vmatprep.subr.mxu0 0.0
    %2128 = vmatpush1.msra.mxu0 0.0
    %2129 = vmatprep.subr.mxu0 0.0
    %2130 = vmatpush1.msra.mxu0 0.0
    %2131 = vmatprep.subr.mxu0 0.0
    %2132 = vmatpush1.msra.mxu0 0.0
    %2133 = vmatprep.subr.mxu0 0.0
    %2134 = vmatpush1.msra.mxu0 0.0
    %2135 = vmatprep.subr.mxu0 0.0
    %2136 = vmatpush1.msra.mxu0 0.0
    %2137 = vmatprep.subr.mxu0 0.0
    %2138 = vmatpush1.msra.mxu0 0.0
    %2139 = vmatprep.subr.mxu0 0.0
    %2140 = vmatpush1.msra.mxu0 0.0
    %2141 = vmatprep.subr.mxu0 0.0
    %2142 = vmatpush1.msra.mxu0 0.0
    %2143 = vmatprep.subr.mxu0 0.0
    %2144 = vmatpush1.msra.mxu0 0.0
    %2145 = vmatprep.subr.mxu0 0.0
    %2146 = vmatpush1.msra.mxu0 0.0
    %2147 = vmatprep.mubr.f32.mxu0 0.0
    %v2148 = vand.u32 %v1620, 4294901760
    %v2149 = vsub.f32 %v1620, %v2148
    %v2150 = vand.u32 %v2149, 4294901760
    %v2151 = vsub.f32 %v2149, %v2150
    %v2152 = vand.u32 %v2151, 4294901760
    %2153 = vmatmul.mubr.f32.gmra.mrb[0].mxu0 %v2152
    %v2154 = vpop.f32.mrb[0].mxu0
    %v2155 = vadd.f32 0.0, %v2154
    %v2156 = vpop.f32.mrb[0].mxu0
    %2157 = vdwg.mxu0
    %2158 = vmatprep.subr.mxu0 0.0
    %v2159 = vand.u32 %v28, 4294901760
    %v2160 = vsub.f32 %v28, %v2159
    %v2161 = vand.u32 %v2160, 4294901760
    %v2162 = vsub.f32 %v2160, %v2161
    %v2163 = vand.u32 %v2162, 4294901760
    %2164 = vmatpush1.msra.mxu0 %v2163
    %2165 = vmatprep.subr.mxu0 0.0
    %v2166 = vand.u32 %v29, 4294901760
    %v2167 = vsub.f32 %v29, %v2166
    %v2168 = vand.u32 %v2167, 4294901760
    %v2169 = vsub.f32 %v2167, %v2168
    %v2170 = vand.u32 %v2169, 4294901760
    %2171 = vmatpush1.msra.mxu0 %v2170
    %2172 = vmatprep.subr.mxu0 0.0
    %2173 = vmatpush1.msra.mxu0 0.0
    %2174 = vmatprep.subr.mxu0 0.0
    %2175 = vmatpush1.msra.mxu0 0.0
    %2176 = vmatprep.subr.mxu0 0.0
    %2177 = vmatpush1.msra.mxu0 0.0
    %2178 = vmatprep.subr.mxu0 0.0
    %2179 = vmatpush1.msra.mxu0 0.0
    %2180 = vmatprep.subr.mxu0 0.0
    %2181 = vmatpush1.msra.mxu0 0.0
    %2182 = vmatprep.subr.mxu0 0.0
    %2183 = vmatpush1.msra.mxu0 0.0
    %2184 = vmatprep.subr.mxu0 0.0
    %2185 = vmatpush1.msra.mxu0 0.0
    %2186 = vmatprep.subr.mxu0 0.0
    %2187 = vmatpush1.msra.mxu0 0.0
    %2188 = vmatprep.subr.mxu0 0.0
    %2189 = vmatpush1.msra.mxu0 0.0
    %2190 = vmatprep.subr.mxu0 0.0
    %2191 = vmatpush1.msra.mxu0 0.0
    %2192 = vmatprep.subr.mxu0 0.0
    %2193 = vmatpush1.msra.mxu0 0.0
    %2194 = vmatprep.subr.mxu0 0.0
    %2195 = vmatpush1.msra.mxu0 0.0
    %2196 = vmatprep.subr.mxu0 0.0
    %2197 = vmatpush1.msra.mxu0 0.0
    %2198 = vmatprep.subr.mxu0 0.0
    %2199 = vmatpush1.msra.mxu0 0.0
    %2200 = vmatprep.subr.mxu0 0.0
    %2201 = vmatpush1.msra.mxu0 0.0
    %2202 = vmatprep.subr.mxu0 0.0
    %2203 = vmatpush1.msra.mxu0 0.0
    %2204 = vmatprep.subr.mxu0 0.0
    %2205 = vmatpush1.msra.mxu0 0.0
    %2206 = vmatprep.subr.mxu0 0.0
    %2207 = vmatpush1.msra.mxu0 0.0
    %2208 = vmatprep.subr.mxu0 0.0
    %2209 = vmatpush1.msra.mxu0 0.0
    %2210 = vmatprep.subr.mxu0 0.0
    %2211 = vmatpush1.msra.mxu0 0.0
    %2212 = vmatprep.subr.mxu0 0.0
    %2213 = vmatpush1.msra.mxu0 0.0
    %2214 = vmatprep.subr.mxu0 0.0
    %2215 = vmatpush1.msra.mxu0 0.0
    %2216 = vmatprep.subr.mxu0 0.0
    %2217 = vmatpush1.msra.mxu0 0.0
    %2218 = vmatprep.subr.mxu0 0.0
    %2219 = vmatpush1.msra.mxu0 0.0
    %2220 = vmatprep.subr.mxu0 0.0
    %2221 = vmatpush1.msra.mxu0 0.0
    %2222 = vmatprep.subr.mxu0 0.0
    %2223 = vmatpush1.msra.mxu0 0.0
    %2224 = vmatprep.subr.mxu0 0.0
    %2225 = vmatpush1.msra.mxu0 0.0
    %2226 = vmatprep.subr.mxu0 0.0
    %2227 = vmatpush1.msra.mxu0 0.0
    %2228 = vmatprep.subr.mxu0 0.0
    %2229 = vmatpush1.msra.mxu0 0.0
    %2230 = vmatprep.subr.mxu0 0.0
    %2231 = vmatpush1.msra.mxu0 0.0
    %2232 = vmatprep.mubr.f32.mxu0 0.0
    %v2233 = vand.u32 %v1620, 4294901760
    %2234 = vmatmul.mubr.f32.gmra.mrb[0].mxu0 %v2233
    %v2235 = vpop.f32.mrb[0].mxu0
    %v2236 = vadd.f32 %v2155, %v2235
    %v2237 = vpop.f32.mrb[0].mxu0
    %2238 = vdwg.mxu0
    %2239 = vmatprep.subr.mxu0 0.0
    %v2240 = vand.u32 %v28, 4294901760
    %v2241 = vsub.f32 %v28, %v2240
    %2242 = vmatpush1.msra.mxu0 %v2241
    %2243 = vmatprep.subr.mxu0 0.0
    %v2244 = vand.u32 %v29, 4294901760
    %v2245 = vsub.f32 %v29, %v2244
    %2246 = vmatpush1.msra.mxu0 %v2245
    %2247 = vmatprep.subr.mxu0 0.0
    %2248 = vmatpush1.msra.mxu0 0.0
    %2249 = vmatprep.subr.mxu0 0.0
    %2250 = vmatpush1.msra.mxu0 0.0
    %2251 = vmatprep.subr.mxu0 0.0
    %2252 = vmatpush1.msra.mxu0 0.0
    %2253 = vmatprep.subr.mxu0 0.0
    %2254 = vmatpush1.msra.mxu0 0.0
    %2255 = vmatprep.subr.mxu0 0.0
    %2256 = vmatpush1.msra.mxu0 0.0
    %2257 = vmatprep.subr.mxu0 0.0
    %2258 = vmatpush1.msra.mxu0 0.0
    %2259 = vmatprep.subr.mxu0 0.0
    %2260 = vmatpush1.msra.mxu0 0.0
    %2261 = vmatprep.subr.mxu0 0.0
    %2262 = vmatpush1.msra.mxu0 0.0
    %2263 = vmatprep.subr.mxu0 0.0
    %2264 = vmatpush1.msra.mxu0 0.0
    %2265 = vmatprep.subr.mxu0 0.0
    %2266 = vmatpush1.msra.mxu0 0.0
    %2267 = vmatprep.subr.mxu0 0.0
    %2268 = vmatpush1.msra.mxu0 0.0
    %2269 = vmatprep.subr.mxu0 0.0
    %2270 = vmatpush1.msra.mxu0 0.0
    %2271 = vmatprep.subr.mxu0 0.0
    %2272 = vmatpush1.msra.mxu0 0.0
    %2273 = vmatprep.subr.mxu0 0.0
    %2274 = vmatpush1.msra.mxu0 0.0
    %2275 = vmatprep.subr.mxu0 0.0
    %2276 = vmatpush1.msra.mxu0 0.0
    %2277 = vmatprep.subr.mxu0 0.0
    %2278 = vmatpush1.msra.mxu0 0.0
    %2279 = vmatprep.subr.mxu0 0.0
    %2280 = vmatpush1.msra.mxu0 0.0
    %2281 = vmatprep.subr.mxu0 0.0
    %2282 = vmatpush1.msra.mxu0 0.0
    %2283 = vmatprep.subr.mxu0 0.0
    %2284 = vmatpush1.msra.mxu0 0.0
    %2285 = vmatprep.subr.mxu0 0.0
    %2286 = vmatpush1.msra.mxu0 0.0
    %2287 = vmatprep.subr.mxu0 0.0
    %2288 = vmatpush1.msra.mxu0 0.0
    %2289 = vmatprep.subr.mxu0 0.0
    %2290 = vmatpush1.msra.mxu0 0.0
    %2291 = vmatprep.subr.mxu0 0.0
    %2292 = vmatpush1.msra.mxu0 0.0
    %2293 = vmatprep.subr.mxu0 0.0
    %2294 = vmatpush1.msra.mxu0 0.0
    %2295 = vmatprep.subr.mxu0 0.0
    %2296 = vmatpush1.msra.mxu0 0.0
    %2297 = vmatprep.subr.mxu0 0.0
    %2298 = vmatpush1.msra.mxu0 0.0
    %2299 = vmatprep.subr.mxu0 0.0
    %2300 = vmatpush1.msra.mxu0 0.0
    %2301 = vmatprep.subr.mxu0 0.0
    %2302 = vmatpush1.msra.mxu0 0.0
    %2303 = vmatprep.subr.mxu0 0.0
    %2304 = vmatpush1.msra.mxu0 0.0
    %2305 = vmatprep.subr.mxu0 0.0
    %2306 = vmatpush1.msra.mxu0 0.0
    %2307 = vmatprep.mubr.f32.mxu0 0.0
    %v2308 = vand.u32 %v1620, 4294901760
    %v2309 = vsub.f32 %v1620, %v2308
    %2310 = vmatmul.mubr.f32.gmra.mrb[0].mxu0 %v2309
    %v2311 = vpop.f32.mrb[0].mxu0
    %v2312 = vadd.f32 %v2236, %v2311
    %v2313 = vpop.f32.mrb[0].mxu0
    %2314 = vdwg.mxu0
    %2315 = vmatprep.subr.mxu0 0.0
    %v2316 = vand.u32 %v28, 4294901760
    %2317 = vmatpush1.msra.mxu0 %v2316
    %2318 = vmatprep.subr.mxu0 0.0
    %v2319 = vand.u32 %v29, 4294901760
    %2320 = vmatpush1.msra.mxu0 %v2319
    %2321 = vmatprep.subr.mxu0 0.0
    %2322 = vmatpush1.msra.mxu0 0.0
    %2323 = vmatprep.subr.mxu0 0.0
    %2324 = vmatpush1.msra.mxu0 0.0
    %2325 = vmatprep.subr.mxu0 0.0
    %2326 = vmatpush1.msra.mxu0 0.0
    %2327 = vmatprep.subr.mxu0 0.0
    %2328 = vmatpush1.msra.mxu0 0.0
    %2329 = vmatprep.subr.mxu0 0.0
    %2330 = vmatpush1.msra.mxu0 0.0
    %2331 = vmatprep.subr.mxu0 0.0
    %2332 = vmatpush1.msra.mxu0 0.0
    %2333 = vmatprep.subr.mxu0 0.0
    %2334 = vmatpush1.msra.mxu0 0.0
    %2335 = vmatprep.subr.mxu0 0.0
    %2336 = vmatpush1.msra.mxu0 0.0
    %2337 = vmatprep.subr.mxu0 0.0
    %2338 = vmatpush1.msra.mxu0 0.0
    %2339 = vmatprep.subr.mxu0 0.0
    %2340 = vmatpush1.msra.mxu0 0.0
    %2341 = vmatprep.subr.mxu0 0.0
    %2342 = vmatpush1.msra.mxu0 0.0
    %2343 = vmatprep.subr.mxu0 0.0
    %2344 = vmatpush1.msra.mxu0 0.0
    %2345 = vmatprep.subr.mxu0 0.0
    %2346 = vmatpush1.msra.mxu0 0.0
    %2347 = vmatprep.subr.mxu0 0.0
    %2348 = vmatpush1.msra.mxu0 0.0
    %2349 = vmatprep.subr.mxu0 0.0
    %2350 = vmatpush1.msra.mxu0 0.0
    %2351 = vmatprep.subr.mxu0 0.0
    %2352 = vmatpush1.msra.mxu0 0.0
    %2353 = vmatprep.subr.mxu0 0.0
    %2354 = vmatpush1.msra.mxu0 0.0
    %2355 = vmatprep.subr.mxu0 0.0
    %2356 = vmatpush1.msra.mxu0 0.0
    %2357 = vmatprep.subr.mxu0 0.0
    %2358 = vmatpush1.msra.mxu0 0.0
    %2359 = vmatprep.subr.mxu0 0.0
    %2360 = vmatpush1.msra.mxu0 0.0
    %2361 = vmatprep.subr.mxu0 0.0
    %2362 = vmatpush1.msra.mxu0 0.0
    %2363 = vmatprep.subr.mxu0 0.0
    %2364 = vmatpush1.msra.mxu0 0.0
    %2365 = vmatprep.subr.mxu0 0.0
    %2366 = vmatpush1.msra.mxu0 0.0
    %2367 = vmatprep.subr.mxu0 0.0
    %2368 = vmatpush1.msra.mxu0 0.0
    %2369 = vmatprep.subr.mxu0 0.0
    %2370 = vmatpush1.msra.mxu0 0.0
    %2371 = vmatprep.subr.mxu0 0.0
    %2372 = vmatpush1.msra.mxu0 0.0
    %2373 = vmatprep.subr.mxu0 0.0
    %2374 = vmatpush1.msra.mxu0 0.0
    %2375 = vmatprep.subr.mxu0 0.0
    %2376 = vmatpush1.msra.mxu0 0.0
    %2377 = vmatprep.subr.mxu0 0.0
    %2378 = vmatpush1.msra.mxu0 0.0
    %2379 = vmatprep.subr.mxu0 0.0
    %2380 = vmatpush1.msra.mxu0 0.0
    %2381 = vmatprep.mubr.f32.mxu0 0.0
    %v2382 = vand.u32 %v1620, 4294901760
    %v2383 = vsub.f32 %v1620, %v2382
    %v2384 = vand.u32 %v2383, 4294901760
    %2385 = vmatmul.mubr.f32.gmra.mrb[0].mxu0 %v2384
    %v2386 = vpop.f32.mrb[0].mxu0
    %v2387 = vadd.f32 %v2312, %v2386
    %v2388 = vpop.f32.mrb[0].mxu0
    %2389 = vdwg.mxu0
    %2390 = vmatprep.subr.mxu0 0.0
    %v2391 = vand.u32 %v28, 4294901760
    %v2392 = vsub.f32 %v28, %v2391
    %v2393 = vand.u32 %v2392, 4294901760
    %2394 = vmatpush1.msra.mxu0 %v2393
    %2395 = vmatprep.subr.mxu0 0.0
    %v2396 = vand.u32 %v29, 4294901760
    %v2397 = vsub.f32 %v29, %v2396
    %v2398 = vand.u32 %v2397, 4294901760
    %2399 = vmatpush1.msra.mxu0 %v2398
    %2400 = vmatprep.subr.mxu0 0.0
    %2401 = vmatpush1.msra.mxu0 0.0
    %2402 = vmatprep.subr.mxu0 0.0
    %2403 = vmatpush1.msra.mxu0 0.0
    %2404 = vmatprep.subr.mxu0 0.0
    %2405 = vmatpush1.msra.mxu0 0.0
    %2406 = vmatprep.subr.mxu0 0.0
    %2407 = vmatpush1.msra.mxu0 0.0
    %2408 = vmatprep.subr.mxu0 0.0
    %2409 = vmatpush1.msra.mxu0 0.0
    %2410 = vmatprep.subr.mxu0 0.0
    %2411 = vmatpush1.msra.mxu0 0.0
    %2412 = vmatprep.subr.mxu0 0.0
    %2413 = vmatpush1.msra.mxu0 0.0
    %2414 = vmatprep.subr.mxu0 0.0
    %2415 = vmatpush1.msra.mxu0 0.0
    %2416 = vmatprep.subr.mxu0 0.0
    %2417 = vmatpush1.msra.mxu0 0.0
    %2418 = vmatprep.subr.mxu0 0.0
    %2419 = vmatpush1.msra.mxu0 0.0
    %2420 = vmatprep.subr.mxu0 0.0
    %2421 = vmatpush1.msra.mxu0 0.0
    %2422 = vmatprep.subr.mxu0 0.0
    %2423 = vmatpush1.msra.mxu0 0.0
    %2424 = vmatprep.subr.mxu0 0.0
    %2425 = vmatpush1.msra.mxu0 0.0
    %2426 = vmatprep.subr.mxu0 0.0
    %2427 = vmatpush1.msra.mxu0 0.0
    %2428 = vmatprep.subr.mxu0 0.0
    %2429 = vmatpush1.msra.mxu0 0.0
    %2430 = vmatprep.subr.mxu0 0.0
    %2431 = vmatpush1.msra.mxu0 0.0
    %2432 = vmatprep.subr.mxu0 0.0
    %2433 = vmatpush1.msra.mxu0 0.0
    %2434 = vmatprep.subr.mxu0 0.0
    %2435 = vmatpush1.msra.mxu0 0.0
    %2436 = vmatprep.subr.mxu0 0.0
    %2437 = vmatpush1.msra.mxu0 0.0
    %2438 = vmatprep.subr.mxu0 0.0
    %2439 = vmatpush1.msra.mxu0 0.0
    %2440 = vmatprep.subr.mxu0 0.0
    %2441 = vmatpush1.msra.mxu0 0.0
    %2442 = vmatprep.subr.mxu0 0.0
    %2443 = vmatpush1.msra.mxu0 0.0
    %2444 = vmatprep.subr.mxu0 0.0
    %2445 = vmatpush1.msra.mxu0 0.0
    %2446 = vmatprep.subr.mxu0 0.0
    %2447 = vmatpush1.msra.mxu0 0.0
    %2448 = vmatprep.subr.mxu0 0.0
    %2449 = vmatpush1.msra.mxu0 0.0
    %2450 = vmatprep.subr.mxu0 0.0
    %2451 = vmatpush1.msra.mxu0 0.0
    %2452 = vmatprep.subr.mxu0 0.0
    %2453 = vmatpush1.msra.mxu0 0.0
    %2454 = vmatprep.subr.mxu0 0.0
    %2455 = vmatpush1.msra.mxu0 0.0
    %2456 = vmatprep.subr.mxu0 0.0
    %2457 = vmatpush1.msra.mxu0 0.0
    %2458 = vmatprep.subr.mxu0 0.0
    %2459 = vmatpush1.msra.mxu0 0.0
    %2460 = vmatprep.mubr.f32.mxu0 0.0
    %v2461 = vand.u32 %v1620, 4294901760
    %2462 = vmatmul.mubr.f32.gmra.mrb[0].mxu0 %v2461
    %v2463 = vpop.f32.mrb[0].mxu0
    %v2464 = vadd.f32 %v2387, %v2463
    %v2465 = vpop.f32.mrb[0].mxu0
    %2466 = vdwg.mxu0
    %2467 = vmatprep.subr.mxu0 0.0
    %v2468 = vand.u32 %v28, 4294901760
    %2469 = vmatpush1.msra.mxu0 %v2468
    %2470 = vmatprep.subr.mxu0 0.0
    %v2471 = vand.u32 %v29, 4294901760
    %2472 = vmatpush1.msra.mxu0 %v2471
    %2473 = vmatprep.subr.mxu0 0.0
    %2474 = vmatpush1.msra.mxu0 0.0
    %2475 = vmatprep.subr.mxu0 0.0
    %2476 = vmatpush1.msra.mxu0 0.0
    %2477 = vmatprep.subr.mxu0 0.0
    %2478 = vmatpush1.msra.mxu0 0.0
    %2479 = vmatprep.subr.mxu0 0.0
    %2480 = vmatpush1.msra.mxu0 0.0
    %2481 = vmatprep.subr.mxu0 0.0
    %2482 = vmatpush1.msra.mxu0 0.0
    %2483 = vmatprep.subr.mxu0 0.0
    %2484 = vmatpush1.msra.mxu0 0.0
    %2485 = vmatprep.subr.mxu0 0.0
    %2486 = vmatpush1.msra.mxu0 0.0
    %2487 = vmatprep.subr.mxu0 0.0
    %2488 = vmatpush1.msra.mxu0 0.0
    %2489 = vmatprep.subr.mxu0 0.0
    %2490 = vmatpush1.msra.mxu0 0.0
    %2491 = vmatprep.subr.mxu0 0.0
    %2492 = vmatpush1.msra.mxu0 0.0
    %2493 = vmatprep.subr.mxu0 0.0
    %2494 = vmatpush1.msra.mxu0 0.0
    %2495 = vmatprep.subr.mxu0 0.0
    %2496 = vmatpush1.msra.mxu0 0.0
    %2497 = vmatprep.subr.mxu0 0.0
    %2498 = vmatpush1.msra.mxu0 0.0
    %2499 = vmatprep.subr.mxu0 0.0
    %2500 = vmatpush1.msra.mxu0 0.0
    %2501 = vmatprep.subr.mxu0 0.0
    %2502 = vmatpush1.msra.mxu0 0.0
    %2503 = vmatprep.subr.mxu0 0.0
    %2504 = vmatpush1.msra.mxu0 0.0
    %2505 = vmatprep.subr.mxu0 0.0
    %2506 = vmatpush1.msra.mxu0 0.0
    %2507 = vmatprep.subr.mxu0 0.0
    %2508 = vmatpush1.msra.mxu0 0.0
    %2509 = vmatprep.subr.mxu0 0.0
    %2510 = vmatpush1.msra.mxu0 0.0
    %2511 = vmatprep.subr.mxu0 0.0
    %2512 = vmatpush1.msra.mxu0 0.0
    %2513 = vmatprep.subr.mxu0 0.0
    %2514 = vmatpush1.msra.mxu0 0.0
    %2515 = vmatprep.subr.mxu0 0.0
    %2516 = vmatpush1.msra.mxu0 0.0
    %2517 = vmatprep.subr.mxu0 0.0
    %2518 = vmatpush1.msra.mxu0 0.0
    %2519 = vmatprep.subr.mxu0 0.0
    %2520 = vmatpush1.msra.mxu0 0.0
    %2521 = vmatprep.subr.mxu0 0.0
    %2522 = vmatpush1.msra.mxu0 0.0
    %2523 = vmatprep.subr.mxu0 0.0
    %2524 = vmatpush1.msra.mxu0 0.0
    %2525 = vmatprep.subr.mxu0 0.0
    %2526 = vmatpush1.msra.mxu0 0.0
    %2527 = vmatprep.subr.mxu0 0.0
    %2528 = vmatpush1.msra.mxu0 0.0
    %2529 = vmatprep.subr.mxu0 0.0
    %2530 = vmatpush1.msra.mxu0 0.0
    %2531 = vmatprep.subr.mxu0 0.0
    %2532 = vmatpush1.msra.mxu0 0.0
    %2533 = vmatprep.mubr.f32.mxu0 0.0
    %v2534 = vand.u32 %v1620, 4294901760
    %2535 = vmatmul.mubr.f32.gmra.mrb[0].mxu0 %v2534
    %v2536 = vpop.f32.mrb[0].mxu0
    %v2537 = vadd.f32 %v2464, %v2536
    %v2538 = vpop.f32.mrb[0].mxu0
    %2539 = vdwg.mxu0
    %v2540 = vmax.f32 %v2078, %v2537
    %v2541 = vsel %vm1028, %v2540, %v2078
    %2542 = vmatprep.subr.mxu0 0.0
    %v2543 = vand.u32 %v31, 4294901760
    %2544 = vmatpush1.msra.mxu0 %v2543
    %2545 = vmatprep.subr.mxu0 0.0
    %v2546 = vand.u32 %v32, 4294901760
    %2547 = vmatpush1.msra.mxu0 %v2546
    %2548 = vmatprep.subr.mxu0 0.0
    %2549 = vmatpush1.msra.mxu0 0.0
    %2550 = vmatprep.subr.mxu0 0.0
    %2551 = vmatpush1.msra.mxu0 0.0
    %2552 = vmatprep.subr.mxu0 0.0
    %2553 = vmatpush1.msra.mxu0 0.0
    %2554 = vmatprep.subr.mxu0 0.0
    %2555 = vmatpush1.msra.mxu0 0.0
    %2556 = vmatprep.subr.mxu0 0.0
    %2557 = vmatpush1.msra.mxu0 0.0
    %2558 = vmatprep.subr.mxu0 0.0
    %2559 = vmatpush1.msra.mxu0 0.0
    %2560 = vmatprep.subr.mxu0 0.0
    %2561 = vmatpush1.msra.mxu0 0.0
    %2562 = vmatprep.subr.mxu0 0.0
    %2563 = vmatpush1.msra.mxu0 0.0
    %2564 = vmatprep.subr.mxu0 0.0
    %2565 = vmatpush1.msra.mxu0 0.0
    %2566 = vmatprep.subr.mxu0 0.0
    %2567 = vmatpush1.msra.mxu0 0.0
    %2568 = vmatprep.subr.mxu0 0.0
    %2569 = vmatpush1.msra.mxu0 0.0
    %2570 = vmatprep.subr.mxu0 0.0
    %2571 = vmatpush1.msra.mxu0 0.0
    %2572 = vmatprep.subr.mxu0 0.0
    %2573 = vmatpush1.msra.mxu0 0.0
    %2574 = vmatprep.subr.mxu0 0.0
    %2575 = vmatpush1.msra.mxu0 0.0
    %2576 = vmatprep.subr.mxu0 0.0
    %2577 = vmatpush1.msra.mxu0 0.0
    %2578 = vmatprep.subr.mxu0 0.0
    %2579 = vmatpush1.msra.mxu0 0.0
    %2580 = vmatprep.subr.mxu0 0.0
    %2581 = vmatpush1.msra.mxu0 0.0
    %2582 = vmatprep.subr.mxu0 0.0
    %2583 = vmatpush1.msra.mxu0 0.0
    %2584 = vmatprep.subr.mxu0 0.0
    %2585 = vmatpush1.msra.mxu0 0.0
    %2586 = vmatprep.subr.mxu0 0.0
    %2587 = vmatpush1.msra.mxu0 0.0
    %2588 = vmatprep.subr.mxu0 0.0
    %2589 = vmatpush1.msra.mxu0 0.0
    %2590 = vmatprep.subr.mxu0 0.0
    %2591 = vmatpush1.msra.mxu0 0.0
    %2592 = vmatprep.subr.mxu0 0.0
    %2593 = vmatpush1.msra.mxu0 0.0
    %2594 = vmatprep.subr.mxu0 0.0
    %2595 = vmatpush1.msra.mxu0 0.0
    %2596 = vmatprep.subr.mxu0 0.0
    %2597 = vmatpush1.msra.mxu0 0.0
    %2598 = vmatprep.subr.mxu0 0.0
    %2599 = vmatpush1.msra.mxu0 0.0
    %2600 = vmatprep.subr.mxu0 0.0
    %2601 = vmatpush1.msra.mxu0 0.0
    %2602 = vmatprep.subr.mxu0 0.0
    %2603 = vmatpush1.msra.mxu0 0.0
    %2604 = vmatprep.subr.mxu0 0.0
    %2605 = vmatpush1.msra.mxu0 0.0
    %2606 = vmatprep.subr.mxu0 0.0
    %2607 = vmatpush1.msra.mxu0 0.0
    %2608 = vmatprep.mubr.f32.mxu0 0.0
    %v2609 = vand.u32 %v1620, 4294901760
    %v2610 = vsub.f32 %v1620, %v2609
    %v2611 = vand.u32 %v2610, 4294901760
    %v2612 = vsub.f32 %v2610, %v2611
    %v2613 = vand.u32 %v2612, 4294901760
    %2614 = vmatmul.mubr.f32.gmra.mrb[0].mxu0 %v2613
    %v2615 = vpop.f32.mrb[0].mxu0
    %v2616 = vadd.f32 0.0, %v2615
    %v2617 = vpop.f32.mrb[0].mxu0
    %2618 = vdwg.mxu0
    %2619 = vmatprep.subr.mxu0 0.0
    %v2620 = vand.u32 %v31, 4294901760
    %v2621 = vsub.f32 %v31, %v2620
    %v2622 = vand.u32 %v2621, 4294901760
    %v2623 = vsub.f32 %v2621, %v2622
    %v2624 = vand.u32 %v2623, 4294901760
    %2625 = vmatpush1.msra.mxu0 %v2624
    %2626 = vmatprep.subr.mxu0 0.0
    %v2627 = vand.u32 %v32, 4294901760
    %v2628 = vsub.f32 %v32, %v2627
    %v2629 = vand.u32 %v2628, 4294901760
    %v2630 = vsub.f32 %v2628, %v2629
    %v2631 = vand.u32 %v2630, 4294901760
    %2632 = vmatpush1.msra.mxu0 %v2631
    %2633 = vmatprep.subr.mxu0 0.0
    %2634 = vmatpush1.msra.mxu0 0.0
    %2635 = vmatprep.subr.mxu0 0.0
    %2636 = vmatpush1.msra.mxu0 0.0
    %2637 = vmatprep.subr.mxu0 0.0
    %2638 = vmatpush1.msra.mxu0 0.0
    %2639 = vmatprep.subr.mxu0 0.0
    %2640 = vmatpush1.msra.mxu0 0.0
    %2641 = vmatprep.subr.mxu0 0.0
    %2642 = vmatpush1.msra.mxu0 0.0
    %2643 = vmatprep.subr.mxu0 0.0
    %2644 = vmatpush1.msra.mxu0 0.0
    %2645 = vmatprep.subr.mxu0 0.0
    %2646 = vmatpush1.msra.mxu0 0.0
    %2647 = vmatprep.subr.mxu0 0.0
    %2648 = vmatpush1.msra.mxu0 0.0
    %2649 = vmatprep.subr.mxu0 0.0
    %2650 = vmatpush1.msra.mxu0 0.0
    %2651 = vmatprep.subr.mxu0 0.0
    %2652 = vmatpush1.msra.mxu0 0.0
    %2653 = vmatprep.subr.mxu0 0.0
    %2654 = vmatpush1.msra.mxu0 0.0
    %2655 = vmatprep.subr.mxu0 0.0
    %2656 = vmatpush1.msra.mxu0 0.0
    %2657 = vmatprep.subr.mxu0 0.0
    %2658 = vmatpush1.msra.mxu0 0.0
    %2659 = vmatprep.subr.mxu0 0.0
    %2660 = vmatpush1.msra.mxu0 0.0
    %2661 = vmatprep.subr.mxu0 0.0
    %2662 = vmatpush1.msra.mxu0 0.0
    %2663 = vmatprep.subr.mxu0 0.0
    %2664 = vmatpush1.msra.mxu0 0.0
    %2665 = vmatprep.subr.mxu0 0.0
    %2666 = vmatpush1.msra.mxu0 0.0
    %2667 = vmatprep.subr.mxu0 0.0
    %2668 = vmatpush1.msra.mxu0 0.0
    %2669 = vmatprep.subr.mxu0 0.0
    %2670 = vmatpush1.msra.mxu0 0.0
    %2671 = vmatprep.subr.mxu0 0.0
    %2672 = vmatpush1.msra.mxu0 0.0
    %2673 = vmatprep.subr.mxu0 0.0
    %2674 = vmatpush1.msra.mxu0 0.0
    %2675 = vmatprep.subr.mxu0 0.0
    %2676 = vmatpush1.msra.mxu0 0.0
    %2677 = vmatprep.subr.mxu0 0.0
    %2678 = vmatpush1.msra.mxu0 0.0
    %2679 = vmatprep.subr.mxu0 0.0
    %2680 = vmatpush1.msra.mxu0 0.0
    %2681 = vmatprep.subr.mxu0 0.0
    %2682 = vmatpush1.msra.mxu0 0.0
    %2683 = vmatprep.subr.mxu0 0.0
    %2684 = vmatpush1.msra.mxu0 0.0
    %2685 = vmatprep.subr.mxu0 0.0
    %2686 = vmatpush1.msra.mxu0 0.0
    %2687 = vmatprep.subr.mxu0 0.0
    %2688 = vmatpush1.msra.mxu0 0.0
    %2689 = vmatprep.subr.mxu0 0.0
    %2690 = vmatpush1.msra.mxu0 0.0
    %2691 = vmatprep.subr.mxu0 0.0
    %2692 = vmatpush1.msra.mxu0 0.0
    %2693 = vmatprep.mubr.f32.mxu0 0.0
    %v2694 = vand.u32 %v1620, 4294901760
    %2695 = vmatmul.mubr.f32.gmra.mrb[0].mxu0 %v2694
    %v2696 = vpop.f32.mrb[0].mxu0
    %v2697 = vadd.f32 %v2616, %v2696
    %v2698 = vpop.f32.mrb[0].mxu0
    %2699 = vdwg.mxu0
    %2700 = vmatprep.subr.mxu0 0.0
    %v2701 = vand.u32 %v31, 4294901760
    %v2702 = vsub.f32 %v31, %v2701
    %2703 = vmatpush1.msra.mxu0 %v2702
    %2704 = vmatprep.subr.mxu0 0.0
    %v2705 = vand.u32 %v32, 4294901760
    %v2706 = vsub.f32 %v32, %v2705
    %2707 = vmatpush1.msra.mxu0 %v2706
    %2708 = vmatprep.subr.mxu0 0.0
    %2709 = vmatpush1.msra.mxu0 0.0
    %2710 = vmatprep.subr.mxu0 0.0
    %2711 = vmatpush1.msra.mxu0 0.0
    %2712 = vmatprep.subr.mxu0 0.0
    %2713 = vmatpush1.msra.mxu0 0.0
    %2714 = vmatprep.subr.mxu0 0.0
    %2715 = vmatpush1.msra.mxu0 0.0
    %2716 = vmatprep.subr.mxu0 0.0
    %2717 = vmatpush1.msra.mxu0 0.0
    %2718 = vmatprep.subr.mxu0 0.0
    %2719 = vmatpush1.msra.mxu0 0.0
    %2720 = vmatprep.subr.mxu0 0.0
    %2721 = vmatpush1.msra.mxu0 0.0
    %2722 = vmatprep.subr.mxu0 0.0
    %2723 = vmatpush1.msra.mxu0 0.0
    %2724 = vmatprep.subr.mxu0 0.0
    %2725 = vmatpush1.msra.mxu0 0.0
    %2726 = vmatprep.subr.mxu0 0.0
    %2727 = vmatpush1.msra.mxu0 0.0
    %2728 = vmatprep.subr.mxu0 0.0
    %2729 = vmatpush1.msra.mxu0 0.0
    %2730 = vmatprep.subr.mxu0 0.0
    %2731 = vmatpush1.msra.mxu0 0.0
    %2732 = vmatprep.subr.mxu0 0.0
    %2733 = vmatpush1.msra.mxu0 0.0
    %2734 = vmatprep.subr.mxu0 0.0
    %2735 = vmatpush1.msra.mxu0 0.0
    %2736 = vmatprep.subr.mxu0 0.0
    %2737 = vmatpush1.msra.mxu0 0.0
    %2738 = vmatprep.subr.mxu0 0.0
    %2739 = vmatpush1.msra.mxu0 0.0
    %2740 = vmatprep.subr.mxu0 0.0
    %2741 = vmatpush1.msra.mxu0 0.0
    %2742 = vmatprep.subr.mxu0 0.0
    %2743 = vmatpush1.msra.mxu0 0.0
    %2744 = vmatprep.subr.mxu0 0.0
    %2745 = vmatpush1.msra.mxu0 0.0
    %2746 = vmatprep.subr.mxu0 0.0
    %2747 = vmatpush1.msra.mxu0 0.0
    %2748 = vmatprep.subr.mxu0 0.0
    %2749 = vmatpush1.msra.mxu0 0.0
    %2750 = vmatprep.subr.mxu0 0.0
    %2751 = vmatpush1.msra.mxu0 0.0
    %2752 = vmatprep.subr.mxu0 0.0
    %2753 = vmatpush1.msra.mxu0 0.0
    %2754 = vmatprep.subr.mxu0 0.0
    %2755 = vmatpush1.msra.mxu0 0.0
    %2756 = vmatprep.subr.mxu0 0.0
    %2757 = vmatpush1.msra.mxu0 0.0
    %2758 = vmatprep.subr.mxu0 0.0
    %2759 = vmatpush1.msra.mxu0 0.0
    %2760 = vmatprep.subr.mxu0 0.0
    %2761 = vmatpush1.msra.mxu0 0.0
    %2762 = vmatprep.subr.mxu0 0.0
    %2763 = vmatpush1.msra.mxu0 0.0
    %2764 = vmatprep.subr.mxu0 0.0
    %2765 = vmatpush1.msra.mxu0 0.0
    %2766 = vmatprep.subr.mxu0 0.0
    %2767 = vmatpush1.msra.mxu0 0.0
    %2768 = vmatprep.mubr.f32.mxu0 0.0
    %v2769 = vand.u32 %v1620, 4294901760
    %v2770 = vsub.f32 %v1620, %v2769
    %2771 = vmatmul.mubr.f32.gmra.mrb[0].mxu0 %v2770
    %v2772 = vpop.f32.mrb[0].mxu0
    %v2773 = vadd.f32 %v2697, %v2772
    %v2774 = vpop.f32.mrb[0].mxu0
    %2775 = vdwg.mxu0
    %2776 = vmatprep.subr.mxu0 0.0
    %v2777 = vand.u32 %v31, 4294901760
    %2778 = vmatpush1.msra.mxu0 %v2777
    %2779 = vmatprep.subr.mxu0 0.0
    %v2780 = vand.u32 %v32, 4294901760
    %2781 = vmatpush1.msra.mxu0 %v2780
    %2782 = vmatprep.subr.mxu0 0.0
    %2783 = vmatpush1.msra.mxu0 0.0
    %2784 = vmatprep.subr.mxu0 0.0
    %2785 = vmatpush1.msra.mxu0 0.0
    %2786 = vmatprep.subr.mxu0 0.0
    %2787 = vmatpush1.msra.mxu0 0.0
    %2788 = vmatprep.subr.mxu0 0.0
    %2789 = vmatpush1.msra.mxu0 0.0
    %2790 = vmatprep.subr.mxu0 0.0
    %2791 = vmatpush1.msra.mxu0 0.0
    %2792 = vmatprep.subr.mxu0 0.0
    %2793 = vmatpush1.msra.mxu0 0.0
    %2794 = vmatprep.subr.mxu0 0.0
    %2795 = vmatpush1.msra.mxu0 0.0
    %2796 = vmatprep.subr.mxu0 0.0
    %2797 = vmatpush1.msra.mxu0 0.0
    %2798 = vmatprep.subr.mxu0 0.0
    %2799 = vmatpush1.msra.mxu0 0.0
    %2800 = vmatprep.subr.mxu0 0.0
    %2801 = vmatpush1.msra.mxu0 0.0
    %2802 = vmatprep.subr.mxu0 0.0
    %2803 = vmatpush1.msra.mxu0 0.0
    %2804 = vmatprep.subr.mxu0 0.0
    %2805 = vmatpush1.msra.mxu0 0.0
    %2806 = vmatprep.subr.mxu0 0.0
    %2807 = vmatpush1.msra.mxu0 0.0
    %2808 = vmatprep.subr.mxu0 0.0
    %2809 = vmatpush1.msra.mxu0 0.0
    %2810 = vmatprep.subr.mxu0 0.0
    %2811 = vmatpush1.msra.mxu0 0.0
    %2812 = vmatprep.subr.mxu0 0.0
    %2813 = vmatpush1.msra.mxu0 0.0
    %2814 = vmatprep.subr.mxu0 0.0
    %2815 = vmatpush1.msra.mxu0 0.0
    %2816 = vmatprep.subr.mxu0 0.0
    %2817 = vmatpush1.msra.mxu0 0.0
    %2818 = vmatprep.subr.mxu0 0.0
    %2819 = vmatpush1.msra.mxu0 0.0
    %2820 = vmatprep.subr.mxu0 0.0
    %2821 = vmatpush1.msra.mxu0 0.0
    %2822 = vmatprep.subr.mxu0 0.0
    %2823 = vmatpush1.msra.mxu0 0.0
    %2824 = vmatprep.subr.mxu0 0.0
    %2825 = vmatpush1.msra.mxu0 0.0
    %2826 = vmatprep.subr.mxu0 0.0
    %2827 = vmatpush1.msra.mxu0 0.0
    %2828 = vmatprep.subr.mxu0 0.0
    %2829 = vmatpush1.msra.mxu0 0.0
    %2830 = vmatprep.subr.mxu0 0.0
    %2831 = vmatpush1.msra.mxu0 0.0
    %2832 = vmatprep.subr.mxu0 0.0
    %2833 = vmatpush1.msra.mxu0 0.0
    %2834 = vmatprep.subr.mxu0 0.0
    %2835 = vmatpush1.msra.mxu0 0.0
    %2836 = vmatprep.subr.mxu0 0.0
    %2837 = vmatpush1.msra.mxu0 0.0
    %2838 = vmatprep.subr.mxu0 0.0
    %2839 = vmatpush1.msra.mxu0 0.0
    %2840 = vmatprep.subr.mxu0 0.0
    %2841 = vmatpush1.msra.mxu0 0.0
    %2842 = vmatprep.mubr.f32.mxu0 0.0
    %v2843 = vand.u32 %v1620, 4294901760
    %v2844 = vsub.f32 %v1620, %v2843
    %v2845 = vand.u32 %v2844, 4294901760
    %2846 = vmatmul.mubr.f32.gmra.mrb[0].mxu0 %v2845
    %v2847 = vpop.f32.mrb[0].mxu0
    %v2848 = vadd.f32 %v2773, %v2847
    %v2849 = vpop.f32.mrb[0].mxu0
    %2850 = vdwg.mxu0
    %2851 = vmatprep.subr.mxu0 0.0
    %v2852 = vand.u32 %v31, 4294901760
    %v2853 = vsub.f32 %v31, %v2852
    %v2854 = vand.u32 %v2853, 4294901760
    %2855 = vmatpush1.msra.mxu0 %v2854
    %2856 = vmatprep.subr.mxu0 0.0
    %v2857 = vand.u32 %v32, 4294901760
    %v2858 = vsub.f32 %v32, %v2857
    %v2859 = vand.u32 %v2858, 4294901760
    %2860 = vmatpush1.msra.mxu0 %v2859
    %2861 = vmatprep.subr.mxu0 0.0
    %2862 = vmatpush1.msra.mxu0 0.0
    %2863 = vmatprep.subr.mxu0 0.0
    %2864 = vmatpush1.msra.mxu0 0.0
    %2865 = vmatprep.subr.mxu0 0.0
    %2866 = vmatpush1.msra.mxu0 0.0
    %2867 = vmatprep.subr.mxu0 0.0
    %2868 = vmatpush1.msra.mxu0 0.0
    %2869 = vmatprep.subr.mxu0 0.0
    %2870 = vmatpush1.msra.mxu0 0.0
    %2871 = vmatprep.subr.mxu0 0.0
    %2872 = vmatpush1.msra.mxu0 0.0
    %2873 = vmatprep.subr.mxu0 0.0
    %2874 = vmatpush1.msra.mxu0 0.0
    %2875 = vmatprep.subr.mxu0 0.0
    %2876 = vmatpush1.msra.mxu0 0.0
    %2877 = vmatprep.subr.mxu0 0.0
    %2878 = vmatpush1.msra.mxu0 0.0
    %2879 = vmatprep.subr.mxu0 0.0
    %2880 = vmatpush1.msra.mxu0 0.0
    %2881 = vmatprep.subr.mxu0 0.0
    %2882 = vmatpush1.msra.mxu0 0.0
    %2883 = vmatprep.subr.mxu0 0.0
    %2884 = vmatpush1.msra.mxu0 0.0
    %2885 = vmatprep.subr.mxu0 0.0
    %2886 = vmatpush1.msra.mxu0 0.0
    %2887 = vmatprep.subr.mxu0 0.0
    %2888 = vmatpush1.msra.mxu0 0.0
    %2889 = vmatprep.subr.mxu0 0.0
    %2890 = vmatpush1.msra.mxu0 0.0
    %2891 = vmatprep.subr.mxu0 0.0
    %2892 = vmatpush1.msra.mxu0 0.0
    %2893 = vmatprep.subr.mxu0 0.0
    %2894 = vmatpush1.msra.mxu0 0.0
    %2895 = vmatprep.subr.mxu0 0.0
    %2896 = vmatpush1.msra.mxu0 0.0
    %2897 = vmatprep.subr.mxu0 0.0
    %2898 = vmatpush1.msra.mxu0 0.0
    %2899 = vmatprep.subr.mxu0 0.0
    %2900 = vmatpush1.msra.mxu0 0.0
    %2901 = vmatprep.subr.mxu0 0.0
    %2902 = vmatpush1.msra.mxu0 0.0
    %2903 = vmatprep.subr.mxu0 0.0
    %2904 = vmatpush1.msra.mxu0 0.0
    %2905 = vmatprep.subr.mxu0 0.0
    %2906 = vmatpush1.msra.mxu0 0.0
    %2907 = vmatprep.subr.mxu0 0.0
    %2908 = vmatpush1.msra.mxu0 0.0
    %2909 = vmatprep.subr.mxu0 0.0
    %2910 = vmatpush1.msra.mxu0 0.0
    %2911 = vmatprep.subr.mxu0 0.0
    %2912 = vmatpush1.msra.mxu0 0.0
    %2913 = vmatprep.subr.mxu0 0.0
    %2914 = vmatpush1.msra.mxu0 0.0
    %2915 = vmatprep.subr.mxu0 0.0
    %2916 = vmatpush1.msra.mxu0 0.0
    %2917 = vmatprep.subr.mxu0 0.0
    %2918 = vmatpush1.msra.mxu0 0.0
    %2919 = vmatprep.subr.mxu0 0.0
    %2920 = vmatpush1.msra.mxu0 0.0
    %2921 = vmatprep.mubr.f32.mxu0 0.0
    %v2922 = vand.u32 %v1620, 4294901760
    %2923 = vmatmul.mubr.f32.gmra.mrb[0].mxu0 %v2922
    %v2924 = vpop.f32.mrb[0].mxu0
    %v2925 = vadd.f32 %v2848, %v2924
    %v2926 = vpop.f32.mrb[0].mxu0
    %2927 = vdwg.mxu0
    %2928 = vmatprep.subr.mxu0 0.0
    %v2929 = vand.u32 %v31, 4294901760
    %2930 = vmatpush1.msra.mxu0 %v2929
    %2931 = vmatprep.subr.mxu0 0.0
    %v2932 = vand.u32 %v32, 4294901760
    %2933 = vmatpush1.msra.mxu0 %v2932
    %2934 = vmatprep.subr.mxu0 0.0
    %2935 = vmatpush1.msra.mxu0 0.0
    %2936 = vmatprep.subr.mxu0 0.0
    %2937 = vmatpush1.msra.mxu0 0.0
    %2938 = vmatprep.subr.mxu0 0.0
    %2939 = vmatpush1.msra.mxu0 0.0
    %2940 = vmatprep.subr.mxu0 0.0
    %2941 = vmatpush1.msra.mxu0 0.0
    %2942 = vmatprep.subr.mxu0 0.0
    %2943 = vmatpush1.msra.mxu0 0.0
    %2944 = vmatprep.subr.mxu0 0.0
    %2945 = vmatpush1.msra.mxu0 0.0
    %2946 = vmatprep.subr.mxu0 0.0
    %2947 = vmatpush1.msra.mxu0 0.0
    %2948 = vmatprep.subr.mxu0 0.0
    %2949 = vmatpush1.msra.mxu0 0.0
    %2950 = vmatprep.subr.mxu0 0.0
    %2951 = vmatpush1.msra.mxu0 0.0
    %2952 = vmatprep.subr.mxu0 0.0
    %2953 = vmatpush1.msra.mxu0 0.0
    %2954 = vmatprep.subr.mxu0 0.0
    %2955 = vmatpush1.msra.mxu0 0.0
    %2956 = vmatprep.subr.mxu0 0.0
    %2957 = vmatpush1.msra.mxu0 0.0
    %2958 = vmatprep.subr.mxu0 0.0
    %2959 = vmatpush1.msra.mxu0 0.0
    %2960 = vmatprep.subr.mxu0 0.0
    %2961 = vmatpush1.msra.mxu0 0.0
    %2962 = vmatprep.subr.mxu0 0.0
    %2963 = vmatpush1.msra.mxu0 0.0
    %2964 = vmatprep.subr.mxu0 0.0
    %2965 = vmatpush1.msra.mxu0 0.0
    %2966 = vmatprep.subr.mxu0 0.0
    %2967 = vmatpush1.msra.mxu0 0.0
    %2968 = vmatprep.subr.mxu0 0.0
    %2969 = vmatpush1.msra.mxu0 0.0
    %2970 = vmatprep.subr.mxu0 0.0
    %2971 = vmatpush1.msra.mxu0 0.0
    %2972 = vmatprep.subr.mxu0 0.0
    %2973 = vmatpush1.msra.mxu0 0.0
    %2974 = vmatprep.subr.mxu0 0.0
    %2975 = vmatpush1.msra.mxu0 0.0
    %2976 = vmatprep.subr.mxu0 0.0
    %2977 = vmatpush1.msra.mxu0 0.0
    %2978 = vmatprep.subr.mxu0 0.0
    %2979 = vmatpush1.msra.mxu0 0.0
    %2980 = vmatprep.subr.mxu0 0.0
    %2981 = vmatpush1.msra.mxu0 0.0
    %2982 = vmatprep.subr.mxu0 0.0
    %2983 = vmatpush1.msra.mxu0 0.0
    %2984 = vmatprep.subr.mxu0 0.0
    %2985 = vmatpush1.msra.mxu0 0.0
    %2986 = vmatprep.subr.mxu0 0.0
    %2987 = vmatpush1.msra.mxu0 0.0
    %2988 = vmatprep.subr.mxu0 0.0
    %2989 = vmatpush1.msra.mxu0 0.0
    %2990 = vmatprep.subr.mxu0 0.0
    %2991 = vmatpush1.msra.mxu0 0.0
    %2992 = vmatprep.subr.mxu0 0.0
    %2993 = vmatpush1.msra.mxu0 0.0
    %2994 = vmatprep.mubr.f32.mxu0 0.0
    %v2995 = vand.u32 %v1620, 4294901760
    %2996 = vmatmul.mubr.f32.gmra.mrb[0].mxu0 %v2995
    %v2997 = vpop.f32.mrb[0].mxu0
    %v2998 = vadd.f32 %v2925, %v2997
    %v2999 = vpop.f32.mrb[0].mxu0
    %3000 = vdwg.mxu0
    %v3001 = vmax.f32 %v2541, %v2998
    %v3002 = vsel %vm1028, %v3001, %v2078
    %v3004 = vcombine.high %v3002, %v3002
    %v3006 = vunpack.c.l.s4 1966171168
    %v3007 = vunpack.c.0.s8 %v3006
    %v3008 = vlaneseq
    %v3009 = vshrl.u32 %v3008, 7
    %v3010 = vsub.s32 %v3007, %v3009
    %v3011 = vrot.slane %v3002, %v3010
    %v3013 = vunpack.c.l.s4 1966171168
    %v3014 = vunpack.c.0.s8 %v3013
    %v3015 = vlaneseq
    %v3016 = vshrl.u32 %v3015, 7
    %v3017 = vsub.s32 %v3014, %v3016
    %v3018 = vrot.slane %v3004, %v3017
    %v3019 = vcombine.high %v3011, %v3011
    %v3020 = vcombine.high %v3018, %v3018
    %v3022 = vunpack.c.l.s4 1966171168
    %v3023 = vunpack.c.0.s8 %v3022
    %v3024 = vlaneseq
    %v3025 = vshrl.u32 %v3024, 7
    %v3026 = vsub.s32 %v3023, %v3025
    %v3027 = vrot.slane %v3011, %v3026
    %v3029 = vunpack.c.l.s4 1966171168
    %v3030 = vunpack.c.0.s8 %v3029
    %v3031 = vlaneseq
    %v3032 = vshrl.u32 %v3031, 7
    %v3033 = vsub.s32 %v3030, %v3032
    %v3034 = vrot.slane %v3018, %v3033
    %v3036 = vunpack.c.l.s4 1966171168
    %v3037 = vunpack.c.0.s8 %v3036
    %v3038 = vlaneseq
    %v3039 = vshrl.u32 %v3038, 7
    %v3040 = vsub.s32 %v3037, %v3039
    %v3041 = vrot.slane %v3019, %v3040
    %v3043 = vunpack.c.l.s4 1966171168
    %v3044 = vunpack.c.0.s8 %v3043
    %v3045 = vlaneseq
    %v3046 = vshrl.u32 %v3045, 7
    %v3047 = vsub.s32 %v3044, %v3046
    %v3048 = vrot.slane %v3020, %v3047
    %v3049 = vcombine.high %v3027, %v3027
    %v3050 = vcombine.high %v3034, %v3034
    %v3051 = vcombine.high %v3041, %v3041
    %v3052 = vcombine.high %v3048, %v3048
    %3061 = vst.msk [vmem:[%s2 + $0x1] sm:$0x1] %vm1549, %v3027
    %3062 = vst.msk [vmem:[%s2 + $0x9] sm:$0x1] %vm1549, %v3041
    %3063 = vst.msk [vmem:[%s2 + $0x11] sm:$0x1] %vm1549, %v3049
    %3064 = vst.msk [vmem:[%s2 + $0x19] sm:$0x1] %vm1549, %v3051
    %3065 = vst.msk [vmem:[%s2 + $0x21] sm:$0x1] %vm1549, %v3034
    %3066 = vst.msk [vmem:[%s2 + $0x29] sm:$0x1] %vm1549, %v3048
    %3067 = vst.msk [vmem:[%s2 + $0x31] sm:$0x1] %vm1549, %v3050
    %3068 = vst.msk [vmem:[%s2 + $0x39] sm:$0x1] %vm1549, %v3052
    %v3069 = vld [vmem:[#allocation2 + $0x6] sm:$0x1]
    %v3070 = vld [vmem:[#allocation2 + $0x16] sm:$0x1]
    %v3071 = vld [vmem:[#allocation2 + $0x26] sm:$0x1]
    %v3072 = vld [vmem:[#allocation2 + $0x36] sm:$0x1]
    %v3073 = vld [vmem:[#allocation2 + $0x46] sm:$0x1]
    %v3074 = vld [vmem:[#allocation2 + $0x56] sm:$0x1]
    %v3075 = vld [vmem:[#allocation2 + $0x66] sm:$0x1]
    %v3076 = vld [vmem:[#allocation2 + $0x76] sm:$0x1]
    %v3077 = vld [vmem:[#allocation2 + $0x7] sm:$0x1]
    %v3078 = vld [vmem:[#allocation2 + $0x17] sm:$0x1]
    %v3079 = vld [vmem:[#allocation2 + $0x27] sm:$0x1]
    %v3080 = vld [vmem:[#allocation2 + $0x37] sm:$0x1]
    %v3081 = vld [vmem:[#allocation2 + $0x47] sm:$0x1]
    %v3082 = vld [vmem:[#allocation2 + $0x57] sm:$0x1]
    %v3083 = vld [vmem:[#allocation2 + $0x67] sm:$0x1]
    %v3084 = vld [vmem:[#allocation2 + $0x77] sm:$0x1]
    %v3085 = vmax.f32 %v3069, %v3077
    %v3086 = vmax.f32 %v3070, %v3078
    %v3087 = vmax.f32 %v3071, %v3079
    %v3088 = vmax.f32 %v3072, %v3080
    %v3089 = vmax.f32 %v3073, %v3081
    %v3090 = vmax.f32 %v3074, %v3082
    %v3091 = vmax.f32 %v3075, %v3083
    %v3092 = vmax.f32 %v3076, %v3084
    %v3093 = vld [vmem:[#allocation2 + $0x8] sm:$0x1]
    %v3094 = vld [vmem:[#allocation2 + $0x18] sm:$0x1]
    %v3095 = vld [vmem:[#allocation2 + $0x28] sm:$0x1]
    %v3096 = vld [vmem:[#allocation2 + $0x38] sm:$0x1]
    %v3097 = vld [vmem:[#allocation2 + $0x48] sm:$0x1]
    %v3098 = vld [vmem:[#allocation2 + $0x58] sm:$0x1]
    %v3099 = vld [vmem:[#allocation2 + $0x68] sm:$0x1]
    %v3100 = vld [vmem:[#allocation2 + $0x78] sm:$0x1]
    %v3101 = vmax.f32 %v3085, %v3093
    %v3102 = vmax.f32 %v3086, %v3094
    %v3103 = vmax.f32 %v3087, %v3095
    %v3104 = vmax.f32 %v3088, %v3096
    %v3105 = vmax.f32 %v3089, %v3097
    %v3106 = vmax.f32 %v3090, %v3098
    %v3107 = vmax.f32 %v3091, %v3099
    %v3108 = vmax.f32 %v3092, %v3100
    %v3117 = vrot.slane %v3102, 7
    %v3118 = vsel %vm85, %v3117, %v3101
    %v3119 = vrot.slane %v3103, 6
    %v3120 = vsel %vm88, %v3119, %v3118
    %v3121 = vrot.slane %v3104, 5
    %v3122 = vsel %vm91, %v3121, %v3120
    %v3123 = vrot.slane %v3105, 4
    %v3124 = vsel %vm94, %v3123, %v3122
    %v3125 = vrot.slane %v3106, 3
    %v3126 = vsel %vm97, %v3125, %v3124
    %v3127 = vrot.slane %v3107, 2
    %v3128 = vsel %vm100, %v3127, %v3126
    %v3129 = vrot.slane %v3108, 1
    %v3130 = vsel %vm103, %v3129, %v3128
    %v3131 = vsel %vm105, %v3130, 0
    %3133 = vmatprep.subr.mxu0 0.0
    %v3134 = vand.u32 %v25, 4294901760
    %3135 = vmatpush1.msra.mxu0 %v3134
    %3136 = vmatprep.subr.mxu0 0.0
    %v3137 = vand.u32 %v26, 4294901760
    %3138 = vmatpush1.msra.mxu0 %v3137
    %3139 = vmatprep.subr.mxu0 0.0
    %3140 = vmatpush1.msra.mxu0 0.0
    %3141 = vmatprep.subr.mxu0 0.0
    %3142 = vmatpush1.msra.mxu0 0.0
    %3143 = vmatprep.subr.mxu0 0.0
    %3144 = vmatpush1.msra.mxu0 0.0
    %3145 = vmatprep.subr.mxu0 0.0
    %3146 = vmatpush1.msra.mxu0 0.0
    %3147 = vmatprep.subr.mxu0 0.0
    %3148 = vmatpush1.msra.mxu0 0.0
    %3149 = vmatprep.subr.mxu0 0.0
    %3150 = vmatpush1.msra.mxu0 0.0
    %3151 = vmatprep.subr.mxu0 0.0
    %3152 = vmatpush1.msra.mxu0 0.0
    %3153 = vmatprep.subr.mxu0 0.0
    %3154 = vmatpush1.msra.mxu0 0.0
    %3155 = vmatprep.subr.mxu0 0.0
    %3156 = vmatpush1.msra.mxu0 0.0
    %3157 = vmatprep.subr.mxu0 0.0
    %3158 = vmatpush1.msra.mxu0 0.0
    %3159 = vmatprep.subr.mxu0 0.0
    %3160 = vmatpush1.msra.mxu0 0.0
    %3161 = vmatprep.subr.mxu0 0.0
    %3162 = vmatpush1.msra.mxu0 0.0
    %3163 = vmatprep.subr.mxu0 0.0
    %3164 = vmatpush1.msra.mxu0 0.0
    %3165 = vmatprep.subr.mxu0 0.0
    %3166 = vmatpush1.msra.mxu0 0.0
    %3167 = vmatprep.subr.mxu0 0.0
    %3168 = vmatpush1.msra.mxu0 0.0
    %3169 = vmatprep.subr.mxu0 0.0
    %3170 = vmatpush1.msra.mxu0 0.0
    %3171 = vmatprep.subr.mxu0 0.0
    %3172 = vmatpush1.msra.mxu0 0.0
    %3173 = vmatprep.subr.mxu0 0.0
    %3174 = vmatpush1.msra.mxu0 0.0
    %3175 = vmatprep.subr.mxu0 0.0
    %3176 = vmatpush1.msra.mxu0 0.0
    %3177 = vmatprep.subr.mxu0 0.0
    %3178 = vmatpush1.msra.mxu0 0.0
    %3179 = vmatprep.subr.mxu0 0.0
    %3180 = vmatpush1.msra.mxu0 0.0
    %3181 = vmatprep.subr.mxu0 0.0
    %3182 = vmatpush1.msra.mxu0 0.0
    %3183 = vmatprep.subr.mxu0 0.0
    %3184 = vmatpush1.msra.mxu0 0.0
    %3185 = vmatprep.subr.mxu0 0.0
    %3186 = vmatpush1.msra.mxu0 0.0
    %3187 = vmatprep.subr.mxu0 0.0
    %3188 = vmatpush1.msra.mxu0 0.0
    %3189 = vmatprep.subr.mxu0 0.0
    %3190 = vmatpush1.msra.mxu0 0.0
    %3191 = vmatprep.subr.mxu0 0.0
    %3192 = vmatpush1.msra.mxu0 0.0
    %3193 = vmatprep.subr.mxu0 0.0
    %3194 = vmatpush1.msra.mxu0 0.0
    %3195 = vmatprep.subr.mxu0 0.0
    %3196 = vmatpush1.msra.mxu0 0.0
    %3197 = vmatprep.subr.mxu0 0.0
    %3198 = vmatpush1.msra.mxu0 0.0
    %3199 = vmatprep.mubr.f32.mxu0 0.0
    %v3200 = vand.u32 %v3131, 4294901760
    %v3201 = vsub.f32 %v3131, %v3200
    %v3202 = vand.u32 %v3201, 4294901760
    %v3203 = vsub.f32 %v3201, %v3202
    %v3204 = vand.u32 %v3203, 4294901760
    %3205 = vmatmul.mubr.f32.gmra.mrb[0].mxu0 %v3204
    %v3206 = vpop.f32.mrb[0].mxu0
    %v3207 = vadd.f32 0.0, %v3206
    %v3208 = vpop.f32.mrb[0].mxu0
    %3209 = vdwg.mxu0
    %3210 = vmatprep.subr.mxu0 0.0
    %v3211 = vand.u32 %v25, 4294901760
    %v3212 = vsub.f32 %v25, %v3211
    %v3213 = vand.u32 %v3212, 4294901760
    %v3214 = vsub.f32 %v3212, %v3213
    %v3215 = vand.u32 %v3214, 4294901760
    %3216 = vmatpush1.msra.mxu0 %v3215
    %3217 = vmatprep.subr.mxu0 0.0
    %v3218 = vand.u32 %v26, 4294901760
    %v3219 = vsub.f32 %v26, %v3218
    %v3220 = vand.u32 %v3219, 4294901760
    %v3221 = vsub.f32 %v3219, %v3220
    %v3222 = vand.u32 %v3221, 4294901760
    %3223 = vmatpush1.msra.mxu0 %v3222
    %3224 = vmatprep.subr.mxu0 0.0
    %3225 = vmatpush1.msra.mxu0 0.0
    %3226 = vmatprep.subr.mxu0 0.0
    %3227 = vmatpush1.msra.mxu0 0.0
    %3228 = vmatprep.subr.mxu0 0.0
    %3229 = vmatpush1.msra.mxu0 0.0
    %3230 = vmatprep.subr.mxu0 0.0
    %3231 = vmatpush1.msra.mxu0 0.0
    %3232 = vmatprep.subr.mxu0 0.0
    %3233 = vmatpush1.msra.mxu0 0.0
    %3234 = vmatprep.subr.mxu0 0.0
    %3235 = vmatpush1.msra.mxu0 0.0
    %3236 = vmatprep.subr.mxu0 0.0
    %3237 = vmatpush1.msra.mxu0 0.0
    %3238 = vmatprep.subr.mxu0 0.0
    %3239 = vmatpush1.msra.mxu0 0.0
    %3240 = vmatprep.subr.mxu0 0.0
    %3241 = vmatpush1.msra.mxu0 0.0
    %3242 = vmatprep.subr.mxu0 0.0
    %3243 = vmatpush1.msra.mxu0 0.0
    %3244 = vmatprep.subr.mxu0 0.0
    %3245 = vmatpush1.msra.mxu0 0.0
    %3246 = vmatprep.subr.mxu0 0.0
    %3247 = vmatpush1.msra.mxu0 0.0
    %3248 = vmatprep.subr.mxu0 0.0
    %3249 = vmatpush1.msra.mxu0 0.0
    %3250 = vmatprep.subr.mxu0 0.0
    %3251 = vmatpush1.msra.mxu0 0.0
    %3252 = vmatprep.subr.mxu0 0.0
    %3253 = vmatpush1.msra.mxu0 0.0
    %3254 = vmatprep.subr.mxu0 0.0
    %3255 = vmatpush1.msra.mxu0 0.0
    %3256 = vmatprep.subr.mxu0 0.0
    %3257 = vmatpush1.msra.mxu0 0.0
    %3258 = vmatprep.subr.mxu0 0.0
    %3259 = vmatpush1.msra.mxu0 0.0
    %3260 = vmatprep.subr.mxu0 0.0
    %3261 = vmatpush1.msra.mxu0 0.0
    %3262 = vmatprep.subr.mxu0 0.0
    %3263 = vmatpush1.msra.mxu0 0.0
    %3264 = vmatprep.subr.mxu0 0.0
    %3265 = vmatpush1.msra.mxu0 0.0
    %3266 = vmatprep.subr.mxu0 0.0
    %3267 = vmatpush1.msra.mxu0 0.0
    %3268 = vmatprep.subr.mxu0 0.0
    %3269 = vmatpush1.msra.mxu0 0.0
    %3270 = vmatprep.subr.mxu0 0.0
    %3271 = vmatpush1.msra.mxu0 0.0
    %3272 = vmatprep.subr.mxu0 0.0
    %3273 = vmatpush1.msra.mxu0 0.0
    %3274 = vmatprep.subr.mxu0 0.0
    %3275 = vmatpush1.msra.mxu0 0.0
    %3276 = vmatprep.subr.mxu0 0.0
    %3277 = vmatpush1.msra.mxu0 0.0
    %3278 = vmatprep.subr.mxu0 0.0
    %3279 = vmatpush1.msra.mxu0 0.0
    %3280 = vmatprep.subr.mxu0 0.0
    %3281 = vmatpush1.msra.mxu0 0.0
    %3282 = vmatprep.subr.mxu0 0.0
    %3283 = vmatpush1.msra.mxu0 0.0
    %3284 = vmatprep.mubr.f32.mxu0 0.0
    %v3285 = vand.u32 %v3131, 4294901760
    %3286 = vmatmul.mubr.f32.gmra.mrb[0].mxu0 %v3285
    %v3287 = vpop.f32.mrb[0].mxu0
    %v3288 = vadd.f32 %v3207, %v3287
    %v3289 = vpop.f32.mrb[0].mxu0
    %3290 = vdwg.mxu0
    %3291 = vmatprep.subr.mxu0 0.0
    %v3292 = vand.u32 %v25, 4294901760
    %v3293 = vsub.f32 %v25, %v3292
    %3294 = vmatpush1.msra.mxu0 %v3293
    %3295 = vmatprep.subr.mxu0 0.0
    %v3296 = vand.u32 %v26, 4294901760
    %v3297 = vsub.f32 %v26, %v3296
    %3298 = vmatpush1.msra.mxu0 %v3297
    %3299 = vmatprep.subr.mxu0 0.0
    %3300 = vmatpush1.msra.mxu0 0.0
    %3301 = vmatprep.subr.mxu0 0.0
    %3302 = vmatpush1.msra.mxu0 0.0
    %3303 = vmatprep.subr.mxu0 0.0
    %3304 = vmatpush1.msra.mxu0 0.0
    %3305 = vmatprep.subr.mxu0 0.0
    %3306 = vmatpush1.msra.mxu0 0.0
    %3307 = vmatprep.subr.mxu0 0.0
    %3308 = vmatpush1.msra.mxu0 0.0
    %3309 = vmatprep.subr.mxu0 0.0
    %3310 = vmatpush1.msra.mxu0 0.0
    %3311 = vmatprep.subr.mxu0 0.0
    %3312 = vmatpush1.msra.mxu0 0.0
    %3313 = vmatprep.subr.mxu0 0.0
    %3314 = vmatpush1.msra.mxu0 0.0
    %3315 = vmatprep.subr.mxu0 0.0
    %3316 = vmatpush1.msra.mxu0 0.0
    %3317 = vmatprep.subr.mxu0 0.0
    %3318 = vmatpush1.msra.mxu0 0.0
    %3319 = vmatprep.subr.mxu0 0.0
    %3320 = vmatpush1.msra.mxu0 0.0
    %3321 = vmatprep.subr.mxu0 0.0
    %3322 = vmatpush1.msra.mxu0 0.0
    %3323 = vmatprep.subr.mxu0 0.0
    %3324 = vmatpush1.msra.mxu0 0.0
    %3325 = vmatprep.subr.mxu0 0.0
    %3326 = vmatpush1.msra.mxu0 0.0
    %3327 = vmatprep.subr.mxu0 0.0
    %3328 = vmatpush1.msra.mxu0 0.0
    %3329 = vmatprep.subr.mxu0 0.0
    %3330 = vmatpush1.msra.mxu0 0.0
    %3331 = vmatprep.subr.mxu0 0.0
    %3332 = vmatpush1.msra.mxu0 0.0
    %3333 = vmatprep.subr.mxu0 0.0
    %3334 = vmatpush1.msra.mxu0 0.0
    %3335 = vmatprep.subr.mxu0 0.0
    %3336 = vmatpush1.msra.mxu0 0.0
    %3337 = vmatprep.subr.mxu0 0.0
    %3338 = vmatpush1.msra.mxu0 0.0
    %3339 = vmatprep.subr.mxu0 0.0
    %3340 = vmatpush1.msra.mxu0 0.0
    %3341 = vmatprep.subr.mxu0 0.0
    %3342 = vmatpush1.msra.mxu0 0.0
    %3343 = vmatprep.subr.mxu0 0.0
    %3344 = vmatpush1.msra.mxu0 0.0
    %3345 = vmatprep.subr.mxu0 0.0
    %3346 = vmatpush1.msra.mxu0 0.0
    %3347 = vmatprep.subr.mxu0 0.0
    %3348 = vmatpush1.msra.mxu0 0.0
    %3349 = vmatprep.subr.mxu0 0.0
    %3350 = vmatpush1.msra.mxu0 0.0
    %3351 = vmatprep.subr.mxu0 0.0
    %3352 = vmatpush1.msra.mxu0 0.0
    %3353 = vmatprep.subr.mxu0 0.0
    %3354 = vmatpush1.msra.mxu0 0.0
    %3355 = vmatprep.subr.mxu0 0.0
    %3356 = vmatpush1.msra.mxu0 0.0
    %3357 = vmatprep.subr.mxu0 0.0
    %3358 = vmatpush1.msra.mxu0 0.0
    %3359 = vmatprep.mubr.f32.mxu0 0.0
    %v3360 = vand.u32 %v3131, 4294901760
    %v3361 = vsub.f32 %v3131, %v3360
    %3362 = vmatmul.mubr.f32.gmra.mrb[0].mxu0 %v3361
    %v3363 = vpop.f32.mrb[0].mxu0
    %v3364 = vadd.f32 %v3288, %v3363
    %v3365 = vpop.f32.mrb[0].mxu0
    %3366 = vdwg.mxu0
    %3367 = vmatprep.subr.mxu0 0.0
    %v3368 = vand.u32 %v25, 4294901760
    %3369 = vmatpush1.msra.mxu0 %v3368
    %3370 = vmatprep.subr.mxu0 0.0
    %v3371 = vand.u32 %v26, 4294901760
    %3372 = vmatpush1.msra.mxu0 %v3371
    %3373 = vmatprep.subr.mxu0 0.0
    %3374 = vmatpush1.msra.mxu0 0.0
    %3375 = vmatprep.subr.mxu0 0.0
    %3376 = vmatpush1.msra.mxu0 0.0
    %3377 = vmatprep.subr.mxu0 0.0
    %3378 = vmatpush1.msra.mxu0 0.0
    %3379 = vmatprep.subr.mxu0 0.0
    %3380 = vmatpush1.msra.mxu0 0.0
    %3381 = vmatprep.subr.mxu0 0.0
    %3382 = vmatpush1.msra.mxu0 0.0
    %3383 = vmatprep.subr.mxu0 0.0
    %3384 = vmatpush1.msra.mxu0 0.0
    %3385 = vmatprep.subr.mxu0 0.0
    %3386 = vmatpush1.msra.mxu0 0.0
    %3387 = vmatprep.subr.mxu0 0.0
    %3388 = vmatpush1.msra.mxu0 0.0
    %3389 = vmatprep.subr.mxu0 0.0
    %3390 = vmatpush1.msra.mxu0 0.0
    %3391 = vmatprep.subr.mxu0 0.0
    %3392 = vmatpush1.msra.mxu0 0.0
    %3393 = vmatprep.subr.mxu0 0.0
    %3394 = vmatpush1.msra.mxu0 0.0
    %3395 = vmatprep.subr.mxu0 0.0
    %3396 = vmatpush1.msra.mxu0 0.0
    %3397 = vmatprep.subr.mxu0 0.0
    %3398 = vmatpush1.msra.mxu0 0.0
    %3399 = vmatprep.subr.mxu0 0.0
    %3400 = vmatpush1.msra.mxu0 0.0
    %3401 = vmatprep.subr.mxu0 0.0
    %3402 = vmatpush1.msra.mxu0 0.0
    %3403 = vmatprep.subr.mxu0 0.0
    %3404 = vmatpush1.msra.mxu0 0.0
    %3405 = vmatprep.subr.mxu0 0.0
    %3406 = vmatpush1.msra.mxu0 0.0
    %3407 = vmatprep.subr.mxu0 0.0
    %3408 = vmatpush1.msra.mxu0 0.0
    %3409 = vmatprep.subr.mxu0 0.0
    %3410 = vmatpush1.msra.mxu0 0.0
    %3411 = vmatprep.subr.mxu0 0.0
    %3412 = vmatpush1.msra.mxu0 0.0
    %3413 = vmatprep.subr.mxu0 0.0
    %3414 = vmatpush1.msra.mxu0 0.0
    %3415 = vmatprep.subr.mxu0 0.0
    %3416 = vmatpush1.msra.mxu0 0.0
    %3417 = vmatprep.subr.mxu0 0.0
    %3418 = vmatpush1.msra.mxu0 0.0
    %3419 = vmatprep.subr.mxu0 0.0
    %3420 = vmatpush1.msra.mxu0 0.0
    %3421 = vmatprep.subr.mxu0 0.0
    %3422 = vmatpush1.msra.mxu0 0.0
    %3423 = vmatprep.subr.mxu0 0.0
    %3424 = vmatpush1.msra.mxu0 0.0
    %3425 = vmatprep.subr.mxu0 0.0
    %3426 = vmatpush1.msra.mxu0 0.0
    %3427 = vmatprep.subr.mxu0 0.0
    %3428 = vmatpush1.msra.mxu0 0.0
    %3429 = vmatprep.subr.mxu0 0.0
    %3430 = vmatpush1.msra.mxu0 0.0
    %3431 = vmatprep.subr.mxu0 0.0
    %3432 = vmatpush1.msra.mxu0 0.0
    %3433 = vmatprep.mubr.f32.mxu0 0.0
    %v3434 = vand.u32 %v3131, 4294901760
    %v3435 = vsub.f32 %v3131, %v3434
    %v3436 = vand.u32 %v3435, 4294901760
    %3437 = vmatmul.mubr.f32.gmra.mrb[0].mxu0 %v3436
    %v3438 = vpop.f32.mrb[0].mxu0
    %v3439 = vadd.f32 %v3364, %v3438
    %v3440 = vpop.f32.mrb[0].mxu0
    %3441 = vdwg.mxu0
    %3442 = vmatprep.subr.mxu0 0.0
    %v3443 = vand.u32 %v25, 4294901760
    %v3444 = vsub.f32 %v25, %v3443
    %v3445 = vand.u32 %v3444, 4294901760
    %3446 = vmatpush1.msra.mxu0 %v3445
    %3447 = vmatprep.subr.mxu0 0.0
    %v3448 = vand.u32 %v26, 4294901760
    %v3449 = vsub.f32 %v26, %v3448
    %v3450 = vand.u32 %v3449, 4294901760
    %3451 = vmatpush1.msra.mxu0 %v3450
    %3452 = vmatprep.subr.mxu0 0.0
    %3453 = vmatpush1.msra.mxu0 0.0
    %3454 = vmatprep.subr.mxu0 0.0
    %3455 = vmatpush1.msra.mxu0 0.0
    %3456 = vmatprep.subr.mxu0 0.0
    %3457 = vmatpush1.msra.mxu0 0.0
    %3458 = vmatprep.subr.mxu0 0.0
    %3459 = vmatpush1.msra.mxu0 0.0
    %3460 = vmatprep.subr.mxu0 0.0
    %3461 = vmatpush1.msra.mxu0 0.0
    %3462 = vmatprep.subr.mxu0 0.0
    %3463 = vmatpush1.msra.mxu0 0.0
    %3464 = vmatprep.subr.mxu0 0.0
    %3465 = vmatpush1.msra.mxu0 0.0
    %3466 = vmatprep.subr.mxu0 0.0
    %3467 = vmatpush1.msra.mxu0 0.0
    %3468 = vmatprep.subr.mxu0 0.0
    %3469 = vmatpush1.msra.mxu0 0.0
    %3470 = vmatprep.subr.mxu0 0.0
    %3471 = vmatpush1.msra.mxu0 0.0
    %3472 = vmatprep.subr.mxu0 0.0
    %3473 = vmatpush1.msra.mxu0 0.0
    %3474 = vmatprep.subr.mxu0 0.0
    %3475 = vmatpush1.msra.mxu0 0.0
    %3476 = vmatprep.subr.mxu0 0.0
    %3477 = vmatpush1.msra.mxu0 0.0
    %3478 = vmatprep.subr.mxu0 0.0
    %3479 = vmatpush1.msra.mxu0 0.0
    %3480 = vmatprep.subr.mxu0 0.0
    %3481 = vmatpush1.msra.mxu0 0.0
    %3482 = vmatprep.subr.mxu0 0.0
    %3483 = vmatpush1.msra.mxu0 0.0
    %3484 = vmatprep.subr.mxu0 0.0
    %3485 = vmatpush1.msra.mxu0 0.0
    %3486 = vmatprep.subr.mxu0 0.0
    %3487 = vmatpush1.msra.mxu0 0.0
    %3488 = vmatprep.subr.mxu0 0.0
    %3489 = vmatpush1.msra.mxu0 0.0
    %3490 = vmatprep.subr.mxu0 0.0
    %3491 = vmatpush1.msra.mxu0 0.0
    %3492 = vmatprep.subr.mxu0 0.0
    %3493 = vmatpush1.msra.mxu0 0.0
    %3494 = vmatprep.subr.mxu0 0.0
    %3495 = vmatpush1.msra.mxu0 0.0
    %3496 = vmatprep.subr.mxu0 0.0
    %3497 = vmatpush1.msra.mxu0 0.0
    %3498 = vmatprep.subr.mxu0 0.0
    %3499 = vmatpush1.msra.mxu0 0.0
    %3500 = vmatprep.subr.mxu0 0.0
    %3501 = vmatpush1.msra.mxu0 0.0
    %3502 = vmatprep.subr.mxu0 0.0
    %3503 = vmatpush1.msra.mxu0 0.0
    %3504 = vmatprep.subr.mxu0 0.0
    %3505 = vmatpush1.msra.mxu0 0.0
    %3506 = vmatprep.subr.mxu0 0.0
    %3507 = vmatpush1.msra.mxu0 0.0
    %3508 = vmatprep.subr.mxu0 0.0
    %3509 = vmatpush1.msra.mxu0 0.0
    %3510 = vmatprep.subr.mxu0 0.0
    %3511 = vmatpush1.msra.mxu0 0.0
    %3512 = vmatprep.mubr.f32.mxu0 0.0
    %v3513 = vand.u32 %v3131, 4294901760
    %3514 = vmatmul.mubr.f32.gmra.mrb[0].mxu0 %v3513
    %v3515 = vpop.f32.mrb[0].mxu0
    %v3516 = vadd.f32 %v3439, %v3515
    %v3517 = vpop.f32.mrb[0].mxu0
    %3518 = vdwg.mxu0
    %3519 = vmatprep.subr.mxu0 0.0
    %v3520 = vand.u32 %v25, 4294901760
    %3521 = vmatpush1.msra.mxu0 %v3520
    %3522 = vmatprep.subr.mxu0 0.0
    %v3523 = vand.u32 %v26, 4294901760
    %3524 = vmatpush1.msra.mxu0 %v3523
    %3525 = vmatprep.subr.mxu0 0.0
    %3526 = vmatpush1.msra.mxu0 0.0
    %3527 = vmatprep.subr.mxu0 0.0
    %3528 = vmatpush1.msra.mxu0 0.0
    %3529 = vmatprep.subr.mxu0 0.0
    %3530 = vmatpush1.msra.mxu0 0.0
    %3531 = vmatprep.subr.mxu0 0.0
    %3532 = vmatpush1.msra.mxu0 0.0
    %3533 = vmatprep.subr.mxu0 0.0
    %3534 = vmatpush1.msra.mxu0 0.0
    %3535 = vmatprep.subr.mxu0 0.0
    %3536 = vmatpush1.msra.mxu0 0.0
    %3537 = vmatprep.subr.mxu0 0.0
    %3538 = vmatpush1.msra.mxu0 0.0
    %3539 = vmatprep.subr.mxu0 0.0
    %3540 = vmatpush1.msra.mxu0 0.0
    %3541 = vmatprep.subr.mxu0 0.0
    %3542 = vmatpush1.msra.mxu0 0.0
    %3543 = vmatprep.subr.mxu0 0.0
    %3544 = vmatpush1.msra.mxu0 0.0
    %3545 = vmatprep.subr.mxu0 0.0
    %3546 = vmatpush1.msra.mxu0 0.0
    %3547 = vmatprep.subr.mxu0 0.0
    %3548 = vmatpush1.msra.mxu0 0.0
    %3549 = vmatprep.subr.mxu0 0.0
    %3550 = vmatpush1.msra.mxu0 0.0
    %3551 = vmatprep.subr.mxu0 0.0
    %3552 = vmatpush1.msra.mxu0 0.0
    %3553 = vmatprep.subr.mxu0 0.0
    %3554 = vmatpush1.msra.mxu0 0.0
    %3555 = vmatprep.subr.mxu0 0.0
    %3556 = vmatpush1.msra.mxu0 0.0
    %3557 = vmatprep.subr.mxu0 0.0
    %3558 = vmatpush1.msra.mxu0 0.0
    %3559 = vmatprep.subr.mxu0 0.0
    %3560 = vmatpush1.msra.mxu0 0.0
    %3561 = vmatprep.subr.mxu0 0.0
    %3562 = vmatpush1.msra.mxu0 0.0
    %3563 = vmatprep.subr.mxu0 0.0
    %3564 = vmatpush1.msra.mxu0 0.0
    %3565 = vmatprep.subr.mxu0 0.0
    %3566 = vmatpush1.msra.mxu0 0.0
    %3567 = vmatprep.subr.mxu0 0.0
    %3568 = vmatpush1.msra.mxu0 0.0
    %3569 = vmatprep.subr.mxu0 0.0
    %3570 = vmatpush1.msra.mxu0 0.0
    %3571 = vmatprep.subr.mxu0 0.0
    %3572 = vmatpush1.msra.mxu0 0.0
    %3573 = vmatprep.subr.mxu0 0.0
    %3574 = vmatpush1.msra.mxu0 0.0
    %3575 = vmatprep.subr.mxu0 0.0
    %3576 = vmatpush1.msra.mxu0 0.0
    %3577 = vmatprep.subr.mxu0 0.0
    %3578 = vmatpush1.msra.mxu0 0.0
    %3579 = vmatprep.subr.mxu0 0.0
    %3580 = vmatpush1.msra.mxu0 0.0
    %3581 = vmatprep.subr.mxu0 0.0
    %3582 = vmatpush1.msra.mxu0 0.0
    %3583 = vmatprep.subr.mxu0 0.0
    %3584 = vmatpush1.msra.mxu0 0.0
    %3585 = vmatprep.mubr.f32.mxu0 0.0
    %v3586 = vand.u32 %v3131, 4294901760
    %3587 = vmatmul.mubr.f32.gmra.mrb[0].mxu0 %v3586
    %v3588 = vpop.f32.mrb[0].mxu0
    %v3589 = vadd.f32 %v3516, %v3588
    %v3590 = vpop.f32.mrb[0].mxu0
    %3591 = vdwg.mxu0
    %3592 = vmatprep.subr.mxu0 0.0
    %v3593 = vand.u32 %v28, 4294901760
    %3594 = vmatpush1.msra.mxu0 %v3593
    %3595 = vmatprep.subr.mxu0 0.0
    %v3596 = vand.u32 %v29, 4294901760
    %3597 = vmatpush1.msra.mxu0 %v3596
    %3598 = vmatprep.subr.mxu0 0.0
    %3599 = vmatpush1.msra.mxu0 0.0
    %3600 = vmatprep.subr.mxu0 0.0
    %3601 = vmatpush1.msra.mxu0 0.0
    %3602 = vmatprep.subr.mxu0 0.0
    %3603 = vmatpush1.msra.mxu0 0.0
    %3604 = vmatprep.subr.mxu0 0.0
    %3605 = vmatpush1.msra.mxu0 0.0
    %3606 = vmatprep.subr.mxu0 0.0
    %3607 = vmatpush1.msra.mxu0 0.0
    %3608 = vmatprep.subr.mxu0 0.0
    %3609 = vmatpush1.msra.mxu0 0.0
    %3610 = vmatprep.subr.mxu0 0.0
    %3611 = vmatpush1.msra.mxu0 0.0
    %3612 = vmatprep.subr.mxu0 0.0
    %3613 = vmatpush1.msra.mxu0 0.0
    %3614 = vmatprep.subr.mxu0 0.0
    %3615 = vmatpush1.msra.mxu0 0.0
    %3616 = vmatprep.subr.mxu0 0.0
    %3617 = vmatpush1.msra.mxu0 0.0
    %3618 = vmatprep.subr.mxu0 0.0
    %3619 = vmatpush1.msra.mxu0 0.0
    %3620 = vmatprep.subr.mxu0 0.0
    %3621 = vmatpush1.msra.mxu0 0.0
    %3622 = vmatprep.subr.mxu0 0.0
    %3623 = vmatpush1.msra.mxu0 0.0
    %3624 = vmatprep.subr.mxu0 0.0
    %3625 = vmatpush1.msra.mxu0 0.0
    %3626 = vmatprep.subr.mxu0 0.0
    %3627 = vmatpush1.msra.mxu0 0.0
    %3628 = vmatprep.subr.mxu0 0.0
    %3629 = vmatpush1.msra.mxu0 0.0
    %3630 = vmatprep.subr.mxu0 0.0
    %3631 = vmatpush1.msra.mxu0 0.0
    %3632 = vmatprep.subr.mxu0 0.0
    %3633 = vmatpush1.msra.mxu0 0.0
    %3634 = vmatprep.subr.mxu0 0.0
    %3635 = vmatpush1.msra.mxu0 0.0
    %3636 = vmatprep.subr.mxu0 0.0
    %3637 = vmatpush1.msra.mxu0 0.0
    %3638 = vmatprep.subr.mxu0 0.0
    %3639 = vmatpush1.msra.mxu0 0.0
    %3640 = vmatprep.subr.mxu0 0.0
    %3641 = vmatpush1.msra.mxu0 0.0
    %3642 = vmatprep.subr.mxu0 0.0
    %3643 = vmatpush1.msra.mxu0 0.0
    %3644 = vmatprep.subr.mxu0 0.0
    %3645 = vmatpush1.msra.mxu0 0.0
    %3646 = vmatprep.subr.mxu0 0.0
    %3647 = vmatpush1.msra.mxu0 0.0
    %3648 = vmatprep.subr.mxu0 0.0
    %3649 = vmatpush1.msra.mxu0 0.0
    %3650 = vmatprep.subr.mxu0 0.0
    %3651 = vmatpush1.msra.mxu0 0.0
    %3652 = vmatprep.subr.mxu0 0.0
    %3653 = vmatpush1.msra.mxu0 0.0
    %3654 = vmatprep.subr.mxu0 0.0
    %3655 = vmatpush1.msra.mxu0 0.0
    %3656 = vmatprep.subr.mxu0 0.0
    %3657 = vmatpush1.msra.mxu0 0.0
    %3658 = vmatprep.mubr.f32.mxu0 0.0
    %v3659 = vand.u32 %v3131, 4294901760
    %v3660 = vsub.f32 %v3131, %v3659
    %v3661 = vand.u32 %v3660, 4294901760
    %v3662 = vsub.f32 %v3660, %v3661
    %v3663 = vand.u32 %v3662, 4294901760
    %3664 = vmatmul.mubr.f32.gmra.mrb[0].mxu0 %v3663
    %v3665 = vpop.f32.mrb[0].mxu0
    %v3666 = vadd.f32 0.0, %v3665
    %v3667 = vpop.f32.mrb[0].mxu0
    %3668 = vdwg.mxu0
    %3669 = vmatprep.subr.mxu0 0.0
    %v3670 = vand.u32 %v28, 4294901760
    %v3671 = vsub.f32 %v28, %v3670
    %v3672 = vand.u32 %v3671, 4294901760
    %v3673 = vsub.f32 %v3671, %v3672
    %v3674 = vand.u32 %v3673, 4294901760
    %3675 = vmatpush1.msra.mxu0 %v3674
    %3676 = vmatprep.subr.mxu0 0.0
    %v3677 = vand.u32 %v29, 4294901760
    %v3678 = vsub.f32 %v29, %v3677
    %v3679 = vand.u32 %v3678, 4294901760
    %v3680 = vsub.f32 %v3678, %v3679
    %v3681 = vand.u32 %v3680, 4294901760
    %3682 = vmatpush1.msra.mxu0 %v3681
    %3683 = vmatprep.subr.mxu0 0.0
    %3684 = vmatpush1.msra.mxu0 0.0
    %3685 = vmatprep.subr.mxu0 0.0
    %3686 = vmatpush1.msra.mxu0 0.0
    %3687 = vmatprep.subr.mxu0 0.0
    %3688 = vmatpush1.msra.mxu0 0.0
    %3689 = vmatprep.subr.mxu0 0.0
    %3690 = vmatpush1.msra.mxu0 0.0
    %3691 = vmatprep.subr.mxu0 0.0
    %3692 = vmatpush1.msra.mxu0 0.0
    %3693 = vmatprep.subr.mxu0 0.0
    %3694 = vmatpush1.msra.mxu0 0.0
    %3695 = vmatprep.subr.mxu0 0.0
    %3696 = vmatpush1.msra.mxu0 0.0
    %3697 = vmatprep.subr.mxu0 0.0
    %3698 = vmatpush1.msra.mxu0 0.0
    %3699 = vmatprep.subr.mxu0 0.0
    %3700 = vmatpush1.msra.mxu0 0.0
    %3701 = vmatprep.subr.mxu0 0.0
    %3702 = vmatpush1.msra.mxu0 0.0
    %3703 = vmatprep.subr.mxu0 0.0
    %3704 = vmatpush1.msra.mxu0 0.0
    %3705 = vmatprep.subr.mxu0 0.0
    %3706 = vmatpush1.msra.mxu0 0.0
    %3707 = vmatprep.subr.mxu0 0.0
    %3708 = vmatpush1.msra.mxu0 0.0
    %3709 = vmatprep.subr.mxu0 0.0
    %3710 = vmatpush1.msra.mxu0 0.0
    %3711 = vmatprep.subr.mxu0 0.0
    %3712 = vmatpush1.msra.mxu0 0.0
    %3713 = vmatprep.subr.mxu0 0.0
    %3714 = vmatpush1.msra.mxu0 0.0
    %3715 = vmatprep.subr.mxu0 0.0
    %3716 = vmatpush1.msra.mxu0 0.0
    %3717 = vmatprep.subr.mxu0 0.0
    %3718 = vmatpush1.msra.mxu0 0.0
    %3719 = vmatprep.subr.mxu0 0.0
    %3720 = vmatpush1.msra.mxu0 0.0
    %3721 = vmatprep.subr.mxu0 0.0
    %3722 = vmatpush1.msra.mxu0 0.0
    %3723 = vmatprep.subr.mxu0 0.0
    %3724 = vmatpush1.msra.mxu0 0.0
    %3725 = vmatprep.subr.mxu0 0.0
    %3726 = vmatpush1.msra.mxu0 0.0
    %3727 = vmatprep.subr.mxu0 0.0
    %3728 = vmatpush1.msra.mxu0 0.0
    %3729 = vmatprep.subr.mxu0 0.0
    %3730 = vmatpush1.msra.mxu0 0.0
    %3731 = vmatprep.subr.mxu0 0.0
    %3732 = vmatpush1.msra.mxu0 0.0
    %3733 = vmatprep.subr.mxu0 0.0
    %3734 = vmatpush1.msra.mxu0 0.0
    %3735 = vmatprep.subr.mxu0 0.0
    %3736 = vmatpush1.msra.mxu0 0.0
    %3737 = vmatprep.subr.mxu0 0.0
    %3738 = vmatpush1.msra.mxu0 0.0
    %3739 = vmatprep.subr.mxu0 0.0
    %3740 = vmatpush1.msra.mxu0 0.0
    %3741 = vmatprep.subr.mxu0 0.0
    %3742 = vmatpush1.msra.mxu0 0.0
    %3743 = vmatprep.mubr.f32.mxu0 0.0
    %v3744 = vand.u32 %v3131, 4294901760
    %3745 = vmatmul.mubr.f32.gmra.mrb[0].mxu0 %v3744
    %v3746 = vpop.f32.mrb[0].mxu0
    %v3747 = vadd.f32 %v3666, %v3746
    %v3748 = vpop.f32.mrb[0].mxu0
    %3749 = vdwg.mxu0
    %3750 = vmatprep.subr.mxu0 0.0
    %v3751 = vand.u32 %v28, 4294901760
    %v3752 = vsub.f32 %v28, %v3751
    %3753 = vmatpush1.msra.mxu0 %v3752
    %3754 = vmatprep.subr.mxu0 0.0
    %v3755 = vand.u32 %v29, 4294901760
    %v3756 = vsub.f32 %v29, %v3755
    %3757 = vmatpush1.msra.mxu0 %v3756
    %3758 = vmatprep.subr.mxu0 0.0
    %3759 = vmatpush1.msra.mxu0 0.0
    %3760 = vmatprep.subr.mxu0 0.0
    %3761 = vmatpush1.msra.mxu0 0.0
    %3762 = vmatprep.subr.mxu0 0.0
    %3763 = vmatpush1.msra.mxu0 0.0
    %3764 = vmatprep.subr.mxu0 0.0
    %3765 = vmatpush1.msra.mxu0 0.0
    %3766 = vmatprep.subr.mxu0 0.0
    %3767 = vmatpush1.msra.mxu0 0.0
    %3768 = vmatprep.subr.mxu0 0.0
    %3769 = vmatpush1.msra.mxu0 0.0
    %3770 = vmatprep.subr.mxu0 0.0
    %3771 = vmatpush1.msra.mxu0 0.0
    %3772 = vmatprep.subr.mxu0 0.0
    %3773 = vmatpush1.msra.mxu0 0.0
    %3774 = vmatprep.subr.mxu0 0.0
    %3775 = vmatpush1.msra.mxu0 0.0
    %3776 = vmatprep.subr.mxu0 0.0
    %3777 = vmatpush1.msra.mxu0 0.0
    %3778 = vmatprep.subr.mxu0 0.0
    %3779 = vmatpush1.msra.mxu0 0.0
    %3780 = vmatprep.subr.mxu0 0.0
    %3781 = vmatpush1.msra.mxu0 0.0
    %3782 = vmatprep.subr.mxu0 0.0
    %3783 = vmatpush1.msra.mxu0 0.0
    %3784 = vmatprep.subr.mxu0 0.0
    %3785 = vmatpush1.msra.mxu0 0.0
    %3786 = vmatprep.subr.mxu0 0.0
    %3787 = vmatpush1.msra.mxu0 0.0
    %3788 = vmatprep.subr.mxu0 0.0
    %3789 = vmatpush1.msra.mxu0 0.0
    %3790 = vmatprep.subr.mxu0 0.0
    %3791 = vmatpush1.msra.mxu0 0.0
    %3792 = vmatprep.subr.mxu0 0.0
    %3793 = vmatpush1.msra.mxu0 0.0
    %3794 = vmatprep.subr.mxu0 0.0
    %3795 = vmatpush1.msra.mxu0 0.0
    %3796 = vmatprep.subr.mxu0 0.0
    %3797 = vmatpush1.msra.mxu0 0.0
    %3798 = vmatprep.subr.mxu0 0.0
    %3799 = vmatpush1.msra.mxu0 0.0
    %3800 = vmatprep.subr.mxu0 0.0
    %3801 = vmatpush1.msra.mxu0 0.0
    %3802 = vmatprep.subr.mxu0 0.0
    %3803 = vmatpush1.msra.mxu0 0.0
    %3804 = vmatprep.subr.mxu0 0.0
    %3805 = vmatpush1.msra.mxu0 0.0
    %3806 = vmatprep.subr.mxu0 0.0
    %3807 = vmatpush1.msra.mxu0 0.0
    %3808 = vmatprep.subr.mxu0 0.0
    %3809 = vmatpush1.msra.mxu0 0.0
    %3810 = vmatprep.subr.mxu0 0.0
    %3811 = vmatpush1.msra.mxu0 0.0
    %3812 = vmatprep.subr.mxu0 0.0
    %3813 = vmatpush1.msra.mxu0 0.0
    %3814 = vmatprep.subr.mxu0 0.0
    %3815 = vmatpush1.msra.mxu0 0.0
    %3816 = vmatprep.subr.mxu0 0.0
    %3817 = vmatpush1.msra.mxu0 0.0
    %3818 = vmatprep.mubr.f32.mxu0 0.0
    %v3819 = vand.u32 %v3131, 4294901760
    %v3820 = vsub.f32 %v3131, %v3819
    %3821 = vmatmul.mubr.f32.gmra.mrb[0].mxu0 %v3820
    %v3822 = vpop.f32.mrb[0].mxu0
    %v3823 = vadd.f32 %v3747, %v3822
    %v3824 = vpop.f32.mrb[0].mxu0
    %3825 = vdwg.mxu0
    %3826 = vmatprep.subr.mxu0 0.0
    %v3827 = vand.u32 %v28, 4294901760
    %3828 = vmatpush1.msra.mxu0 %v3827
    %3829 = vmatprep.subr.mxu0 0.0
    %v3830 = vand.u32 %v29, 4294901760
    %3831 = vmatpush1.msra.mxu0 %v3830
    %3832 = vmatprep.subr.mxu0 0.0
    %3833 = vmatpush1.msra.mxu0 0.0
    %3834 = vmatprep.subr.mxu0 0.0
    %3835 = vmatpush1.msra.mxu0 0.0
    %3836 = vmatprep.subr.mxu0 0.0
    %3837 = vmatpush1.msra.mxu0 0.0
    %3838 = vmatprep.subr.mxu0 0.0
    %3839 = vmatpush1.msra.mxu0 0.0
    %3840 = vmatprep.subr.mxu0 0.0
    %3841 = vmatpush1.msra.mxu0 0.0
    %3842 = vmatprep.subr.mxu0 0.0
    %3843 = vmatpush1.msra.mxu0 0.0
    %3844 = vmatprep.subr.mxu0 0.0
    %3845 = vmatpush1.msra.mxu0 0.0
    %3846 = vmatprep.subr.mxu0 0.0
    %3847 = vmatpush1.msra.mxu0 0.0
    %3848 = vmatprep.subr.mxu0 0.0
    %3849 = vmatpush1.msra.mxu0 0.0
    %3850 = vmatprep.subr.mxu0 0.0
    %3851 = vmatpush1.msra.mxu0 0.0
    %3852 = vmatprep.subr.mxu0 0.0
    %3853 = vmatpush1.msra.mxu0 0.0
    %3854 = vmatprep.subr.mxu0 0.0
    %3855 = vmatpush1.msra.mxu0 0.0
    %3856 = vmatprep.subr.mxu0 0.0
    %3857 = vmatpush1.msra.mxu0 0.0
    %3858 = vmatprep.subr.mxu0 0.0
    %3859 = vmatpush1.msra.mxu0 0.0
    %3860 = vmatprep.subr.mxu0 0.0
    %3861 = vmatpush1.msra.mxu0 0.0
    %3862 = vmatprep.subr.mxu0 0.0
    %3863 = vmatpush1.msra.mxu0 0.0
    %3864 = vmatprep.subr.mxu0 0.0
    %3865 = vmatpush1.msra.mxu0 0.0
    %3866 = vmatprep.subr.mxu0 0.0
    %3867 = vmatpush1.msra.mxu0 0.0
    %3868 = vmatprep.subr.mxu0 0.0
    %3869 = vmatpush1.msra.mxu0 0.0
    %3870 = vmatprep.subr.mxu0 0.0
    %3871 = vmatpush1.msra.mxu0 0.0
    %3872 = vmatprep.subr.mxu0 0.0
    %3873 = vmatpush1.msra.mxu0 0.0
    %3874 = vmatprep.subr.mxu0 0.0
    %3875 = vmatpush1.msra.mxu0 0.0
    %3876 = vmatprep.subr.mxu0 0.0
    %3877 = vmatpush1.msra.mxu0 0.0
    %3878 = vmatprep.subr.mxu0 0.0
    %3879 = vmatpush1.msra.mxu0 0.0
    %3880 = vmatprep.subr.mxu0 0.0
    %3881 = vmatpush1.msra.mxu0 0.0
    %3882 = vmatprep.subr.mxu0 0.0
    %3883 = vmatpush1.msra.mxu0 0.0
    %3884 = vmatprep.subr.mxu0 0.0
    %3885 = vmatpush1.msra.mxu0 0.0
    %3886 = vmatprep.subr.mxu0 0.0
    %3887 = vmatpush1.msra.mxu0 0.0
    %3888 = vmatprep.subr.mxu0 0.0
    %3889 = vmatpush1.msra.mxu0 0.0
    %3890 = vmatprep.subr.mxu0 0.0
    %3891 = vmatpush1.msra.mxu0 0.0
    %3892 = vmatprep.mubr.f32.mxu0 0.0
    %v3893 = vand.u32 %v3131, 4294901760
    %v3894 = vsub.f32 %v3131, %v3893
    %v3895 = vand.u32 %v3894, 4294901760
    %3896 = vmatmul.mubr.f32.gmra.mrb[0].mxu0 %v3895
    %v3897 = vpop.f32.mrb[0].mxu0
    %v3898 = vadd.f32 %v3823, %v3897
    %v3899 = vpop.f32.mrb[0].mxu0
    %3900 = vdwg.mxu0
    %3901 = vmatprep.subr.mxu0 0.0
    %v3902 = vand.u32 %v28, 4294901760
    %v3903 = vsub.f32 %v28, %v3902
    %v3904 = vand.u32 %v3903, 4294901760
    %3905 = vmatpush1.msra.mxu0 %v3904
    %3906 = vmatprep.subr.mxu0 0.0
    %v3907 = vand.u32 %v29, 4294901760
    %v3908 = vsub.f32 %v29, %v3907
    %v3909 = vand.u32 %v3908, 4294901760
    %3910 = vmatpush1.msra.mxu0 %v3909
    %3911 = vmatprep.subr.mxu0 0.0
    %3912 = vmatpush1.msra.mxu0 0.0
    %3913 = vmatprep.subr.mxu0 0.0
    %3914 = vmatpush1.msra.mxu0 0.0
    %3915 = vmatprep.subr.mxu0 0.0
    %3916 = vmatpush1.msra.mxu0 0.0
    %3917 = vmatprep.subr.mxu0 0.0
    %3918 = vmatpush1.msra.mxu0 0.0
    %3919 = vmatprep.subr.mxu0 0.0
    %3920 = vmatpush1.msra.mxu0 0.0
    %3921 = vmatprep.subr.mxu0 0.0
    %3922 = vmatpush1.msra.mxu0 0.0
    %3923 = vmatprep.subr.mxu0 0.0
    %3924 = vmatpush1.msra.mxu0 0.0
    %3925 = vmatprep.subr.mxu0 0.0
    %3926 = vmatpush1.msra.mxu0 0.0
    %3927 = vmatprep.subr.mxu0 0.0
    %3928 = vmatpush1.msra.mxu0 0.0
    %3929 = vmatprep.subr.mxu0 0.0
    %3930 = vmatpush1.msra.mxu0 0.0
    %3931 = vmatprep.subr.mxu0 0.0
    %3932 = vmatpush1.msra.mxu0 0.0
    %3933 = vmatprep.subr.mxu0 0.0
    %3934 = vmatpush1.msra.mxu0 0.0
    %3935 = vmatprep.subr.mxu0 0.0
    %3936 = vmatpush1.msra.mxu0 0.0
    %3937 = vmatprep.subr.mxu0 0.0
    %3938 = vmatpush1.msra.mxu0 0.0
    %3939 = vmatprep.subr.mxu0 0.0
    %3940 = vmatpush1.msra.mxu0 0.0
    %3941 = vmatprep.subr.mxu0 0.0
    %3942 = vmatpush1.msra.mxu0 0.0
    %3943 = vmatprep.subr.mxu0 0.0
    %3944 = vmatpush1.msra.mxu0 0.0
    %3945 = vmatprep.subr.mxu0 0.0
    %3946 = vmatpush1.msra.mxu0 0.0
    %3947 = vmatprep.subr.mxu0 0.0
    %3948 = vmatpush1.msra.mxu0 0.0
    %3949 = vmatprep.subr.mxu0 0.0
    %3950 = vmatpush1.msra.mxu0 0.0
    %3951 = vmatprep.subr.mxu0 0.0
    %3952 = vmatpush1.msra.mxu0 0.0
    %3953 = vmatprep.subr.mxu0 0.0
    %3954 = vmatpush1.msra.mxu0 0.0
    %3955 = vmatprep.subr.mxu0 0.0
    %3956 = vmatpush1.msra.mxu0 0.0
    %3957 = vmatprep.subr.mxu0 0.0
    %3958 = vmatpush1.msra.mxu0 0.0
    %3959 = vmatprep.subr.mxu0 0.0
    %3960 = vmatpush1.msra.mxu0 0.0
    %3961 = vmatprep.subr.mxu0 0.0
    %3962 = vmatpush1.msra.mxu0 0.0
    %3963 = vmatprep.subr.mxu0 0.0
    %3964 = vmatpush1.msra.mxu0 0.0
    %3965 = vmatprep.subr.mxu0 0.0
    %3966 = vmatpush1.msra.mxu0 0.0
    %3967 = vmatprep.subr.mxu0 0.0
    %3968 = vmatpush1.msra.mxu0 0.0
    %3969 = vmatprep.subr.mxu0 0.0
    %3970 = vmatpush1.msra.mxu0 0.0
    %3971 = vmatprep.mubr.f32.mxu0 0.0
    %v3972 = vand.u32 %v3131, 4294901760
    %3973 = vmatmul.mubr.f32.gmra.mrb[0].mxu0 %v3972
    %v3974 = vpop.f32.mrb[0].mxu0
    %v3975 = vadd.f32 %v3898, %v3974
    %v3976 = vpop.f32.mrb[0].mxu0
    %3977 = vdwg.mxu0
    %3978 = vmatprep.subr.mxu0 0.0
    %v3979 = vand.u32 %v28, 4294901760
    %3980 = vmatpush1.msra.mxu0 %v3979
    %3981 = vmatprep.subr.mxu0 0.0
    %v3982 = vand.u32 %v29, 4294901760
    %3983 = vmatpush1.msra.mxu0 %v3982
    %3984 = vmatprep.subr.mxu0 0.0
    %3985 = vmatpush1.msra.mxu0 0.0
    %3986 = vmatprep.subr.mxu0 0.0
    %3987 = vmatpush1.msra.mxu0 0.0
    %3988 = vmatprep.subr.mxu0 0.0
    %3989 = vmatpush1.msra.mxu0 0.0
    %3990 = vmatprep.subr.mxu0 0.0
    %3991 = vmatpush1.msra.mxu0 0.0
    %3992 = vmatprep.subr.mxu0 0.0
    %3993 = vmatpush1.msra.mxu0 0.0
    %3994 = vmatprep.subr.mxu0 0.0
    %3995 = vmatpush1.msra.mxu0 0.0
    %3996 = vmatprep.subr.mxu0 0.0
    %3997 = vmatpush1.msra.mxu0 0.0
    %3998 = vmatprep.subr.mxu0 0.0
    %3999 = vmatpush1.msra.mxu0 0.0
    %4000 = vmatprep.subr.mxu0 0.0
    %4001 = vmatpush1.msra.mxu0 0.0
    %4002 = vmatprep.subr.mxu0 0.0
    %4003 = vmatpush1.msra.mxu0 0.0
    %4004 = vmatprep.subr.mxu0 0.0
    %4005 = vmatpush1.msra.mxu0 0.0
    %4006 = vmatprep.subr.mxu0 0.0
    %4007 = vmatpush1.msra.mxu0 0.0
    %4008 = vmatprep.subr.mxu0 0.0
    %4009 = vmatpush1.msra.mxu0 0.0
    %4010 = vmatprep.subr.mxu0 0.0
    %4011 = vmatpush1.msra.mxu0 0.0
    %4012 = vmatprep.subr.mxu0 0.0
    %4013 = vmatpush1.msra.mxu0 0.0
    %4014 = vmatprep.subr.mxu0 0.0
    %4015 = vmatpush1.msra.mxu0 0.0
    %4016 = vmatprep.subr.mxu0 0.0
    %4017 = vmatpush1.msra.mxu0 0.0
    %4018 = vmatprep.subr.mxu0 0.0
    %4019 = vmatpush1.msra.mxu0 0.0
    %4020 = vmatprep.subr.mxu0 0.0
    %4021 = vmatpush1.msra.mxu0 0.0
    %4022 = vmatprep.subr.mxu0 0.0
    %4023 = vmatpush1.msra.mxu0 0.0
    %4024 = vmatprep.subr.mxu0 0.0
    %4025 = vmatpush1.msra.mxu0 0.0
    %4026 = vmatprep.subr.mxu0 0.0
    %4027 = vmatpush1.msra.mxu0 0.0
    %4028 = vmatprep.subr.mxu0 0.0
    %4029 = vmatpush1.msra.mxu0 0.0
    %4030 = vmatprep.subr.mxu0 0.0
    %4031 = vmatpush1.msra.mxu0 0.0
    %4032 = vmatprep.subr.mxu0 0.0
    %4033 = vmatpush1.msra.mxu0 0.0
    %4034 = vmatprep.subr.mxu0 0.0
    %4035 = vmatpush1.msra.mxu0 0.0
    %4036 = vmatprep.subr.mxu0 0.0
    %4037 = vmatpush1.msra.mxu0 0.0
    %4038 = vmatprep.subr.mxu0 0.0
    %4039 = vmatpush1.msra.mxu0 0.0
    %4040 = vmatprep.subr.mxu0 0.0
    %4041 = vmatpush1.msra.mxu0 0.0
    %4042 = vmatprep.subr.mxu0 0.0
    %4043 = vmatpush1.msra.mxu0 0.0
    %4044 = vmatprep.mubr.f32.mxu0 0.0
    %v4045 = vand.u32 %v3131, 4294901760
    %4046 = vmatmul.mubr.f32.gmra.mrb[0].mxu0 %v4045
    %v4047 = vpop.f32.mrb[0].mxu0
    %v4048 = vadd.f32 %v3975, %v4047
    %v4049 = vpop.f32.mrb[0].mxu0
    %4050 = vdwg.mxu0
    %v4051 = vmax.f32 %v3589, %v4048
    %v4052 = vsel %vm1028, %v4051, %v3589
    %4053 = vmatprep.subr.mxu0 0.0
    %v4054 = vand.u32 %v31, 4294901760
    %4055 = vmatpush1.msra.mxu0 %v4054
    %4056 = vmatprep.subr.mxu0 0.0
    %v4057 = vand.u32 %v32, 4294901760
    %4058 = vmatpush1.msra.mxu0 %v4057
    %4059 = vmatprep.subr.mxu0 0.0
    %4060 = vmatpush1.msra.mxu0 0.0
    %4061 = vmatprep.subr.mxu0 0.0
    %4062 = vmatpush1.msra.mxu0 0.0
    %4063 = vmatprep.subr.mxu0 0.0
    %4064 = vmatpush1.msra.mxu0 0.0
    %4065 = vmatprep.subr.mxu0 0.0
    %4066 = vmatpush1.msra.mxu0 0.0
    %4067 = vmatprep.subr.mxu0 0.0
    %4068 = vmatpush1.msra.mxu0 0.0
    %4069 = vmatprep.subr.mxu0 0.0
    %4070 = vmatpush1.msra.mxu0 0.0
    %4071 = vmatprep.subr.mxu0 0.0
    %4072 = vmatpush1.msra.mxu0 0.0
    %4073 = vmatprep.subr.mxu0 0.0
    %4074 = vmatpush1.msra.mxu0 0.0
    %4075 = vmatprep.subr.mxu0 0.0
    %4076 = vmatpush1.msra.mxu0 0.0
    %4077 = vmatprep.subr.mxu0 0.0
    %4078 = vmatpush1.msra.mxu0 0.0
    %4079 = vmatprep.subr.mxu0 0.0
    %4080 = vmatpush1.msra.mxu0 0.0
    %4081 = vmatprep.subr.mxu0 0.0
    %4082 = vmatpush1.msra.mxu0 0.0
    %4083 = vmatprep.subr.mxu0 0.0
    %4084 = vmatpush1.msra.mxu0 0.0
    %4085 = vmatprep.subr.mxu0 0.0
    %4086 = vmatpush1.msra.mxu0 0.0
    %4087 = vmatprep.subr.mxu0 0.0
    %4088 = vmatpush1.msra.mxu0 0.0
    %4089 = vmatprep.subr.mxu0 0.0
    %4090 = vmatpush1.msra.mxu0 0.0
    %4091 = vmatprep.subr.mxu0 0.0
    %4092 = vmatpush1.msra.mxu0 0.0
    %4093 = vmatprep.subr.mxu0 0.0
    %4094 = vmatpush1.msra.mxu0 0.0
    %4095 = vmatprep.subr.mxu0 0.0
    %4096 = vmatpush1.msra.mxu0 0.0
    %4097 = vmatprep.subr.mxu0 0.0
    %4098 = vmatpush1.msra.mxu0 0.0
    %4099 = vmatprep.subr.mxu0 0.0
    %4100 = vmatpush1.msra.mxu0 0.0
    %4101 = vmatprep.subr.mxu0 0.0
    %4102 = vmatpush1.msra.mxu0 0.0
    %4103 = vmatprep.subr.mxu0 0.0
    %4104 = vmatpush1.msra.mxu0 0.0
    %4105 = vmatprep.subr.mxu0 0.0
    %4106 = vmatpush1.msra.mxu0 0.0
    %4107 = vmatprep.subr.mxu0 0.0
    %4108 = vmatpush1.msra.mxu0 0.0
    %4109 = vmatprep.subr.mxu0 0.0
    %4110 = vmatpush1.msra.mxu0 0.0
    %4111 = vmatprep.subr.mxu0 0.0
    %4112 = vmatpush1.msra.mxu0 0.0
    %4113 = vmatprep.subr.mxu0 0.0
    %4114 = vmatpush1.msra.mxu0 0.0
    %4115 = vmatprep.subr.mxu0 0.0
    %4116 = vmatpush1.msra.mxu0 0.0
    %4117 = vmatprep.subr.mxu0 0.0
    %4118 = vmatpush1.msra.mxu0 0.0
    %4119 = vmatprep.mubr.f32.mxu0 0.0
    %v4120 = vand.u32 %v3131, 4294901760
    %v4121 = vsub.f32 %v3131, %v4120
    %v4122 = vand.u32 %v4121, 4294901760
    %v4123 = vsub.f32 %v4121, %v4122
    %v4124 = vand.u32 %v4123, 4294901760
    %4125 = vmatmul.mubr.f32.gmra.mrb[0].mxu0 %v4124
    %v4126 = vpop.f32.mrb[0].mxu0
    %v4127 = vadd.f32 0.0, %v4126
    %v4128 = vpop.f32.mrb[0].mxu0
    %4129 = vdwg.mxu0
    %4130 = vmatprep.subr.mxu0 0.0
    %v4131 = vand.u32 %v31, 4294901760
    %v4132 = vsub.f32 %v31, %v4131
    %v4133 = vand.u32 %v4132, 4294901760
    %v4134 = vsub.f32 %v4132, %v4133
    %v4135 = vand.u32 %v4134, 4294901760
    %4136 = vmatpush1.msra.mxu0 %v4135
    %4137 = vmatprep.subr.mxu0 0.0
    %v4138 = vand.u32 %v32, 4294901760
    %v4139 = vsub.f32 %v32, %v4138
    %v4140 = vand.u32 %v4139, 4294901760
    %v4141 = vsub.f32 %v4139, %v4140
    %v4142 = vand.u32 %v4141, 4294901760
    %4143 = vmatpush1.msra.mxu0 %v4142
    %4144 = vmatprep.subr.mxu0 0.0
    %4145 = vmatpush1.msra.mxu0 0.0
    %4146 = vmatprep.subr.mxu0 0.0
    %4147 = vmatpush1.msra.mxu0 0.0
    %4148 = vmatprep.subr.mxu0 0.0
    %4149 = vmatpush1.msra.mxu0 0.0
    %4150 = vmatprep.subr.mxu0 0.0
    %4151 = vmatpush1.msra.mxu0 0.0
    %4152 = vmatprep.subr.mxu0 0.0
    %4153 = vmatpush1.msra.mxu0 0.0
    %4154 = vmatprep.subr.mxu0 0.0
    %4155 = vmatpush1.msra.mxu0 0.0
    %4156 = vmatprep.subr.mxu0 0.0
    %4157 = vmatpush1.msra.mxu0 0.0
    %4158 = vmatprep.subr.mxu0 0.0
    %4159 = vmatpush1.msra.mxu0 0.0
    %4160 = vmatprep.subr.mxu0 0.0
    %4161 = vmatpush1.msra.mxu0 0.0
    %4162 = vmatprep.subr.mxu0 0.0
    %4163 = vmatpush1.msra.mxu0 0.0
    %4164 = vmatprep.subr.mxu0 0.0
    %4165 = vmatpush1.msra.mxu0 0.0
    %4166 = vmatprep.subr.mxu0 0.0
    %4167 = vmatpush1.msra.mxu0 0.0
    %4168 = vmatprep.subr.mxu0 0.0
    %4169 = vmatpush1.msra.mxu0 0.0
    %4170 = vmatprep.subr.mxu0 0.0
    %4171 = vmatpush1.msra.mxu0 0.0
    %4172 = vmatprep.subr.mxu0 0.0
    %4173 = vmatpush1.msra.mxu0 0.0
    %4174 = vmatprep.subr.mxu0 0.0
    %4175 = vmatpush1.msra.mxu0 0.0
    %4176 = vmatprep.subr.mxu0 0.0
    %4177 = vmatpush1.msra.mxu0 0.0
    %4178 = vmatprep.subr.mxu0 0.0
    %4179 = vmatpush1.msra.mxu0 0.0
    %4180 = vmatprep.subr.mxu0 0.0
    %4181 = vmatpush1.msra.mxu0 0.0
    %4182 = vmatprep.subr.mxu0 0.0
    %4183 = vmatpush1.msra.mxu0 0.0
    %4184 = vmatprep.subr.mxu0 0.0
    %4185 = vmatpush1.msra.mxu0 0.0
    %4186 = vmatprep.subr.mxu0 0.0
    %4187 = vmatpush1.msra.mxu0 0.0
    %4188 = vmatprep.subr.mxu0 0.0
    %4189 = vmatpush1.msra.mxu0 0.0
    %4190 = vmatprep.subr.mxu0 0.0
    %4191 = vmatpush1.msra.mxu0 0.0
    %4192 = vmatprep.subr.mxu0 0.0
    %4193 = vmatpush1.msra.mxu0 0.0
    %4194 = vmatprep.subr.mxu0 0.0
    %4195 = vmatpush1.msra.mxu0 0.0
    %4196 = vmatprep.subr.mxu0 0.0
    %4197 = vmatpush1.msra.mxu0 0.0
    %4198 = vmatprep.subr.mxu0 0.0
    %4199 = vmatpush1.msra.mxu0 0.0
    %4200 = vmatprep.subr.mxu0 0.0
    %4201 = vmatpush1.msra.mxu0 0.0
    %4202 = vmatprep.subr.mxu0 0.0
    %4203 = vmatpush1.msra.mxu0 0.0
    %4204 = vmatprep.mubr.f32.mxu0 0.0
    %v4205 = vand.u32 %v3131, 4294901760
    %4206 = vmatmul.mubr.f32.gmra.mrb[0].mxu0 %v4205
    %v4207 = vpop.f32.mrb[0].mxu0
    %v4208 = vadd.f32 %v4127, %v4207
    %v4209 = vpop.f32.mrb[0].mxu0
    %4210 = vdwg.mxu0
    %4211 = vmatprep.subr.mxu0 0.0
    %v4212 = vand.u32 %v31, 4294901760
    %v4213 = vsub.f32 %v31, %v4212
    %4214 = vmatpush1.msra.mxu0 %v4213
    %4215 = vmatprep.subr.mxu0 0.0
    %v4216 = vand.u32 %v32, 4294901760
    %v4217 = vsub.f32 %v32, %v4216
    %4218 = vmatpush1.msra.mxu0 %v4217
    %4219 = vmatprep.subr.mxu0 0.0
    %4220 = vmatpush1.msra.mxu0 0.0
    %4221 = vmatprep.subr.mxu0 0.0
    %4222 = vmatpush1.msra.mxu0 0.0
    %4223 = vmatprep.subr.mxu0 0.0
    %4224 = vmatpush1.msra.mxu0 0.0
    %4225 = vmatprep.subr.mxu0 0.0
    %4226 = vmatpush1.msra.mxu0 0.0
    %4227 = vmatprep.subr.mxu0 0.0
    %4228 = vmatpush1.msra.mxu0 0.0
    %4229 = vmatprep.subr.mxu0 0.0
    %4230 = vmatpush1.msra.mxu0 0.0
    %4231 = vmatprep.subr.mxu0 0.0
    %4232 = vmatpush1.msra.mxu0 0.0
    %4233 = vmatprep.subr.mxu0 0.0
    %4234 = vmatpush1.msra.mxu0 0.0
    %4235 = vmatprep.subr.mxu0 0.0
    %4236 = vmatpush1.msra.mxu0 0.0
    %4237 = vmatprep.subr.mxu0 0.0
    %4238 = vmatpush1.msra.mxu0 0.0
    %4239 = vmatprep.subr.mxu0 0.0
    %4240 = vmatpush1.msra.mxu0 0.0
    %4241 = vmatprep.subr.mxu0 0.0
    %4242 = vmatpush1.msra.mxu0 0.0
    %4243 = vmatprep.subr.mxu0 0.0
    %4244 = vmatpush1.msra.mxu0 0.0
    %4245 = vmatprep.subr.mxu0 0.0
    %4246 = vmatpush1.msra.mxu0 0.0
    %4247 = vmatprep.subr.mxu0 0.0
    %4248 = vmatpush1.msra.mxu0 0.0
    %4249 = vmatprep.subr.mxu0 0.0
    %4250 = vmatpush1.msra.mxu0 0.0
    %4251 = vmatprep.subr.mxu0 0.0
    %4252 = vmatpush1.msra.mxu0 0.0
    %4253 = vmatprep.subr.mxu0 0.0
    %4254 = vmatpush1.msra.mxu0 0.0
    %4255 = vmatprep.subr.mxu0 0.0
    %4256 = vmatpush1.msra.mxu0 0.0
    %4257 = vmatprep.subr.mxu0 0.0
    %4258 = vmatpush1.msra.mxu0 0.0
    %4259 = vmatprep.subr.mxu0 0.0
    %4260 = vmatpush1.msra.mxu0 0.0
    %4261 = vmatprep.subr.mxu0 0.0
    %4262 = vmatpush1.msra.mxu0 0.0
    %4263 = vmatprep.subr.mxu0 0.0
    %4264 = vmatpush1.msra.mxu0 0.0
    %4265 = vmatprep.subr.mxu0 0.0
    %4266 = vmatpush1.msra.mxu0 0.0
    %4267 = vmatprep.subr.mxu0 0.0
    %4268 = vmatpush1.msra.mxu0 0.0
    %4269 = vmatprep.subr.mxu0 0.0
    %4270 = vmatpush1.msra.mxu0 0.0
    %4271 = vmatprep.subr.mxu0 0.0
    %4272 = vmatpush1.msra.mxu0 0.0
    %4273 = vmatprep.subr.mxu0 0.0
    %4274 = vmatpush1.msra.mxu0 0.0
    %4275 = vmatprep.subr.mxu0 0.0
    %4276 = vmatpush1.msra.mxu0 0.0
    %4277 = vmatprep.subr.mxu0 0.0
    %4278 = vmatpush1.msra.mxu0 0.0
    %4279 = vmatprep.mubr.f32.mxu0 0.0
    %v4280 = vand.u32 %v3131, 4294901760
    %v4281 = vsub.f32 %v3131, %v4280
    %4282 = vmatmul.mubr.f32.gmra.mrb[0].mxu0 %v4281
    %v4283 = vpop.f32.mrb[0].mxu0
    %v4284 = vadd.f32 %v4208, %v4283
    %v4285 = vpop.f32.mrb[0].mxu0
    %4286 = vdwg.mxu0
    %4287 = vmatprep.subr.mxu0 0.0
    %v4288 = vand.u32 %v31, 4294901760
    %4289 = vmatpush1.msra.mxu0 %v4288
    %4290 = vmatprep.subr.mxu0 0.0
    %v4291 = vand.u32 %v32, 4294901760
    %4292 = vmatpush1.msra.mxu0 %v4291
    %4293 = vmatprep.subr.mxu0 0.0
    %4294 = vmatpush1.msra.mxu0 0.0
    %4295 = vmatprep.subr.mxu0 0.0
    %4296 = vmatpush1.msra.mxu0 0.0
    %4297 = vmatprep.subr.mxu0 0.0
    %4298 = vmatpush1.msra.mxu0 0.0
    %4299 = vmatprep.subr.mxu0 0.0
    %4300 = vmatpush1.msra.mxu0 0.0
    %4301 = vmatprep.subr.mxu0 0.0
    %4302 = vmatpush1.msra.mxu0 0.0
    %4303 = vmatprep.subr.mxu0 0.0
    %4304 = vmatpush1.msra.mxu0 0.0
    %4305 = vmatprep.subr.mxu0 0.0
    %4306 = vmatpush1.msra.mxu0 0.0
    %4307 = vmatprep.subr.mxu0 0.0
    %4308 = vmatpush1.msra.mxu0 0.0
    %4309 = vmatprep.subr.mxu0 0.0
    %4310 = vmatpush1.msra.mxu0 0.0
    %4311 = vmatprep.subr.mxu0 0.0
    %4312 = vmatpush1.msra.mxu0 0.0
    %4313 = vmatprep.subr.mxu0 0.0
    %4314 = vmatpush1.msra.mxu0 0.0
    %4315 = vmatprep.subr.mxu0 0.0
    %4316 = vmatpush1.msra.mxu0 0.0
    %4317 = vmatprep.subr.mxu0 0.0
    %4318 = vmatpush1.msra.mxu0 0.0
    %4319 = vmatprep.subr.mxu0 0.0
    %4320 = vmatpush1.msra.mxu0 0.0
    %4321 = vmatprep.subr.mxu0 0.0
    %4322 = vmatpush1.msra.mxu0 0.0
    %4323 = vmatprep.subr.mxu0 0.0
    %4324 = vmatpush1.msra.mxu0 0.0
    %4325 = vmatprep.subr.mxu0 0.0
    %4326 = vmatpush1.msra.mxu0 0.0
    %4327 = vmatprep.subr.mxu0 0.0
    %4328 = vmatpush1.msra.mxu0 0.0
    %4329 = vmatprep.subr.mxu0 0.0
    %4330 = vmatpush1.msra.mxu0 0.0
    %4331 = vmatprep.subr.mxu0 0.0
    %4332 = vmatpush1.msra.mxu0 0.0
    %4333 = vmatprep.subr.mxu0 0.0
    %4334 = vmatpush1.msra.mxu0 0.0
    %4335 = vmatprep.subr.mxu0 0.0
    %4336 = vmatpush1.msra.mxu0 0.0
    %4337 = vmatprep.subr.mxu0 0.0
    %4338 = vmatpush1.msra.mxu0 0.0
    %4339 = vmatprep.subr.mxu0 0.0
    %4340 = vmatpush1.msra.mxu0 0.0
    %4341 = vmatprep.subr.mxu0 0.0
    %4342 = vmatpush1.msra.mxu0 0.0
    %4343 = vmatprep.subr.mxu0 0.0
    %4344 = vmatpush1.msra.mxu0 0.0
    %4345 = vmatprep.subr.mxu0 0.0
    %4346 = vmatpush1.msra.mxu0 0.0
    %4347 = vmatprep.subr.mxu0 0.0
    %4348 = vmatpush1.msra.mxu0 0.0
    %4349 = vmatprep.subr.mxu0 0.0
    %4350 = vmatpush1.msra.mxu0 0.0
    %4351 = vmatprep.subr.mxu0 0.0
    %4352 = vmatpush1.msra.mxu0 0.0
    %4353 = vmatprep.mubr.f32.mxu0 0.0
    %v4354 = vand.u32 %v3131, 4294901760
    %v4355 = vsub.f32 %v3131, %v4354
    %v4356 = vand.u32 %v4355, 4294901760
    %4357 = vmatmul.mubr.f32.gmra.mrb[0].mxu0 %v4356
    %v4358 = vpop.f32.mrb[0].mxu0
    %v4359 = vadd.f32 %v4284, %v4358
    %v4360 = vpop.f32.mrb[0].mxu0
    %4361 = vdwg.mxu0
    %4362 = vmatprep.subr.mxu0 0.0
    %v4363 = vand.u32 %v31, 4294901760
    %v4364 = vsub.f32 %v31, %v4363
    %v4365 = vand.u32 %v4364, 4294901760
    %4366 = vmatpush1.msra.mxu0 %v4365
    %4367 = vmatprep.subr.mxu0 0.0
    %v4368 = vand.u32 %v32, 4294901760
    %v4369 = vsub.f32 %v32, %v4368
    %v4370 = vand.u32 %v4369, 4294901760
    %4371 = vmatpush1.msra.mxu0 %v4370
    %4372 = vmatprep.subr.mxu0 0.0
    %4373 = vmatpush1.msra.mxu0 0.0
    %4374 = vmatprep.subr.mxu0 0.0
    %4375 = vmatpush1.msra.mxu0 0.0
    %4376 = vmatprep.subr.mxu0 0.0
    %4377 = vmatpush1.msra.mxu0 0.0
    %4378 = vmatprep.subr.mxu0 0.0
    %4379 = vmatpush1.msra.mxu0 0.0
    %4380 = vmatprep.subr.mxu0 0.0
    %4381 = vmatpush1.msra.mxu0 0.0
    %4382 = vmatprep.subr.mxu0 0.0
    %4383 = vmatpush1.msra.mxu0 0.0
    %4384 = vmatprep.subr.mxu0 0.0
    %4385 = vmatpush1.msra.mxu0 0.0
    %4386 = vmatprep.subr.mxu0 0.0
    %4387 = vmatpush1.msra.mxu0 0.0
    %4388 = vmatprep.subr.mxu0 0.0
    %4389 = vmatpush1.msra.mxu0 0.0
    %4390 = vmatprep.subr.mxu0 0.0
    %4391 = vmatpush1.msra.mxu0 0.0
    %4392 = vmatprep.subr.mxu0 0.0
    %4393 = vmatpush1.msra.mxu0 0.0
    %4394 = vmatprep.subr.mxu0 0.0
    %4395 = vmatpush1.msra.mxu0 0.0
    %4396 = vmatprep.subr.mxu0 0.0
    %4397 = vmatpush1.msra.mxu0 0.0
    %4398 = vmatprep.subr.mxu0 0.0
    %4399 = vmatpush1.msra.mxu0 0.0
    %4400 = vmatprep.subr.mxu0 0.0
    %4401 = vmatpush1.msra.mxu0 0.0
    %4402 = vmatprep.subr.mxu0 0.0
    %4403 = vmatpush1.msra.mxu0 0.0
    %4404 = vmatprep.subr.mxu0 0.0
    %4405 = vmatpush1.msra.mxu0 0.0
    %4406 = vmatprep.subr.mxu0 0.0
    %4407 = vmatpush1.msra.mxu0 0.0
    %4408 = vmatprep.subr.mxu0 0.0
    %4409 = vmatpush1.msra.mxu0 0.0
    %4410 = vmatprep.subr.mxu0 0.0
    %4411 = vmatpush1.msra.mxu0 0.0
    %4412 = vmatprep.subr.mxu0 0.0
    %4413 = vmatpush1.msra.mxu0 0.0
    %4414 = vmatprep.subr.mxu0 0.0
    %4415 = vmatpush1.msra.mxu0 0.0
    %4416 = vmatprep.subr.mxu0 0.0
    %4417 = vmatpush1.msra.mxu0 0.0
    %4418 = vmatprep.subr.mxu0 0.0
    %4419 = vmatpush1.msra.mxu0 0.0
    %4420 = vmatprep.subr.mxu0 0.0
    %4421 = vmatpush1.msra.mxu0 0.0
    %4422 = vmatprep.subr.mxu0 0.0
    %4423 = vmatpush1.msra.mxu0 0.0
    %4424 = vmatprep.subr.mxu0 0.0
    %4425 = vmatpush1.msra.mxu0 0.0
    %4426 = vmatprep.subr.mxu0 0.0
    %4427 = vmatpush1.msra.mxu0 0.0
    %4428 = vmatprep.subr.mxu0 0.0
    %4429 = vmatpush1.msra.mxu0 0.0
    %4430 = vmatprep.subr.mxu0 0.0
    %4431 = vmatpush1.msra.mxu0 0.0
    %4432 = vmatprep.mubr.f32.mxu0 0.0
    %v4433 = vand.u32 %v3131, 4294901760
    %4434 = vmatmul.mubr.f32.gmra.mrb[0].mxu0 %v4433
    %v4435 = vpop.f32.mrb[0].mxu0
    %v4436 = vadd.f32 %v4359, %v4435
    %v4437 = vpop.f32.mrb[0].mxu0
    %4438 = vdwg.mxu0
    %4439 = vmatprep.subr.mxu0 0.0
    %v4440 = vand.u32 %v31, 4294901760
    %4441 = vmatpush1.msra.mxu0 %v4440
    %4442 = vmatprep.subr.mxu0 0.0
    %v4443 = vand.u32 %v32, 4294901760
    %4444 = vmatpush1.msra.mxu0 %v4443
    %4445 = vmatprep.subr.mxu0 0.0
    %4446 = vmatpush1.msra.mxu0 0.0
    %4447 = vmatprep.subr.mxu0 0.0
    %4448 = vmatpush1.msra.mxu0 0.0
    %4449 = vmatprep.subr.mxu0 0.0
    %4450 = vmatpush1.msra.mxu0 0.0
    %4451 = vmatprep.subr.mxu0 0.0
    %4452 = vmatpush1.msra.mxu0 0.0
    %4453 = vmatprep.subr.mxu0 0.0
    %4454 = vmatpush1.msra.mxu0 0.0
    %4455 = vmatprep.subr.mxu0 0.0
    %4456 = vmatpush1.msra.mxu0 0.0
    %4457 = vmatprep.subr.mxu0 0.0
    %4458 = vmatpush1.msra.mxu0 0.0
    %4459 = vmatprep.subr.mxu0 0.0
    %4460 = vmatpush1.msra.mxu0 0.0
    %4461 = vmatprep.subr.mxu0 0.0
    %4462 = vmatpush1.msra.mxu0 0.0
    %4463 = vmatprep.subr.mxu0 0.0
    %4464 = vmatpush1.msra.mxu0 0.0
    %4465 = vmatprep.subr.mxu0 0.0
    %4466 = vmatpush1.msra.mxu0 0.0
    %4467 = vmatprep.subr.mxu0 0.0
    %4468 = vmatpush1.msra.mxu0 0.0
    %4469 = vmatprep.subr.mxu0 0.0
    %4470 = vmatpush1.msra.mxu0 0.0
    %4471 = vmatprep.subr.mxu0 0.0
    %4472 = vmatpush1.msra.mxu0 0.0
    %4473 = vmatprep.subr.mxu0 0.0
    %4474 = vmatpush1.msra.mxu0 0.0
    %4475 = vmatprep.subr.mxu0 0.0
    %4476 = vmatpush1.msra.mxu0 0.0
    %4477 = vmatprep.subr.mxu0 0.0
    %4478 = vmatpush1.msra.mxu0 0.0
    %4479 = vmatprep.subr.mxu0 0.0
    %4480 = vmatpush1.msra.mxu0 0.0
    %4481 = vmatprep.subr.mxu0 0.0
    %4482 = vmatpush1.msra.mxu0 0.0
    %4483 = vmatprep.subr.mxu0 0.0
    %4484 = vmatpush1.msra.mxu0 0.0
    %4485 = vmatprep.subr.mxu0 0.0
    %4486 = vmatpush1.msra.mxu0 0.0
    %4487 = vmatprep.subr.mxu0 0.0
    %4488 = vmatpush1.msra.mxu0 0.0
    %4489 = vmatprep.subr.mxu0 0.0
    %4490 = vmatpush1.msra.mxu0 0.0
    %4491 = vmatprep.subr.mxu0 0.0
    %4492 = vmatpush1.msra.mxu0 0.0
    %4493 = vmatprep.subr.mxu0 0.0
    %4494 = vmatpush1.msra.mxu0 0.0
    %4495 = vmatprep.subr.mxu0 0.0
    %4496 = vmatpush1.msra.mxu0 0.0
    %4497 = vmatprep.subr.mxu0 0.0
    %4498 = vmatpush1.msra.mxu0 0.0
    %4499 = vmatprep.subr.mxu0 0.0
    %4500 = vmatpush1.msra.mxu0 0.0
    %4501 = vmatprep.subr.mxu0 0.0
    %4502 = vmatpush1.msra.mxu0 0.0
    %4503 = vmatprep.subr.mxu0 0.0
    %4504 = vmatpush1.msra.mxu0 0.0
    %4505 = vmatprep.mubr.f32.mxu0 0.0
    %v4506 = vand.u32 %v3131, 4294901760
    %4507 = vmatmul.mubr.f32.gmra.mrb[0].mxu0 %v4506
    %v4508 = vpop.f32.mrb[0].mxu0
    %v4509 = vadd.f32 %v4436, %v4508
    %v4510 = vpop.f32.mrb[0].mxu0
    %4511 = vdwg.mxu0
    %v4512 = vmax.f32 %v4052, %v4509
    %v4513 = vsel %vm1028, %v4512, %v3589
    %v4515 = vcombine.high %v4513, %v4513
    %v4517 = vunpack.c.l.s4 1966171168
    %v4518 = vunpack.c.0.s8 %v4517
    %v4519 = vlaneseq
    %v4520 = vshrl.u32 %v4519, 7
    %v4521 = vsub.s32 %v4518, %v4520
    %v4522 = vrot.slane %v4513, %v4521
    %v4524 = vunpack.c.l.s4 1966171168
    %v4525 = vunpack.c.0.s8 %v4524
    %v4526 = vlaneseq
    %v4527 = vshrl.u32 %v4526, 7
    %v4528 = vsub.s32 %v4525, %v4527
    %v4529 = vrot.slane %v4515, %v4528
    %v4530 = vcombine.high %v4522, %v4522
    %v4531 = vcombine.high %v4529, %v4529
    %v4533 = vunpack.c.l.s4 1966171168
    %v4534 = vunpack.c.0.s8 %v4533
    %v4535 = vlaneseq
    %v4536 = vshrl.u32 %v4535, 7
    %v4537 = vsub.s32 %v4534, %v4536
    %v4538 = vrot.slane %v4522, %v4537
    %v4540 = vunpack.c.l.s4 1966171168
    %v4541 = vunpack.c.0.s8 %v4540
    %v4542 = vlaneseq
    %v4543 = vshrl.u32 %v4542, 7
    %v4544 = vsub.s32 %v4541, %v4543
    %v4545 = vrot.slane %v4529, %v4544
    %v4547 = vunpack.c.l.s4 1966171168
    %v4548 = vunpack.c.0.s8 %v4547
    %v4549 = vlaneseq
    %v4550 = vshrl.u32 %v4549, 7
    %v4551 = vsub.s32 %v4548, %v4550
    %v4552 = vrot.slane %v4530, %v4551
    %v4554 = vunpack.c.l.s4 1966171168
    %v4555 = vunpack.c.0.s8 %v4554
    %v4556 = vlaneseq
    %v4557 = vshrl.u32 %v4556, 7
    %v4558 = vsub.s32 %v4555, %v4557
    %v4559 = vrot.slane %v4531, %v4558
    %v4560 = vcombine.high %v4538, %v4538
    %v4561 = vcombine.high %v4545, %v4545
    %v4562 = vcombine.high %v4552, %v4552
    %v4563 = vcombine.high %v4559, %v4559
    %4572 = vst.msk [vmem:[%s2 + $0x2] sm:$0x1] %vm1549, %v4538
    %4573 = vst.msk [vmem:[%s2 + $0xa] sm:$0x1] %vm1549, %v4552
    %4574 = vst.msk [vmem:[%s2 + $0x12] sm:$0x1] %vm1549, %v4560
    %4575 = vst.msk [vmem:[%s2 + $0x1a] sm:$0x1] %vm1549, %v4562
    %4576 = vst.msk [vmem:[%s2 + $0x22] sm:$0x1] %vm1549, %v4545
    %4577 = vst.msk [vmem:[%s2 + $0x2a] sm:$0x1] %vm1549, %v4559
    %4578 = vst.msk [vmem:[%s2 + $0x32] sm:$0x1] %vm1549, %v4561
    %4579 = vst.msk [vmem:[%s2 + $0x3a] sm:$0x1] %vm1549, %v4563
    %v4580 = vld [vmem:[#allocation2 + $0x9] sm:$0x1]
    %v4581 = vld [vmem:[#allocation2 + $0x19] sm:$0x1]
    %v4582 = vld [vmem:[#allocation2 + $0x29] sm:$0x1]
    %v4583 = vld [vmem:[#allocation2 + $0x39] sm:$0x1]
    %v4584 = vld [vmem:[#allocation2 + $0x49] sm:$0x1]
    %v4585 = vld [vmem:[#allocation2 + $0x59] sm:$0x1]
    %v4586 = vld [vmem:[#allocation2 + $0x69] sm:$0x1]
    %v4587 = vld [vmem:[#allocation2 + $0x79] sm:$0x1]
    %v4588 = vld [vmem:[#allocation2 + $0xa] sm:$0x1]
    %v4589 = vld [vmem:[#allocation2 + $0x1a] sm:$0x1]
    %v4590 = vld [vmem:[#allocation2 + $0x2a] sm:$0x1]
    %v4591 = vld [vmem:[#allocation2 + $0x3a] sm:$0x1]
    %v4592 = vld [vmem:[#allocation2 + $0x4a] sm:$0x1]
    %v4593 = vld [vmem:[#allocation2 + $0x5a] sm:$0x1]
    %v4594 = vld [vmem:[#allocation2 + $0x6a] sm:$0x1]
    %v4595 = vld [vmem:[#allocation2 + $0x7a] sm:$0x1]
    %v4596 = vmax.f32 %v4580, %v4588
    %v4597 = vmax.f32 %v4581, %v4589
    %v4598 = vmax.f32 %v4582, %v4590
    %v4599 = vmax.f32 %v4583, %v4591
    %v4600 = vmax.f32 %v4584, %v4592
    %v4601 = vmax.f32 %v4585, %v4593
    %v4602 = vmax.f32 %v4586, %v4594
    %v4603 = vmax.f32 %v4587, %v4595
    %v4604 = vld [vmem:[#allocation2 + $0xb] sm:$0x1]
    %v4605 = vld [vmem:[#allocation2 + $0x1b] sm:$0x1]
    %v4606 = vld [vmem:[#allocation2 + $0x2b] sm:$0x1]
    %v4607 = vld [vmem:[#allocation2 + $0x3b] sm:$0x1]
    %v4608 = vld [vmem:[#allocation2 + $0x4b] sm:$0x1]
    %v4609 = vld [vmem:[#allocation2 + $0x5b] sm:$0x1]
    %v4610 = vld [vmem:[#allocation2 + $0x6b] sm:$0x1]
    %v4611 = vld [vmem:[#allocation2 + $0x7b] sm:$0x1]
    %v4612 = vmax.f32 %v4596, %v4604
    %v4613 = vmax.f32 %v4597, %v4605
    %v4614 = vmax.f32 %v4598, %v4606
    %v4615 = vmax.f32 %v4599, %v4607
    %v4616 = vmax.f32 %v4600, %v4608
    %v4617 = vmax.f32 %v4601, %v4609
    %v4618 = vmax.f32 %v4602, %v4610
    %v4619 = vmax.f32 %v4603, %v4611
    %v4628 = vrot.slane %v4613, 7
    %v4629 = vsel %vm85, %v4628, %v4612
    %v4630 = vrot.slane %v4614, 6
    %v4631 = vsel %vm88, %v4630, %v4629
    %v4632 = vrot.slane %v4615, 5
    %v4633 = vsel %vm91, %v4632, %v4631
    %v4634 = vrot.slane %v4616, 4
    %v4635 = vsel %vm94, %v4634, %v4633
    %v4636 = vrot.slane %v4617, 3
    %v4637 = vsel %vm97, %v4636, %v4635
    %v4638 = vrot.slane %v4618, 2
    %v4639 = vsel %vm100, %v4638, %v4637
    %v4640 = vrot.slane %v4619, 1
    %v4641 = vsel %vm103, %v4640, %v4639
    %v4642 = vsel %vm105, %v4641, 0
    %4644 = vmatprep.subr.mxu0 0.0
    %v4645 = vand.u32 %v25, 4294901760
    %4646 = vmatpush1.msra.mxu0 %v4645
    %4647 = vmatprep.subr.mxu0 0.0
    %v4648 = vand.u32 %v26, 4294901760
    %4649 = vmatpush1.msra.mxu0 %v4648
    %4650 = vmatprep.subr.mxu0 0.0
    %4651 = vmatpush1.msra.mxu0 0.0
    %4652 = vmatprep.subr.mxu0 0.0
    %4653 = vmatpush1.msra.mxu0 0.0
    %4654 = vmatprep.subr.mxu0 0.0
    %4655 = vmatpush1.msra.mxu0 0.0
    %4656 = vmatprep.subr.mxu0 0.0
    %4657 = vmatpush1.msra.mxu0 0.0
    %4658 = vmatprep.subr.mxu0 0.0
    %4659 = vmatpush1.msra.mxu0 0.0
    %4660 = vmatprep.subr.mxu0 0.0
    %4661 = vmatpush1.msra.mxu0 0.0
    %4662 = vmatprep.subr.mxu0 0.0
    %4663 = vmatpush1.msra.mxu0 0.0
    %4664 = vmatprep.subr.mxu0 0.0
    %4665 = vmatpush1.msra.mxu0 0.0
    %4666 = vmatprep.subr.mxu0 0.0
    %4667 = vmatpush1.msra.mxu0 0.0
    %4668 = vmatprep.subr.mxu0 0.0
    %4669 = vmatpush1.msra.mxu0 0.0
    %4670 = vmatprep.subr.mxu0 0.0
    %4671 = vmatpush1.msra.mxu0 0.0
    %4672 = vmatprep.subr.mxu0 0.0
    %4673 = vmatpush1.msra.mxu0 0.0
    %4674 = vmatprep.subr.mxu0 0.0
    %4675 = vmatpush1.msra.mxu0 0.0
    %4676 = vmatprep.subr.mxu0 0.0
    %4677 = vmatpush1.msra.mxu0 0.0
    %4678 = vmatprep.subr.mxu0 0.0
    %4679 = vmatpush1.msra.mxu0 0.0
    %4680 = vmatprep.subr.mxu0 0.0
    %4681 = vmatpush1.msra.mxu0 0.0
    %4682 = vmatprep.subr.mxu0 0.0
    %4683 = vmatpush1.msra.mxu0 0.0
    %4684 = vmatprep.subr.mxu0 0.0
    %4685 = vmatpush1.msra.mxu0 0.0
    %4686 = vmatprep.subr.mxu0 0.0
    %4687 = vmatpush1.msra.mxu0 0.0
    %4688 = vmatprep.subr.mxu0 0.0
    %4689 = vmatpush1.msra.mxu0 0.0
    %4690 = vmatprep.subr.mxu0 0.0
    %4691 = vmatpush1.msra.mxu0 0.0
    %4692 = vmatprep.subr.mxu0 0.0
    %4693 = vmatpush1.msra.mxu0 0.0
    %4694 = vmatprep.subr.mxu0 0.0
    %4695 = vmatpush1.msra.mxu0 0.0
    %4696 = vmatprep.subr.mxu0 0.0
    %4697 = vmatpush1.msra.mxu0 0.0
    %4698 = vmatprep.subr.mxu0 0.0
    %4699 = vmatpush1.msra.mxu0 0.0
    %4700 = vmatprep.subr.mxu0 0.0
    %4701 = vmatpush1.msra.mxu0 0.0
    %4702 = vmatprep.subr.mxu0 0.0
    %4703 = vmatpush1.msra.mxu0 0.0
    %4704 = vmatprep.subr.mxu0 0.0
    %4705 = vmatpush1.msra.mxu0 0.0
    %4706 = vmatprep.subr.mxu0 0.0
    %4707 = vmatpush1.msra.mxu0 0.0
    %4708 = vmatprep.subr.mxu0 0.0
    %4709 = vmatpush1.msra.mxu0 0.0
    %4710 = vmatprep.mubr.f32.mxu0 0.0
    %v4711 = vand.u32 %v4642, 4294901760
    %v4712 = vsub.f32 %v4642, %v4711
    %v4713 = vand.u32 %v4712, 4294901760
    %v4714 = vsub.f32 %v4712, %v4713
    %v4715 = vand.u32 %v4714, 4294901760
    %4716 = vmatmul.mubr.f32.gmra.mrb[0].mxu0 %v4715
    %v4717 = vpop.f32.mrb[0].mxu0
    %v4718 = vadd.f32 0.0, %v4717
    %v4719 = vpop.f32.mrb[0].mxu0
    %4720 = vdwg.mxu0
    %4721 = vmatprep.subr.mxu0 0.0
    %v4722 = vand.u32 %v25, 4294901760
    %v4723 = vsub.f32 %v25, %v4722
    %v4724 = vand.u32 %v4723, 4294901760
    %v4725 = vsub.f32 %v4723, %v4724
    %v4726 = vand.u32 %v4725, 4294901760
    %4727 = vmatpush1.msra.mxu0 %v4726
    %4728 = vmatprep.subr.mxu0 0.0
    %v4729 = vand.u32 %v26, 4294901760
    %v4730 = vsub.f32 %v26, %v4729
    %v4731 = vand.u32 %v4730, 4294901760
    %v4732 = vsub.f32 %v4730, %v4731
    %v4733 = vand.u32 %v4732, 4294901760
    %4734 = vmatpush1.msra.mxu0 %v4733
    %4735 = vmatprep.subr.mxu0 0.0
    %4736 = vmatpush1.msra.mxu0 0.0
    %4737 = vmatprep.subr.mxu0 0.0
    %4738 = vmatpush1.msra.mxu0 0.0
    %4739 = vmatprep.subr.mxu0 0.0
    %4740 = vmatpush1.msra.mxu0 0.0
    %4741 = vmatprep.subr.mxu0 0.0
    %4742 = vmatpush1.msra.mxu0 0.0
    %4743 = vmatprep.subr.mxu0 0.0
    %4744 = vmatpush1.msra.mxu0 0.0
    %4745 = vmatprep.subr.mxu0 0.0
    %4746 = vmatpush1.msra.mxu0 0.0
    %4747 = vmatprep.subr.mxu0 0.0
    %4748 = vmatpush1.msra.mxu0 0.0
    %4749 = vmatprep.subr.mxu0 0.0
    %4750 = vmatpush1.msra.mxu0 0.0
    %4751 = vmatprep.subr.mxu0 0.0
    %4752 = vmatpush1.msra.mxu0 0.0
    %4753 = vmatprep.subr.mxu0 0.0
    %4754 = vmatpush1.msra.mxu0 0.0
    %4755 = vmatprep.subr.mxu0 0.0
    %4756 = vmatpush1.msra.mxu0 0.0
    %4757 = vmatprep.subr.mxu0 0.0
    %4758 = vmatpush1.msra.mxu0 0.0
    %4759 = vmatprep.subr.mxu0 0.0
    %4760 = vmatpush1.msra.mxu0 0.0
    %4761 = vmatprep.subr.mxu0 0.0
    %4762 = vmatpush1.msra.mxu0 0.0
    %4763 = vmatprep.subr.mxu0 0.0
    %4764 = vmatpush1.msra.mxu0 0.0
    %4765 = vmatprep.subr.mxu0 0.0
    %4766 = vmatpush1.msra.mxu0 0.0
    %4767 = vmatprep.subr.mxu0 0.0
    %4768 = vmatpush1.msra.mxu0 0.0
    %4769 = vmatprep.subr.mxu0 0.0
    %4770 = vmatpush1.msra.mxu0 0.0
    %4771 = vmatprep.subr.mxu0 0.0
    %4772 = vmatpush1.msra.mxu0 0.0
    %4773 = vmatprep.subr.mxu0 0.0
    %4774 = vmatpush1.msra.mxu0 0.0
    %4775 = vmatprep.subr.mxu0 0.0
    %4776 = vmatpush1.msra.mxu0 0.0
    %4777 = vmatprep.subr.mxu0 0.0
    %4778 = vmatpush1.msra.mxu0 0.0
    %4779 = vmatprep.subr.mxu0 0.0
    %4780 = vmatpush1.msra.mxu0 0.0
    %4781 = vmatprep.subr.mxu0 0.0
    %4782 = vmatpush1.msra.mxu0 0.0
    %4783 = vmatprep.subr.mxu0 0.0
    %4784 = vmatpush1.msra.mxu0 0.0
    %4785 = vmatprep.subr.mxu0 0.0
    %4786 = vmatpush1.msra.mxu0 0.0
    %4787 = vmatprep.subr.mxu0 0.0
    %4788 = vmatpush1.msra.mxu0 0.0
    %4789 = vmatprep.subr.mxu0 0.0
    %4790 = vmatpush1.msra.mxu0 0.0
    %4791 = vmatprep.subr.mxu0 0.0
    %4792 = vmatpush1.msra.mxu0 0.0
    %4793 = vmatprep.subr.mxu0 0.0
    %4794 = vmatpush1.msra.mxu0 0.0
    %4795 = vmatprep.mubr.f32.mxu0 0.0
    %v4796 = vand.u32 %v4642, 4294901760
    %4797 = vmatmul.mubr.f32.gmra.mrb[0].mxu0 %v4796
    %v4798 = vpop.f32.mrb[0].mxu0
    %v4799 = vadd.f32 %v4718, %v4798
    %v4800 = vpop.f32.mrb[0].mxu0
    %4801 = vdwg.mxu0
    %4802 = vmatprep.subr.mxu0 0.0
    %v4803 = vand.u32 %v25, 4294901760
    %v4804 = vsub.f32 %v25, %v4803
    %4805 = vmatpush1.msra.mxu0 %v4804
    %4806 = vmatprep.subr.mxu0 0.0
    %v4807 = vand.u32 %v26, 4294901760
    %v4808 = vsub.f32 %v26, %v4807
    %4809 = vmatpush1.msra.mxu0 %v4808
    %4810 = vmatprep.subr.mxu0 0.0
    %4811 = vmatpush1.msra.mxu0 0.0
    %4812 = vmatprep.subr.mxu0 0.0
    %4813 = vmatpush1.msra.mxu0 0.0
    %4814 = vmatprep.subr.mxu0 0.0
    %4815 = vmatpush1.msra.mxu0 0.0
    %4816 = vmatprep.subr.mxu0 0.0
    %4817 = vmatpush1.msra.mxu0 0.0
    %4818 = vmatprep.subr.mxu0 0.0
    %4819 = vmatpush1.msra.mxu0 0.0
    %4820 = vmatprep.subr.mxu0 0.0
    %4821 = vmatpush1.msra.mxu0 0.0
    %4822 = vmatprep.subr.mxu0 0.0
    %4823 = vmatpush1.msra.mxu0 0.0
    %4824 = vmatprep.subr.mxu0 0.0
    %4825 = vmatpush1.msra.mxu0 0.0
    %4826 = vmatprep.subr.mxu0 0.0
    %4827 = vmatpush1.msra.mxu0 0.0
    %4828 = vmatprep.subr.mxu0 0.0
    %4829 = vmatpush1.msra.mxu0 0.0
    %4830 = vmatprep.subr.mxu0 0.0
    %4831 = vmatpush1.msra.mxu0 0.0
    %4832 = vmatprep.subr.mxu0 0.0
    %4833 = vmatpush1.msra.mxu0 0.0
    %4834 = vmatprep.subr.mxu0 0.0
    %4835 = vmatpush1.msra.mxu0 0.0
    %4836 = vmatprep.subr.mxu0 0.0
    %4837 = vmatpush1.msra.mxu0 0.0
    %4838 = vmatprep.subr.mxu0 0.0
    %4839 = vmatpush1.msra.mxu0 0.0
    %4840 = vmatprep.subr.mxu0 0.0
    %4841 = vmatpush1.msra.mxu0 0.0
    %4842 = vmatprep.subr.mxu0 0.0
    %4843 = vmatpush1.msra.mxu0 0.0
    %4844 = vmatprep.subr.mxu0 0.0
    %4845 = vmatpush1.msra.mxu0 0.0
    %4846 = vmatprep.subr.mxu0 0.0
    %4847 = vmatpush1.msra.mxu0 0.0
    %4848 = vmatprep.subr.mxu0 0.0
    %4849 = vmatpush1.msra.mxu0 0.0
    %4850 = vmatprep.subr.mxu0 0.0
    %4851 = vmatpush1.msra.mxu0 0.0
    %4852 = vmatprep.subr.mxu0 0.0
    %4853 = vmatpush1.msra.mxu0 0.0
    %4854 = vmatprep.subr.mxu0 0.0
    %4855 = vmatpush1.msra.mxu0 0.0
    %4856 = vmatprep.subr.mxu0 0.0
    %4857 = vmatpush1.msra.mxu0 0.0
    %4858 = vmatprep.subr.mxu0 0.0
    %4859 = vmatpush1.msra.mxu0 0.0
    %4860 = vmatprep.subr.mxu0 0.0
    %4861 = vmatpush1.msra.mxu0 0.0
    %4862 = vmatprep.subr.mxu0 0.0
    %4863 = vmatpush1.msra.mxu0 0.0
    %4864 = vmatprep.subr.mxu0 0.0
    %4865 = vmatpush1.msra.mxu0 0.0
    %4866 = vmatprep.subr.mxu0 0.0
    %4867 = vmatpush1.msra.mxu0 0.0
    %4868 = vmatprep.subr.mxu0 0.0
    %4869 = vmatpush1.msra.mxu0 0.0
    %4870 = vmatprep.mubr.f32.mxu0 0.0
    %v4871 = vand.u32 %v4642, 4294901760
    %v4872 = vsub.f32 %v4642, %v4871
    %4873 = vmatmul.mubr.f32.gmra.mrb[0].mxu0 %v4872
    %v4874 = vpop.f32.mrb[0].mxu0
    %v4875 = vadd.f32 %v4799, %v4874
    %v4876 = vpop.f32.mrb[0].mxu0
    %4877 = vdwg.mxu0
    %4878 = vmatprep.subr.mxu0 0.0
    %v4879 = vand.u32 %v25, 4294901760
    %4880 = vmatpush1.msra.mxu0 %v4879
    %4881 = vmatprep.subr.mxu0 0.0
    %v4882 = vand.u32 %v26, 4294901760
    %4883 = vmatpush1.msra.mxu0 %v4882
    %4884 = vmatprep.subr.mxu0 0.0
    %4885 = vmatpush1.msra.mxu0 0.0
    %4886 = vmatprep.subr.mxu0 0.0
    %4887 = vmatpush1.msra.mxu0 0.0
    %4888 = vmatprep.subr.mxu0 0.0
    %4889 = vmatpush1.msra.mxu0 0.0
    %4890 = vmatprep.subr.mxu0 0.0
    %4891 = vmatpush1.msra.mxu0 0.0
    %4892 = vmatprep.subr.mxu0 0.0
    %4893 = vmatpush1.msra.mxu0 0.0
    %4894 = vmatprep.subr.mxu0 0.0
    %4895 = vmatpush1.msra.mxu0 0.0
    %4896 = vmatprep.subr.mxu0 0.0
    %4897 = vmatpush1.msra.mxu0 0.0
    %4898 = vmatprep.subr.mxu0 0.0
    %4899 = vmatpush1.msra.mxu0 0.0
    %4900 = vmatprep.subr.mxu0 0.0
    %4901 = vmatpush1.msra.mxu0 0.0
    %4902 = vmatprep.subr.mxu0 0.0
    %4903 = vmatpush1.msra.mxu0 0.0
    %4904 = vmatprep.subr.mxu0 0.0
    %4905 = vmatpush1.msra.mxu0 0.0
    %4906 = vmatprep.subr.mxu0 0.0
    %4907 = vmatpush1.msra.mxu0 0.0
    %4908 = vmatprep.subr.mxu0 0.0
    %4909 = vmatpush1.msra.mxu0 0.0
    %4910 = vmatprep.subr.mxu0 0.0
    %4911 = vmatpush1.msra.mxu0 0.0
    %4912 = vmatprep.subr.mxu0 0.0
    %4913 = vmatpush1.msra.mxu0 0.0
    %4914 = vmatprep.subr.mxu0 0.0
    %4915 = vmatpush1.msra.mxu0 0.0
    %4916 = vmatprep.subr.mxu0 0.0
    %4917 = vmatpush1.msra.mxu0 0.0
    %4918 = vmatprep.subr.mxu0 0.0
    %4919 = vmatpush1.msra.mxu0 0.0
    %4920 = vmatprep.subr.mxu0 0.0
    %4921 = vmatpush1.msra.mxu0 0.0
    %4922 = vmatprep.subr.mxu0 0.0
    %4923 = vmatpush1.msra.mxu0 0.0
    %4924 = vmatprep.subr.mxu0 0.0
    %4925 = vmatpush1.msra.mxu0 0.0
    %4926 = vmatprep.subr.mxu0 0.0
    %4927 = vmatpush1.msra.mxu0 0.0
    %4928 = vmatprep.subr.mxu0 0.0
    %4929 = vmatpush1.msra.mxu0 0.0
    %4930 = vmatprep.subr.mxu0 0.0
    %4931 = vmatpush1.msra.mxu0 0.0
    %4932 = vmatprep.subr.mxu0 0.0
    %4933 = vmatpush1.msra.mxu0 0.0
    %4934 = vmatprep.subr.mxu0 0.0
    %4935 = vmatpush1.msra.mxu0 0.0
    %4936 = vmatprep.subr.mxu0 0.0
    %4937 = vmatpush1.msra.mxu0 0.0
    %4938 = vmatprep.subr.mxu0 0.0
    %4939 = vmatpush1.msra.mxu0 0.0
    %4940 = vmatprep.subr.mxu0 0.0
    %4941 = vmatpush1.msra.mxu0 0.0
    %4942 = vmatprep.subr.mxu0 0.0
    %4943 = vmatpush1.msra.mxu0 0.0
    %4944 = vmatprep.mubr.f32.mxu0 0.0
    %v4945 = vand.u32 %v4642, 4294901760
    %v4946 = vsub.f32 %v4642, %v4945
    %v4947 = vand.u32 %v4946, 4294901760
    %4948 = vmatmul.mubr.f32.gmra.mrb[0].mxu0 %v4947
    %v4949 = vpop.f32.mrb[0].mxu0
    %v4950 = vadd.f32 %v4875, %v4949
    %v4951 = vpop.f32.mrb[0].mxu0
    %4952 = vdwg.mxu0
    %4953 = vmatprep.subr.mxu0 0.0
    %v4954 = vand.u32 %v25, 4294901760
    %v4955 = vsub.f32 %v25, %v4954
    %v4956 = vand.u32 %v4955, 4294901760
    %4957 = vmatpush1.msra.mxu0 %v4956
    %4958 = vmatprep.subr.mxu0 0.0
    %v4959 = vand.u32 %v26, 4294901760
    %v4960 = vsub.f32 %v26, %v4959
    %v4961 = vand.u32 %v4960, 4294901760
    %4962 = vmatpush1.msra.mxu0 %v4961
    %4963 = vmatprep.subr.mxu0 0.0
    %4964 = vmatpush1.msra.mxu0 0.0
    %4965 = vmatprep.subr.mxu0 0.0
    %4966 = vmatpush1.msra.mxu0 0.0
    %4967 = vmatprep.subr.mxu0 0.0
    %4968 = vmatpush1.msra.mxu0 0.0
    %4969 = vmatprep.subr.mxu0 0.0
    %4970 = vmatpush1.msra.mxu0 0.0
    %4971 = vmatprep.subr.mxu0 0.0
    %4972 = vmatpush1.msra.mxu0 0.0
    %4973 = vmatprep.subr.mxu0 0.0
    %4974 = vmatpush1.msra.mxu0 0.0
    %4975 = vmatprep.subr.mxu0 0.0
    %4976 = vmatpush1.msra.mxu0 0.0
    %4977 = vmatprep.subr.mxu0 0.0
    %4978 = vmatpush1.msra.mxu0 0.0
    %4979 = vmatprep.subr.mxu0 0.0
    %4980 = vmatpush1.msra.mxu0 0.0
    %4981 = vmatprep.subr.mxu0 0.0
    %4982 = vmatpush1.msra.mxu0 0.0
    %4983 = vmatprep.subr.mxu0 0.0
    %4984 = vmatpush1.msra.mxu0 0.0
    %4985 = vmatprep.subr.mxu0 0.0
    %4986 = vmatpush1.msra.mxu0 0.0
    %4987 = vmatprep.subr.mxu0 0.0
    %4988 = vmatpush1.msra.mxu0 0.0
    %4989 = vmatprep.subr.mxu0 0.0
    %4990 = vmatpush1.msra.mxu0 0.0
    %4991 = vmatprep.subr.mxu0 0.0
    %4992 = vmatpush1.msra.mxu0 0.0
    %4993 = vmatprep.subr.mxu0 0.0
    %4994 = vmatpush1.msra.mxu0 0.0
    %4995 = vmatprep.subr.mxu0 0.0
    %4996 = vmatpush1.msra.mxu0 0.0
    %4997 = vmatprep.subr.mxu0 0.0
    %4998 = vmatpush1.msra.mxu0 0.0
    %4999 = vmatprep.subr.mxu0 0.0
    %5000 = vmatpush1.msra.mxu0 0.0
    %5001 = vmatprep.subr.mxu0 0.0
    %5002 = vmatpush1.msra.mxu0 0.0
    %5003 = vmatprep.subr.mxu0 0.0
    %5004 = vmatpush1.msra.mxu0 0.0
    %5005 = vmatprep.subr.mxu0 0.0
    %5006 = vmatpush1.msra.mxu0 0.0
    %5007 = vmatprep.subr.mxu0 0.0
    %5008 = vmatpush1.msra.mxu0 0.0
    %5009 = vmatprep.subr.mxu0 0.0
    %5010 = vmatpush1.msra.mxu0 0.0
    %5011 = vmatprep.subr.mxu0 0.0
    %5012 = vmatpush1.msra.mxu0 0.0
    %5013 = vmatprep.subr.mxu0 0.0
    %5014 = vmatpush1.msra.mxu0 0.0
    %5015 = vmatprep.subr.mxu0 0.0
    %5016 = vmatpush1.msra.mxu0 0.0
    %5017 = vmatprep.subr.mxu0 0.0
    %5018 = vmatpush1.msra.mxu0 0.0
    %5019 = vmatprep.subr.mxu0 0.0
    %5020 = vmatpush1.msra.mxu0 0.0
    %5021 = vmatprep.subr.mxu0 0.0
    %5022 = vmatpush1.msra.mxu0 0.0
    %5023 = vmatprep.mubr.f32.mxu0 0.0
    %v5024 = vand.u32 %v4642, 4294901760
    %5025 = vmatmul.mubr.f32.gmra.mrb[0].mxu0 %v5024
    %v5026 = vpop.f32.mrb[0].mxu0
    %v5027 = vadd.f32 %v4950, %v5026
    %v5028 = vpop.f32.mrb[0].mxu0
    %5029 = vdwg.mxu0
    %5030 = vmatprep.subr.mxu0 0.0
    %v5031 = vand.u32 %v25, 4294901760
    %5032 = vmatpush1.msra.mxu0 %v5031
    %5033 = vmatprep.subr.mxu0 0.0
    %v5034 = vand.u32 %v26, 4294901760
    %5035 = vmatpush1.msra.mxu0 %v5034
    %5036 = vmatprep.subr.mxu0 0.0
    %5037 = vmatpush1.msra.mxu0 0.0
    %5038 = vmatprep.subr.mxu0 0.0
    %5039 = vmatpush1.msra.mxu0 0.0
    %5040 = vmatprep.subr.mxu0 0.0
    %5041 = vmatpush1.msra.mxu0 0.0
    %5042 = vmatprep.subr.mxu0 0.0
    %5043 = vmatpush1.msra.mxu0 0.0
    %5044 = vmatprep.subr.mxu0 0.0
    %5045 = vmatpush1.msra.mxu0 0.0
    %5046 = vmatprep.subr.mxu0 0.0
    %5047 = vmatpush1.msra.mxu0 0.0
    %5048 = vmatprep.subr.mxu0 0.0
    %5049 = vmatpush1.msra.mxu0 0.0
    %5050 = vmatprep.subr.mxu0 0.0
    %5051 = vmatpush1.msra.mxu0 0.0
    %5052 = vmatprep.subr.mxu0 0.0
    %5053 = vmatpush1.msra.mxu0 0.0
    %5054 = vmatprep.subr.mxu0 0.0
    %5055 = vmatpush1.msra.mxu0 0.0
    %5056 = vmatprep.subr.mxu0 0.0
    %5057 = vmatpush1.msra.mxu0 0.0
    %5058 = vmatprep.subr.mxu0 0.0
    %5059 = vmatpush1.msra.mxu0 0.0
    %5060 = vmatprep.subr.mxu0 0.0
    %5061 = vmatpush1.msra.mxu0 0.0
    %5062 = vmatprep.subr.mxu0 0.0
    %5063 = vmatpush1.msra.mxu0 0.0
    %5064 = vmatprep.subr.mxu0 0.0
    %5065 = vmatpush1.msra.mxu0 0.0
    %5066 = vmatprep.subr.mxu0 0.0
    %5067 = vmatpush1.msra.mxu0 0.0
    %5068 = vmatprep.subr.mxu0 0.0
    %5069 = vmatpush1.msra.mxu0 0.0
    %5070 = vmatprep.subr.mxu0 0.0
    %5071 = vmatpush1.msra.mxu0 0.0
    %5072 = vmatprep.subr.mxu0 0.0
    %5073 = vmatpush1.msra.mxu0 0.0
    %5074 = vmatprep.subr.mxu0 0.0
    %5075 = vmatpush1.msra.mxu0 0.0
    %5076 = vmatprep.subr.mxu0 0.0
    %5077 = vmatpush1.msra.mxu0 0.0
    %5078 = vmatprep.subr.mxu0 0.0
    %5079 = vmatpush1.msra.mxu0 0.0
    %5080 = vmatprep.subr.mxu0 0.0
    %5081 = vmatpush1.msra.mxu0 0.0
    %5082 = vmatprep.subr.mxu0 0.0
    %5083 = vmatpush1.msra.mxu0 0.0
    %5084 = vmatprep.subr.mxu0 0.0
    %5085 = vmatpush1.msra.mxu0 0.0
    %5086 = vmatprep.subr.mxu0 0.0
    %5087 = vmatpush1.msra.mxu0 0.0
    %5088 = vmatprep.subr.mxu0 0.0
    %5089 = vmatpush1.msra.mxu0 0.0
    %5090 = vmatprep.subr.mxu0 0.0
    %5091 = vmatpush1.msra.mxu0 0.0
    %5092 = vmatprep.subr.mxu0 0.0
    %5093 = vmatpush1.msra.mxu0 0.0
    %5094 = vmatprep.subr.mxu0 0.0
    %5095 = vmatpush1.msra.mxu0 0.0
    %5096 = vmatprep.mubr.f32.mxu0 0.0
    %v5097 = vand.u32 %v4642, 4294901760
    %5098 = vmatmul.mubr.f32.gmra.mrb[0].mxu0 %v5097
    %v5099 = vpop.f32.mrb[0].mxu0
    %v5100 = vadd.f32 %v5027, %v5099
    %v5101 = vpop.f32.mrb[0].mxu0
    %5102 = vdwg.mxu0
    %5103 = vmatprep.subr.mxu0 0.0
    %v5104 = vand.u32 %v28, 4294901760
    %5105 = vmatpush1.msra.mxu0 %v5104
    %5106 = vmatprep.subr.mxu0 0.0
    %v5107 = vand.u32 %v29, 4294901760
    %5108 = vmatpush1.msra.mxu0 %v5107
    %5109 = vmatprep.subr.mxu0 0.0
    %5110 = vmatpush1.msra.mxu0 0.0
    %5111 = vmatprep.subr.mxu0 0.0
    %5112 = vmatpush1.msra.mxu0 0.0
    %5113 = vmatprep.subr.mxu0 0.0
    %5114 = vmatpush1.msra.mxu0 0.0
    %5115 = vmatprep.subr.mxu0 0.0
    %5116 = vmatpush1.msra.mxu0 0.0
    %5117 = vmatprep.subr.mxu0 0.0
    %5118 = vmatpush1.msra.mxu0 0.0
    %5119 = vmatprep.subr.mxu0 0.0
    %5120 = vmatpush1.msra.mxu0 0.0
    %5121 = vmatprep.subr.mxu0 0.0
    %5122 = vmatpush1.msra.mxu0 0.0
    %5123 = vmatprep.subr.mxu0 0.0
    %5124 = vmatpush1.msra.mxu0 0.0
    %5125 = vmatprep.subr.mxu0 0.0
    %5126 = vmatpush1.msra.mxu0 0.0
    %5127 = vmatprep.subr.mxu0 0.0
    %5128 = vmatpush1.msra.mxu0 0.0
    %5129 = vmatprep.subr.mxu0 0.0
    %5130 = vmatpush1.msra.mxu0 0.0
    %5131 = vmatprep.subr.mxu0 0.0
    %5132 = vmatpush1.msra.mxu0 0.0
    %5133 = vmatprep.subr.mxu0 0.0
    %5134 = vmatpush1.msra.mxu0 0.0
    %5135 = vmatprep.subr.mxu0 0.0
    %5136 = vmatpush1.msra.mxu0 0.0
    %5137 = vmatprep.subr.mxu0 0.0
    %5138 = vmatpush1.msra.mxu0 0.0
    %5139 = vmatprep.subr.mxu0 0.0
    %5140 = vmatpush1.msra.mxu0 0.0
    %5141 = vmatprep.subr.mxu0 0.0
    %5142 = vmatpush1.msra.mxu0 0.0
    %5143 = vmatprep.subr.mxu0 0.0
    %5144 = vmatpush1.msra.mxu0 0.0
    %5145 = vmatprep.subr.mxu0 0.0
    %5146 = vmatpush1.msra.mxu0 0.0
    %5147 = vmatprep.subr.mxu0 0.0
    %5148 = vmatpush1.msra.mxu0 0.0
    %5149 = vmatprep.subr.mxu0 0.0
    %5150 = vmatpush1.msra.mxu0 0.0
    %5151 = vmatprep.subr.mxu0 0.0
    %5152 = vmatpush1.msra.mxu0 0.0
    %5153 = vmatprep.subr.mxu0 0.0
    %5154 = vmatpush1.msra.mxu0 0.0
    %5155 = vmatprep.subr.mxu0 0.0
    %5156 = vmatpush1.msra.mxu0 0.0
    %5157 = vmatprep.subr.mxu0 0.0
    %5158 = vmatpush1.msra.mxu0 0.0
    %5159 = vmatprep.subr.mxu0 0.0
    %5160 = vmatpush1.msra.mxu0 0.0
    %5161 = vmatprep.subr.mxu0 0.0
    %5162 = vmatpush1.msra.mxu0 0.0
    %5163 = vmatprep.subr.mxu0 0.0
    %5164 = vmatpush1.msra.mxu0 0.0
    %5165 = vmatprep.subr.mxu0 0.0
    %5166 = vmatpush1.msra.mxu0 0.0
    %5167 = vmatprep.subr.mxu0 0.0
    %5168 = vmatpush1.msra.mxu0 0.0
    %5169 = vmatprep.mubr.f32.mxu0 0.0
    %v5170 = vand.u32 %v4642, 4294901760
    %v5171 = vsub.f32 %v4642, %v5170
    %v5172 = vand.u32 %v5171, 4294901760
    %v5173 = vsub.f32 %v5171, %v5172
    %v5174 = vand.u32 %v5173, 4294901760
    %5175 = vmatmul.mubr.f32.gmra.mrb[0].mxu0 %v5174
    %v5176 = vpop.f32.mrb[0].mxu0
    %v5177 = vadd.f32 0.0, %v5176
    %v5178 = vpop.f32.mrb[0].mxu0
    %5179 = vdwg.mxu0
    %5180 = vmatprep.subr.mxu0 0.0
    %v5181 = vand.u32 %v28, 4294901760
    %v5182 = vsub.f32 %v28, %v5181
    %v5183 = vand.u32 %v5182, 4294901760
    %v5184 = vsub.f32 %v5182, %v5183
    %v5185 = vand.u32 %v5184, 4294901760
    %5186 = vmatpush1.msra.mxu0 %v5185
    %5187 = vmatprep.subr.mxu0 0.0
    %v5188 = vand.u32 %v29, 4294901760
    %v5189 = vsub.f32 %v29, %v5188
    %v5190 = vand.u32 %v5189, 4294901760
    %v5191 = vsub.f32 %v5189, %v5190
    %v5192 = vand.u32 %v5191, 4294901760
    %5193 = vmatpush1.msra.mxu0 %v5192
    %5194 = vmatprep.subr.mxu0 0.0
    %5195 = vmatpush1.msra.mxu0 0.0
    %5196 = vmatprep.subr.mxu0 0.0
    %5197 = vmatpush1.msra.mxu0 0.0
    %5198 = vmatprep.subr.mxu0 0.0
    %5199 = vmatpush1.msra.mxu0 0.0
    %5200 = vmatprep.subr.mxu0 0.0
    %5201 = vmatpush1.msra.mxu0 0.0
    %5202 = vmatprep.subr.mxu0 0.0
    %5203 = vmatpush1.msra.mxu0 0.0
    %5204 = vmatprep.subr.mxu0 0.0
    %5205 = vmatpush1.msra.mxu0 0.0
    %5206 = vmatprep.subr.mxu0 0.0
    %5207 = vmatpush1.msra.mxu0 0.0
    %5208 = vmatprep.subr.mxu0 0.0
    %5209 = vmatpush1.msra.mxu0 0.0
    %5210 = vmatprep.subr.mxu0 0.0
    %5211 = vmatpush1.msra.mxu0 0.0
    %5212 = vmatprep.subr.mxu0 0.0
    %5213 = vmatpush1.msra.mxu0 0.0
    %5214 = vmatprep.subr.mxu0 0.0
    %5215 = vmatpush1.msra.mxu0 0.0
    %5216 = vmatprep.subr.mxu0 0.0
    %5217 = vmatpush1.msra.mxu0 0.0
    %5218 = vmatprep.subr.mxu0 0.0
    %5219 = vmatpush1.msra.mxu0 0.0
    %5220 = vmatprep.subr.mxu0 0.0
    %5221 = vmatpush1.msra.mxu0 0.0
    %5222 = vmatprep.subr.mxu0 0.0
    %5223 = vmatpush1.msra.mxu0 0.0
    %5224 = vmatprep.subr.mxu0 0.0
    %5225 = vmatpush1.msra.mxu0 0.0
    %5226 = vmatprep.subr.mxu0 0.0
    %5227 = vmatpush1.msra.mxu0 0.0
    %5228 = vmatprep.subr.mxu0 0.0
    %5229 = vmatpush1.msra.mxu0 0.0
    %5230 = vmatprep.subr.mxu0 0.0
    %5231 = vmatpush1.msra.mxu0 0.0
    %5232 = vmatprep.subr.mxu0 0.0
    %5233 = vmatpush1.msra.mxu0 0.0
    %5234 = vmatprep.subr.mxu0 0.0
    %5235 = vmatpush1.msra.mxu0 0.0
    %5236 = vmatprep.subr.mxu0 0.0
    %5237 = vmatpush1.msra.mxu0 0.0
    %5238 = vmatprep.subr.mxu0 0.0
    %5239 = vmatpush1.msra.mxu0 0.0
    %5240 = vmatprep.subr.mxu0 0.0
    %5241 = vmatpush1.msra.mxu0 0.0
    %5242 = vmatprep.subr.mxu0 0.0
    %5243 = vmatpush1.msra.mxu0 0.0
    %5244 = vmatprep.subr.mxu0 0.0
    %5245 = vmatpush1.msra.mxu0 0.0
    %5246 = vmatprep.subr.mxu0 0.0
    %5247 = vmatpush1.msra.mxu0 0.0
    %5248 = vmatprep.subr.mxu0 0.0
    %5249 = vmatpush1.msra.mxu0 0.0
    %5250 = vmatprep.subr.mxu0 0.0
    %5251 = vmatpush1.msra.mxu0 0.0
    %5252 = vmatprep.subr.mxu0 0.0
    %5253 = vmatpush1.msra.mxu0 0.0
    %5254 = vmatprep.mubr.f32.mxu0 0.0
    %v5255 = vand.u32 %v4642, 4294901760
    %5256 = vmatmul.mubr.f32.gmra.mrb[0].mxu0 %v5255
    %v5257 = vpop.f32.mrb[0].mxu0
    %v5258 = vadd.f32 %v5177, %v5257
    %v5259 = vpop.f32.mrb[0].mxu0
    %5260 = vdwg.mxu0
    %5261 = vmatprep.subr.mxu0 0.0
    %v5262 = vand.u32 %v28, 4294901760
    %v5263 = vsub.f32 %v28, %v5262
    %5264 = vmatpush1.msra.mxu0 %v5263
    %5265 = vmatprep.subr.mxu0 0.0
    %v5266 = vand.u32 %v29, 4294901760
    %v5267 = vsub.f32 %v29, %v5266
    %5268 = vmatpush1.msra.mxu0 %v5267
    %5269 = vmatprep.subr.mxu0 0.0
    %5270 = vmatpush1.msra.mxu0 0.0
    %5271 = vmatprep.subr.mxu0 0.0
    %5272 = vmatpush1.msra.mxu0 0.0
    %5273 = vmatprep.subr.mxu0 0.0
    %5274 = vmatpush1.msra.mxu0 0.0
    %5275 = vmatprep.subr.mxu0 0.0
    %5276 = vmatpush1.msra.mxu0 0.0
    %5277 = vmatprep.subr.mxu0 0.0
    %5278 = vmatpush1.msra.mxu0 0.0
    %5279 = vmatprep.subr.mxu0 0.0
    %5280 = vmatpush1.msra.mxu0 0.0
    %5281 = vmatprep.subr.mxu0 0.0
    %5282 = vmatpush1.msra.mxu0 0.0
    %5283 = vmatprep.subr.mxu0 0.0
    %5284 = vmatpush1.msra.mxu0 0.0
    %5285 = vmatprep.subr.mxu0 0.0
    %5286 = vmatpush1.msra.mxu0 0.0
    %5287 = vmatprep.subr.mxu0 0.0
    %5288 = vmatpush1.msra.mxu0 0.0
    %5289 = vmatprep.subr.mxu0 0.0
    %5290 = vmatpush1.msra.mxu0 0.0
    %5291 = vmatprep.subr.mxu0 0.0
    %5292 = vmatpush1.msra.mxu0 0.0
    %5293 = vmatprep.subr.mxu0 0.0
    %5294 = vmatpush1.msra.mxu0 0.0
    %5295 = vmatprep.subr.mxu0 0.0
    %5296 = vmatpush1.msra.mxu0 0.0
    %5297 = vmatprep.subr.mxu0 0.0
    %5298 = vmatpush1.msra.mxu0 0.0
    %5299 = vmatprep.subr.mxu0 0.0
    %5300 = vmatpush1.msra.mxu0 0.0
    %5301 = vmatprep.subr.mxu0 0.0
    %5302 = vmatpush1.msra.mxu0 0.0
    %5303 = vmatprep.subr.mxu0 0.0
    %5304 = vmatpush1.msra.mxu0 0.0
    %5305 = vmatprep.subr.mxu0 0.0
    %5306 = vmatpush1.msra.mxu0 0.0
    %5307 = vmatprep.subr.mxu0 0.0
    %5308 = vmatpush1.msra.mxu0 0.0
    %5309 = vmatprep.subr.mxu0 0.0
    %5310 = vmatpush1.msra.mxu0 0.0
    %5311 = vmatprep.subr.mxu0 0.0
    %5312 = vmatpush1.msra.mxu0 0.0
    %5313 = vmatprep.subr.mxu0 0.0
    %5314 = vmatpush1.msra.mxu0 0.0
    %5315 = vmatprep.subr.mxu0 0.0
    %5316 = vmatpush1.msra.mxu0 0.0
    %5317 = vmatprep.subr.mxu0 0.0
    %5318 = vmatpush1.msra.mxu0 0.0
    %5319 = vmatprep.subr.mxu0 0.0
    %5320 = vmatpush1.msra.mxu0 0.0
    %5321 = vmatprep.subr.mxu0 0.0
    %5322 = vmatpush1.msra.mxu0 0.0
    %5323 = vmatprep.subr.mxu0 0.0
    %5324 = vmatpush1.msra.mxu0 0.0
    %5325 = vmatprep.subr.mxu0 0.0
    %5326 = vmatpush1.msra.mxu0 0.0
    %5327 = vmatprep.subr.mxu0 0.0
    %5328 = vmatpush1.msra.mxu0 0.0
    %5329 = vmatprep.mubr.f32.mxu0 0.0
    %v5330 = vand.u32 %v4642, 4294901760
    %v5331 = vsub.f32 %v4642, %v5330
    %5332 = vmatmul.mubr.f32.gmra.mrb[0].mxu0 %v5331
    %v5333 = vpop.f32.mrb[0].mxu0
    %v5334 = vadd.f32 %v5258, %v5333
    %v5335 = vpop.f32.mrb[0].mxu0
    %5336 = vdwg.mxu0
    %5337 = vmatprep.subr.mxu0 0.0
    %v5338 = vand.u32 %v28, 4294901760
    %5339 = vmatpush1.msra.mxu0 %v5338
    %5340 = vmatprep.subr.mxu0 0.0
    %v5341 = vand.u32 %v29, 4294901760
    %5342 = vmatpush1.msra.mxu0 %v5341
    %5343 = vmatprep.subr.mxu0 0.0
    %5344 = vmatpush1.msra.mxu0 0.0
    %5345 = vmatprep.subr.mxu0 0.0
    %5346 = vmatpush1.msra.mxu0 0.0
    %5347 = vmatprep.subr.mxu0 0.0
    %5348 = vmatpush1.msra.mxu0 0.0
    %5349 = vmatprep.subr.mxu0 0.0
    %5350 = vmatpush1.msra.mxu0 0.0
    %5351 = vmatprep.subr.mxu0 0.0
    %5352 = vmatpush1.msra.mxu0 0.0
    %5353 = vmatprep.subr.mxu0 0.0
    %5354 = vmatpush1.msra.mxu0 0.0
    %5355 = vmatprep.subr.mxu0 0.0
    %5356 = vmatpush1.msra.mxu0 0.0
    %5357 = vmatprep.subr.mxu0 0.0
    %5358 = vmatpush1.msra.mxu0 0.0
    %5359 = vmatprep.subr.mxu0 0.0
    %5360 = vmatpush1.msra.mxu0 0.0
    %5361 = vmatprep.subr.mxu0 0.0
    %5362 = vmatpush1.msra.mxu0 0.0
    %5363 = vmatprep.subr.mxu0 0.0
    %5364 = vmatpush1.msra.mxu0 0.0
    %5365 = vmatprep.subr.mxu0 0.0
    %5366 = vmatpush1.msra.mxu0 0.0
    %5367 = vmatprep.subr.mxu0 0.0
    %5368 = vmatpush1.msra.mxu0 0.0
    %5369 = vmatprep.subr.mxu0 0.0
    %5370 = vmatpush1.msra.mxu0 0.0
    %5371 = vmatprep.subr.mxu0 0.0
    %5372 = vmatpush1.msra.mxu0 0.0
    %5373 = vmatprep.subr.mxu0 0.0
    %5374 = vmatpush1.msra.mxu0 0.0
    %5375 = vmatprep.subr.mxu0 0.0
    %5376 = vmatpush1.msra.mxu0 0.0
    %5377 = vmatprep.subr.mxu0 0.0
    %5378 = vmatpush1.msra.mxu0 0.0
    %5379 = vmatprep.subr.mxu0 0.0
    %5380 = vmatpush1.msra.mxu0 0.0
    %5381 = vmatprep.subr.mxu0 0.0
    %5382 = vmatpush1.msra.mxu0 0.0
    %5383 = vmatprep.subr.mxu0 0.0
    %5384 = vmatpush1.msra.mxu0 0.0
    %5385 = vmatprep.subr.mxu0 0.0
    %5386 = vmatpush1.msra.mxu0 0.0
    %5387 = vmatprep.subr.mxu0 0.0
    %5388 = vmatpush1.msra.mxu0 0.0
    %5389 = vmatprep.subr.mxu0 0.0
    %5390 = vmatpush1.msra.mxu0 0.0
    %5391 = vmatprep.subr.mxu0 0.0
    %5392 = vmatpush1.msra.mxu0 0.0
    %5393 = vmatprep.subr.mxu0 0.0
    %5394 = vmatpush1.msra.mxu0 0.0
    %5395 = vmatprep.subr.mxu0 0.0
    %5396 = vmatpush1.msra.mxu0 0.0
    %5397 = vmatprep.subr.mxu0 0.0
    %5398 = vmatpush1.msra.mxu0 0.0
    %5399 = vmatprep.subr.mxu0 0.0
    %5400 = vmatpush1.msra.mxu0 0.0
    %5401 = vmatprep.subr.mxu0 0.0
    %5402 = vmatpush1.msra.mxu0 0.0
    %5403 = vmatprep.mubr.f32.mxu0 0.0
    %v5404 = vand.u32 %v4642, 4294901760
    %v5405 = vsub.f32 %v4642, %v5404
    %v5406 = vand.u32 %v5405, 4294901760
    %5407 = vmatmul.mubr.f32.gmra.mrb[0].mxu0 %v5406
    %v5408 = vpop.f32.mrb[0].mxu0
    %v5409 = vadd.f32 %v5334, %v5408
    %v5410 = vpop.f32.mrb[0].mxu0
    %5411 = vdwg.mxu0
    %5412 = vmatprep.subr.mxu0 0.0
    %v5413 = vand.u32 %v28, 4294901760
    %v5414 = vsub.f32 %v28, %v5413
    %v5415 = vand.u32 %v5414, 4294901760
    %5416 = vmatpush1.msra.mxu0 %v5415
    %5417 = vmatprep.subr.mxu0 0.0
    %v5418 = vand.u32 %v29, 4294901760
    %v5419 = vsub.f32 %v29, %v5418
    %v5420 = vand.u32 %v5419, 4294901760
    %5421 = vmatpush1.msra.mxu0 %v5420
    %5422 = vmatprep.subr.mxu0 0.0
    %5423 = vmatpush1.msra.mxu0 0.0
    %5424 = vmatprep.subr.mxu0 0.0
    %5425 = vmatpush1.msra.mxu0 0.0
    %5426 = vmatprep.subr.mxu0 0.0
    %5427 = vmatpush1.msra.mxu0 0.0
    %5428 = vmatprep.subr.mxu0 0.0
    %5429 = vmatpush1.msra.mxu0 0.0
    %5430 = vmatprep.subr.mxu0 0.0
    %5431 = vmatpush1.msra.mxu0 0.0
    %5432 = vmatprep.subr.mxu0 0.0
    %5433 = vmatpush1.msra.mxu0 0.0
    %5434 = vmatprep.subr.mxu0 0.0
    %5435 = vmatpush1.msra.mxu0 0.0
    %5436 = vmatprep.subr.mxu0 0.0
    %5437 = vmatpush1.msra.mxu0 0.0
    %5438 = vmatprep.subr.mxu0 0.0
    %5439 = vmatpush1.msra.mxu0 0.0
    %5440 = vmatprep.subr.mxu0 0.0
    %5441 = vmatpush1.msra.mxu0 0.0
    %5442 = vmatprep.subr.mxu0 0.0
    %5443 = vmatpush1.msra.mxu0 0.0
    %5444 = vmatprep.subr.mxu0 0.0
    %5445 = vmatpush1.msra.mxu0 0.0
    %5446 = vmatprep.subr.mxu0 0.0
    %5447 = vmatpush1.msra.mxu0 0.0
    %5448 = vmatprep.subr.mxu0 0.0
    %5449 = vmatpush1.msra.mxu0 0.0
    %5450 = vmatprep.subr.mxu0 0.0
    %5451 = vmatpush1.msra.mxu0 0.0
    %5452 = vmatprep.subr.mxu0 0.0
    %5453 = vmatpush1.msra.mxu0 0.0
    %5454 = vmatprep.subr.mxu0 0.0
    %5455 = vmatpush1.msra.mxu0 0.0
    %5456 = vmatprep.subr.mxu0 0.0
    %5457 = vmatpush1.msra.mxu0 0.0
    %5458 = vmatprep.subr.mxu0 0.0
    %5459 = vmatpush1.msra.mxu0 0.0
    %5460 = vmatprep.subr.mxu0 0.0
    %5461 = vmatpush1.msra.mxu0 0.0
    %5462 = vmatprep.subr.mxu0 0.0
    %5463 = vmatpush1.msra.mxu0 0.0
    %5464 = vmatprep.subr.mxu0 0.0
    %5465 = vmatpush1.msra.mxu0 0.0
    %5466 = vmatprep.subr.mxu0 0.0
    %5467 = vmatpush1.msra.mxu0 0.0
    %5468 = vmatprep.subr.mxu0 0.0
    %5469 = vmatpush1.msra.mxu0 0.0
    %5470 = vmatprep.subr.mxu0 0.0
    %5471 = vmatpush1.msra.mxu0 0.0
    %5472 = vmatprep.subr.mxu0 0.0
    %5473 = vmatpush1.msra.mxu0 0.0
    %5474 = vmatprep.subr.mxu0 0.0
    %5475 = vmatpush1.msra.mxu0 0.0
    %5476 = vmatprep.subr.mxu0 0.0
    %5477 = vmatpush1.msra.mxu0 0.0
    %5478 = vmatprep.subr.mxu0 0.0
    %5479 = vmatpush1.msra.mxu0 0.0
    %5480 = vmatprep.subr.mxu0 0.0
    %5481 = vmatpush1.msra.mxu0 0.0
    %5482 = vmatprep.mubr.f32.mxu0 0.0
    %v5483 = vand.u32 %v4642, 4294901760
    %5484 = vmatmul.mubr.f32.gmra.mrb[0].mxu0 %v5483
    %v5485 = vpop.f32.mrb[0].mxu0
    %v5486 = vadd.f32 %v5409, %v5485
    %v5487 = vpop.f32.mrb[0].mxu0
    %5488 = vdwg.mxu0
    %5489 = vmatprep.subr.mxu0 0.0
    %v5490 = vand.u32 %v28, 4294901760
    %5491 = vmatpush1.msra.mxu0 %v5490
    %5492 = vmatprep.subr.mxu0 0.0
    %v5493 = vand.u32 %v29, 4294901760
    %5494 = vmatpush1.msra.mxu0 %v5493
    %5495 = vmatprep.subr.mxu0 0.0
    %5496 = vmatpush1.msra.mxu0 0.0
    %5497 = vmatprep.subr.mxu0 0.0
    %5498 = vmatpush1.msra.mxu0 0.0
    %5499 = vmatprep.subr.mxu0 0.0
    %5500 = vmatpush1.msra.mxu0 0.0
    %5501 = vmatprep.subr.mxu0 0.0
    %5502 = vmatpush1.msra.mxu0 0.0
    %5503 = vmatprep.subr.mxu0 0.0
    %5504 = vmatpush1.msra.mxu0 0.0
    %5505 = vmatprep.subr.mxu0 0.0
    %5506 = vmatpush1.msra.mxu0 0.0
    %5507 = vmatprep.subr.mxu0 0.0
    %5508 = vmatpush1.msra.mxu0 0.0
    %5509 = vmatprep.subr.mxu0 0.0
    %5510 = vmatpush1.msra.mxu0 0.0
    %5511 = vmatprep.subr.mxu0 0.0
    %5512 = vmatpush1.msra.mxu0 0.0
    %5513 = vmatprep.subr.mxu0 0.0
    %5514 = vmatpush1.msra.mxu0 0.0
    %5515 = vmatprep.subr.mxu0 0.0
    %5516 = vmatpush1.msra.mxu0 0.0
    %5517 = vmatprep.subr.mxu0 0.0
    %5518 = vmatpush1.msra.mxu0 0.0
    %5519 = vmatprep.subr.mxu0 0.0
    %5520 = vmatpush1.msra.mxu0 0.0
    %5521 = vmatprep.subr.mxu0 0.0
    %5522 = vmatpush1.msra.mxu0 0.0
    %5523 = vmatprep.subr.mxu0 0.0
    %5524 = vmatpush1.msra.mxu0 0.0
    %5525 = vmatprep.subr.mxu0 0.0
    %5526 = vmatpush1.msra.mxu0 0.0
    %5527 = vmatprep.subr.mxu0 0.0
    %5528 = vmatpush1.msra.mxu0 0.0
    %5529 = vmatprep.subr.mxu0 0.0
    %5530 = vmatpush1.msra.mxu0 0.0
    %5531 = vmatprep.subr.mxu0 0.0
    %5532 = vmatpush1.msra.mxu0 0.0
    %5533 = vmatprep.subr.mxu0 0.0
    %5534 = vmatpush1.msra.mxu0 0.0
    %5535 = vmatprep.subr.mxu0 0.0
    %5536 = vmatpush1.msra.mxu0 0.0
    %5537 = vmatprep.subr.mxu0 0.0
    %5538 = vmatpush1.msra.mxu0 0.0
    %5539 = vmatprep.subr.mxu0 0.0
    %5540 = vmatpush1.msra.mxu0 0.0
    %5541 = vmatprep.subr.mxu0 0.0
    %5542 = vmatpush1.msra.mxu0 0.0
    %5543 = vmatprep.subr.mxu0 0.0
    %5544 = vmatpush1.msra.mxu0 0.0
    %5545 = vmatprep.subr.mxu0 0.0
    %5546 = vmatpush1.msra.mxu0 0.0
    %5547 = vmatprep.subr.mxu0 0.0
    %5548 = vmatpush1.msra.mxu0 0.0
    %5549 = vmatprep.subr.mxu0 0.0
    %5550 = vmatpush1.msra.mxu0 0.0
    %5551 = vmatprep.subr.mxu0 0.0
    %5552 = vmatpush1.msra.mxu0 0.0
    %5553 = vmatprep.subr.mxu0 0.0
    %5554 = vmatpush1.msra.mxu0 0.0
    %5555 = vmatprep.mubr.f32.mxu0 0.0
    %v5556 = vand.u32 %v4642, 4294901760
    %5557 = vmatmul.mubr.f32.gmra.mrb[0].mxu0 %v5556
    %v5558 = vpop.f32.mrb[0].mxu0
    %v5559 = vadd.f32 %v5486, %v5558
    %v5560 = vpop.f32.mrb[0].mxu0
    %5561 = vdwg.mxu0
    %v5562 = vmax.f32 %v5100, %v5559
    %v5563 = vsel %vm1028, %v5562, %v5100
    %5564 = vmatprep.subr.mxu0 0.0
    %v5565 = vand.u32 %v31, 4294901760
    %5566 = vmatpush1.msra.mxu0 %v5565
    %5567 = vmatprep.subr.mxu0 0.0
    %v5568 = vand.u32 %v32, 4294901760
    %5569 = vmatpush1.msra.mxu0 %v5568
    %5570 = vmatprep.subr.mxu0 0.0
    %5571 = vmatpush1.msra.mxu0 0.0
    %5572 = vmatprep.subr.mxu0 0.0
    %5573 = vmatpush1.msra.mxu0 0.0
    %5574 = vmatprep.subr.mxu0 0.0
    %5575 = vmatpush1.msra.mxu0 0.0
    %5576 = vmatprep.subr.mxu0 0.0
    %5577 = vmatpush1.msra.mxu0 0.0
    %5578 = vmatprep.subr.mxu0 0.0
    %5579 = vmatpush1.msra.mxu0 0.0
    %5580 = vmatprep.subr.mxu0 0.0
    %5581 = vmatpush1.msra.mxu0 0.0
    %5582 = vmatprep.subr.mxu0 0.0
    %5583 = vmatpush1.msra.mxu0 0.0
    %5584 = vmatprep.subr.mxu0 0.0
    %5585 = vmatpush1.msra.mxu0 0.0
    %5586 = vmatprep.subr.mxu0 0.0
    %5587 = vmatpush1.msra.mxu0 0.0
    %5588 = vmatprep.subr.mxu0 0.0
    %5589 = vmatpush1.msra.mxu0 0.0
    %5590 = vmatprep.subr.mxu0 0.0
    %5591 = vmatpush1.msra.mxu0 0.0
    %5592 = vmatprep.subr.mxu0 0.0
    %5593 = vmatpush1.msra.mxu0 0.0
    %5594 = vmatprep.subr.mxu0 0.0
    %5595 = vmatpush1.msra.mxu0 0.0
    %5596 = vmatprep.subr.mxu0 0.0
    %5597 = vmatpush1.msra.mxu0 0.0
    %5598 = vmatprep.subr.mxu0 0.0
    %5599 = vmatpush1.msra.mxu0 0.0
    %5600 = vmatprep.subr.mxu0 0.0
    %5601 = vmatpush1.msra.mxu0 0.0
    %5602 = vmatprep.subr.mxu0 0.0
    %5603 = vmatpush1.msra.mxu0 0.0
    %5604 = vmatprep.subr.mxu0 0.0
    %5605 = vmatpush1.msra.mxu0 0.0
    %5606 = vmatprep.subr.mxu0 0.0
    %5607 = vmatpush1.msra.mxu0 0.0
    %5608 = vmatprep.subr.mxu0 0.0
    %5609 = vmatpush1.msra.mxu0 0.0
    %5610 = vmatprep.subr.mxu0 0.0
    %5611 = vmatpush1.msra.mxu0 0.0
    %5612 = vmatprep.subr.mxu0 0.0
    %5613 = vmatpush1.msra.mxu0 0.0
    %5614 = vmatprep.subr.mxu0 0.0
    %5615 = vmatpush1.msra.mxu0 0.0
    %5616 = vmatprep.subr.mxu0 0.0
    %5617 = vmatpush1.msra.mxu0 0.0
    %5618 = vmatprep.subr.mxu0 0.0
    %5619 = vmatpush1.msra.mxu0 0.0
    %5620 = vmatprep.subr.mxu0 0.0
    %5621 = vmatpush1.msra.mxu0 0.0
    %5622 = vmatprep.subr.mxu0 0.0
    %5623 = vmatpush1.msra.mxu0 0.0
    %5624 = vmatprep.subr.mxu0 0.0
    %5625 = vmatpush1.msra.mxu0 0.0
    %5626 = vmatprep.subr.mxu0 0.0
    %5627 = vmatpush1.msra.mxu0 0.0
    %5628 = vmatprep.subr.mxu0 0.0
    %5629 = vmatpush1.msra.mxu0 0.0
    %5630 = vmatprep.mubr.f32.mxu0 0.0
    %v5631 = vand.u32 %v4642, 4294901760
    %v5632 = vsub.f32 %v4642, %v5631
    %v5633 = vand.u32 %v5632, 4294901760
    %v5634 = vsub.f32 %v5632, %v5633
    %v5635 = vand.u32 %v5634, 4294901760
    %5636 = vmatmul.mubr.f32.gmra.mrb[0].mxu0 %v5635
    %v5637 = vpop.f32.mrb[0].mxu0
    %v5638 = vadd.f32 0.0, %v5637
    %v5639 = vpop.f32.mrb[0].mxu0
    %5640 = vdwg.mxu0
    %5641 = vmatprep.subr.mxu0 0.0
    %v5642 = vand.u32 %v31, 4294901760
    %v5643 = vsub.f32 %v31, %v5642
    %v5644 = vand.u32 %v5643, 4294901760
    %v5645 = vsub.f32 %v5643, %v5644
    %v5646 = vand.u32 %v5645, 4294901760
    %5647 = vmatpush1.msra.mxu0 %v5646
    %5648 = vmatprep.subr.mxu0 0.0
    %v5649 = vand.u32 %v32, 4294901760
    %v5650 = vsub.f32 %v32, %v5649
    %v5651 = vand.u32 %v5650, 4294901760
    %v5652 = vsub.f32 %v5650, %v5651
    %v5653 = vand.u32 %v5652, 4294901760
    %5654 = vmatpush1.msra.mxu0 %v5653
    %5655 = vmatprep.subr.mxu0 0.0
    %5656 = vmatpush1.msra.mxu0 0.0
    %5657 = vmatprep.subr.mxu0 0.0
    %5658 = vmatpush1.msra.mxu0 0.0
    %5659 = vmatprep.subr.mxu0 0.0
    %5660 = vmatpush1.msra.mxu0 0.0
    %5661 = vmatprep.subr.mxu0 0.0
    %5662 = vmatpush1.msra.mxu0 0.0
    %5663 = vmatprep.subr.mxu0 0.0
    %5664 = vmatpush1.msra.mxu0 0.0
    %5665 = vmatprep.subr.mxu0 0.0
    %5666 = vmatpush1.msra.mxu0 0.0
    %5667 = vmatprep.subr.mxu0 0.0
    %5668 = vmatpush1.msra.mxu0 0.0
    %5669 = vmatprep.subr.mxu0 0.0
    %5670 = vmatpush1.msra.mxu0 0.0
    %5671 = vmatprep.subr.mxu0 0.0
    %5672 = vmatpush1.msra.mxu0 0.0
    %5673 = vmatprep.subr.mxu0 0.0
    %5674 = vmatpush1.msra.mxu0 0.0
    %5675 = vmatprep.subr.mxu0 0.0
    %5676 = vmatpush1.msra.mxu0 0.0
    %5677 = vmatprep.subr.mxu0 0.0
    %5678 = vmatpush1.msra.mxu0 0.0
    %5679 = vmatprep.subr.mxu0 0.0
    %5680 = vmatpush1.msra.mxu0 0.0
    %5681 = vmatprep.subr.mxu0 0.0
    %5682 = vmatpush1.msra.mxu0 0.0
    %5683 = vmatprep.subr.mxu0 0.0
    %5684 = vmatpush1.msra.mxu0 0.0
    %5685 = vmatprep.subr.mxu0 0.0
    %5686 = vmatpush1.msra.mxu0 0.0
    %5687 = vmatprep.subr.mxu0 0.0
    %5688 = vmatpush1.msra.mxu0 0.0
    %5689 = vmatprep.subr.mxu0 0.0
    %5690 = vmatpush1.msra.mxu0 0.0
    %5691 = vmatprep.subr.mxu0 0.0
    %5692 = vmatpush1.msra.mxu0 0.0
    %5693 = vmatprep.subr.mxu0 0.0
    %5694 = vmatpush1.msra.mxu0 0.0
    %5695 = vmatprep.subr.mxu0 0.0
    %5696 = vmatpush1.msra.mxu0 0.0
    %5697 = vmatprep.subr.mxu0 0.0
    %5698 = vmatpush1.msra.mxu0 0.0
    %5699 = vmatprep.subr.mxu0 0.0
    %5700 = vmatpush1.msra.mxu0 0.0
    %5701 = vmatprep.subr.mxu0 0.0
    %5702 = vmatpush1.msra.mxu0 0.0
    %5703 = vmatprep.subr.mxu0 0.0
    %5704 = vmatpush1.msra.mxu0 0.0
    %5705 = vmatprep.subr.mxu0 0.0
    %5706 = vmatpush1.msra.mxu0 0.0
    %5707 = vmatprep.subr.mxu0 0.0
    %5708 = vmatpush1.msra.mxu0 0.0
    %5709 = vmatprep.subr.mxu0 0.0
    %5710 = vmatpush1.msra.mxu0 0.0
    %5711 = vmatprep.subr.mxu0 0.0
    %5712 = vmatpush1.msra.mxu0 0.0
    %5713 = vmatprep.subr.mxu0 0.0
    %5714 = vmatpush1.msra.mxu0 0.0
    %5715 = vmatprep.mubr.f32.mxu0 0.0
    %v5716 = vand.u32 %v4642, 4294901760
    %5717 = vmatmul.mubr.f32.gmra.mrb[0].mxu0 %v5716
    %v5718 = vpop.f32.mrb[0].mxu0
    %v5719 = vadd.f32 %v5638, %v5718
    %v5720 = vpop.f32.mrb[0].mxu0
    %5721 = vdwg.mxu0
    %5722 = vmatprep.subr.mxu0 0.0
    %v5723 = vand.u32 %v31, 4294901760
    %v5724 = vsub.f32 %v31, %v5723
    %5725 = vmatpush1.msra.mxu0 %v5724
    %5726 = vmatprep.subr.mxu0 0.0
    %v5727 = vand.u32 %v32, 4294901760
    %v5728 = vsub.f32 %v32, %v5727
    %5729 = vmatpush1.msra.mxu0 %v5728
    %5730 = vmatprep.subr.mxu0 0.0
    %5731 = vmatpush1.msra.mxu0 0.0
    %5732 = vmatprep.subr.mxu0 0.0
    %5733 = vmatpush1.msra.mxu0 0.0
    %5734 = vmatprep.subr.mxu0 0.0
    %5735 = vmatpush1.msra.mxu0 0.0
    %5736 = vmatprep.subr.mxu0 0.0
    %5737 = vmatpush1.msra.mxu0 0.0
    %5738 = vmatprep.subr.mxu0 0.0
    %5739 = vmatpush1.msra.mxu0 0.0
    %5740 = vmatprep.subr.mxu0 0.0
    %5741 = vmatpush1.msra.mxu0 0.0
    %5742 = vmatprep.subr.mxu0 0.0
    %5743 = vmatpush1.msra.mxu0 0.0
    %5744 = vmatprep.subr.mxu0 0.0
    %5745 = vmatpush1.msra.mxu0 0.0
    %5746 = vmatprep.subr.mxu0 0.0
    %5747 = vmatpush1.msra.mxu0 0.0
    %5748 = vmatprep.subr.mxu0 0.0
    %5749 = vmatpush1.msra.mxu0 0.0
    %5750 = vmatprep.subr.mxu0 0.0
    %5751 = vmatpush1.msra.mxu0 0.0
    %5752 = vmatprep.subr.mxu0 0.0
    %5753 = vmatpush1.msra.mxu0 0.0
    %5754 = vmatprep.subr.mxu0 0.0
    %5755 = vmatpush1.msra.mxu0 0.0
    %5756 = vmatprep.subr.mxu0 0.0
    %5757 = vmatpush1.msra.mxu0 0.0
    %5758 = vmatprep.subr.mxu0 0.0
    %5759 = vmatpush1.msra.mxu0 0.0
    %5760 = vmatprep.subr.mxu0 0.0
    %5761 = vmatpush1.msra.mxu0 0.0
    %5762 = vmatprep.subr.mxu0 0.0
    %5763 = vmatpush1.msra.mxu0 0.0
    %5764 = vmatprep.subr.mxu0 0.0
    %5765 = vmatpush1.msra.mxu0 0.0
    %5766 = vmatprep.subr.mxu0 0.0
    %5767 = vmatpush1.msra.mxu0 0.0
    %5768 = vmatprep.subr.mxu0 0.0
    %5769 = vmatpush1.msra.mxu0 0.0
    %5770 = vmatprep.subr.mxu0 0.0
    %5771 = vmatpush1.msra.mxu0 0.0
    %5772 = vmatprep.subr.mxu0 0.0
    %5773 = vmatpush1.msra.mxu0 0.0
    %5774 = vmatprep.subr.mxu0 0.0
    %5775 = vmatpush1.msra.mxu0 0.0
    %5776 = vmatprep.subr.mxu0 0.0
    %5777 = vmatpush1.msra.mxu0 0.0
    %5778 = vmatprep.subr.mxu0 0.0
    %5779 = vmatpush1.msra.mxu0 0.0
    %5780 = vmatprep.subr.mxu0 0.0
    %5781 = vmatpush1.msra.mxu0 0.0
    %5782 = vmatprep.subr.mxu0 0.0
    %5783 = vmatpush1.msra.mxu0 0.0
    %5784 = vmatprep.subr.mxu0 0.0
    %5785 = vmatpush1.msra.mxu0 0.0
    %5786 = vmatprep.subr.mxu0 0.0
    %5787 = vmatpush1.msra.mxu0 0.0
    %5788 = vmatprep.subr.mxu0 0.0
    %5789 = vmatpush1.msra.mxu0 0.0
    %5790 = vmatprep.mubr.f32.mxu0 0.0
    %v5791 = vand.u32 %v4642, 4294901760
    %v5792 = vsub.f32 %v4642, %v5791
    %5793 = vmatmul.mubr.f32.gmra.mrb[0].mxu0 %v5792
    %v5794 = vpop.f32.mrb[0].mxu0
    %v5795 = vadd.f32 %v5719, %v5794
    %v5796 = vpop.f32.mrb[0].mxu0
    %5797 = vdwg.mxu0
    %5798 = vmatprep.subr.mxu0 0.0
    %v5799 = vand.u32 %v31, 4294901760
    %5800 = vmatpush1.msra.mxu0 %v5799
    %5801 = vmatprep.subr.mxu0 0.0
    %v5802 = vand.u32 %v32, 4294901760
    %5803 = vmatpush1.msra.mxu0 %v5802
    %5804 = vmatprep.subr.mxu0 0.0
    %5805 = vmatpush1.msra.mxu0 0.0
    %5806 = vmatprep.subr.mxu0 0.0
    %5807 = vmatpush1.msra.mxu0 0.0
    %5808 = vmatprep.subr.mxu0 0.0
    %5809 = vmatpush1.msra.mxu0 0.0
    %5810 = vmatprep.subr.mxu0 0.0
    %5811 = vmatpush1.msra.mxu0 0.0
    %5812 = vmatprep.subr.mxu0 0.0
    %5813 = vmatpush1.msra.mxu0 0.0
    %5814 = vmatprep.subr.mxu0 0.0
    %5815 = vmatpush1.msra.mxu0 0.0
    %5816 = vmatprep.subr.mxu0 0.0
    %5817 = vmatpush1.msra.mxu0 0.0
    %5818 = vmatprep.subr.mxu0 0.0
    %5819 = vmatpush1.msra.mxu0 0.0
    %5820 = vmatprep.subr.mxu0 0.0
    %5821 = vmatpush1.msra.mxu0 0.0
    %5822 = vmatprep.subr.mxu0 0.0
    %5823 = vmatpush1.msra.mxu0 0.0
    %5824 = vmatprep.subr.mxu0 0.0
    %5825 = vmatpush1.msra.mxu0 0.0
    %5826 = vmatprep.subr.mxu0 0.0
    %5827 = vmatpush1.msra.mxu0 0.0
    %5828 = vmatprep.subr.mxu0 0.0
    %5829 = vmatpush1.msra.mxu0 0.0
    %5830 = vmatprep.subr.mxu0 0.0
    %5831 = vmatpush1.msra.mxu0 0.0
    %5832 = vmatprep.subr.mxu0 0.0
    %5833 = vmatpush1.msra.mxu0 0.0
    %5834 = vmatprep.subr.mxu0 0.0
    %5835 = vmatpush1.msra.mxu0 0.0
    %5836 = vmatprep.subr.mxu0 0.0
    %5837 = vmatpush1.msra.mxu0 0.0
    %5838 = vmatprep.subr.mxu0 0.0
    %5839 = vmatpush1.msra.mxu0 0.0
    %5840 = vmatprep.subr.mxu0 0.0
    %5841 = vmatpush1.msra.mxu0 0.0
    %5842 = vmatprep.subr.mxu0 0.0
    %5843 = vmatpush1.msra.mxu0 0.0
    %5844 = vmatprep.subr.mxu0 0.0
    %5845 = vmatpush1.msra.mxu0 0.0
    %5846 = vmatprep.subr.mxu0 0.0
    %5847 = vmatpush1.msra.mxu0 0.0
    %5848 = vmatprep.subr.mxu0 0.0
    %5849 = vmatpush1.msra.mxu0 0.0
    %5850 = vmatprep.subr.mxu0 0.0
    %5851 = vmatpush1.msra.mxu0 0.0
    %5852 = vmatprep.subr.mxu0 0.0
    %5853 = vmatpush1.msra.mxu0 0.0
    %5854 = vmatprep.subr.mxu0 0.0
    %5855 = vmatpush1.msra.mxu0 0.0
    %5856 = vmatprep.subr.mxu0 0.0
    %5857 = vmatpush1.msra.mxu0 0.0
    %5858 = vmatprep.subr.mxu0 0.0
    %5859 = vmatpush1.msra.mxu0 0.0
    %5860 = vmatprep.subr.mxu0 0.0
    %5861 = vmatpush1.msra.mxu0 0.0
    %5862 = vmatprep.subr.mxu0 0.0
    %5863 = vmatpush1.msra.mxu0 0.0
    %5864 = vmatprep.mubr.f32.mxu0 0.0
    %v5865 = vand.u32 %v4642, 4294901760
    %v5866 = vsub.f32 %v4642, %v5865
    %v5867 = vand.u32 %v5866, 4294901760
    %5868 = vmatmul.mubr.f32.gmra.mrb[0].mxu0 %v5867
    %v5869 = vpop.f32.mrb[0].mxu0
    %v5870 = vadd.f32 %v5795, %v5869
    %v5871 = vpop.f32.mrb[0].mxu0
    %5872 = vdwg.mxu0
    %5873 = vmatprep.subr.mxu0 0.0
    %v5874 = vand.u32 %v31, 4294901760
    %v5875 = vsub.f32 %v31, %v5874
    %v5876 = vand.u32 %v5875, 4294901760
    %5877 = vmatpush1.msra.mxu0 %v5876
    %5878 = vmatprep.subr.mxu0 0.0
    %v5879 = vand.u32 %v32, 4294901760
    %v5880 = vsub.f32 %v32, %v5879
    %v5881 = vand.u32 %v5880, 4294901760
    %5882 = vmatpush1.msra.mxu0 %v5881
    %5883 = vmatprep.subr.mxu0 0.0
    %5884 = vmatpush1.msra.mxu0 0.0
    %5885 = vmatprep.subr.mxu0 0.0
    %5886 = vmatpush1.msra.mxu0 0.0
    %5887 = vmatprep.subr.mxu0 0.0
    %5888 = vmatpush1.msra.mxu0 0.0
    %5889 = vmatprep.subr.mxu0 0.0
    %5890 = vmatpush1.msra.mxu0 0.0
    %5891 = vmatprep.subr.mxu0 0.0
    %5892 = vmatpush1.msra.mxu0 0.0
    %5893 = vmatprep.subr.mxu0 0.0
    %5894 = vmatpush1.msra.mxu0 0.0
    %5895 = vmatprep.subr.mxu0 0.0
    %5896 = vmatpush1.msra.mxu0 0.0
    %5897 = vmatprep.subr.mxu0 0.0
    %5898 = vmatpush1.msra.mxu0 0.0
    %5899 = vmatprep.subr.mxu0 0.0
    %5900 = vmatpush1.msra.mxu0 0.0
    %5901 = vmatprep.subr.mxu0 0.0
    %5902 = vmatpush1.msra.mxu0 0.0
    %5903 = vmatprep.subr.mxu0 0.0
    %5904 = vmatpush1.msra.mxu0 0.0
    %5905 = vmatprep.subr.mxu0 0.0
    %5906 = vmatpush1.msra.mxu0 0.0
    %5907 = vmatprep.subr.mxu0 0.0
    %5908 = vmatpush1.msra.mxu0 0.0
    %5909 = vmatprep.subr.mxu0 0.0
    %5910 = vmatpush1.msra.mxu0 0.0
    %5911 = vmatprep.subr.mxu0 0.0
    %5912 = vmatpush1.msra.mxu0 0.0
    %5913 = vmatprep.subr.mxu0 0.0
    %5914 = vmatpush1.msra.mxu0 0.0
    %5915 = vmatprep.subr.mxu0 0.0
    %5916 = vmatpush1.msra.mxu0 0.0
    %5917 = vmatprep.subr.mxu0 0.0
    %5918 = vmatpush1.msra.mxu0 0.0
    %5919 = vmatprep.subr.mxu0 0.0
    %5920 = vmatpush1.msra.mxu0 0.0
    %5921 = vmatprep.subr.mxu0 0.0
    %5922 = vmatpush1.msra.mxu0 0.0
    %5923 = vmatprep.subr.mxu0 0.0
    %5924 = vmatpush1.msra.mxu0 0.0
    %5925 = vmatprep.subr.mxu0 0.0
    %5926 = vmatpush1.msra.mxu0 0.0
    %5927 = vmatprep.subr.mxu0 0.0
    %5928 = vmatpush1.msra.mxu0 0.0
    %5929 = vmatprep.subr.mxu0 0.0
    %5930 = vmatpush1.msra.mxu0 0.0
    %5931 = vmatprep.subr.mxu0 0.0
    %5932 = vmatpush1.msra.mxu0 0.0
    %5933 = vmatprep.subr.mxu0 0.0
    %5934 = vmatpush1.msra.mxu0 0.0
    %5935 = vmatprep.subr.mxu0 0.0
    %5936 = vmatpush1.msra.mxu0 0.0
    %5937 = vmatprep.subr.mxu0 0.0
    %5938 = vmatpush1.msra.mxu0 0.0
    %5939 = vmatprep.subr.mxu0 0.0
    %5940 = vmatpush1.msra.mxu0 0.0
    %5941 = vmatprep.subr.mxu0 0.0
    %5942 = vmatpush1.msra.mxu0 0.0
    %5943 = vmatprep.mubr.f32.mxu0 0.0
    %v5944 = vand.u32 %v4642, 4294901760
    %5945 = vmatmul.mubr.f32.gmra.mrb[0].mxu0 %v5944
    %v5946 = vpop.f32.mrb[0].mxu0
    %v5947 = vadd.f32 %v5870, %v5946
    %v5948 = vpop.f32.mrb[0].mxu0
    %5949 = vdwg.mxu0
    %5950 = vmatprep.subr.mxu0 0.0
    %v5951 = vand.u32 %v31, 4294901760
    %5952 = vmatpush1.msra.mxu0 %v5951
    %5953 = vmatprep.subr.mxu0 0.0
    %v5954 = vand.u32 %v32, 4294901760
    %5955 = vmatpush1.msra.mxu0 %v5954
    %5956 = vmatprep.subr.mxu0 0.0
    %5957 = vmatpush1.msra.mxu0 0.0
    %5958 = vmatprep.subr.mxu0 0.0
    %5959 = vmatpush1.msra.mxu0 0.0
    %5960 = vmatprep.subr.mxu0 0.0
    %5961 = vmatpush1.msra.mxu0 0.0
    %5962 = vmatprep.subr.mxu0 0.0
    %5963 = vmatpush1.msra.mxu0 0.0
    %5964 = vmatprep.subr.mxu0 0.0
    %5965 = vmatpush1.msra.mxu0 0.0
    %5966 = vmatprep.subr.mxu0 0.0
    %5967 = vmatpush1.msra.mxu0 0.0
    %5968 = vmatprep.subr.mxu0 0.0
    %5969 = vmatpush1.msra.mxu0 0.0
    %5970 = vmatprep.subr.mxu0 0.0
    %5971 = vmatpush1.msra.mxu0 0.0
    %5972 = vmatprep.subr.mxu0 0.0
    %5973 = vmatpush1.msra.mxu0 0.0
    %5974 = vmatprep.subr.mxu0 0.0
    %5975 = vmatpush1.msra.mxu0 0.0
    %5976 = vmatprep.subr.mxu0 0.0
    %5977 = vmatpush1.msra.mxu0 0.0
    %5978 = vmatprep.subr.mxu0 0.0
    %5979 = vmatpush1.msra.mxu0 0.0
    %5980 = vmatprep.subr.mxu0 0.0
    %5981 = vmatpush1.msra.mxu0 0.0
    %5982 = vmatprep.subr.mxu0 0.0
    %5983 = vmatpush1.msra.mxu0 0.0
    %5984 = vmatprep.subr.mxu0 0.0
    %5985 = vmatpush1.msra.mxu0 0.0
    %5986 = vmatprep.subr.mxu0 0.0
    %5987 = vmatpush1.msra.mxu0 0.0
    %5988 = vmatprep.subr.mxu0 0.0
    %5989 = vmatpush1.msra.mxu0 0.0
    %5990 = vmatprep.subr.mxu0 0.0
    %5991 = vmatpush1.msra.mxu0 0.0
    %5992 = vmatprep.subr.mxu0 0.0
    %5993 = vmatpush1.msra.mxu0 0.0
    %5994 = vmatprep.subr.mxu0 0.0
    %5995 = vmatpush1.msra.mxu0 0.0
    %5996 = vmatprep.subr.mxu0 0.0
    %5997 = vmatpush1.msra.mxu0 0.0
    %5998 = vmatprep.subr.mxu0 0.0
    %5999 = vmatpush1.msra.mxu0 0.0
    %6000 = vmatprep.subr.mxu0 0.0
    %6001 = vmatpush1.msra.mxu0 0.0
    %6002 = vmatprep.subr.mxu0 0.0
    %6003 = vmatpush1.msra.mxu0 0.0
    %6004 = vmatprep.subr.mxu0 0.0
    %6005 = vmatpush1.msra.mxu0 0.0
    %6006 = vmatprep.subr.mxu0 0.0
    %6007 = vmatpush1.msra.mxu0 0.0
    %6008 = vmatprep.subr.mxu0 0.0
    %6009 = vmatpush1.msra.mxu0 0.0
    %6010 = vmatprep.subr.mxu0 0.0
    %6011 = vmatpush1.msra.mxu0 0.0
    %6012 = vmatprep.subr.mxu0 0.0
    %6013 = vmatpush1.msra.mxu0 0.0
    %6014 = vmatprep.subr.mxu0 0.0
    %6015 = vmatpush1.msra.mxu0 0.0
    %6016 = vmatprep.mubr.f32.mxu0 0.0
    %v6017 = vand.u32 %v4642, 4294901760
    %6018 = vmatmul.mubr.f32.gmra.mrb[0].mxu0 %v6017
    %v6019 = vpop.f32.mrb[0].mxu0
    %v6020 = vadd.f32 %v5947, %v6019
    %v6021 = vpop.f32.mrb[0].mxu0
    %6022 = vdwg.mxu0
    %v6023 = vmax.f32 %v5563, %v6020
    %v6024 = vsel %vm1028, %v6023, %v5100
    %v6026 = vcombine.high %v6024, %v6024
    %v6028 = vunpack.c.l.s4 1966171168
    %v6029 = vunpack.c.0.s8 %v6028
    %v6030 = vlaneseq
    %v6031 = vshrl.u32 %v6030, 7
    %v6032 = vsub.s32 %v6029, %v6031
    %v6033 = vrot.slane %v6024, %v6032
    %v6035 = vunpack.c.l.s4 1966171168
    %v6036 = vunpack.c.0.s8 %v6035
    %v6037 = vlaneseq
    %v6038 = vshrl.u32 %v6037, 7
    %v6039 = vsub.s32 %v6036, %v6038
    %v6040 = vrot.slane %v6026, %v6039
    %v6041 = vcombine.high %v6033, %v6033
    %v6042 = vcombine.high %v6040, %v6040
    %v6044 = vunpack.c.l.s4 1966171168
    %v6045 = vunpack.c.0.s8 %v6044
    %v6046 = vlaneseq
    %v6047 = vshrl.u32 %v6046, 7
    %v6048 = vsub.s32 %v6045, %v6047
    %v6049 = vrot.slane %v6033, %v6048
    %v6051 = vunpack.c.l.s4 1966171168
    %v6052 = vunpack.c.0.s8 %v6051
    %v6053 = vlaneseq
    %v6054 = vshrl.u32 %v6053, 7
    %v6055 = vsub.s32 %v6052, %v6054
    %v6056 = vrot.slane %v6040, %v6055
    %v6058 = vunpack.c.l.s4 1966171168
    %v6059 = vunpack.c.0.s8 %v6058
    %v6060 = vlaneseq
    %v6061 = vshrl.u32 %v6060, 7
    %v6062 = vsub.s32 %v6059, %v6061
    %v6063 = vrot.slane %v6041, %v6062
    %v6065 = vunpack.c.l.s4 1966171168
    %v6066 = vunpack.c.0.s8 %v6065
    %v6067 = vlaneseq
    %v6068 = vshrl.u32 %v6067, 7
    %v6069 = vsub.s32 %v6066, %v6068
    %v6070 = vrot.slane %v6042, %v6069
    %v6071 = vcombine.high %v6049, %v6049
    %v6072 = vcombine.high %v6056, %v6056
    %v6073 = vcombine.high %v6063, %v6063
    %v6074 = vcombine.high %v6070, %v6070
    %6083 = vst.msk [vmem:[%s2 + $0x3] sm:$0x1] %vm1549, %v6049
    %6084 = vst.msk [vmem:[%s2 + $0xb] sm:$0x1] %vm1549, %v6063
    %6085 = vst.msk [vmem:[%s2 + $0x13] sm:$0x1] %vm1549, %v6071
    %6086 = vst.msk [vmem:[%s2 + $0x1b] sm:$0x1] %vm1549, %v6073
    %6087 = vst.msk [vmem:[%s2 + $0x23] sm:$0x1] %vm1549, %v6056
    %6088 = vst.msk [vmem:[%s2 + $0x2b] sm:$0x1] %vm1549, %v6070
    %6089 = vst.msk [vmem:[%s2 + $0x33] sm:$0x1] %vm1549, %v6072
    %6090 = vst.msk [vmem:[%s2 + $0x3b] sm:$0x1] %vm1549, %v6074
    %v6091 = vld [vmem:[#allocation2 + $0xc] sm:$0x1]
    %v6092 = vld [vmem:[#allocation2 + $0x1c] sm:$0x1]
    %v6093 = vld [vmem:[#allocation2 + $0x2c] sm:$0x1]
    %v6094 = vld [vmem:[#allocation2 + $0x3c] sm:$0x1]
    %v6095 = vld [vmem:[#allocation2 + $0x4c] sm:$0x1]
    %v6096 = vld [vmem:[#allocation2 + $0x5c] sm:$0x1]
    %v6097 = vld [vmem:[#allocation2 + $0x6c] sm:$0x1]
    %v6098 = vld [vmem:[#allocation2 + $0x7c] sm:$0x1]
    %v6099 = vld [vmem:[#allocation2 + $0xd] sm:$0x1]
    %v6100 = vld [vmem:[#allocation2 + $0x1d] sm:$0x1]
    %v6101 = vld [vmem:[#allocation2 + $0x2d] sm:$0x1]
    %v6102 = vld [vmem:[#allocation2 + $0x3d] sm:$0x1]
    %v6103 = vld [vmem:[#allocation2 + $0x4d] sm:$0x1]
    %v6104 = vld [vmem:[#allocation2 + $0x5d] sm:$0x1]
    %v6105 = vld [vmem:[#allocation2 + $0x6d] sm:$0x1]
    %v6106 = vld [vmem:[#allocation2 + $0x7d] sm:$0x1]
    %v6107 = vmax.f32 %v6091, %v6099
    %v6108 = vmax.f32 %v6092, %v6100
    %v6109 = vmax.f32 %v6093, %v6101
    %v6110 = vmax.f32 %v6094, %v6102
    %v6111 = vmax.f32 %v6095, %v6103
    %v6112 = vmax.f32 %v6096, %v6104
    %v6113 = vmax.f32 %v6097, %v6105
    %v6114 = vmax.f32 %v6098, %v6106
    %v6115 = vld [vmem:[#allocation2 + $0xe] sm:$0x1]
    %v6116 = vld [vmem:[#allocation2 + $0x1e] sm:$0x1]
    %v6117 = vld [vmem:[#allocation2 + $0x2e] sm:$0x1]
    %v6118 = vld [vmem:[#allocation2 + $0x3e] sm:$0x1]
    %v6119 = vld [vmem:[#allocation2 + $0x4e] sm:$0x1]
    %v6120 = vld [vmem:[#allocation2 + $0x5e] sm:$0x1]
    %v6121 = vld [vmem:[#allocation2 + $0x6e] sm:$0x1]
    %v6122 = vld [vmem:[#allocation2 + $0x7e] sm:$0x1]
    %v6123 = vmax.f32 %v6107, %v6115
    %v6124 = vmax.f32 %v6108, %v6116
    %v6125 = vmax.f32 %v6109, %v6117
    %v6126 = vmax.f32 %v6110, %v6118
    %v6127 = vmax.f32 %v6111, %v6119
    %v6128 = vmax.f32 %v6112, %v6120
    %v6129 = vmax.f32 %v6113, %v6121
    %v6130 = vmax.f32 %v6114, %v6122
    %v6139 = vrot.slane %v6124, 7
    %v6140 = vsel %vm85, %v6139, %v6123
    %v6141 = vrot.slane %v6125, 6
    %v6142 = vsel %vm88, %v6141, %v6140
    %v6143 = vrot.slane %v6126, 5
    %v6144 = vsel %vm91, %v6143, %v6142
    %v6145 = vrot.slane %v6127, 4
    %v6146 = vsel %vm94, %v6145, %v6144
    %v6147 = vrot.slane %v6128, 3
    %v6148 = vsel %vm97, %v6147, %v6146
    %v6149 = vrot.slane %v6129, 2
    %v6150 = vsel %vm100, %v6149, %v6148
    %v6151 = vrot.slane %v6130, 1
    %v6152 = vsel %vm103, %v6151, %v6150
    %v6153 = vsel %vm105, %v6152, 0
    %6155 = vmatprep.subr.mxu0 0.0
    %v6156 = vand.u32 %v25, 4294901760
    %6157 = vmatpush1.msra.mxu0 %v6156
    %6158 = vmatprep.subr.mxu0 0.0
    %v6159 = vand.u32 %v26, 4294901760
    %6160 = vmatpush1.msra.mxu0 %v6159
    %6161 = vmatprep.subr.mxu0 0.0
    %6162 = vmatpush1.msra.mxu0 0.0
    %6163 = vmatprep.subr.mxu0 0.0
    %6164 = vmatpush1.msra.mxu0 0.0
    %6165 = vmatprep.subr.mxu0 0.0
    %6166 = vmatpush1.msra.mxu0 0.0
    %6167 = vmatprep.subr.mxu0 0.0
    %6168 = vmatpush1.msra.mxu0 0.0
    %6169 = vmatprep.subr.mxu0 0.0
    %6170 = vmatpush1.msra.mxu0 0.0
    %6171 = vmatprep.subr.mxu0 0.0
    %6172 = vmatpush1.msra.mxu0 0.0
    %6173 = vmatprep.subr.mxu0 0.0
    %6174 = vmatpush1.msra.mxu0 0.0
    %6175 = vmatprep.subr.mxu0 0.0
    %6176 = vmatpush1.msra.mxu0 0.0
    %6177 = vmatprep.subr.mxu0 0.0
    %6178 = vmatpush1.msra.mxu0 0.0
    %6179 = vmatprep.subr.mxu0 0.0
    %6180 = vmatpush1.msra.mxu0 0.0
    %6181 = vmatprep.subr.mxu0 0.0
    %6182 = vmatpush1.msra.mxu0 0.0
    %6183 = vmatprep.subr.mxu0 0.0
    %6184 = vmatpush1.msra.mxu0 0.0
    %6185 = vmatprep.subr.mxu0 0.0
    %6186 = vmatpush1.msra.mxu0 0.0
    %6187 = vmatprep.subr.mxu0 0.0
    %6188 = vmatpush1.msra.mxu0 0.0
    %6189 = vmatprep.subr.mxu0 0.0
    %6190 = vmatpush1.msra.mxu0 0.0
    %6191 = vmatprep.subr.mxu0 0.0
    %6192 = vmatpush1.msra.mxu0 0.0
    %6193 = vmatprep.subr.mxu0 0.0
    %6194 = vmatpush1.msra.mxu0 0.0
    %6195 = vmatprep.subr.mxu0 0.0
    %6196 = vmatpush1.msra.mxu0 0.0
    %6197 = vmatprep.subr.mxu0 0.0
    %6198 = vmatpush1.msra.mxu0 0.0
    %6199 = vmatprep.subr.mxu0 0.0
    %6200 = vmatpush1.msra.mxu0 0.0
    %6201 = vmatprep.subr.mxu0 0.0
    %6202 = vmatpush1.msra.mxu0 0.0
    %6203 = vmatprep.subr.mxu0 0.0
    %6204 = vmatpush1.msra.mxu0 0.0
    %6205 = vmatprep.subr.mxu0 0.0
    %6206 = vmatpush1.msra.mxu0 0.0
    %6207 = vmatprep.subr.mxu0 0.0
    %6208 = vmatpush1.msra.mxu0 0.0
    %6209 = vmatprep.subr.mxu0 0.0
    %6210 = vmatpush1.msra.mxu0 0.0
    %6211 = vmatprep.subr.mxu0 0.0
    %6212 = vmatpush1.msra.mxu0 0.0
    %6213 = vmatprep.subr.mxu0 0.0
    %6214 = vmatpush1.msra.mxu0 0.0
    %6215 = vmatprep.subr.mxu0 0.0
    %6216 = vmatpush1.msra.mxu0 0.0
    %6217 = vmatprep.subr.mxu0 0.0
    %6218 = vmatpush1.msra.mxu0 0.0
    %6219 = vmatprep.subr.mxu0 0.0
    %6220 = vmatpush1.msra.mxu0 0.0
    %6221 = vmatprep.mubr.f32.mxu0 0.0
    %v6222 = vand.u32 %v6153, 4294901760
    %v6223 = vsub.f32 %v6153, %v6222
    %v6224 = vand.u32 %v6223, 4294901760
    %v6225 = vsub.f32 %v6223, %v6224
    %v6226 = vand.u32 %v6225, 4294901760
    %6227 = vmatmul.mubr.f32.gmra.mrb[0].mxu0 %v6226
    %v6228 = vpop.f32.mrb[0].mxu0
    %v6229 = vadd.f32 0.0, %v6228
    %v6230 = vpop.f32.mrb[0].mxu0
    %6231 = vdwg.mxu0
    %6232 = vmatprep.subr.mxu0 0.0
    %v6233 = vand.u32 %v25, 4294901760
    %v6234 = vsub.f32 %v25, %v6233
    %v6235 = vand.u32 %v6234, 4294901760
    %v6236 = vsub.f32 %v6234, %v6235
    %v6237 = vand.u32 %v6236, 4294901760
    %6238 = vmatpush1.msra.mxu0 %v6237
    %6239 = vmatprep.subr.mxu0 0.0
    %v6240 = vand.u32 %v26, 4294901760
    %v6241 = vsub.f32 %v26, %v6240
    %v6242 = vand.u32 %v6241, 4294901760
    %v6243 = vsub.f32 %v6241, %v6242
    %v6244 = vand.u32 %v6243, 4294901760
    %6245 = vmatpush1.msra.mxu0 %v6244
    %6246 = vmatprep.subr.mxu0 0.0
    %6247 = vmatpush1.msra.mxu0 0.0
    %6248 = vmatprep.subr.mxu0 0.0
    %6249 = vmatpush1.msra.mxu0 0.0
    %6250 = vmatprep.subr.mxu0 0.0
    %6251 = vmatpush1.msra.mxu0 0.0
    %6252 = vmatprep.subr.mxu0 0.0
    %6253 = vmatpush1.msra.mxu0 0.0
    %6254 = vmatprep.subr.mxu0 0.0
    %6255 = vmatpush1.msra.mxu0 0.0
    %6256 = vmatprep.subr.mxu0 0.0
    %6257 = vmatpush1.msra.mxu0 0.0
    %6258 = vmatprep.subr.mxu0 0.0
    %6259 = vmatpush1.msra.mxu0 0.0
    %6260 = vmatprep.subr.mxu0 0.0
    %6261 = vmatpush1.msra.mxu0 0.0
    %6262 = vmatprep.subr.mxu0 0.0
    %6263 = vmatpush1.msra.mxu0 0.0
    %6264 = vmatprep.subr.mxu0 0.0
    %6265 = vmatpush1.msra.mxu0 0.0
    %6266 = vmatprep.subr.mxu0 0.0
    %6267 = vmatpush1.msra.mxu0 0.0
    %6268 = vmatprep.subr.mxu0 0.0
    %6269 = vmatpush1.msra.mxu0 0.0
    %6270 = vmatprep.subr.mxu0 0.0
    %6271 = vmatpush1.msra.mxu0 0.0
    %6272 = vmatprep.subr.mxu0 0.0
    %6273 = vmatpush1.msra.mxu0 0.0
    %6274 = vmatprep.subr.mxu0 0.0
    %6275 = vmatpush1.msra.mxu0 0.0
    %6276 = vmatprep.subr.mxu0 0.0
    %6277 = vmatpush1.msra.mxu0 0.0
    %6278 = vmatprep.subr.mxu0 0.0
    %6279 = vmatpush1.msra.mxu0 0.0
    %6280 = vmatprep.subr.mxu0 0.0
    %6281 = vmatpush1.msra.mxu0 0.0
    %6282 = vmatprep.subr.mxu0 0.0
    %6283 = vmatpush1.msra.mxu0 0.0
    %6284 = vmatprep.subr.mxu0 0.0
    %6285 = vmatpush1.msra.mxu0 0.0
    %6286 = vmatprep.subr.mxu0 0.0
    %6287 = vmatpush1.msra.mxu0 0.0
    %6288 = vmatprep.subr.mxu0 0.0
    %6289 = vmatpush1.msra.mxu0 0.0
    %6290 = vmatprep.subr.mxu0 0.0
    %6291 = vmatpush1.msra.mxu0 0.0
    %6292 = vmatprep.subr.mxu0 0.0
    %6293 = vmatpush1.msra.mxu0 0.0
    %6294 = vmatprep.subr.mxu0 0.0
    %6295 = vmatpush1.msra.mxu0 0.0
    %6296 = vmatprep.subr.mxu0 0.0
    %6297 = vmatpush1.msra.mxu0 0.0
    %6298 = vmatprep.subr.mxu0 0.0
    %6299 = vmatpush1.msra.mxu0 0.0
    %6300 = vmatprep.subr.mxu0 0.0
    %6301 = vmatpush1.msra.mxu0 0.0
    %6302 = vmatprep.subr.mxu0 0.0
    %6303 = vmatpush1.msra.mxu0 0.0
    %6304 = vmatprep.subr.mxu0 0.0
    %6305 = vmatpush1.msra.mxu0 0.0
    %6306 = vmatprep.mubr.f32.mxu0 0.0
    %v6307 = vand.u32 %v6153, 4294901760
    %6308 = vmatmul.mubr.f32.gmra.mrb[0].mxu0 %v6307
    %v6309 = vpop.f32.mrb[0].mxu0
    %v6310 = vadd.f32 %v6229, %v6309
    %v6311 = vpop.f32.mrb[0].mxu0
    %6312 = vdwg.mxu0
    %6313 = vmatprep.subr.mxu0 0.0
    %v6314 = vand.u32 %v25, 4294901760
    %v6315 = vsub.f32 %v25, %v6314
    %6316 = vmatpush1.msra.mxu0 %v6315
    %6317 = vmatprep.subr.mxu0 0.0
    %v6318 = vand.u32 %v26, 4294901760
    %v6319 = vsub.f32 %v26, %v6318
    %6320 = vmatpush1.msra.mxu0 %v6319
    %6321 = vmatprep.subr.mxu0 0.0
    %6322 = vmatpush1.msra.mxu0 0.0
    %6323 = vmatprep.subr.mxu0 0.0
    %6324 = vmatpush1.msra.mxu0 0.0
    %6325 = vmatprep.subr.mxu0 0.0
    %6326 = vmatpush1.msra.mxu0 0.0
    %6327 = vmatprep.subr.mxu0 0.0
    %6328 = vmatpush1.msra.mxu0 0.0
    %6329 = vmatprep.subr.mxu0 0.0
    %6330 = vmatpush1.msra.mxu0 0.0
    %6331 = vmatprep.subr.mxu0 0.0
    %6332 = vmatpush1.msra.mxu0 0.0
    %6333 = vmatprep.subr.mxu0 0.0
    %6334 = vmatpush1.msra.mxu0 0.0
    %6335 = vmatprep.subr.mxu0 0.0
    %6336 = vmatpush1.msra.mxu0 0.0
    %6337 = vmatprep.subr.mxu0 0.0
    %6338 = vmatpush1.msra.mxu0 0.0
    %6339 = vmatprep.subr.mxu0 0.0
    %6340 = vmatpush1.msra.mxu0 0.0
    %6341 = vmatprep.subr.mxu0 0.0
    %6342 = vmatpush1.msra.mxu0 0.0
    %6343 = vmatprep.subr.mxu0 0.0
    %6344 = vmatpush1.msra.mxu0 0.0
    %6345 = vmatprep.subr.mxu0 0.0
    %6346 = vmatpush1.msra.mxu0 0.0
    %6347 = vmatprep.subr.mxu0 0.0
    %6348 = vmatpush1.msra.mxu0 0.0
    %6349 = vmatprep.subr.mxu0 0.0
    %6350 = vmatpush1.msra.mxu0 0.0
    %6351 = vmatprep.subr.mxu0 0.0
    %6352 = vmatpush1.msra.mxu0 0.0
    %6353 = vmatprep.subr.mxu0 0.0
    %6354 = vmatpush1.msra.mxu0 0.0
    %6355 = vmatprep.subr.mxu0 0.0
    %6356 = vmatpush1.msra.mxu0 0.0
    %6357 = vmatprep.subr.mxu0 0.0
    %6358 = vmatpush1.msra.mxu0 0.0
    %6359 = vmatprep.subr.mxu0 0.0
    %6360 = vmatpush1.msra.mxu0 0.0
    %6361 = vmatprep.subr.mxu0 0.0
    %6362 = vmatpush1.msra.mxu0 0.0
    %6363 = vmatprep.subr.mxu0 0.0
    %6364 = vmatpush1.msra.mxu0 0.0
    %6365 = vmatprep.subr.mxu0 0.0
    %6366 = vmatpush1.msra.mxu0 0.0
    %6367 = vmatprep.subr.mxu0 0.0
    %6368 = vmatpush1.msra.mxu0 0.0
    %6369 = vmatprep.subr.mxu0 0.0
    %6370 = vmatpush1.msra.mxu0 0.0
    %6371 = vmatprep.subr.mxu0 0.0
    %6372 = vmatpush1.msra.mxu0 0.0
    %6373 = vmatprep.subr.mxu0 0.0
    %6374 = vmatpush1.msra.mxu0 0.0
    %6375 = vmatprep.subr.mxu0 0.0
    %6376 = vmatpush1.msra.mxu0 0.0
    %6377 = vmatprep.subr.mxu0 0.0
    %6378 = vmatpush1.msra.mxu0 0.0
    %6379 = vmatprep.subr.mxu0 0.0
    %6380 = vmatpush1.msra.mxu0 0.0
    %6381 = vmatprep.mubr.f32.mxu0 0.0
    %v6382 = vand.u32 %v6153, 4294901760
    %v6383 = vsub.f32 %v6153, %v6382
    %6384 = vmatmul.mubr.f32.gmra.mrb[0].mxu0 %v6383
    %v6385 = vpop.f32.mrb[0].mxu0
    %v6386 = vadd.f32 %v6310, %v6385
    %v6387 = vpop.f32.mrb[0].mxu0
    %6388 = vdwg.mxu0
    %6389 = vmatprep.subr.mxu0 0.0
    %v6390 = vand.u32 %v25, 4294901760
    %6391 = vmatpush1.msra.mxu0 %v6390
    %6392 = vmatprep.subr.mxu0 0.0
    %v6393 = vand.u32 %v26, 4294901760
    %6394 = vmatpush1.msra.mxu0 %v6393
    %6395 = vmatprep.subr.mxu0 0.0
    %6396 = vmatpush1.msra.mxu0 0.0
    %6397 = vmatprep.subr.mxu0 0.0
    %6398 = vmatpush1.msra.mxu0 0.0
    %6399 = vmatprep.subr.mxu0 0.0
    %6400 = vmatpush1.msra.mxu0 0.0
    %6401 = vmatprep.subr.mxu0 0.0
    %6402 = vmatpush1.msra.mxu0 0.0
    %6403 = vmatprep.subr.mxu0 0.0
    %6404 = vmatpush1.msra.mxu0 0.0
    %6405 = vmatprep.subr.mxu0 0.0
    %6406 = vmatpush1.msra.mxu0 0.0
    %6407 = vmatprep.subr.mxu0 0.0
    %6408 = vmatpush1.msra.mxu0 0.0
    %6409 = vmatprep.subr.mxu0 0.0
    %6410 = vmatpush1.msra.mxu0 0.0
    %6411 = vmatprep.subr.mxu0 0.0
    %6412 = vmatpush1.msra.mxu0 0.0
    %6413 = vmatprep.subr.mxu0 0.0
    %6414 = vmatpush1.msra.mxu0 0.0
    %6415 = vmatprep.subr.mxu0 0.0
    %6416 = vmatpush1.msra.mxu0 0.0
    %6417 = vmatprep.subr.mxu0 0.0
    %6418 = vmatpush1.msra.mxu0 0.0
    %6419 = vmatprep.subr.mxu0 0.0
    %6420 = vmatpush1.msra.mxu0 0.0
    %6421 = vmatprep.subr.mxu0 0.0
    %6422 = vmatpush1.msra.mxu0 0.0
    %6423 = vmatprep.subr.mxu0 0.0
    %6424 = vmatpush1.msra.mxu0 0.0
    %6425 = vmatprep.subr.mxu0 0.0
    %6426 = vmatpush1.msra.mxu0 0.0
    %6427 = vmatprep.subr.mxu0 0.0
    %6428 = vmatpush1.msra.mxu0 0.0
    %6429 = vmatprep.subr.mxu0 0.0
    %6430 = vmatpush1.msra.mxu0 0.0
    %6431 = vmatprep.subr.mxu0 0.0
    %6432 = vmatpush1.msra.mxu0 0.0
    %6433 = vmatprep.subr.mxu0 0.0
    %6434 = vmatpush1.msra.mxu0 0.0
    %6435 = vmatprep.subr.mxu0 0.0
    %6436 = vmatpush1.msra.mxu0 0.0
    %6437 = vmatprep.subr.mxu0 0.0
    %6438 = vmatpush1.msra.mxu0 0.0
    %6439 = vmatprep.subr.mxu0 0.0
    %6440 = vmatpush1.msra.mxu0 0.0
    %6441 = vmatprep.subr.mxu0 0.0
    %6442 = vmatpush1.msra.mxu0 0.0
    %6443 = vmatprep.subr.mxu0 0.0
    %6444 = vmatpush1.msra.mxu0 0.0
    %6445 = vmatprep.subr.mxu0 0.0
    %6446 = vmatpush1.msra.mxu0 0.0
    %6447 = vmatprep.subr.mxu0 0.0
    %6448 = vmatpush1.msra.mxu0 0.0
    %6449 = vmatprep.subr.mxu0 0.0
    %6450 = vmatpush1.msra.mxu0 0.0
    %6451 = vmatprep.subr.mxu0 0.0
    %6452 = vmatpush1.msra.mxu0 0.0
    %6453 = vmatprep.subr.mxu0 0.0
    %6454 = vmatpush1.msra.mxu0 0.0
    %6455 = vmatprep.mubr.f32.mxu0 0.0
    %v6456 = vand.u32 %v6153, 4294901760
    %v6457 = vsub.f32 %v6153, %v6456
    %v6458 = vand.u32 %v6457, 4294901760
    %6459 = vmatmul.mubr.f32.gmra.mrb[0].mxu0 %v6458
    %v6460 = vpop.f32.mrb[0].mxu0
    %v6461 = vadd.f32 %v6386, %v6460
    %v6462 = vpop.f32.mrb[0].mxu0
    %6463 = vdwg.mxu0
    %6464 = vmatprep.subr.mxu0 0.0
    %v6465 = vand.u32 %v25, 4294901760
    %v6466 = vsub.f32 %v25, %v6465
    %v6467 = vand.u32 %v6466, 4294901760
    %6468 = vmatpush1.msra.mxu0 %v6467
    %6469 = vmatprep.subr.mxu0 0.0
    %v6470 = vand.u32 %v26, 4294901760
    %v6471 = vsub.f32 %v26, %v6470
    %v6472 = vand.u32 %v6471, 4294901760
    %6473 = vmatpush1.msra.mxu0 %v6472
    %6474 = vmatprep.subr.mxu0 0.0
    %6475 = vmatpush1.msra.mxu0 0.0
    %6476 = vmatprep.subr.mxu0 0.0
    %6477 = vmatpush1.msra.mxu0 0.0
    %6478 = vmatprep.subr.mxu0 0.0
    %6479 = vmatpush1.msra.mxu0 0.0
    %6480 = vmatprep.subr.mxu0 0.0
    %6481 = vmatpush1.msra.mxu0 0.0
    %6482 = vmatprep.subr.mxu0 0.0
    %6483 = vmatpush1.msra.mxu0 0.0
    %6484 = vmatprep.subr.mxu0 0.0
    %6485 = vmatpush1.msra.mxu0 0.0
    %6486 = vmatprep.subr.mxu0 0.0
    %6487 = vmatpush1.msra.mxu0 0.0
    %6488 = vmatprep.subr.mxu0 0.0
    %6489 = vmatpush1.msra.mxu0 0.0
    %6490 = vmatprep.subr.mxu0 0.0
    %6491 = vmatpush1.msra.mxu0 0.0
    %6492 = vmatprep.subr.mxu0 0.0
    %6493 = vmatpush1.msra.mxu0 0.0
    %6494 = vmatprep.subr.mxu0 0.0
    %6495 = vmatpush1.msra.mxu0 0.0
    %6496 = vmatprep.subr.mxu0 0.0
    %6497 = vmatpush1.msra.mxu0 0.0
    %6498 = vmatprep.subr.mxu0 0.0
    %6499 = vmatpush1.msra.mxu0 0.0
    %6500 = vmatprep.subr.mxu0 0.0
    %6501 = vmatpush1.msra.mxu0 0.0
    %6502 = vmatprep.subr.mxu0 0.0
    %6503 = vmatpush1.msra.mxu0 0.0
    %6504 = vmatprep.subr.mxu0 0.0
    %6505 = vmatpush1.msra.mxu0 0.0
    %6506 = vmatprep.subr.mxu0 0.0
    %6507 = vmatpush1.msra.mxu0 0.0
    %6508 = vmatprep.subr.mxu0 0.0
    %6509 = vmatpush1.msra.mxu0 0.0
    %6510 = vmatprep.subr.mxu0 0.0
    %6511 = vmatpush1.msra.mxu0 0.0
    %6512 = vmatprep.subr.mxu0 0.0
    %6513 = vmatpush1.msra.mxu0 0.0
    %6514 = vmatprep.subr.mxu0 0.0
    %6515 = vmatpush1.msra.mxu0 0.0
    %6516 = vmatprep.subr.mxu0 0.0
    %6517 = vmatpush1.msra.mxu0 0.0
    %6518 = vmatprep.subr.mxu0 0.0
    %6519 = vmatpush1.msra.mxu0 0.0
    %6520 = vmatprep.subr.mxu0 0.0
    %6521 = vmatpush1.msra.mxu0 0.0
    %6522 = vmatprep.subr.mxu0 0.0
    %6523 = vmatpush1.msra.mxu0 0.0
    %6524 = vmatprep.subr.mxu0 0.0
    %6525 = vmatpush1.msra.mxu0 0.0
    %6526 = vmatprep.subr.mxu0 0.0
    %6527 = vmatpush1.msra.mxu0 0.0
    %6528 = vmatprep.subr.mxu0 0.0
    %6529 = vmatpush1.msra.mxu0 0.0
    %6530 = vmatprep.subr.mxu0 0.0
    %6531 = vmatpush1.msra.mxu0 0.0
    %6532 = vmatprep.subr.mxu0 0.0
    %6533 = vmatpush1.msra.mxu0 0.0
    %6534 = vmatprep.mubr.f32.mxu0 0.0
    %v6535 = vand.u32 %v6153, 4294901760
    %6536 = vmatmul.mubr.f32.gmra.mrb[0].mxu0 %v6535
    %v6537 = vpop.f32.mrb[0].mxu0
    %v6538 = vadd.f32 %v6461, %v6537
    %v6539 = vpop.f32.mrb[0].mxu0
    %6540 = vdwg.mxu0
    %6541 = vmatprep.subr.mxu0 0.0
    %v6542 = vand.u32 %v25, 4294901760
    %6543 = vmatpush1.msra.mxu0 %v6542
    %6544 = vmatprep.subr.mxu0 0.0
    %v6545 = vand.u32 %v26, 4294901760
    %6546 = vmatpush1.msra.mxu0 %v6545
    %6547 = vmatprep.subr.mxu0 0.0
    %6548 = vmatpush1.msra.mxu0 0.0
    %6549 = vmatprep.subr.mxu0 0.0
    %6550 = vmatpush1.msra.mxu0 0.0
    %6551 = vmatprep.subr.mxu0 0.0
    %6552 = vmatpush1.msra.mxu0 0.0
    %6553 = vmatprep.subr.mxu0 0.0
    %6554 = vmatpush1.msra.mxu0 0.0
    %6555 = vmatprep.subr.mxu0 0.0
    %6556 = vmatpush1.msra.mxu0 0.0
    %6557 = vmatprep.subr.mxu0 0.0
    %6558 = vmatpush1.msra.mxu0 0.0
    %6559 = vmatprep.subr.mxu0 0.0
    %6560 = vmatpush1.msra.mxu0 0.0
    %6561 = vmatprep.subr.mxu0 0.0
    %6562 = vmatpush1.msra.mxu0 0.0
    %6563 = vmatprep.subr.mxu0 0.0
    %6564 = vmatpush1.msra.mxu0 0.0
    %6565 = vmatprep.subr.mxu0 0.0
    %6566 = vmatpush1.msra.mxu0 0.0
    %6567 = vmatprep.subr.mxu0 0.0
    %6568 = vmatpush1.msra.mxu0 0.0
    %6569 = vmatprep.subr.mxu0 0.0
    %6570 = vmatpush1.msra.mxu0 0.0
    %6571 = vmatprep.subr.mxu0 0.0
    %6572 = vmatpush1.msra.mxu0 0.0
    %6573 = vmatprep.subr.mxu0 0.0
    %6574 = vmatpush1.msra.mxu0 0.0
    %6575 = vmatprep.subr.mxu0 0.0
    %6576 = vmatpush1.msra.mxu0 0.0
    %6577 = vmatprep.subr.mxu0 0.0
    %6578 = vmatpush1.msra.mxu0 0.0
    %6579 = vmatprep.subr.mxu0 0.0
    %6580 = vmatpush1.msra.mxu0 0.0
    %6581 = vmatprep.subr.mxu0 0.0
    %6582 = vmatpush1.msra.mxu0 0.0
    %6583 = vmatprep.subr.mxu0 0.0
    %6584 = vmatpush1.msra.mxu0 0.0
    %6585 = vmatprep.subr.mxu0 0.0
    %6586 = vmatpush1.msra.mxu0 0.0
    %6587 = vmatprep.subr.mxu0 0.0
    %6588 = vmatpush1.msra.mxu0 0.0
    %6589 = vmatprep.subr.mxu0 0.0
    %6590 = vmatpush1.msra.mxu0 0.0
    %6591 = vmatprep.subr.mxu0 0.0
    %6592 = vmatpush1.msra.mxu0 0.0
    %6593 = vmatprep.subr.mxu0 0.0
    %6594 = vmatpush1.msra.mxu0 0.0
    %6595 = vmatprep.subr.mxu0 0.0
    %6596 = vmatpush1.msra.mxu0 0.0
    %6597 = vmatprep.subr.mxu0 0.0
    %6598 = vmatpush1.msra.mxu0 0.0
    %6599 = vmatprep.subr.mxu0 0.0
    %6600 = vmatpush1.msra.mxu0 0.0
    %6601 = vmatprep.subr.mxu0 0.0
    %6602 = vmatpush1.msra.mxu0 0.0
    %6603 = vmatprep.subr.mxu0 0.0
    %6604 = vmatpush1.msra.mxu0 0.0
    %6605 = vmatprep.subr.mxu0 0.0
    %6606 = vmatpush1.msra.mxu0 0.0
    %6607 = vmatprep.mubr.f32.mxu0 0.0
    %v6608 = vand.u32 %v6153, 4294901760
    %6609 = vmatmul.mubr.f32.gmra.mrb[0].mxu0 %v6608
    %v6610 = vpop.f32.mrb[0].mxu0
    %v6611 = vadd.f32 %v6538, %v6610
    %v6612 = vpop.f32.mrb[0].mxu0
    %6613 = vdwg.mxu0
    %6614 = vmatprep.subr.mxu0 0.0
    %v6615 = vand.u32 %v28, 4294901760
    %6616 = vmatpush1.msra.mxu0 %v6615
    %6617 = vmatprep.subr.mxu0 0.0
    %v6618 = vand.u32 %v29, 4294901760
    %6619 = vmatpush1.msra.mxu0 %v6618
    %6620 = vmatprep.subr.mxu0 0.0
    %6621 = vmatpush1.msra.mxu0 0.0
    %6622 = vmatprep.subr.mxu0 0.0
    %6623 = vmatpush1.msra.mxu0 0.0
    %6624 = vmatprep.subr.mxu0 0.0
    %6625 = vmatpush1.msra.mxu0 0.0
    %6626 = vmatprep.subr.mxu0 0.0
    %6627 = vmatpush1.msra.mxu0 0.0
    %6628 = vmatprep.subr.mxu0 0.0
    %6629 = vmatpush1.msra.mxu0 0.0
    %6630 = vmatprep.subr.mxu0 0.0
    %6631 = vmatpush1.msra.mxu0 0.0
    %6632 = vmatprep.subr.mxu0 0.0
    %6633 = vmatpush1.msra.mxu0 0.0
    %6634 = vmatprep.subr.mxu0 0.0
    %6635 = vmatpush1.msra.mxu0 0.0
    %6636 = vmatprep.subr.mxu0 0.0
    %6637 = vmatpush1.msra.mxu0 0.0
    %6638 = vmatprep.subr.mxu0 0.0
    %6639 = vmatpush1.msra.mxu0 0.0
    %6640 = vmatprep.subr.mxu0 0.0
    %6641 = vmatpush1.msra.mxu0 0.0
    %6642 = vmatprep.subr.mxu0 0.0
    %6643 = vmatpush1.msra.mxu0 0.0
    %6644 = vmatprep.subr.mxu0 0.0
    %6645 = vmatpush1.msra.mxu0 0.0
    %6646 = vmatprep.subr.mxu0 0.0
    %6647 = vmatpush1.msra.mxu0 0.0
    %6648 = vmatprep.subr.mxu0 0.0
    %6649 = vmatpush1.msra.mxu0 0.0
    %6650 = vmatprep.subr.mxu0 0.0
    %6651 = vmatpush1.msra.mxu0 0.0
    %6652 = vmatprep.subr.mxu0 0.0
    %6653 = vmatpush1.msra.mxu0 0.0
    %6654 = vmatprep.subr.mxu0 0.0
    %6655 = vmatpush1.msra.mxu0 0.0
    %6656 = vmatprep.subr.mxu0 0.0
    %6657 = vmatpush1.msra.mxu0 0.0
    %6658 = vmatprep.subr.mxu0 0.0
    %6659 = vmatpush1.msra.mxu0 0.0
    %6660 = vmatprep.subr.mxu0 0.0
    %6661 = vmatpush1.msra.mxu0 0.0
    %6662 = vmatprep.subr.mxu0 0.0
    %6663 = vmatpush1.msra.mxu0 0.0
    %6664 = vmatprep.subr.mxu0 0.0
    %6665 = vmatpush1.msra.mxu0 0.0
    %6666 = vmatprep.subr.mxu0 0.0
    %6667 = vmatpush1.msra.mxu0 0.0
    %6668 = vmatprep.subr.mxu0 0.0
    %6669 = vmatpush1.msra.mxu0 0.0
    %6670 = vmatprep.subr.mxu0 0.0
    %6671 = vmatpush1.msra.mxu0 0.0
    %6672 = vmatprep.subr.mxu0 0.0
    %6673 = vmatpush1.msra.mxu0 0.0
    %6674 = vmatprep.subr.mxu0 0.0
    %6675 = vmatpush1.msra.mxu0 0.0
    %6676 = vmatprep.subr.mxu0 0.0
    %6677 = vmatpush1.msra.mxu0 0.0
    %6678 = vmatprep.subr.mxu0 0.0
    %6679 = vmatpush1.msra.mxu0 0.0
    %6680 = vmatprep.mubr.f32.mxu0 0.0
    %v6681 = vand.u32 %v6153, 4294901760
    %v6682 = vsub.f32 %v6153, %v6681
    %v6683 = vand.u32 %v6682, 4294901760
    %v6684 = vsub.f32 %v6682, %v6683
    %v6685 = vand.u32 %v6684, 4294901760
    %6686 = vmatmul.mubr.f32.gmra.mrb[0].mxu0 %v6685
    %v6687 = vpop.f32.mrb[0].mxu0
    %v6688 = vadd.f32 0.0, %v6687
    %v6689 = vpop.f32.mrb[0].mxu0
    %6690 = vdwg.mxu0
    %6691 = vmatprep.subr.mxu0 0.0
    %v6692 = vand.u32 %v28, 4294901760
    %v6693 = vsub.f32 %v28, %v6692
    %v6694 = vand.u32 %v6693, 4294901760
    %v6695 = vsub.f32 %v6693, %v6694
    %v6696 = vand.u32 %v6695, 4294901760
    %6697 = vmatpush1.msra.mxu0 %v6696
    %6698 = vmatprep.subr.mxu0 0.0
    %v6699 = vand.u32 %v29, 4294901760
    %v6700 = vsub.f32 %v29, %v6699
    %v6701 = vand.u32 %v6700, 4294901760
    %v6702 = vsub.f32 %v6700, %v6701
    %v6703 = vand.u32 %v6702, 4294901760
    %6704 = vmatpush1.msra.mxu0 %v6703
    %6705 = vmatprep.subr.mxu0 0.0
    %6706 = vmatpush1.msra.mxu0 0.0
    %6707 = vmatprep.subr.mxu0 0.0
    %6708 = vmatpush1.msra.mxu0 0.0
    %6709 = vmatprep.subr.mxu0 0.0
    %6710 = vmatpush1.msra.mxu0 0.0
    %6711 = vmatprep.subr.mxu0 0.0
    %6712 = vmatpush1.msra.mxu0 0.0
    %6713 = vmatprep.subr.mxu0 0.0
    %6714 = vmatpush1.msra.mxu0 0.0
    %6715 = vmatprep.subr.mxu0 0.0
    %6716 = vmatpush1.msra.mxu0 0.0
    %6717 = vmatprep.subr.mxu0 0.0
    %6718 = vmatpush1.msra.mxu0 0.0
    %6719 = vmatprep.subr.mxu0 0.0
    %6720 = vmatpush1.msra.mxu0 0.0
    %6721 = vmatprep.subr.mxu0 0.0
    %6722 = vmatpush1.msra.mxu0 0.0
    %6723 = vmatprep.subr.mxu0 0.0
    %6724 = vmatpush1.msra.mxu0 0.0
    %6725 = vmatprep.subr.mxu0 0.0
    %6726 = vmatpush1.msra.mxu0 0.0
    %6727 = vmatprep.subr.mxu0 0.0
    %6728 = vmatpush1.msra.mxu0 0.0
    %6729 = vmatprep.subr.mxu0 0.0
    %6730 = vmatpush1.msra.mxu0 0.0
    %6731 = vmatprep.subr.mxu0 0.0
    %6732 = vmatpush1.msra.mxu0 0.0
    %6733 = vmatprep.subr.mxu0 0.0
    %6734 = vmatpush1.msra.mxu0 0.0
    %6735 = vmatprep.subr.mxu0 0.0
    %6736 = vmatpush1.msra.mxu0 0.0
    %6737 = vmatprep.subr.mxu0 0.0
    %6738 = vmatpush1.msra.mxu0 0.0
    %6739 = vmatprep.subr.mxu0 0.0
    %6740 = vmatpush1.msra.mxu0 0.0
    %6741 = vmatprep.subr.mxu0 0.0
    %6742 = vmatpush1.msra.mxu0 0.0
    %6743 = vmatprep.subr.mxu0 0.0
    %6744 = vmatpush1.msra.mxu0 0.0
    %6745 = vmatprep.subr.mxu0 0.0
    %6746 = vmatpush1.msra.mxu0 0.0
    %6747 = vmatprep.subr.mxu0 0.0
    %6748 = vmatpush1.msra.mxu0 0.0
    %6749 = vmatprep.subr.mxu0 0.0
    %6750 = vmatpush1.msra.mxu0 0.0
    %6751 = vmatprep.subr.mxu0 0.0
    %6752 = vmatpush1.msra.mxu0 0.0
    %6753 = vmatprep.subr.mxu0 0.0
    %6754 = vmatpush1.msra.mxu0 0.0
    %6755 = vmatprep.subr.mxu0 0.0
    %6756 = vmatpush1.msra.mxu0 0.0
    %6757 = vmatprep.subr.mxu0 0.0
    %6758 = vmatpush1.msra.mxu0 0.0
    %6759 = vmatprep.subr.mxu0 0.0
    %6760 = vmatpush1.msra.mxu0 0.0
    %6761 = vmatprep.subr.mxu0 0.0
    %6762 = vmatpush1.msra.mxu0 0.0
    %6763 = vmatprep.subr.mxu0 0.0
    %6764 = vmatpush1.msra.mxu0 0.0
    %6765 = vmatprep.mubr.f32.mxu0 0.0
    %v6766 = vand.u32 %v6153, 4294901760
    %6767 = vmatmul.mubr.f32.gmra.mrb[0].mxu0 %v6766
    %v6768 = vpop.f32.mrb[0].mxu0
    %v6769 = vadd.f32 %v6688, %v6768
    %v6770 = vpop.f32.mrb[0].mxu0
    %6771 = vdwg.mxu0
    %6772 = vmatprep.subr.mxu0 0.0
    %v6773 = vand.u32 %v28, 4294901760
    %v6774 = vsub.f32 %v28, %v6773
    %6775 = vmatpush1.msra.mxu0 %v6774
    %6776 = vmatprep.subr.mxu0 0.0
    %v6777 = vand.u32 %v29, 4294901760
    %v6778 = vsub.f32 %v29, %v6777
    %6779 = vmatpush1.msra.mxu0 %v6778
    %6780 = vmatprep.subr.mxu0 0.0
    %6781 = vmatpush1.msra.mxu0 0.0
    %6782 = vmatprep.subr.mxu0 0.0
    %6783 = vmatpush1.msra.mxu0 0.0
    %6784 = vmatprep.subr.mxu0 0.0
    %6785 = vmatpush1.msra.mxu0 0.0
    %6786 = vmatprep.subr.mxu0 0.0
    %6787 = vmatpush1.msra.mxu0 0.0
    %6788 = vmatprep.subr.mxu0 0.0
    %6789 = vmatpush1.msra.mxu0 0.0
    %6790 = vmatprep.subr.mxu0 0.0
    %6791 = vmatpush1.msra.mxu0 0.0
    %6792 = vmatprep.subr.mxu0 0.0
    %6793 = vmatpush1.msra.mxu0 0.0
    %6794 = vmatprep.subr.mxu0 0.0
    %6795 = vmatpush1.msra.mxu0 0.0
    %6796 = vmatprep.subr.mxu0 0.0
    %6797 = vmatpush1.msra.mxu0 0.0
    %6798 = vmatprep.subr.mxu0 0.0
    %6799 = vmatpush1.msra.mxu0 0.0
    %6800 = vmatprep.subr.mxu0 0.0
    %6801 = vmatpush1.msra.mxu0 0.0
    %6802 = vmatprep.subr.mxu0 0.0
    %6803 = vmatpush1.msra.mxu0 0.0
    %6804 = vmatprep.subr.mxu0 0.0
    %6805 = vmatpush1.msra.mxu0 0.0
    %6806 = vmatprep.subr.mxu0 0.0
    %6807 = vmatpush1.msra.mxu0 0.0
    %6808 = vmatprep.subr.mxu0 0.0
    %6809 = vmatpush1.msra.mxu0 0.0
    %6810 = vmatprep.subr.mxu0 0.0
    %6811 = vmatpush1.msra.mxu0 0.0
    %6812 = vmatprep.subr.mxu0 0.0
    %6813 = vmatpush1.msra.mxu0 0.0
    %6814 = vmatprep.subr.mxu0 0.0
    %6815 = vmatpush1.msra.mxu0 0.0
    %6816 = vmatprep.subr.mxu0 0.0
    %6817 = vmatpush1.msra.mxu0 0.0
    %6818 = vmatprep.subr.mxu0 0.0
    %6819 = vmatpush1.msra.mxu0 0.0
    %6820 = vmatprep.subr.mxu0 0.0
    %6821 = vmatpush1.msra.mxu0 0.0
    %6822 = vmatprep.subr.mxu0 0.0
    %6823 = vmatpush1.msra.mxu0 0.0
    %6824 = vmatprep.subr.mxu0 0.0
    %6825 = vmatpush1.msra.mxu0 0.0
    %6826 = vmatprep.subr.mxu0 0.0
    %6827 = vmatpush1.msra.mxu0 0.0
    %6828 = vmatprep.subr.mxu0 0.0
    %6829 = vmatpush1.msra.mxu0 0.0
    %6830 = vmatprep.subr.mxu0 0.0
    %6831 = vmatpush1.msra.mxu0 0.0
    %6832 = vmatprep.subr.mxu0 0.0
    %6833 = vmatpush1.msra.mxu0 0.0
    %6834 = vmatprep.subr.mxu0 0.0
    %6835 = vmatpush1.msra.mxu0 0.0
    %6836 = vmatprep.subr.mxu0 0.0
    %6837 = vmatpush1.msra.mxu0 0.0
    %6838 = vmatprep.subr.mxu0 0.0
    %6839 = vmatpush1.msra.mxu0 0.0
    %6840 = vmatprep.mubr.f32.mxu0 0.0
    %v6841 = vand.u32 %v6153, 4294901760
    %v6842 = vsub.f32 %v6153, %v6841
    %6843 = vmatmul.mubr.f32.gmra.mrb[0].mxu0 %v6842
    %v6844 = vpop.f32.mrb[0].mxu0
    %v6845 = vadd.f32 %v6769, %v6844
    %v6846 = vpop.f32.mrb[0].mxu0
    %6847 = vdwg.mxu0
    %6848 = vmatprep.subr.mxu0 0.0
    %v6849 = vand.u32 %v28, 4294901760
    %6850 = vmatpush1.msra.mxu0 %v6849
    %6851 = vmatprep.subr.mxu0 0.0
    %v6852 = vand.u32 %v29, 4294901760
    %6853 = vmatpush1.msra.mxu0 %v6852
    %6854 = vmatprep.subr.mxu0 0.0
    %6855 = vmatpush1.msra.mxu0 0.0
    %6856 = vmatprep.subr.mxu0 0.0
    %6857 = vmatpush1.msra.mxu0 0.0
    %6858 = vmatprep.subr.mxu0 0.0
    %6859 = vmatpush1.msra.mxu0 0.0
    %6860 = vmatprep.subr.mxu0 0.0
    %6861 = vmatpush1.msra.mxu0 0.0
    %6862 = vmatprep.subr.mxu0 0.0
    %6863 = vmatpush1.msra.mxu0 0.0
    %6864 = vmatprep.subr.mxu0 0.0
    %6865 = vmatpush1.msra.mxu0 0.0
    %6866 = vmatprep.subr.mxu0 0.0
    %6867 = vmatpush1.msra.mxu0 0.0
    %6868 = vmatprep.subr.mxu0 0.0
    %6869 = vmatpush1.msra.mxu0 0.0
    %6870 = vmatprep.subr.mxu0 0.0
    %6871 = vmatpush1.msra.mxu0 0.0
    %6872 = vmatprep.subr.mxu0 0.0
    %6873 = vmatpush1.msra.mxu0 0.0
    %6874 = vmatprep.subr.mxu0 0.0
    %6875 = vmatpush1.msra.mxu0 0.0
    %6876 = vmatprep.subr.mxu0 0.0
    %6877 = vmatpush1.msra.mxu0 0.0
    %6878 = vmatprep.subr.mxu0 0.0
    %6879 = vmatpush1.msra.mxu0 0.0
    %6880 = vmatprep.subr.mxu0 0.0
    %6881 = vmatpush1.msra.mxu0 0.0
    %6882 = vmatprep.subr.mxu0 0.0
    %6883 = vmatpush1.msra.mxu0 0.0
    %6884 = vmatprep.subr.mxu0 0.0
    %6885 = vmatpush1.msra.mxu0 0.0
    %6886 = vmatprep.subr.mxu0 0.0
    %6887 = vmatpush1.msra.mxu0 0.0
    %6888 = vmatprep.subr.mxu0 0.0
    %6889 = vmatpush1.msra.mxu0 0.0
    %6890 = vmatprep.subr.mxu0 0.0
    %6891 = vmatpush1.msra.mxu0 0.0
    %6892 = vmatprep.subr.mxu0 0.0
    %6893 = vmatpush1.msra.mxu0 0.0
    %6894 = vmatprep.subr.mxu0 0.0
    %6895 = vmatpush1.msra.mxu0 0.0
    %6896 = vmatprep.subr.mxu0 0.0
    %6897 = vmatpush1.msra.mxu0 0.0
    %6898 = vmatprep.subr.mxu0 0.0
    %6899 = vmatpush1.msra.mxu0 0.0
    %6900 = vmatprep.subr.mxu0 0.0
    %6901 = vmatpush1.msra.mxu0 0.0
    %6902 = vmatprep.subr.mxu0 0.0
    %6903 = vmatpush1.msra.mxu0 0.0
    %6904 = vmatprep.subr.mxu0 0.0
    %6905 = vmatpush1.msra.mxu0 0.0
    %6906 = vmatprep.subr.mxu0 0.0
    %6907 = vmatpush1.msra.mxu0 0.0
    %6908 = vmatprep.subr.mxu0 0.0
    %6909 = vmatpush1.msra.mxu0 0.0
    %6910 = vmatprep.subr.mxu0 0.0
    %6911 = vmatpush1.msra.mxu0 0.0
    %6912 = vmatprep.subr.mxu0 0.0
    %6913 = vmatpush1.msra.mxu0 0.0
    %6914 = vmatprep.mubr.f32.mxu0 0.0
    %v6915 = vand.u32 %v6153, 4294901760
    %v6916 = vsub.f32 %v6153, %v6915
    %v6917 = vand.u32 %v6916, 4294901760
    %6918 = vmatmul.mubr.f32.gmra.mrb[0].mxu0 %v6917
    %v6919 = vpop.f32.mrb[0].mxu0
    %v6920 = vadd.f32 %v6845, %v6919
    %v6921 = vpop.f32.mrb[0].mxu0
    %6922 = vdwg.mxu0
    %6923 = vmatprep.subr.mxu0 0.0
    %v6924 = vand.u32 %v28, 4294901760
    %v6925 = vsub.f32 %v28, %v6924
    %v6926 = vand.u32 %v6925, 4294901760
    %6927 = vmatpush1.msra.mxu0 %v6926
    %6928 = vmatprep.subr.mxu0 0.0
    %v6929 = vand.u32 %v29, 4294901760
    %v6930 = vsub.f32 %v29, %v6929
    %v6931 = vand.u32 %v6930, 4294901760
    %6932 = vmatpush1.msra.mxu0 %v6931
    %6933 = vmatprep.subr.mxu0 0.0
    %6934 = vmatpush1.msra.mxu0 0.0
    %6935 = vmatprep.subr.mxu0 0.0
    %6936 = vmatpush1.msra.mxu0 0.0
    %6937 = vmatprep.subr.mxu0 0.0
    %6938 = vmatpush1.msra.mxu0 0.0
    %6939 = vmatprep.subr.mxu0 0.0
    %6940 = vmatpush1.msra.mxu0 0.0
    %6941 = vmatprep.subr.mxu0 0.0
    %6942 = vmatpush1.msra.mxu0 0.0
    %6943 = vmatprep.subr.mxu0 0.0
    %6944 = vmatpush1.msra.mxu0 0.0
    %6945 = vmatprep.subr.mxu0 0.0
    %6946 = vmatpush1.msra.mxu0 0.0
    %6947 = vmatprep.subr.mxu0 0.0
    %6948 = vmatpush1.msra.mxu0 0.0
    %6949 = vmatprep.subr.mxu0 0.0
    %6950 = vmatpush1.msra.mxu0 0.0
    %6951 = vmatprep.subr.mxu0 0.0
    %6952 = vmatpush1.msra.mxu0 0.0
    %6953 = vmatprep.subr.mxu0 0.0
    %6954 = vmatpush1.msra.mxu0 0.0
    %6955 = vmatprep.subr.mxu0 0.0
    %6956 = vmatpush1.msra.mxu0 0.0
    %6957 = vmatprep.subr.mxu0 0.0
    %6958 = vmatpush1.msra.mxu0 0.0
    %6959 = vmatprep.subr.mxu0 0.0
    %6960 = vmatpush1.msra.mxu0 0.0
    %6961 = vmatprep.subr.mxu0 0.0
    %6962 = vmatpush1.msra.mxu0 0.0
    %6963 = vmatprep.subr.mxu0 0.0
    %6964 = vmatpush1.msra.mxu0 0.0
    %6965 = vmatprep.subr.mxu0 0.0
    %6966 = vmatpush1.msra.mxu0 0.0
    %6967 = vmatprep.subr.mxu0 0.0
    %6968 = vmatpush1.msra.mxu0 0.0
    %6969 = vmatprep.subr.mxu0 0.0
    %6970 = vmatpush1.msra.mxu0 0.0
    %6971 = vmatprep.subr.mxu0 0.0
    %6972 = vmatpush1.msra.mxu0 0.0
    %6973 = vmatprep.subr.mxu0 0.0
    %6974 = vmatpush1.msra.mxu0 0.0
    %6975 = vmatprep.subr.mxu0 0.0
    %6976 = vmatpush1.msra.mxu0 0.0
    %6977 = vmatprep.subr.mxu0 0.0
    %6978 = vmatpush1.msra.mxu0 0.0
    %6979 = vmatprep.subr.mxu0 0.0
    %6980 = vmatpush1.msra.mxu0 0.0
    %6981 = vmatprep.subr.mxu0 0.0
    %6982 = vmatpush1.msra.mxu0 0.0
    %6983 = vmatprep.subr.mxu0 0.0
    %6984 = vmatpush1.msra.mxu0 0.0
    %6985 = vmatprep.subr.mxu0 0.0
    %6986 = vmatpush1.msra.mxu0 0.0
    %6987 = vmatprep.subr.mxu0 0.0
    %6988 = vmatpush1.msra.mxu0 0.0
    %6989 = vmatprep.subr.mxu0 0.0
    %6990 = vmatpush1.msra.mxu0 0.0
    %6991 = vmatprep.subr.mxu0 0.0
    %6992 = vmatpush1.msra.mxu0 0.0
    %6993 = vmatprep.mubr.f32.mxu0 0.0
    %v6994 = vand.u32 %v6153, 4294901760
    %6995 = vmatmul.mubr.f32.gmra.mrb[0].mxu0 %v6994
    %v6996 = vpop.f32.mrb[0].mxu0
    %v6997 = vadd.f32 %v6920, %v6996
    %v6998 = vpop.f32.mrb[0].mxu0
    %6999 = vdwg.mxu0
    %7000 = vmatprep.subr.mxu0 0.0
    %v7001 = vand.u32 %v28, 4294901760
    %7002 = vmatpush1.msra.mxu0 %v7001
    %7003 = vmatprep.subr.mxu0 0.0
    %v7004 = vand.u32 %v29, 4294901760
    %7005 = vmatpush1.msra.mxu0 %v7004
    %7006 = vmatprep.subr.mxu0 0.0
    %7007 = vmatpush1.msra.mxu0 0.0
    %7008 = vmatprep.subr.mxu0 0.0
    %7009 = vmatpush1.msra.mxu0 0.0
    %7010 = vmatprep.subr.mxu0 0.0
    %7011 = vmatpush1.msra.mxu0 0.0
    %7012 = vmatprep.subr.mxu0 0.0
    %7013 = vmatpush1.msra.mxu0 0.0
    %7014 = vmatprep.subr.mxu0 0.0
    %7015 = vmatpush1.msra.mxu0 0.0
    %7016 = vmatprep.subr.mxu0 0.0
    %7017 = vmatpush1.msra.mxu0 0.0
    %7018 = vmatprep.subr.mxu0 0.0
    %7019 = vmatpush1.msra.mxu0 0.0
    %7020 = vmatprep.subr.mxu0 0.0
    %7021 = vmatpush1.msra.mxu0 0.0
    %7022 = vmatprep.subr.mxu0 0.0
    %7023 = vmatpush1.msra.mxu0 0.0
    %7024 = vmatprep.subr.mxu0 0.0
    %7025 = vmatpush1.msra.mxu0 0.0
    %7026 = vmatprep.subr.mxu0 0.0
    %7027 = vmatpush1.msra.mxu0 0.0
    %7028 = vmatprep.subr.mxu0 0.0
    %7029 = vmatpush1.msra.mxu0 0.0
    %7030 = vmatprep.subr.mxu0 0.0
    %7031 = vmatpush1.msra.mxu0 0.0
    %7032 = vmatprep.subr.mxu0 0.0
    %7033 = vmatpush1.msra.mxu0 0.0
    %7034 = vmatprep.subr.mxu0 0.0
    %7035 = vmatpush1.msra.mxu0 0.0
    %7036 = vmatprep.subr.mxu0 0.0
    %7037 = vmatpush1.msra.mxu0 0.0
    %7038 = vmatprep.subr.mxu0 0.0
    %7039 = vmatpush1.msra.mxu0 0.0
    %7040 = vmatprep.subr.mxu0 0.0
    %7041 = vmatpush1.msra.mxu0 0.0
    %7042 = vmatprep.subr.mxu0 0.0
    %7043 = vmatpush1.msra.mxu0 0.0
    %7044 = vmatprep.subr.mxu0 0.0
    %7045 = vmatpush1.msra.mxu0 0.0
    %7046 = vmatprep.subr.mxu0 0.0
    %7047 = vmatpush1.msra.mxu0 0.0
    %7048 = vmatprep.subr.mxu0 0.0
    %7049 = vmatpush1.msra.mxu0 0.0
    %7050 = vmatprep.subr.mxu0 0.0
    %7051 = vmatpush1.msra.mxu0 0.0
    %7052 = vmatprep.subr.mxu0 0.0
    %7053 = vmatpush1.msra.mxu0 0.0
    %7054 = vmatprep.subr.mxu0 0.0
    %7055 = vmatpush1.msra.mxu0 0.0
    %7056 = vmatprep.subr.mxu0 0.0
    %7057 = vmatpush1.msra.mxu0 0.0
    %7058 = vmatprep.subr.mxu0 0.0
    %7059 = vmatpush1.msra.mxu0 0.0
    %7060 = vmatprep.subr.mxu0 0.0
    %7061 = vmatpush1.msra.mxu0 0.0
    %7062 = vmatprep.subr.mxu0 0.0
    %7063 = vmatpush1.msra.mxu0 0.0
    %7064 = vmatprep.subr.mxu0 0.0
    %7065 = vmatpush1.msra.mxu0 0.0
    %7066 = vmatprep.mubr.f32.mxu0 0.0
    %v7067 = vand.u32 %v6153, 4294901760
    %7068 = vmatmul.mubr.f32.gmra.mrb[0].mxu0 %v7067
    %v7069 = vpop.f32.mrb[0].mxu0
    %v7070 = vadd.f32 %v6997, %v7069
    %v7071 = vpop.f32.mrb[0].mxu0
    %7072 = vdwg.mxu0
    %v7073 = vmax.f32 %v6611, %v7070
    %v7074 = vsel %vm1028, %v7073, %v6611
    %7075 = vmatprep.subr.mxu0 0.0
    %v7076 = vand.u32 %v31, 4294901760
    %7077 = vmatpush1.msra.mxu0 %v7076
    %7078 = vmatprep.subr.mxu0 0.0
    %v7079 = vand.u32 %v32, 4294901760
    %7080 = vmatpush1.msra.mxu0 %v7079
    %7081 = vmatprep.subr.mxu0 0.0
    %7082 = vmatpush1.msra.mxu0 0.0
    %7083 = vmatprep.subr.mxu0 0.0
    %7084 = vmatpush1.msra.mxu0 0.0
    %7085 = vmatprep.subr.mxu0 0.0
    %7086 = vmatpush1.msra.mxu0 0.0
    %7087 = vmatprep.subr.mxu0 0.0
    %7088 = vmatpush1.msra.mxu0 0.0
    %7089 = vmatprep.subr.mxu0 0.0
    %7090 = vmatpush1.msra.mxu0 0.0
    %7091 = vmatprep.subr.mxu0 0.0
    %7092 = vmatpush1.msra.mxu0 0.0
    %7093 = vmatprep.subr.mxu0 0.0
    %7094 = vmatpush1.msra.mxu0 0.0
    %7095 = vmatprep.subr.mxu0 0.0
    %7096 = vmatpush1.msra.mxu0 0.0
    %7097 = vmatprep.subr.mxu0 0.0
    %7098 = vmatpush1.msra.mxu0 0.0
    %7099 = vmatprep.subr.mxu0 0.0
    %7100 = vmatpush1.msra.mxu0 0.0
    %7101 = vmatprep.subr.mxu0 0.0
    %7102 = vmatpush1.msra.mxu0 0.0
    %7103 = vmatprep.subr.mxu0 0.0
    %7104 = vmatpush1.msra.mxu0 0.0
    %7105 = vmatprep.subr.mxu0 0.0
    %7106 = vmatpush1.msra.mxu0 0.0
    %7107 = vmatprep.subr.mxu0 0.0
    %7108 = vmatpush1.msra.mxu0 0.0
    %7109 = vmatprep.subr.mxu0 0.0
    %7110 = vmatpush1.msra.mxu0 0.0
    %7111 = vmatprep.subr.mxu0 0.0
    %7112 = vmatpush1.msra.mxu0 0.0
    %7113 = vmatprep.subr.mxu0 0.0
    %7114 = vmatpush1.msra.mxu0 0.0
    %7115 = vmatprep.subr.mxu0 0.0
    %7116 = vmatpush1.msra.mxu0 0.0
    %7117 = vmatprep.subr.mxu0 0.0
    %7118 = vmatpush1.msra.mxu0 0.0
    %7119 = vmatprep.subr.mxu0 0.0
    %7120 = vmatpush1.msra.mxu0 0.0
    %7121 = vmatprep.subr.mxu0 0.0
    %7122 = vmatpush1.msra.mxu0 0.0
    %7123 = vmatprep.subr.mxu0 0.0
    %7124 = vmatpush1.msra.mxu0 0.0
    %7125 = vmatprep.subr.mxu0 0.0
    %7126 = vmatpush1.msra.mxu0 0.0
    %7127 = vmatprep.subr.mxu0 0.0
    %7128 = vmatpush1.msra.mxu0 0.0
    %7129 = vmatprep.subr.mxu0 0.0
    %7130 = vmatpush1.msra.mxu0 0.0
    %7131 = vmatprep.subr.mxu0 0.0
    %7132 = vmatpush1.msra.mxu0 0.0
    %7133 = vmatprep.subr.mxu0 0.0
    %7134 = vmatpush1.msra.mxu0 0.0
    %7135 = vmatprep.subr.mxu0 0.0
    %7136 = vmatpush1.msra.mxu0 0.0
    %7137 = vmatprep.subr.mxu0 0.0
    %7138 = vmatpush1.msra.mxu0 0.0
    %7139 = vmatprep.subr.mxu0 0.0
    %7140 = vmatpush1.msra.mxu0 0.0
    %7141 = vmatprep.mubr.f32.mxu0 0.0
    %v7142 = vand.u32 %v6153, 4294901760
    %v7143 = vsub.f32 %v6153, %v7142
    %v7144 = vand.u32 %v7143, 4294901760
    %v7145 = vsub.f32 %v7143, %v7144
    %v7146 = vand.u32 %v7145, 4294901760
    %7147 = vmatmul.mubr.f32.gmra.mrb[0].mxu0 %v7146
    %v7148 = vpop.f32.mrb[0].mxu0
    %v7149 = vadd.f32 0.0, %v7148
    %v7150 = vpop.f32.mrb[0].mxu0
    %7151 = vdwg.mxu0
    %7152 = vmatprep.subr.mxu0 0.0
    %v7153 = vand.u32 %v31, 4294901760
    %v7154 = vsub.f32 %v31, %v7153
    %v7155 = vand.u32 %v7154, 4294901760
    %v7156 = vsub.f32 %v7154, %v7155
    %v7157 = vand.u32 %v7156, 4294901760
    %7158 = vmatpush1.msra.mxu0 %v7157
    %7159 = vmatprep.subr.mxu0 0.0
    %v7160 = vand.u32 %v32, 4294901760
    %v7161 = vsub.f32 %v32, %v7160
    %v7162 = vand.u32 %v7161, 4294901760
    %v7163 = vsub.f32 %v7161, %v7162
    %v7164 = vand.u32 %v7163, 4294901760
    %7165 = vmatpush1.msra.mxu0 %v7164
    %7166 = vmatprep.subr.mxu0 0.0
    %7167 = vmatpush1.msra.mxu0 0.0
    %7168 = vmatprep.subr.mxu0 0.0
    %7169 = vmatpush1.msra.mxu0 0.0
    %7170 = vmatprep.subr.mxu0 0.0
    %7171 = vmatpush1.msra.mxu0 0.0
    %7172 = vmatprep.subr.mxu0 0.0
    %7173 = vmatpush1.msra.mxu0 0.0
    %7174 = vmatprep.subr.mxu0 0.0
    %7175 = vmatpush1.msra.mxu0 0.0
    %7176 = vmatprep.subr.mxu0 0.0
    %7177 = vmatpush1.msra.mxu0 0.0
    %7178 = vmatprep.subr.mxu0 0.0
    %7179 = vmatpush1.msra.mxu0 0.0
    %7180 = vmatprep.subr.mxu0 0.0
    %7181 = vmatpush1.msra.mxu0 0.0
    %7182 = vmatprep.subr.mxu0 0.0
    %7183 = vmatpush1.msra.mxu0 0.0
    %7184 = vmatprep.subr.mxu0 0.0
    %7185 = vmatpush1.msra.mxu0 0.0
    %7186 = vmatprep.subr.mxu0 0.0
    %7187 = vmatpush1.msra.mxu0 0.0
    %7188 = vmatprep.subr.mxu0 0.0
    %7189 = vmatpush1.msra.mxu0 0.0
    %7190 = vmatprep.subr.mxu0 0.0
    %7191 = vmatpush1.msra.mxu0 0.0
    %7192 = vmatprep.subr.mxu0 0.0
    %7193 = vmatpush1.msra.mxu0 0.0
    %7194 = vmatprep.subr.mxu0 0.0
    %7195 = vmatpush1.msra.mxu0 0.0
    %7196 = vmatprep.subr.mxu0 0.0
    %7197 = vmatpush1.msra.mxu0 0.0
    %7198 = vmatprep.subr.mxu0 0.0
    %7199 = vmatpush1.msra.mxu0 0.0
    %7200 = vmatprep.subr.mxu0 0.0
    %7201 = vmatpush1.msra.mxu0 0.0
    %7202 = vmatprep.subr.mxu0 0.0
    %7203 = vmatpush1.msra.mxu0 0.0
    %7204 = vmatprep.subr.mxu0 0.0
    %7205 = vmatpush1.msra.mxu0 0.0
    %7206 = vmatprep.subr.mxu0 0.0
    %7207 = vmatpush1.msra.mxu0 0.0
    %7208 = vmatprep.subr.mxu0 0.0
    %7209 = vmatpush1.msra.mxu0 0.0
    %7210 = vmatprep.subr.mxu0 0.0
    %7211 = vmatpush1.msra.mxu0 0.0
    %7212 = vmatprep.subr.mxu0 0.0
    %7213 = vmatpush1.msra.mxu0 0.0
    %7214 = vmatprep.subr.mxu0 0.0
    %7215 = vmatpush1.msra.mxu0 0.0
    %7216 = vmatprep.subr.mxu0 0.0
    %7217 = vmatpush1.msra.mxu0 0.0
    %7218 = vmatprep.subr.mxu0 0.0
    %7219 = vmatpush1.msra.mxu0 0.0
    %7220 = vmatprep.subr.mxu0 0.0
    %7221 = vmatpush1.msra.mxu0 0.0
    %7222 = vmatprep.subr.mxu0 0.0
    %7223 = vmatpush1.msra.mxu0 0.0
    %7224 = vmatprep.subr.mxu0 0.0
    %7225 = vmatpush1.msra.mxu0 0.0
    %7226 = vmatprep.mubr.f32.mxu0 0.0
    %v7227 = vand.u32 %v6153, 4294901760
    %7228 = vmatmul.mubr.f32.gmra.mrb[0].mxu0 %v7227
    %v7229 = vpop.f32.mrb[0].mxu0
    %v7230 = vadd.f32 %v7149, %v7229
    %v7231 = vpop.f32.mrb[0].mxu0
    %7232 = vdwg.mxu0
    %7233 = vmatprep.subr.mxu0 0.0
    %v7234 = vand.u32 %v31, 4294901760
    %v7235 = vsub.f32 %v31, %v7234
    %7236 = vmatpush1.msra.mxu0 %v7235
    %7237 = vmatprep.subr.mxu0 0.0
    %v7238 = vand.u32 %v32, 4294901760
    %v7239 = vsub.f32 %v32, %v7238
    %7240 = vmatpush1.msra.mxu0 %v7239
    %7241 = vmatprep.subr.mxu0 0.0
    %7242 = vmatpush1.msra.mxu0 0.0
    %7243 = vmatprep.subr.mxu0 0.0
    %7244 = vmatpush1.msra.mxu0 0.0
    %7245 = vmatprep.subr.mxu0 0.0
    %7246 = vmatpush1.msra.mxu0 0.0
    %7247 = vmatprep.subr.mxu0 0.0
    %7248 = vmatpush1.msra.mxu0 0.0
    %7249 = vmatprep.subr.mxu0 0.0
    %7250 = vmatpush1.msra.mxu0 0.0
    %7251 = vmatprep.subr.mxu0 0.0
    %7252 = vmatpush1.msra.mxu0 0.0
    %7253 = vmatprep.subr.mxu0 0.0
    %7254 = vmatpush1.msra.mxu0 0.0
    %7255 = vmatprep.subr.mxu0 0.0
    %7256 = vmatpush1.msra.mxu0 0.0
    %7257 = vmatprep.subr.mxu0 0.0
    %7258 = vmatpush1.msra.mxu0 0.0
    %7259 = vmatprep.subr.mxu0 0.0
    %7260 = vmatpush1.msra.mxu0 0.0
    %7261 = vmatprep.subr.mxu0 0.0
    %7262 = vmatpush1.msra.mxu0 0.0
    %7263 = vmatprep.subr.mxu0 0.0
    %7264 = vmatpush1.msra.mxu0 0.0
    %7265 = vmatprep.subr.mxu0 0.0
    %7266 = vmatpush1.msra.mxu0 0.0
    %7267 = vmatprep.subr.mxu0 0.0
    %7268 = vmatpush1.msra.mxu0 0.0
    %7269 = vmatprep.subr.mxu0 0.0
    %7270 = vmatpush1.msra.mxu0 0.0
    %7271 = vmatprep.subr.mxu0 0.0
    %7272 = vmatpush1.msra.mxu0 0.0
    %7273 = vmatprep.subr.mxu0 0.0
    %7274 = vmatpush1.msra.mxu0 0.0
    %7275 = vmatprep.subr.mxu0 0.0
    %7276 = vmatpush1.msra.mxu0 0.0
    %7277 = vmatprep.subr.mxu0 0.0
    %7278 = vmatpush1.msra.mxu0 0.0
    %7279 = vmatprep.subr.mxu0 0.0
    %7280 = vmatpush1.msra.mxu0 0.0
    %7281 = vmatprep.subr.mxu0 0.0
    %7282 = vmatpush1.msra.mxu0 0.0
    %7283 = vmatprep.subr.mxu0 0.0
    %7284 = vmatpush1.msra.mxu0 0.0
    %7285 = vmatprep.subr.mxu0 0.0
    %7286 = vmatpush1.msra.mxu0 0.0
    %7287 = vmatprep.subr.mxu0 0.0
    %7288 = vmatpush1.msra.mxu0 0.0
    %7289 = vmatprep.subr.mxu0 0.0
    %7290 = vmatpush1.msra.mxu0 0.0
    %7291 = vmatprep.subr.mxu0 0.0
    %7292 = vmatpush1.msra.mxu0 0.0
    %7293 = vmatprep.subr.mxu0 0.0
    %7294 = vmatpush1.msra.mxu0 0.0
    %7295 = vmatprep.subr.mxu0 0.0
    %7296 = vmatpush1.msra.mxu0 0.0
    %7297 = vmatprep.subr.mxu0 0.0
    %7298 = vmatpush1.msra.mxu0 0.0
    %7299 = vmatprep.subr.mxu0 0.0
    %7300 = vmatpush1.msra.mxu0 0.0
    %7301 = vmatprep.mubr.f32.mxu0 0.0
    %v7302 = vand.u32 %v6153, 4294901760
    %v7303 = vsub.f32 %v6153, %v7302
    %7304 = vmatmul.mubr.f32.gmra.mrb[0].mxu0 %v7303
    %v7305 = vpop.f32.mrb[0].mxu0
    %v7306 = vadd.f32 %v7230, %v7305
    %v7307 = vpop.f32.mrb[0].mxu0
    %7308 = vdwg.mxu0
    %7309 = vmatprep.subr.mxu0 0.0
    %v7310 = vand.u32 %v31, 4294901760
    %7311 = vmatpush1.msra.mxu0 %v7310
    %7312 = vmatprep.subr.mxu0 0.0
    %v7313 = vand.u32 %v32, 4294901760
    %7314 = vmatpush1.msra.mxu0 %v7313
    %7315 = vmatprep.subr.mxu0 0.0
    %7316 = vmatpush1.msra.mxu0 0.0
    %7317 = vmatprep.subr.mxu0 0.0
    %7318 = vmatpush1.msra.mxu0 0.0
    %7319 = vmatprep.subr.mxu0 0.0
    %7320 = vmatpush1.msra.mxu0 0.0
    %7321 = vmatprep.subr.mxu0 0.0
    %7322 = vmatpush1.msra.mxu0 0.0
    %7323 = vmatprep.subr.mxu0 0.0
    %7324 = vmatpush1.msra.mxu0 0.0
    %7325 = vmatprep.subr.mxu0 0.0
    %7326 = vmatpush1.msra.mxu0 0.0
    %7327 = vmatprep.subr.mxu0 0.0
    %7328 = vmatpush1.msra.mxu0 0.0
    %7329 = vmatprep.subr.mxu0 0.0
    %7330 = vmatpush1.msra.mxu0 0.0
    %7331 = vmatprep.subr.mxu0 0.0
    %7332 = vmatpush1.msra.mxu0 0.0
    %7333 = vmatprep.subr.mxu0 0.0
    %7334 = vmatpush1.msra.mxu0 0.0
    %7335 = vmatprep.subr.mxu0 0.0
    %7336 = vmatpush1.msra.mxu0 0.0
    %7337 = vmatprep.subr.mxu0 0.0
    %7338 = vmatpush1.msra.mxu0 0.0
    %7339 = vmatprep.subr.mxu0 0.0
    %7340 = vmatpush1.msra.mxu0 0.0
    %7341 = vmatprep.subr.mxu0 0.0
    %7342 = vmatpush1.msra.mxu0 0.0
    %7343 = vmatprep.subr.mxu0 0.0
    %7344 = vmatpush1.msra.mxu0 0.0
    %7345 = vmatprep.subr.mxu0 0.0
    %7346 = vmatpush1.msra.mxu0 0.0
    %7347 = vmatprep.subr.mxu0 0.0
    %7348 = vmatpush1.msra.mxu0 0.0
    %7349 = vmatprep.subr.mxu0 0.0
    %7350 = vmatpush1.msra.mxu0 0.0
    %7351 = vmatprep.subr.mxu0 0.0
    %7352 = vmatpush1.msra.mxu0 0.0
    %7353 = vmatprep.subr.mxu0 0.0
    %7354 = vmatpush1.msra.mxu0 0.0
    %7355 = vmatprep.subr.mxu0 0.0
    %7356 = vmatpush1.msra.mxu0 0.0
    %7357 = vmatprep.subr.mxu0 0.0
    %7358 = vmatpush1.msra.mxu0 0.0
    %7359 = vmatprep.subr.mxu0 0.0
    %7360 = vmatpush1.msra.mxu0 0.0
    %7361 = vmatprep.subr.mxu0 0.0
    %7362 = vmatpush1.msra.mxu0 0.0
    %7363 = vmatprep.subr.mxu0 0.0
    %7364 = vmatpush1.msra.mxu0 0.0
    %7365 = vmatprep.subr.mxu0 0.0
    %7366 = vmatpush1.msra.mxu0 0.0
    %7367 = vmatprep.subr.mxu0 0.0
    %7368 = vmatpush1.msra.mxu0 0.0
    %7369 = vmatprep.subr.mxu0 0.0
    %7370 = vmatpush1.msra.mxu0 0.0
    %7371 = vmatprep.subr.mxu0 0.0
    %7372 = vmatpush1.msra.mxu0 0.0
    %7373 = vmatprep.subr.mxu0 0.0
    %7374 = vmatpush1.msra.mxu0 0.0
    %7375 = vmatprep.mubr.f32.mxu0 0.0
    %v7376 = vand.u32 %v6153, 4294901760
    %v7377 = vsub.f32 %v6153, %v7376
    %v7378 = vand.u32 %v7377, 4294901760
    %7379 = vmatmul.mubr.f32.gmra.mrb[0].mxu0 %v7378
    %v7380 = vpop.f32.mrb[0].mxu0
    %v7381 = vadd.f32 %v7306, %v7380
    %v7382 = vpop.f32.mrb[0].mxu0
    %7383 = vdwg.mxu0
    %7384 = vmatprep.subr.mxu0 0.0
    %v7385 = vand.u32 %v31, 4294901760
    %v7386 = vsub.f32 %v31, %v7385
    %v7387 = vand.u32 %v7386, 4294901760
    %7388 = vmatpush1.msra.mxu0 %v7387
    %7389 = vmatprep.subr.mxu0 0.0
    %v7390 = vand.u32 %v32, 4294901760
    %v7391 = vsub.f32 %v32, %v7390
    %v7392 = vand.u32 %v7391, 4294901760
    %7393 = vmatpush1.msra.mxu0 %v7392
    %7394 = vmatprep.subr.mxu0 0.0
    %7395 = vmatpush1.msra.mxu0 0.0
    %7396 = vmatprep.subr.mxu0 0.0
    %7397 = vmatpush1.msra.mxu0 0.0
    %7398 = vmatprep.subr.mxu0 0.0
    %7399 = vmatpush1.msra.mxu0 0.0
    %7400 = vmatprep.subr.mxu0 0.0
    %7401 = vmatpush1.msra.mxu0 0.0
    %7402 = vmatprep.subr.mxu0 0.0
    %7403 = vmatpush1.msra.mxu0 0.0
    %7404 = vmatprep.subr.mxu0 0.0
    %7405 = vmatpush1.msra.mxu0 0.0
    %7406 = vmatprep.subr.mxu0 0.0
    %7407 = vmatpush1.msra.mxu0 0.0
    %7408 = vmatprep.subr.mxu0 0.0
    %7409 = vmatpush1.msra.mxu0 0.0
    %7410 = vmatprep.subr.mxu0 0.0
    %7411 = vmatpush1.msra.mxu0 0.0
    %7412 = vmatprep.subr.mxu0 0.0
    %7413 = vmatpush1.msra.mxu0 0.0
    %7414 = vmatprep.subr.mxu0 0.0
    %7415 = vmatpush1.msra.mxu0 0.0
    %7416 = vmatprep.subr.mxu0 0.0
    %7417 = vmatpush1.msra.mxu0 0.0
    %7418 = vmatprep.subr.mxu0 0.0
    %7419 = vmatpush1.msra.mxu0 0.0
    %7420 = vmatprep.subr.mxu0 0.0
    %7421 = vmatpush1.msra.mxu0 0.0
    %7422 = vmatprep.subr.mxu0 0.0
    %7423 = vmatpush1.msra.mxu0 0.0
    %7424 = vmatprep.subr.mxu0 0.0
    %7425 = vmatpush1.msra.mxu0 0.0
    %7426 = vmatprep.subr.mxu0 0.0
    %7427 = vmatpush1.msra.mxu0 0.0
    %7428 = vmatprep.subr.mxu0 0.0
    %7429 = vmatpush1.msra.mxu0 0.0
    %7430 = vmatprep.subr.mxu0 0.0
    %7431 = vmatpush1.msra.mxu0 0.0
    %7432 = vmatprep.subr.mxu0 0.0
    %7433 = vmatpush1.msra.mxu0 0.0
    %7434 = vmatprep.subr.mxu0 0.0
    %7435 = vmatpush1.msra.mxu0 0.0
    %7436 = vmatprep.subr.mxu0 0.0
    %7437 = vmatpush1.msra.mxu0 0.0
    %7438 = vmatprep.subr.mxu0 0.0
    %7439 = vmatpush1.msra.mxu0 0.0
    %7440 = vmatprep.subr.mxu0 0.0
    %7441 = vmatpush1.msra.mxu0 0.0
    %7442 = vmatprep.subr.mxu0 0.0
    %7443 = vmatpush1.msra.mxu0 0.0
    %7444 = vmatprep.subr.mxu0 0.0
    %7445 = vmatpush1.msra.mxu0 0.0
    %7446 = vmatprep.subr.mxu0 0.0
    %7447 = vmatpush1.msra.mxu0 0.0
    %7448 = vmatprep.subr.mxu0 0.0
    %7449 = vmatpush1.msra.mxu0 0.0
    %7450 = vmatprep.subr.mxu0 0.0
    %7451 = vmatpush1.msra.mxu0 0.0
    %7452 = vmatprep.subr.mxu0 0.0
    %7453 = vmatpush1.msra.mxu0 0.0
    %7454 = vmatprep.mubr.f32.mxu0 0.0
    %v7455 = vand.u32 %v6153, 4294901760
    %7456 = vmatmul.mubr.f32.gmra.mrb[0].mxu0 %v7455
    %v7457 = vpop.f32.mrb[0].mxu0
    %v7458 = vadd.f32 %v7381, %v7457
    %v7459 = vpop.f32.mrb[0].mxu0
    %7460 = vdwg.mxu0
    %7461 = vmatprep.subr.mxu0 0.0
    %v7462 = vand.u32 %v31, 4294901760
    %7463 = vmatpush1.msra.mxu0 %v7462
    %7464 = vmatprep.subr.mxu0 0.0
    %v7465 = vand.u32 %v32, 4294901760
    %7466 = vmatpush1.msra.mxu0 %v7465
    %7467 = vmatprep.subr.mxu0 0.0
    %7468 = vmatpush1.msra.mxu0 0.0
    %7469 = vmatprep.subr.mxu0 0.0
    %7470 = vmatpush1.msra.mxu0 0.0
    %7471 = vmatprep.subr.mxu0 0.0
    %7472 = vmatpush1.msra.mxu0 0.0
    %7473 = vmatprep.subr.mxu0 0.0
    %7474 = vmatpush1.msra.mxu0 0.0
    %7475 = vmatprep.subr.mxu0 0.0
    %7476 = vmatpush1.msra.mxu0 0.0
    %7477 = vmatprep.subr.mxu0 0.0
    %7478 = vmatpush1.msra.mxu0 0.0
    %7479 = vmatprep.subr.mxu0 0.0
    %7480 = vmatpush1.msra.mxu0 0.0
    %7481 = vmatprep.subr.mxu0 0.0
    %7482 = vmatpush1.msra.mxu0 0.0
    %7483 = vmatprep.subr.mxu0 0.0
    %7484 = vmatpush1.msra.mxu0 0.0
    %7485 = vmatprep.subr.mxu0 0.0
    %7486 = vmatpush1.msra.mxu0 0.0
    %7487 = vmatprep.subr.mxu0 0.0
    %7488 = vmatpush1.msra.mxu0 0.0
    %7489 = vmatprep.subr.mxu0 0.0
    %7490 = vmatpush1.msra.mxu0 0.0
    %7491 = vmatprep.subr.mxu0 0.0
    %7492 = vmatpush1.msra.mxu0 0.0
    %7493 = vmatprep.subr.mxu0 0.0
    %7494 = vmatpush1.msra.mxu0 0.0
    %7495 = vmatprep.subr.mxu0 0.0
    %7496 = vmatpush1.msra.mxu0 0.0
    %7497 = vmatprep.subr.mxu0 0.0
    %7498 = vmatpush1.msra.mxu0 0.0
    %7499 = vmatprep.subr.mxu0 0.0
    %7500 = vmatpush1.msra.mxu0 0.0
    %7501 = vmatprep.subr.mxu0 0.0
    %7502 = vmatpush1.msra.mxu0 0.0
    %7503 = vmatprep.subr.mxu0 0.0
    %7504 = vmatpush1.msra.mxu0 0.0
    %7505 = vmatprep.subr.mxu0 0.0
    %7506 = vmatpush1.msra.mxu0 0.0
    %7507 = vmatprep.subr.mxu0 0.0
    %7508 = vmatpush1.msra.mxu0 0.0
    %7509 = vmatprep.subr.mxu0 0.0
    %7510 = vmatpush1.msra.mxu0 0.0
    %7511 = vmatprep.subr.mxu0 0.0
    %7512 = vmatpush1.msra.mxu0 0.0
    %7513 = vmatprep.subr.mxu0 0.0
    %7514 = vmatpush1.msra.mxu0 0.0
    %7515 = vmatprep.subr.mxu0 0.0
    %7516 = vmatpush1.msra.mxu0 0.0
    %7517 = vmatprep.subr.mxu0 0.0
    %7518 = vmatpush1.msra.mxu0 0.0
    %7519 = vmatprep.subr.mxu0 0.0
    %7520 = vmatpush1.msra.mxu0 0.0
    %7521 = vmatprep.subr.mxu0 0.0
    %7522 = vmatpush1.msra.mxu0 0.0
    %7523 = vmatprep.subr.mxu0 0.0
    %7524 = vmatpush1.msra.mxu0 0.0
    %7525 = vmatprep.subr.mxu0 0.0
    %7526 = vmatpush1.msra.mxu0 0.0
    %7527 = vmatprep.mubr.f32.mxu0 0.0
    %v7528 = vand.u32 %v6153, 4294901760
    %7529 = vmatmul.mubr.f32.gmra.mrb[0].mxu0 %v7528
    %v7530 = vpop.f32.mrb[0].mxu0
    %v7531 = vadd.f32 %v7458, %v7530
    %v7532 = vpop.f32.mrb[0].mxu0
    %7533 = vdwg.mxu0
    %v7534 = vmax.f32 %v7074, %v7531
    %v7535 = vsel %vm1028, %v7534, %v6611
    %v7537 = vcombine.high %v7535, %v7535
    %v7539 = vunpack.c.l.s4 1966171168
    %v7540 = vunpack.c.0.s8 %v7539
    %v7541 = vlaneseq
    %v7542 = vshrl.u32 %v7541, 7
    %v7543 = vsub.s32 %v7540, %v7542
    %v7544 = vrot.slane %v7535, %v7543
    %v7546 = vunpack.c.l.s4 1966171168
    %v7547 = vunpack.c.0.s8 %v7546
    %v7548 = vlaneseq
    %v7549 = vshrl.u32 %v7548, 7
    %v7550 = vsub.s32 %v7547, %v7549
    %v7551 = vrot.slane %v7537, %v7550
    %v7552 = vcombine.high %v7544, %v7544
    %v7553 = vcombine.high %v7551, %v7551
    %v7555 = vunpack.c.l.s4 1966171168
    %v7556 = vunpack.c.0.s8 %v7555
    %v7557 = vlaneseq
    %v7558 = vshrl.u32 %v7557, 7
    %v7559 = vsub.s32 %v7556, %v7558
    %v7560 = vrot.slane %v7544, %v7559
    %v7562 = vunpack.c.l.s4 1966171168
    %v7563 = vunpack.c.0.s8 %v7562
    %v7564 = vlaneseq
    %v7565 = vshrl.u32 %v7564, 7
    %v7566 = vsub.s32 %v7563, %v7565
    %v7567 = vrot.slane %v7551, %v7566
    %v7569 = vunpack.c.l.s4 1966171168
    %v7570 = vunpack.c.0.s8 %v7569
    %v7571 = vlaneseq
    %v7572 = vshrl.u32 %v7571, 7
    %v7573 = vsub.s32 %v7570, %v7572
    %v7574 = vrot.slane %v7552, %v7573
    %v7576 = vunpack.c.l.s4 1966171168
    %v7577 = vunpack.c.0.s8 %v7576
    %v7578 = vlaneseq
    %v7579 = vshrl.u32 %v7578, 7
    %v7580 = vsub.s32 %v7577, %v7579
    %v7581 = vrot.slane %v7553, %v7580
    %v7582 = vcombine.high %v7560, %v7560
    %v7583 = vcombine.high %v7567, %v7567
    %v7584 = vcombine.high %v7574, %v7574
    %v7585 = vcombine.high %v7581, %v7581
    %7594 = vst.msk [vmem:[%s2 + $0x4] sm:$0x1] %vm1549, %v7560
    %7595 = vst.msk [vmem:[%s2 + $0xc] sm:$0x1] %vm1549, %v7574
    %7596 = vst.msk [vmem:[%s2 + $0x14] sm:$0x1] %vm1549, %v7582
    %7597 = vst.msk [vmem:[%s2 + $0x1c] sm:$0x1] %vm1549, %v7584
    %7598 = vst.msk [vmem:[%s2 + $0x24] sm:$0x1] %vm1549, %v7567
    %7599 = vst.msk [vmem:[%s2 + $0x2c] sm:$0x1] %vm1549, %v7581
    %7600 = vst.msk [vmem:[%s2 + $0x34] sm:$0x1] %vm1549, %v7583
    %7601 = vst.msk [vmem:[%s2 + $0x3c] sm:$0x1] %vm1549, %v7585
    %v7602 = vld [vmem:[#allocation2 + $0xf] sm:$0x1]
    %v7603 = vld [vmem:[#allocation2 + $0x1f] sm:$0x1]
    %v7604 = vld [vmem:[#allocation2 + $0x2f] sm:$0x1]
    %v7605 = vld [vmem:[#allocation2 + $0x3f] sm:$0x1]
    %v7606 = vld [vmem:[#allocation2 + $0x4f] sm:$0x1]
    %v7607 = vld [vmem:[#allocation2 + $0x5f] sm:$0x1]
    %v7608 = vld [vmem:[#allocation2 + $0x6f] sm:$0x1]
    %v7609 = vld [vmem:[#allocation2 + $0x7f] sm:$0x1]
    %v7618 = vrot.slane %v7603, 7
    %v7619 = vsel %vm85, %v7618, %v7602
    %v7620 = vrot.slane %v7604, 6
    %v7621 = vsel %vm88, %v7620, %v7619
    %v7622 = vrot.slane %v7605, 5
    %v7623 = vsel %vm91, %v7622, %v7621
    %v7624 = vrot.slane %v7606, 4
    %v7625 = vsel %vm94, %v7624, %v7623
    %v7626 = vrot.slane %v7607, 3
    %v7627 = vsel %vm97, %v7626, %v7625
    %v7628 = vrot.slane %v7608, 2
    %v7629 = vsel %vm100, %v7628, %v7627
    %v7630 = vrot.slane %v7609, 1
    %v7631 = vsel %vm103, %v7630, %v7629
    %v7632 = vsel %vm105, %v7631, 0
    %7634 = vmatprep.subr.mxu0 0.0
    %v7635 = vand.u32 %v25, 4294901760
    %7636 = vmatpush1.msra.mxu0 %v7635
    %7637 = vmatprep.subr.mxu0 0.0
    %v7638 = vand.u32 %v26, 4294901760
    %7639 = vmatpush1.msra.mxu0 %v7638
    %7640 = vmatprep.subr.mxu0 0.0
    %7641 = vmatpush1.msra.mxu0 0.0
    %7642 = vmatprep.subr.mxu0 0.0
    %7643 = vmatpush1.msra.mxu0 0.0
    %7644 = vmatprep.subr.mxu0 0.0
    %7645 = vmatpush1.msra.mxu0 0.0
    %7646 = vmatprep.subr.mxu0 0.0
    %7647 = vmatpush1.msra.mxu0 0.0
    %7648 = vmatprep.subr.mxu0 0.0
    %7649 = vmatpush1.msra.mxu0 0.0
    %7650 = vmatprep.subr.mxu0 0.0
    %7651 = vmatpush1.msra.mxu0 0.0
    %7652 = vmatprep.subr.mxu0 0.0
    %7653 = vmatpush1.msra.mxu0 0.0
    %7654 = vmatprep.subr.mxu0 0.0
    %7655 = vmatpush1.msra.mxu0 0.0
    %7656 = vmatprep.subr.mxu0 0.0
    %7657 = vmatpush1.msra.mxu0 0.0
    %7658 = vmatprep.subr.mxu0 0.0
    %7659 = vmatpush1.msra.mxu0 0.0
    %7660 = vmatprep.subr.mxu0 0.0
    %7661 = vmatpush1.msra.mxu0 0.0
    %7662 = vmatprep.subr.mxu0 0.0
    %7663 = vmatpush1.msra.mxu0 0.0
    %7664 = vmatprep.subr.mxu0 0.0
    %7665 = vmatpush1.msra.mxu0 0.0
    %7666 = vmatprep.subr.mxu0 0.0
    %7667 = vmatpush1.msra.mxu0 0.0
    %7668 = vmatprep.subr.mxu0 0.0
    %7669 = vmatpush1.msra.mxu0 0.0
    %7670 = vmatprep.subr.mxu0 0.0
    %7671 = vmatpush1.msra.mxu0 0.0
    %7672 = vmatprep.subr.mxu0 0.0
    %7673 = vmatpush1.msra.mxu0 0.0
    %7674 = vmatprep.subr.mxu0 0.0
    %7675 = vmatpush1.msra.mxu0 0.0
    %7676 = vmatprep.subr.mxu0 0.0
    %7677 = vmatpush1.msra.mxu0 0.0
    %7678 = vmatprep.subr.mxu0 0.0
    %7679 = vmatpush1.msra.mxu0 0.0
    %7680 = vmatprep.subr.mxu0 0.0
    %7681 = vmatpush1.msra.mxu0 0.0
    %7682 = vmatprep.subr.mxu0 0.0
    %7683 = vmatpush1.msra.mxu0 0.0
    %7684 = vmatprep.subr.mxu0 0.0
    %7685 = vmatpush1.msra.mxu0 0.0
    %7686 = vmatprep.subr.mxu0 0.0
    %7687 = vmatpush1.msra.mxu0 0.0
    %7688 = vmatprep.subr.mxu0 0.0
    %7689 = vmatpush1.msra.mxu0 0.0
    %7690 = vmatprep.subr.mxu0 0.0
    %7691 = vmatpush1.msra.mxu0 0.0
    %7692 = vmatprep.subr.mxu0 0.0
    %7693 = vmatpush1.msra.mxu0 0.0
    %7694 = vmatprep.subr.mxu0 0.0
    %7695 = vmatpush1.msra.mxu0 0.0
    %7696 = vmatprep.subr.mxu0 0.0
    %7697 = vmatpush1.msra.mxu0 0.0
    %7698 = vmatprep.subr.mxu0 0.0
    %7699 = vmatpush1.msra.mxu0 0.0
    %7700 = vmatprep.mubr.f32.mxu0 0.0
    %v7701 = vand.u32 %v7632, 4294901760
    %v7702 = vsub.f32 %v7632, %v7701
    %v7703 = vand.u32 %v7702, 4294901760
    %v7704 = vsub.f32 %v7702, %v7703
    %v7705 = vand.u32 %v7704, 4294901760
    %7706 = vmatmul.mubr.f32.gmra.mrb[0].mxu0 %v7705
    %v7707 = vpop.f32.mrb[0].mxu0
    %v7708 = vadd.f32 0.0, %v7707
    %v7709 = vpop.f32.mrb[0].mxu0
    %7710 = vdwg.mxu0
    %7711 = vmatprep.subr.mxu0 0.0
    %v7712 = vand.u32 %v25, 4294901760
    %v7713 = vsub.f32 %v25, %v7712
    %v7714 = vand.u32 %v7713, 4294901760
    %v7715 = vsub.f32 %v7713, %v7714
    %v7716 = vand.u32 %v7715, 4294901760
    %7717 = vmatpush1.msra.mxu0 %v7716
    %7718 = vmatprep.subr.mxu0 0.0
    %v7719 = vand.u32 %v26, 4294901760
    %v7720 = vsub.f32 %v26, %v7719
    %v7721 = vand.u32 %v7720, 4294901760
    %v7722 = vsub.f32 %v7720, %v7721
    %v7723 = vand.u32 %v7722, 4294901760
    %7724 = vmatpush1.msra.mxu0 %v7723
    %7725 = vmatprep.subr.mxu0 0.0
    %7726 = vmatpush1.msra.mxu0 0.0
    %7727 = vmatprep.subr.mxu0 0.0
    %7728 = vmatpush1.msra.mxu0 0.0
    %7729 = vmatprep.subr.mxu0 0.0
    %7730 = vmatpush1.msra.mxu0 0.0
    %7731 = vmatprep.subr.mxu0 0.0
    %7732 = vmatpush1.msra.mxu0 0.0
    %7733 = vmatprep.subr.mxu0 0.0
    %7734 = vmatpush1.msra.mxu0 0.0
    %7735 = vmatprep.subr.mxu0 0.0
    %7736 = vmatpush1.msra.mxu0 0.0
    %7737 = vmatprep.subr.mxu0 0.0
    %7738 = vmatpush1.msra.mxu0 0.0
    %7739 = vmatprep.subr.mxu0 0.0
    %7740 = vmatpush1.msra.mxu0 0.0
    %7741 = vmatprep.subr.mxu0 0.0
    %7742 = vmatpush1.msra.mxu0 0.0
    %7743 = vmatprep.subr.mxu0 0.0
    %7744 = vmatpush1.msra.mxu0 0.0
    %7745 = vmatprep.subr.mxu0 0.0
    %7746 = vmatpush1.msra.mxu0 0.0
    %7747 = vmatprep.subr.mxu0 0.0
    %7748 = vmatpush1.msra.mxu0 0.0
    %7749 = vmatprep.subr.mxu0 0.0
    %7750 = vmatpush1.msra.mxu0 0.0
    %7751 = vmatprep.subr.mxu0 0.0
    %7752 = vmatpush1.msra.mxu0 0.0
    %7753 = vmatprep.subr.mxu0 0.0
    %7754 = vmatpush1.msra.mxu0 0.0
    %7755 = vmatprep.subr.mxu0 0.0
    %7756 = vmatpush1.msra.mxu0 0.0
    %7757 = vmatprep.subr.mxu0 0.0
    %7758 = vmatpush1.msra.mxu0 0.0
    %7759 = vmatprep.subr.mxu0 0.0
    %7760 = vmatpush1.msra.mxu0 0.0
    %7761 = vmatprep.subr.mxu0 0.0
    %7762 = vmatpush1.msra.mxu0 0.0
    %7763 = vmatprep.subr.mxu0 0.0
    %7764 = vmatpush1.msra.mxu0 0.0
    %7765 = vmatprep.subr.mxu0 0.0
    %7766 = vmatpush1.msra.mxu0 0.0
    %7767 = vmatprep.subr.mxu0 0.0
    %7768 = vmatpush1.msra.mxu0 0.0
    %7769 = vmatprep.subr.mxu0 0.0
    %7770 = vmatpush1.msra.mxu0 0.0
    %7771 = vmatprep.subr.mxu0 0.0
    %7772 = vmatpush1.msra.mxu0 0.0
    %7773 = vmatprep.subr.mxu0 0.0
    %7774 = vmatpush1.msra.mxu0 0.0
    %7775 = vmatprep.subr.mxu0 0.0
    %7776 = vmatpush1.msra.mxu0 0.0
    %7777 = vmatprep.subr.mxu0 0.0
    %7778 = vmatpush1.msra.mxu0 0.0
    %7779 = vmatprep.subr.mxu0 0.0
    %7780 = vmatpush1.msra.mxu0 0.0
    %7781 = vmatprep.subr.mxu0 0.0
    %7782 = vmatpush1.msra.mxu0 0.0
    %7783 = vmatprep.subr.mxu0 0.0
    %7784 = vmatpush1.msra.mxu0 0.0
    %7785 = vmatprep.mubr.f32.mxu0 0.0
    %v7786 = vand.u32 %v7632, 4294901760
    %7787 = vmatmul.mubr.f32.gmra.mrb[0].mxu0 %v7786
    %v7788 = vpop.f32.mrb[0].mxu0
    %v7789 = vadd.f32 %v7708, %v7788
    %v7790 = vpop.f32.mrb[0].mxu0
    %7791 = vdwg.mxu0
    %7792 = vmatprep.subr.mxu0 0.0
    %v7793 = vand.u32 %v25, 4294901760
    %v7794 = vsub.f32 %v25, %v7793
    %7795 = vmatpush1.msra.mxu0 %v7794
    %7796 = vmatprep.subr.mxu0 0.0
    %v7797 = vand.u32 %v26, 4294901760
    %v7798 = vsub.f32 %v26, %v7797
    %7799 = vmatpush1.msra.mxu0 %v7798
    %7800 = vmatprep.subr.mxu0 0.0
    %7801 = vmatpush1.msra.mxu0 0.0
    %7802 = vmatprep.subr.mxu0 0.0
    %7803 = vmatpush1.msra.mxu0 0.0
    %7804 = vmatprep.subr.mxu0 0.0
    %7805 = vmatpush1.msra.mxu0 0.0
    %7806 = vmatprep.subr.mxu0 0.0
    %7807 = vmatpush1.msra.mxu0 0.0
    %7808 = vmatprep.subr.mxu0 0.0
    %7809 = vmatpush1.msra.mxu0 0.0
    %7810 = vmatprep.subr.mxu0 0.0
    %7811 = vmatpush1.msra.mxu0 0.0
    %7812 = vmatprep.subr.mxu0 0.0
    %7813 = vmatpush1.msra.mxu0 0.0
    %7814 = vmatprep.subr.mxu0 0.0
    %7815 = vmatpush1.msra.mxu0 0.0
    %7816 = vmatprep.subr.mxu0 0.0
    %7817 = vmatpush1.msra.mxu0 0.0
    %7818 = vmatprep.subr.mxu0 0.0
    %7819 = vmatpush1.msra.mxu0 0.0
    %7820 = vmatprep.subr.mxu0 0.0
    %7821 = vmatpush1.msra.mxu0 0.0
    %7822 = vmatprep.subr.mxu0 0.0
    %7823 = vmatpush1.msra.mxu0 0.0
    %7824 = vmatprep.subr.mxu0 0.0
    %7825 = vmatpush1.msra.mxu0 0.0
    %7826 = vmatprep.subr.mxu0 0.0
    %7827 = vmatpush1.msra.mxu0 0.0
    %7828 = vmatprep.subr.mxu0 0.0
    %7829 = vmatpush1.msra.mxu0 0.0
    %7830 = vmatprep.subr.mxu0 0.0
    %7831 = vmatpush1.msra.mxu0 0.0
    %7832 = vmatprep.subr.mxu0 0.0
    %7833 = vmatpush1.msra.mxu0 0.0
    %7834 = vmatprep.subr.mxu0 0.0
    %7835 = vmatpush1.msra.mxu0 0.0
    %7836 = vmatprep.subr.mxu0 0.0
    %7837 = vmatpush1.msra.mxu0 0.0
    %7838 = vmatprep.subr.mxu0 0.0
    %7839 = vmatpush1.msra.mxu0 0.0
    %7840 = vmatprep.subr.mxu0 0.0
    %7841 = vmatpush1.msra.mxu0 0.0
    %7842 = vmatprep.subr.mxu0 0.0
    %7843 = vmatpush1.msra.mxu0 0.0
    %7844 = vmatprep.subr.mxu0 0.0
    %7845 = vmatpush1.msra.mxu0 0.0
    %7846 = vmatprep.subr.mxu0 0.0
    %7847 = vmatpush1.msra.mxu0 0.0
    %7848 = vmatprep.subr.mxu0 0.0
    %7849 = vmatpush1.msra.mxu0 0.0
    %7850 = vmatprep.subr.mxu0 0.0
    %7851 = vmatpush1.msra.mxu0 0.0
    %7852 = vmatprep.subr.mxu0 0.0
    %7853 = vmatpush1.msra.mxu0 0.0
    %7854 = vmatprep.subr.mxu0 0.0
    %7855 = vmatpush1.msra.mxu0 0.0
    %7856 = vmatprep.subr.mxu0 0.0
    %7857 = vmatpush1.msra.mxu0 0.0
    %7858 = vmatprep.subr.mxu0 0.0
    %7859 = vmatpush1.msra.mxu0 0.0
    %7860 = vmatprep.mubr.f32.mxu0 0.0
    %v7861 = vand.u32 %v7632, 4294901760
    %v7862 = vsub.f32 %v7632, %v7861
    %7863 = vmatmul.mubr.f32.gmra.mrb[0].mxu0 %v7862
    %v7864 = vpop.f32.mrb[0].mxu0
    %v7865 = vadd.f32 %v7789, %v7864
    %v7866 = vpop.f32.mrb[0].mxu0
    %7867 = vdwg.mxu0
    %7868 = vmatprep.subr.mxu0 0.0
    %v7869 = vand.u32 %v25, 4294901760
    %7870 = vmatpush1.msra.mxu0 %v7869
    %7871 = vmatprep.subr.mxu0 0.0
    %v7872 = vand.u32 %v26, 4294901760
    %7873 = vmatpush1.msra.mxu0 %v7872
    %7874 = vmatprep.subr.mxu0 0.0
    %7875 = vmatpush1.msra.mxu0 0.0
    %7876 = vmatprep.subr.mxu0 0.0
    %7877 = vmatpush1.msra.mxu0 0.0
    %7878 = vmatprep.subr.mxu0 0.0
    %7879 = vmatpush1.msra.mxu0 0.0
    %7880 = vmatprep.subr.mxu0 0.0
    %7881 = vmatpush1.msra.mxu0 0.0
    %7882 = vmatprep.subr.mxu0 0.0
    %7883 = vmatpush1.msra.mxu0 0.0
    %7884 = vmatprep.subr.mxu0 0.0
    %7885 = vmatpush1.msra.mxu0 0.0
    %7886 = vmatprep.subr.mxu0 0.0
    %7887 = vmatpush1.msra.mxu0 0.0
    %7888 = vmatprep.subr.mxu0 0.0
    %7889 = vmatpush1.msra.mxu0 0.0
    %7890 = vmatprep.subr.mxu0 0.0
    %7891 = vmatpush1.msra.mxu0 0.0
    %7892 = vmatprep.subr.mxu0 0.0
    %7893 = vmatpush1.msra.mxu0 0.0
    %7894 = vmatprep.subr.mxu0 0.0
    %7895 = vmatpush1.msra.mxu0 0.0
    %7896 = vmatprep.subr.mxu0 0.0
    %7897 = vmatpush1.msra.mxu0 0.0
    %7898 = vmatprep.subr.mxu0 0.0
    %7899 = vmatpush1.msra.mxu0 0.0
    %7900 = vmatprep.subr.mxu0 0.0
    %7901 = vmatpush1.msra.mxu0 0.0
    %7902 = vmatprep.subr.mxu0 0.0
    %7903 = vmatpush1.msra.mxu0 0.0
    %7904 = vmatprep.subr.mxu0 0.0
    %7905 = vmatpush1.msra.mxu0 0.0
    %7906 = vmatprep.subr.mxu0 0.0
    %7907 = vmatpush1.msra.mxu0 0.0
    %7908 = vmatprep.subr.mxu0 0.0
    %7909 = vmatpush1.msra.mxu0 0.0
    %7910 = vmatprep.subr.mxu0 0.0
    %7911 = vmatpush1.msra.mxu0 0.0
    %7912 = vmatprep.subr.mxu0 0.0
    %7913 = vmatpush1.msra.mxu0 0.0
    %7914 = vmatprep.subr.mxu0 0.0
    %7915 = vmatpush1.msra.mxu0 0.0
    %7916 = vmatprep.subr.mxu0 0.0
    %7917 = vmatpush1.msra.mxu0 0.0
    %7918 = vmatprep.subr.mxu0 0.0
    %7919 = vmatpush1.msra.mxu0 0.0
    %7920 = vmatprep.subr.mxu0 0.0
    %7921 = vmatpush1.msra.mxu0 0.0
    %7922 = vmatprep.subr.mxu0 0.0
    %7923 = vmatpush1.msra.mxu0 0.0
    %7924 = vmatprep.subr.mxu0 0.0
    %7925 = vmatpush1.msra.mxu0 0.0
    %7926 = vmatprep.subr.mxu0 0.0
    %7927 = vmatpush1.msra.mxu0 0.0
    %7928 = vmatprep.subr.mxu0 0.0
    %7929 = vmatpush1.msra.mxu0 0.0
    %7930 = vmatprep.subr.mxu0 0.0
    %7931 = vmatpush1.msra.mxu0 0.0
    %7932 = vmatprep.subr.mxu0 0.0
    %7933 = vmatpush1.msra.mxu0 0.0
    %7934 = vmatprep.mubr.f32.mxu0 0.0
    %v7935 = vand.u32 %v7632, 4294901760
    %v7936 = vsub.f32 %v7632, %v7935
    %v7937 = vand.u32 %v7936, 4294901760
    %7938 = vmatmul.mubr.f32.gmra.mrb[0].mxu0 %v7937
    %v7939 = vpop.f32.mrb[0].mxu0
    %v7940 = vadd.f32 %v7865, %v7939
    %v7941 = vpop.f32.mrb[0].mxu0
    %7942 = vdwg.mxu0
    %7943 = vmatprep.subr.mxu0 0.0
    %v7944 = vand.u32 %v25, 4294901760
    %v7945 = vsub.f32 %v25, %v7944
    %v7946 = vand.u32 %v7945, 4294901760
    %7947 = vmatpush1.msra.mxu0 %v7946
    %7948 = vmatprep.subr.mxu0 0.0
    %v7949 = vand.u32 %v26, 4294901760
    %v7950 = vsub.f32 %v26, %v7949
    %v7951 = vand.u32 %v7950, 4294901760
    %7952 = vmatpush1.msra.mxu0 %v7951
    %7953 = vmatprep.subr.mxu0 0.0
    %7954 = vmatpush1.msra.mxu0 0.0
    %7955 = vmatprep.subr.mxu0 0.0
    %7956 = vmatpush1.msra.mxu0 0.0
    %7957 = vmatprep.subr.mxu0 0.0
    %7958 = vmatpush1.msra.mxu0 0.0
    %7959 = vmatprep.subr.mxu0 0.0
    %7960 = vmatpush1.msra.mxu0 0.0
    %7961 = vmatprep.subr.mxu0 0.0
    %7962 = vmatpush1.msra.mxu0 0.0
    %7963 = vmatprep.subr.mxu0 0.0
    %7964 = vmatpush1.msra.mxu0 0.0
    %7965 = vmatprep.subr.mxu0 0.0
    %7966 = vmatpush1.msra.mxu0 0.0
    %7967 = vmatprep.subr.mxu0 0.0
    %7968 = vmatpush1.msra.mxu0 0.0
    %7969 = vmatprep.subr.mxu0 0.0
    %7970 = vmatpush1.msra.mxu0 0.0
    %7971 = vmatprep.subr.mxu0 0.0
    %7972 = vmatpush1.msra.mxu0 0.0
    %7973 = vmatprep.subr.mxu0 0.0
    %7974 = vmatpush1.msra.mxu0 0.0
    %7975 = vmatprep.subr.mxu0 0.0
    %7976 = vmatpush1.msra.mxu0 0.0
    %7977 = vmatprep.subr.mxu0 0.0
    %7978 = vmatpush1.msra.mxu0 0.0
    %7979 = vmatprep.subr.mxu0 0.0
    %7980 = vmatpush1.msra.mxu0 0.0
    %7981 = vmatprep.subr.mxu0 0.0
    %7982 = vmatpush1.msra.mxu0 0.0
    %7983 = vmatprep.subr.mxu0 0.0
    %7984 = vmatpush1.msra.mxu0 0.0
    %7985 = vmatprep.subr.mxu0 0.0
    %7986 = vmatpush1.msra.mxu0 0.0
    %7987 = vmatprep.subr.mxu0 0.0
    %7988 = vmatpush1.msra.mxu0 0.0
    %7989 = vmatprep.subr.mxu0 0.0
    %7990 = vmatpush1.msra.mxu0 0.0
    %7991 = vmatprep.subr.mxu0 0.0
    %7992 = vmatpush1.msra.mxu0 0.0
    %7993 = vmatprep.subr.mxu0 0.0
    %7994 = vmatpush1.msra.mxu0 0.0
    %7995 = vmatprep.subr.mxu0 0.0
    %7996 = vmatpush1.msra.mxu0 0.0
    %7997 = vmatprep.subr.mxu0 0.0
    %7998 = vmatpush1.msra.mxu0 0.0
    %7999 = vmatprep.subr.mxu0 0.0
    %8000 = vmatpush1.msra.mxu0 0.0
    %8001 = vmatprep.subr.mxu0 0.0
    %8002 = vmatpush1.msra.mxu0 0.0
    %8003 = vmatprep.subr.mxu0 0.0
    %8004 = vmatpush1.msra.mxu0 0.0
    %8005 = vmatprep.subr.mxu0 0.0
    %8006 = vmatpush1.msra.mxu0 0.0
    %8007 = vmatprep.subr.mxu0 0.0
    %8008 = vmatpush1.msra.mxu0 0.0
    %8009 = vmatprep.subr.mxu0 0.0
    %8010 = vmatpush1.msra.mxu0 0.0
    %8011 = vmatprep.subr.mxu0 0.0
    %8012 = vmatpush1.msra.mxu0 0.0
    %8013 = vmatprep.mubr.f32.mxu0 0.0
    %v8014 = vand.u32 %v7632, 4294901760
    %8015 = vmatmul.mubr.f32.gmra.mrb[0].mxu0 %v8014
    %v8016 = vpop.f32.mrb[0].mxu0
    %v8017 = vadd.f32 %v7940, %v8016
    %v8018 = vpop.f32.mrb[0].mxu0
    %8019 = vdwg.mxu0
    %8020 = vmatprep.subr.mxu0 0.0
    %v8021 = vand.u32 %v25, 4294901760
    %8022 = vmatpush1.msra.mxu0 %v8021
    %8023 = vmatprep.subr.mxu0 0.0
    %v8024 = vand.u32 %v26, 4294901760
    %8025 = vmatpush1.msra.mxu0 %v8024
    %8026 = vmatprep.subr.mxu0 0.0
    %8027 = vmatpush1.msra.mxu0 0.0
    %8028 = vmatprep.subr.mxu0 0.0
    %8029 = vmatpush1.msra.mxu0 0.0
    %8030 = vmatprep.subr.mxu0 0.0
    %8031 = vmatpush1.msra.mxu0 0.0
    %8032 = vmatprep.subr.mxu0 0.0
    %8033 = vmatpush1.msra.mxu0 0.0
    %8034 = vmatprep.subr.mxu0 0.0
    %8035 = vmatpush1.msra.mxu0 0.0
    %8036 = vmatprep.subr.mxu0 0.0
    %8037 = vmatpush1.msra.mxu0 0.0
    %8038 = vmatprep.subr.mxu0 0.0
    %8039 = vmatpush1.msra.mxu0 0.0
    %8040 = vmatprep.subr.mxu0 0.0
    %8041 = vmatpush1.msra.mxu0 0.0
    %8042 = vmatprep.subr.mxu0 0.0
    %8043 = vmatpush1.msra.mxu0 0.0
    %8044 = vmatprep.subr.mxu0 0.0
    %8045 = vmatpush1.msra.mxu0 0.0
    %8046 = vmatprep.subr.mxu0 0.0
    %8047 = vmatpush1.msra.mxu0 0.0
    %8048 = vmatprep.subr.mxu0 0.0
    %8049 = vmatpush1.msra.mxu0 0.0
    %8050 = vmatprep.subr.mxu0 0.0
    %8051 = vmatpush1.msra.mxu0 0.0
    %8052 = vmatprep.subr.mxu0 0.0
    %8053 = vmatpush1.msra.mxu0 0.0
    %8054 = vmatprep.subr.mxu0 0.0
    %8055 = vmatpush1.msra.mxu0 0.0
    %8056 = vmatprep.subr.mxu0 0.0
    %8057 = vmatpush1.msra.mxu0 0.0
    %8058 = vmatprep.subr.mxu0 0.0
    %8059 = vmatpush1.msra.mxu0 0.0
    %8060 = vmatprep.subr.mxu0 0.0
    %8061 = vmatpush1.msra.mxu0 0.0
    %8062 = vmatprep.subr.mxu0 0.0
    %8063 = vmatpush1.msra.mxu0 0.0
    %8064 = vmatprep.subr.mxu0 0.0
    %8065 = vmatpush1.msra.mxu0 0.0
    %8066 = vmatprep.subr.mxu0 0.0
    %8067 = vmatpush1.msra.mxu0 0.0
    %8068 = vmatprep.subr.mxu0 0.0
    %8069 = vmatpush1.msra.mxu0 0.0
    %8070 = vmatprep.subr.mxu0 0.0
    %8071 = vmatpush1.msra.mxu0 0.0
    %8072 = vmatprep.subr.mxu0 0.0
    %8073 = vmatpush1.msra.mxu0 0.0
    %8074 = vmatprep.subr.mxu0 0.0
    %8075 = vmatpush1.msra.mxu0 0.0
    %8076 = vmatprep.subr.mxu0 0.0
    %8077 = vmatpush1.msra.mxu0 0.0
    %8078 = vmatprep.subr.mxu0 0.0
    %8079 = vmatpush1.msra.mxu0 0.0
    %8080 = vmatprep.subr.mxu0 0.0
    %8081 = vmatpush1.msra.mxu0 0.0
    %8082 = vmatprep.subr.mxu0 0.0
    %8083 = vmatpush1.msra.mxu0 0.0
    %8084 = vmatprep.subr.mxu0 0.0
    %8085 = vmatpush1.msra.mxu0 0.0
    %8086 = vmatprep.mubr.f32.mxu0 0.0
    %v8087 = vand.u32 %v7632, 4294901760
    %8088 = vmatmul.mubr.f32.gmra.mrb[0].mxu0 %v8087
    %v8089 = vpop.f32.mrb[0].mxu0
    %v8090 = vadd.f32 %v8017, %v8089
    %v8091 = vpop.f32.mrb[0].mxu0
    %8092 = vdwg.mxu0
    %8093 = vmatprep.subr.mxu0 0.0
    %v8094 = vand.u32 %v28, 4294901760
    %8095 = vmatpush1.msra.mxu0 %v8094
    %8096 = vmatprep.subr.mxu0 0.0
    %v8097 = vand.u32 %v29, 4294901760
    %8098 = vmatpush1.msra.mxu0 %v8097
    %8099 = vmatprep.subr.mxu0 0.0
    %8100 = vmatpush1.msra.mxu0 0.0
    %8101 = vmatprep.subr.mxu0 0.0
    %8102 = vmatpush1.msra.mxu0 0.0
    %8103 = vmatprep.subr.mxu0 0.0
    %8104 = vmatpush1.msra.mxu0 0.0
    %8105 = vmatprep.subr.mxu0 0.0
    %8106 = vmatpush1.msra.mxu0 0.0
    %8107 = vmatprep.subr.mxu0 0.0
    %8108 = vmatpush1.msra.mxu0 0.0
    %8109 = vmatprep.subr.mxu0 0.0
    %8110 = vmatpush1.msra.mxu0 0.0
    %8111 = vmatprep.subr.mxu0 0.0
    %8112 = vmatpush1.msra.mxu0 0.0
    %8113 = vmatprep.subr.mxu0 0.0
    %8114 = vmatpush1.msra.mxu0 0.0
    %8115 = vmatprep.subr.mxu0 0.0
    %8116 = vmatpush1.msra.mxu0 0.0
    %8117 = vmatprep.subr.mxu0 0.0
    %8118 = vmatpush1.msra.mxu0 0.0
    %8119 = vmatprep.subr.mxu0 0.0
    %8120 = vmatpush1.msra.mxu0 0.0
    %8121 = vmatprep.subr.mxu0 0.0
    %8122 = vmatpush1.msra.mxu0 0.0
    %8123 = vmatprep.subr.mxu0 0.0
    %8124 = vmatpush1.msra.mxu0 0.0
    %8125 = vmatprep.subr.mxu0 0.0
    %8126 = vmatpush1.msra.mxu0 0.0
    %8127 = vmatprep.subr.mxu0 0.0
    %8128 = vmatpush1.msra.mxu0 0.0
    %8129 = vmatprep.subr.mxu0 0.0
    %8130 = vmatpush1.msra.mxu0 0.0
    %8131 = vmatprep.subr.mxu0 0.0
    %8132 = vmatpush1.msra.mxu0 0.0
    %8133 = vmatprep.subr.mxu0 0.0
    %8134 = vmatpush1.msra.mxu0 0.0
    %8135 = vmatprep.subr.mxu0 0.0
    %8136 = vmatpush1.msra.mxu0 0.0
    %8137 = vmatprep.subr.mxu0 0.0
    %8138 = vmatpush1.msra.mxu0 0.0
    %8139 = vmatprep.subr.mxu0 0.0
    %8140 = vmatpush1.msra.mxu0 0.0
    %8141 = vmatprep.subr.mxu0 0.0
    %8142 = vmatpush1.msra.mxu0 0.0
    %8143 = vmatprep.subr.mxu0 0.0
    %8144 = vmatpush1.msra.mxu0 0.0
    %8145 = vmatprep.subr.mxu0 0.0
    %8146 = vmatpush1.msra.mxu0 0.0
    %8147 = vmatprep.subr.mxu0 0.0
    %8148 = vmatpush1.msra.mxu0 0.0
    %8149 = vmatprep.subr.mxu0 0.0
    %8150 = vmatpush1.msra.mxu0 0.0
    %8151 = vmatprep.subr.mxu0 0.0
    %8152 = vmatpush1.msra.mxu0 0.0
    %8153 = vmatprep.subr.mxu0 0.0
    %8154 = vmatpush1.msra.mxu0 0.0
    %8155 = vmatprep.subr.mxu0 0.0
    %8156 = vmatpush1.msra.mxu0 0.0
    %8157 = vmatprep.subr.mxu0 0.0
    %8158 = vmatpush1.msra.mxu0 0.0
    %8159 = vmatprep.mubr.f32.mxu0 0.0
    %v8160 = vand.u32 %v7632, 4294901760
    %v8161 = vsub.f32 %v7632, %v8160
    %v8162 = vand.u32 %v8161, 4294901760
    %v8163 = vsub.f32 %v8161, %v8162
    %v8164 = vand.u32 %v8163, 4294901760
    %8165 = vmatmul.mubr.f32.gmra.mrb[0].mxu0 %v8164
    %v8166 = vpop.f32.mrb[0].mxu0
    %v8167 = vadd.f32 0.0, %v8166
    %v8168 = vpop.f32.mrb[0].mxu0
    %8169 = vdwg.mxu0
    %8170 = vmatprep.subr.mxu0 0.0
    %v8171 = vand.u32 %v28, 4294901760
    %v8172 = vsub.f32 %v28, %v8171
    %v8173 = vand.u32 %v8172, 4294901760
    %v8174 = vsub.f32 %v8172, %v8173
    %v8175 = vand.u32 %v8174, 4294901760
    %8176 = vmatpush1.msra.mxu0 %v8175
    %8177 = vmatprep.subr.mxu0 0.0
    %v8178 = vand.u32 %v29, 4294901760
    %v8179 = vsub.f32 %v29, %v8178
    %v8180 = vand.u32 %v8179, 4294901760
    %v8181 = vsub.f32 %v8179, %v8180
    %v8182 = vand.u32 %v8181, 4294901760
    %8183 = vmatpush1.msra.mxu0 %v8182
    %8184 = vmatprep.subr.mxu0 0.0
    %8185 = vmatpush1.msra.mxu0 0.0
    %8186 = vmatprep.subr.mxu0 0.0
    %8187 = vmatpush1.msra.mxu0 0.0
    %8188 = vmatprep.subr.mxu0 0.0
    %8189 = vmatpush1.msra.mxu0 0.0
    %8190 = vmatprep.subr.mxu0 0.0
    %8191 = vmatpush1.msra.mxu0 0.0
    %8192 = vmatprep.subr.mxu0 0.0
    %8193 = vmatpush1.msra.mxu0 0.0
    %8194 = vmatprep.subr.mxu0 0.0
    %8195 = vmatpush1.msra.mxu0 0.0
    %8196 = vmatprep.subr.mxu0 0.0
    %8197 = vmatpush1.msra.mxu0 0.0
    %8198 = vmatprep.subr.mxu0 0.0
    %8199 = vmatpush1.msra.mxu0 0.0
    %8200 = vmatprep.subr.mxu0 0.0
    %8201 = vmatpush1.msra.mxu0 0.0
    %8202 = vmatprep.subr.mxu0 0.0
    %8203 = vmatpush1.msra.mxu0 0.0
    %8204 = vmatprep.subr.mxu0 0.0
    %8205 = vmatpush1.msra.mxu0 0.0
    %8206 = vmatprep.subr.mxu0 0.0
    %8207 = vmatpush1.msra.mxu0 0.0
    %8208 = vmatprep.subr.mxu0 0.0
    %8209 = vmatpush1.msra.mxu0 0.0
    %8210 = vmatprep.subr.mxu0 0.0
    %8211 = vmatpush1.msra.mxu0 0.0
    %8212 = vmatprep.subr.mxu0 0.0
    %8213 = vmatpush1.msra.mxu0 0.0
    %8214 = vmatprep.subr.mxu0 0.0
    %8215 = vmatpush1.msra.mxu0 0.0
    %8216 = vmatprep.subr.mxu0 0.0
    %8217 = vmatpush1.msra.mxu0 0.0
    %8218 = vmatprep.subr.mxu0 0.0
    %8219 = vmatpush1.msra.mxu0 0.0
    %8220 = vmatprep.subr.mxu0 0.0
    %8221 = vmatpush1.msra.mxu0 0.0
    %8222 = vmatprep.subr.mxu0 0.0
    %8223 = vmatpush1.msra.mxu0 0.0
    %8224 = vmatprep.subr.mxu0 0.0
    %8225 = vmatpush1.msra.mxu0 0.0
    %8226 = vmatprep.subr.mxu0 0.0
    %8227 = vmatpush1.msra.mxu0 0.0
    %8228 = vmatprep.subr.mxu0 0.0
    %8229 = vmatpush1.msra.mxu0 0.0
    %8230 = vmatprep.subr.mxu0 0.0
    %8231 = vmatpush1.msra.mxu0 0.0
    %8232 = vmatprep.subr.mxu0 0.0
    %8233 = vmatpush1.msra.mxu0 0.0
    %8234 = vmatprep.subr.mxu0 0.0
    %8235 = vmatpush1.msra.mxu0 0.0
    %8236 = vmatprep.subr.mxu0 0.0
    %8237 = vmatpush1.msra.mxu0 0.0
    %8238 = vmatprep.subr.mxu0 0.0
    %8239 = vmatpush1.msra.mxu0 0.0
    %8240 = vmatprep.subr.mxu0 0.0
    %8241 = vmatpush1.msra.mxu0 0.0
    %8242 = vmatprep.subr.mxu0 0.0
    %8243 = vmatpush1.msra.mxu0 0.0
    %8244 = vmatprep.mubr.f32.mxu0 0.0
    %v8245 = vand.u32 %v7632, 4294901760
    %8246 = vmatmul.mubr.f32.gmra.mrb[0].mxu0 %v8245
    %v8247 = vpop.f32.mrb[0].mxu0
    %v8248 = vadd.f32 %v8167, %v8247
    %v8249 = vpop.f32.mrb[0].mxu0
    %8250 = vdwg.mxu0
    %8251 = vmatprep.subr.mxu0 0.0
    %v8252 = vand.u32 %v28, 4294901760
    %v8253 = vsub.f32 %v28, %v8252
    %8254 = vmatpush1.msra.mxu0 %v8253
    %8255 = vmatprep.subr.mxu0 0.0
    %v8256 = vand.u32 %v29, 4294901760
    %v8257 = vsub.f32 %v29, %v8256
    %8258 = vmatpush1.msra.mxu0 %v8257
    %8259 = vmatprep.subr.mxu0 0.0
    %8260 = vmatpush1.msra.mxu0 0.0
    %8261 = vmatprep.subr.mxu0 0.0
    %8262 = vmatpush1.msra.mxu0 0.0
    %8263 = vmatprep.subr.mxu0 0.0
    %8264 = vmatpush1.msra.mxu0 0.0
    %8265 = vmatprep.subr.mxu0 0.0
    %8266 = vmatpush1.msra.mxu0 0.0
    %8267 = vmatprep.subr.mxu0 0.0
    %8268 = vmatpush1.msra.mxu0 0.0
    %8269 = vmatprep.subr.mxu0 0.0
    %8270 = vmatpush1.msra.mxu0 0.0
    %8271 = vmatprep.subr.mxu0 0.0
    %8272 = vmatpush1.msra.mxu0 0.0
    %8273 = vmatprep.subr.mxu0 0.0
    %8274 = vmatpush1.msra.mxu0 0.0
    %8275 = vmatprep.subr.mxu0 0.0
    %8276 = vmatpush1.msra.mxu0 0.0
    %8277 = vmatprep.subr.mxu0 0.0
    %8278 = vmatpush1.msra.mxu0 0.0
    %8279 = vmatprep.subr.mxu0 0.0
    %8280 = vmatpush1.msra.mxu0 0.0
    %8281 = vmatprep.subr.mxu0 0.0
    %8282 = vmatpush1.msra.mxu0 0.0
    %8283 = vmatprep.subr.mxu0 0.0
    %8284 = vmatpush1.msra.mxu0 0.0
    %8285 = vmatprep.subr.mxu0 0.0
    %8286 = vmatpush1.msra.mxu0 0.0
    %8287 = vmatprep.subr.mxu0 0.0
    %8288 = vmatpush1.msra.mxu0 0.0
    %8289 = vmatprep.subr.mxu0 0.0
    %8290 = vmatpush1.msra.mxu0 0.0
    %8291 = vmatprep.subr.mxu0 0.0
    %8292 = vmatpush1.msra.mxu0 0.0
    %8293 = vmatprep.subr.mxu0 0.0
    %8294 = vmatpush1.msra.mxu0 0.0
    %8295 = vmatprep.subr.mxu0 0.0
    %8296 = vmatpush1.msra.mxu0 0.0
    %8297 = vmatprep.subr.mxu0 0.0
    %8298 = vmatpush1.msra.mxu0 0.0
    %8299 = vmatprep.subr.mxu0 0.0
    %8300 = vmatpush1.msra.mxu0 0.0
    %8301 = vmatprep.subr.mxu0 0.0
    %8302 = vmatpush1.msra.mxu0 0.0
    %8303 = vmatprep.subr.mxu0 0.0
    %8304 = vmatpush1.msra.mxu0 0.0
    %8305 = vmatprep.subr.mxu0 0.0
    %8306 = vmatpush1.msra.mxu0 0.0
    %8307 = vmatprep.subr.mxu0 0.0
    %8308 = vmatpush1.msra.mxu0 0.0
    %8309 = vmatprep.subr.mxu0 0.0
    %8310 = vmatpush1.msra.mxu0 0.0
    %8311 = vmatprep.subr.mxu0 0.0
    %8312 = vmatpush1.msra.mxu0 0.0
    %8313 = vmatprep.subr.mxu0 0.0
    %8314 = vmatpush1.msra.mxu0 0.0
    %8315 = vmatprep.subr.mxu0 0.0
    %8316 = vmatpush1.msra.mxu0 0.0
    %8317 = vmatprep.subr.mxu0 0.0
    %8318 = vmatpush1.msra.mxu0 0.0
    %8319 = vmatprep.mubr.f32.mxu0 0.0
    %v8320 = vand.u32 %v7632, 4294901760
    %v8321 = vsub.f32 %v7632, %v8320
    %8322 = vmatmul.mubr.f32.gmra.mrb[0].mxu0 %v8321
    %v8323 = vpop.f32.mrb[0].mxu0
    %v8324 = vadd.f32 %v8248, %v8323
    %v8325 = vpop.f32.mrb[0].mxu0
    %8326 = vdwg.mxu0
    %8327 = vmatprep.subr.mxu0 0.0
    %v8328 = vand.u32 %v28, 4294901760
    %8329 = vmatpush1.msra.mxu0 %v8328
    %8330 = vmatprep.subr.mxu0 0.0
    %v8331 = vand.u32 %v29, 4294901760
    %8332 = vmatpush1.msra.mxu0 %v8331
    %8333 = vmatprep.subr.mxu0 0.0
    %8334 = vmatpush1.msra.mxu0 0.0
    %8335 = vmatprep.subr.mxu0 0.0
    %8336 = vmatpush1.msra.mxu0 0.0
    %8337 = vmatprep.subr.mxu0 0.0
    %8338 = vmatpush1.msra.mxu0 0.0
    %8339 = vmatprep.subr.mxu0 0.0
    %8340 = vmatpush1.msra.mxu0 0.0
    %8341 = vmatprep.subr.mxu0 0.0
    %8342 = vmatpush1.msra.mxu0 0.0
    %8343 = vmatprep.subr.mxu0 0.0
    %8344 = vmatpush1.msra.mxu0 0.0
    %8345 = vmatprep.subr.mxu0 0.0
    %8346 = vmatpush1.msra.mxu0 0.0
    %8347 = vmatprep.subr.mxu0 0.0
    %8348 = vmatpush1.msra.mxu0 0.0
    %8349 = vmatprep.subr.mxu0 0.0
    %8350 = vmatpush1.msra.mxu0 0.0
    %8351 = vmatprep.subr.mxu0 0.0
    %8352 = vmatpush1.msra.mxu0 0.0
    %8353 = vmatprep.subr.mxu0 0.0
    %8354 = vmatpush1.msra.mxu0 0.0
    %8355 = vmatprep.subr.mxu0 0.0
    %8356 = vmatpush1.msra.mxu0 0.0
    %8357 = vmatprep.subr.mxu0 0.0
    %8358 = vmatpush1.msra.mxu0 0.0
    %8359 = vmatprep.subr.mxu0 0.0
    %8360 = vmatpush1.msra.mxu0 0.0
    %8361 = vmatprep.subr.mxu0 0.0
    %8362 = vmatpush1.msra.mxu0 0.0
    %8363 = vmatprep.subr.mxu0 0.0
    %8364 = vmatpush1.msra.mxu0 0.0
    %8365 = vmatprep.subr.mxu0 0.0
    %8366 = vmatpush1.msra.mxu0 0.0
    %8367 = vmatprep.subr.mxu0 0.0
    %8368 = vmatpush1.msra.mxu0 0.0
    %8369 = vmatprep.subr.mxu0 0.0
    %8370 = vmatpush1.msra.mxu0 0.0
    %8371 = vmatprep.subr.mxu0 0.0
    %8372 = vmatpush1.msra.mxu0 0.0
    %8373 = vmatprep.subr.mxu0 0.0
    %8374 = vmatpush1.msra.mxu0 0.0
    %8375 = vmatprep.subr.mxu0 0.0
    %8376 = vmatpush1.msra.mxu0 0.0
    %8377 = vmatprep.subr.mxu0 0.0
    %8378 = vmatpush1.msra.mxu0 0.0
    %8379 = vmatprep.subr.mxu0 0.0
    %8380 = vmatpush1.msra.mxu0 0.0
    %8381 = vmatprep.subr.mxu0 0.0
    %8382 = vmatpush1.msra.mxu0 0.0
    %8383 = vmatprep.subr.mxu0 0.0
    %8384 = vmatpush1.msra.mxu0 0.0
    %8385 = vmatprep.subr.mxu0 0.0
    %8386 = vmatpush1.msra.mxu0 0.0
    %8387 = vmatprep.subr.mxu0 0.0
    %8388 = vmatpush1.msra.mxu0 0.0
    %8389 = vmatprep.subr.mxu0 0.0
    %8390 = vmatpush1.msra.mxu0 0.0
    %8391 = vmatprep.subr.mxu0 0.0
    %8392 = vmatpush1.msra.mxu0 0.0
    %8393 = vmatprep.mubr.f32.mxu0 0.0
    %v8394 = vand.u32 %v7632, 4294901760
    %v8395 = vsub.f32 %v7632, %v8394
    %v8396 = vand.u32 %v8395, 4294901760
    %8397 = vmatmul.mubr.f32.gmra.mrb[0].mxu0 %v8396
    %v8398 = vpop.f32.mrb[0].mxu0
    %v8399 = vadd.f32 %v8324, %v8398
    %v8400 = vpop.f32.mrb[0].mxu0
    %8401 = vdwg.mxu0
    %8402 = vmatprep.subr.mxu0 0.0
    %v8403 = vand.u32 %v28, 4294901760
    %v8404 = vsub.f32 %v28, %v8403
    %v8405 = vand.u32 %v8404, 4294901760
    %8406 = vmatpush1.msra.mxu0 %v8405
    %8407 = vmatprep.subr.mxu0 0.0
    %v8408 = vand.u32 %v29, 4294901760
    %v8409 = vsub.f32 %v29, %v8408
    %v8410 = vand.u32 %v8409, 4294901760
    %8411 = vmatpush1.msra.mxu0 %v8410
    %8412 = vmatprep.subr.mxu0 0.0
    %8413 = vmatpush1.msra.mxu0 0.0
    %8414 = vmatprep.subr.mxu0 0.0
    %8415 = vmatpush1.msra.mxu0 0.0
    %8416 = vmatprep.subr.mxu0 0.0
    %8417 = vmatpush1.msra.mxu0 0.0
    %8418 = vmatprep.subr.mxu0 0.0
    %8419 = vmatpush1.msra.mxu0 0.0
    %8420 = vmatprep.subr.mxu0 0.0
    %8421 = vmatpush1.msra.mxu0 0.0
    %8422 = vmatprep.subr.mxu0 0.0
    %8423 = vmatpush1.msra.mxu0 0.0
    %8424 = vmatprep.subr.mxu0 0.0
    %8425 = vmatpush1.msra.mxu0 0.0
    %8426 = vmatprep.subr.mxu0 0.0
    %8427 = vmatpush1.msra.mxu0 0.0
    %8428 = vmatprep.subr.mxu0 0.0
    %8429 = vmatpush1.msra.mxu0 0.0
    %8430 = vmatprep.subr.mxu0 0.0
    %8431 = vmatpush1.msra.mxu0 0.0
    %8432 = vmatprep.subr.mxu0 0.0
    %8433 = vmatpush1.msra.mxu0 0.0
    %8434 = vmatprep.subr.mxu0 0.0
    %8435 = vmatpush1.msra.mxu0 0.0
    %8436 = vmatprep.subr.mxu0 0.0
    %8437 = vmatpush1.msra.mxu0 0.0
    %8438 = vmatprep.subr.mxu0 0.0
    %8439 = vmatpush1.msra.mxu0 0.0
    %8440 = vmatprep.subr.mxu0 0.0
    %8441 = vmatpush1.msra.mxu0 0.0
    %8442 = vmatprep.subr.mxu0 0.0
    %8443 = vmatpush1.msra.mxu0 0.0
    %8444 = vmatprep.subr.mxu0 0.0
    %8445 = vmatpush1.msra.mxu0 0.0
    %8446 = vmatprep.subr.mxu0 0.0
    %8447 = vmatpush1.msra.mxu0 0.0
    %8448 = vmatprep.subr.mxu0 0.0
    %8449 = vmatpush1.msra.mxu0 0.0
    %8450 = vmatprep.subr.mxu0 0.0
    %8451 = vmatpush1.msra.mxu0 0.0
    %8452 = vmatprep.subr.mxu0 0.0
    %8453 = vmatpush1.msra.mxu0 0.0
    %8454 = vmatprep.subr.mxu0 0.0
    %8455 = vmatpush1.msra.mxu0 0.0
    %8456 = vmatprep.subr.mxu0 0.0
    %8457 = vmatpush1.msra.mxu0 0.0
    %8458 = vmatprep.subr.mxu0 0.0
    %8459 = vmatpush1.msra.mxu0 0.0
    %8460 = vmatprep.subr.mxu0 0.0
    %8461 = vmatpush1.msra.mxu0 0.0
    %8462 = vmatprep.subr.mxu0 0.0
    %8463 = vmatpush1.msra.mxu0 0.0
    %8464 = vmatprep.subr.mxu0 0.0
    %8465 = vmatpush1.msra.mxu0 0.0
    %8466 = vmatprep.subr.mxu0 0.0
    %8467 = vmatpush1.msra.mxu0 0.0
    %8468 = vmatprep.subr.mxu0 0.0
    %8469 = vmatpush1.msra.mxu0 0.0
    %8470 = vmatprep.subr.mxu0 0.0
    %8471 = vmatpush1.msra.mxu0 0.0
    %8472 = vmatprep.mubr.f32.mxu0 0.0
    %v8473 = vand.u32 %v7632, 4294901760
    %8474 = vmatmul.mubr.f32.gmra.mrb[0].mxu0 %v8473
    %v8475 = vpop.f32.mrb[0].mxu0
    %v8476 = vadd.f32 %v8399, %v8475
    %v8477 = vpop.f32.mrb[0].mxu0
    %8478 = vdwg.mxu0
    %8479 = vmatprep.subr.mxu0 0.0
    %v8480 = vand.u32 %v28, 4294901760
    %8481 = vmatpush1.msra.mxu0 %v8480
    %8482 = vmatprep.subr.mxu0 0.0
    %v8483 = vand.u32 %v29, 4294901760
    %8484 = vmatpush1.msra.mxu0 %v8483
    %8485 = vmatprep.subr.mxu0 0.0
    %8486 = vmatpush1.msra.mxu0 0.0
    %8487 = vmatprep.subr.mxu0 0.0
    %8488 = vmatpush1.msra.mxu0 0.0
    %8489 = vmatprep.subr.mxu0 0.0
    %8490 = vmatpush1.msra.mxu0 0.0
    %8491 = vmatprep.subr.mxu0 0.0
    %8492 = vmatpush1.msra.mxu0 0.0
    %8493 = vmatprep.subr.mxu0 0.0
    %8494 = vmatpush1.msra.mxu0 0.0
    %8495 = vmatprep.subr.mxu0 0.0
    %8496 = vmatpush1.msra.mxu0 0.0
    %8497 = vmatprep.subr.mxu0 0.0
    %8498 = vmatpush1.msra.mxu0 0.0
    %8499 = vmatprep.subr.mxu0 0.0
    %8500 = vmatpush1.msra.mxu0 0.0
    %8501 = vmatprep.subr.mxu0 0.0
    %8502 = vmatpush1.msra.mxu0 0.0
    %8503 = vmatprep.subr.mxu0 0.0
    %8504 = vmatpush1.msra.mxu0 0.0
    %8505 = vmatprep.subr.mxu0 0.0
    %8506 = vmatpush1.msra.mxu0 0.0
    %8507 = vmatprep.subr.mxu0 0.0
    %8508 = vmatpush1.msra.mxu0 0.0
    %8509 = vmatprep.subr.mxu0 0.0
    %8510 = vmatpush1.msra.mxu0 0.0
    %8511 = vmatprep.subr.mxu0 0.0
    %8512 = vmatpush1.msra.mxu0 0.0
    %8513 = vmatprep.subr.mxu0 0.0
    %8514 = vmatpush1.msra.mxu0 0.0
    %8515 = vmatprep.subr.mxu0 0.0
    %8516 = vmatpush1.msra.mxu0 0.0
    %8517 = vmatprep.subr.mxu0 0.0
    %8518 = vmatpush1.msra.mxu0 0.0
    %8519 = vmatprep.subr.mxu0 0.0
    %8520 = vmatpush1.msra.mxu0 0.0
    %8521 = vmatprep.subr.mxu0 0.0
    %8522 = vmatpush1.msra.mxu0 0.0
    %8523 = vmatprep.subr.mxu0 0.0
    %8524 = vmatpush1.msra.mxu0 0.0
    %8525 = vmatprep.subr.mxu0 0.0
    %8526 = vmatpush1.msra.mxu0 0.0
    %8527 = vmatprep.subr.mxu0 0.0
    %8528 = vmatpush1.msra.mxu0 0.0
    %8529 = vmatprep.subr.mxu0 0.0
    %8530 = vmatpush1.msra.mxu0 0.0
    %8531 = vmatprep.subr.mxu0 0.0
    %8532 = vmatpush1.msra.mxu0 0.0
    %8533 = vmatprep.subr.mxu0 0.0
    %8534 = vmatpush1.msra.mxu0 0.0
    %8535 = vmatprep.subr.mxu0 0.0
    %8536 = vmatpush1.msra.mxu0 0.0
    %8537 = vmatprep.subr.mxu0 0.0
    %8538 = vmatpush1.msra.mxu0 0.0
    %8539 = vmatprep.subr.mxu0 0.0
    %8540 = vmatpush1.msra.mxu0 0.0
    %8541 = vmatprep.subr.mxu0 0.0
    %8542 = vmatpush1.msra.mxu0 0.0
    %8543 = vmatprep.subr.mxu0 0.0
    %8544 = vmatpush1.msra.mxu0 0.0
    %8545 = vmatprep.mubr.f32.mxu0 0.0
    %v8546 = vand.u32 %v7632, 4294901760
    %8547 = vmatmul.mubr.f32.gmra.mrb[0].mxu0 %v8546
    %v8548 = vpop.f32.mrb[0].mxu0
    %v8549 = vadd.f32 %v8476, %v8548
    %v8550 = vpop.f32.mrb[0].mxu0
    %8551 = vdwg.mxu0
    %v8552 = vmax.f32 %v8090, %v8549
    %v8553 = vsel %vm1028, %v8552, %v8090
    %8554 = vmatprep.subr.mxu0 0.0
    %v8555 = vand.u32 %v31, 4294901760
    %8556 = vmatpush1.msra.mxu0 %v8555
    %8557 = vmatprep.subr.mxu0 0.0
    %v8558 = vand.u32 %v32, 4294901760
    %8559 = vmatpush1.msra.mxu0 %v8558
    %8560 = vmatprep.subr.mxu0 0.0
    %8561 = vmatpush1.msra.mxu0 0.0
    %8562 = vmatprep.subr.mxu0 0.0
    %8563 = vmatpush1.msra.mxu0 0.0
    %8564 = vmatprep.subr.mxu0 0.0
    %8565 = vmatpush1.msra.mxu0 0.0
    %8566 = vmatprep.subr.mxu0 0.0
    %8567 = vmatpush1.msra.mxu0 0.0
    %8568 = vmatprep.subr.mxu0 0.0
    %8569 = vmatpush1.msra.mxu0 0.0
    %8570 = vmatprep.subr.mxu0 0.0
    %8571 = vmatpush1.msra.mxu0 0.0
    %8572 = vmatprep.subr.mxu0 0.0
    %8573 = vmatpush1.msra.mxu0 0.0
    %8574 = vmatprep.subr.mxu0 0.0
    %8575 = vmatpush1.msra.mxu0 0.0
    %8576 = vmatprep.subr.mxu0 0.0
    %8577 = vmatpush1.msra.mxu0 0.0
    %8578 = vmatprep.subr.mxu0 0.0
    %8579 = vmatpush1.msra.mxu0 0.0
    %8580 = vmatprep.subr.mxu0 0.0
    %8581 = vmatpush1.msra.mxu0 0.0
    %8582 = vmatprep.subr.mxu0 0.0
    %8583 = vmatpush1.msra.mxu0 0.0
    %8584 = vmatprep.subr.mxu0 0.0
    %8585 = vmatpush1.msra.mxu0 0.0
    %8586 = vmatprep.subr.mxu0 0.0
    %8587 = vmatpush1.msra.mxu0 0.0
    %8588 = vmatprep.subr.mxu0 0.0
    %8589 = vmatpush1.msra.mxu0 0.0
    %8590 = vmatprep.subr.mxu0 0.0
    %8591 = vmatpush1.msra.mxu0 0.0
    %8592 = vmatprep.subr.mxu0 0.0
    %8593 = vmatpush1.msra.mxu0 0.0
    %8594 = vmatprep.subr.mxu0 0.0
    %8595 = vmatpush1.msra.mxu0 0.0
    %8596 = vmatprep.subr.mxu0 0.0
    %8597 = vmatpush1.msra.mxu0 0.0
    %8598 = vmatprep.subr.mxu0 0.0
    %8599 = vmatpush1.msra.mxu0 0.0
    %8600 = vmatprep.subr.mxu0 0.0
    %8601 = vmatpush1.msra.mxu0 0.0
    %8602 = vmatprep.subr.mxu0 0.0
    %8603 = vmatpush1.msra.mxu0 0.0
    %8604 = vmatprep.subr.mxu0 0.0
    %8605 = vmatpush1.msra.mxu0 0.0
    %8606 = vmatprep.subr.mxu0 0.0
    %8607 = vmatpush1.msra.mxu0 0.0
    %8608 = vmatprep.subr.mxu0 0.0
    %8609 = vmatpush1.msra.mxu0 0.0
    %8610 = vmatprep.subr.mxu0 0.0
    %8611 = vmatpush1.msra.mxu0 0.0
    %8612 = vmatprep.subr.mxu0 0.0
    %8613 = vmatpush1.msra.mxu0 0.0
    %8614 = vmatprep.subr.mxu0 0.0
    %8615 = vmatpush1.msra.mxu0 0.0
    %8616 = vmatprep.subr.mxu0 0.0
    %8617 = vmatpush1.msra.mxu0 0.0
    %8618 = vmatprep.subr.mxu0 0.0
    %8619 = vmatpush1.msra.mxu0 0.0
    %8620 = vmatprep.mubr.f32.mxu0 0.0
    %v8621 = vand.u32 %v7632, 4294901760
    %v8622 = vsub.f32 %v7632, %v8621
    %v8623 = vand.u32 %v8622, 4294901760
    %v8624 = vsub.f32 %v8622, %v8623
    %v8625 = vand.u32 %v8624, 4294901760
    %8626 = vmatmul.mubr.f32.gmra.mrb[0].mxu0 %v8625
    %v8627 = vpop.f32.mrb[0].mxu0
    %v8628 = vadd.f32 0.0, %v8627
    %v8629 = vpop.f32.mrb[0].mxu0
    %8630 = vdwg.mxu0
    %8631 = vmatprep.subr.mxu0 0.0
    %v8632 = vand.u32 %v31, 4294901760
    %v8633 = vsub.f32 %v31, %v8632
    %v8634 = vand.u32 %v8633, 4294901760
    %v8635 = vsub.f32 %v8633, %v8634
    %v8636 = vand.u32 %v8635, 4294901760
    %8637 = vmatpush1.msra.mxu0 %v8636
    %8638 = vmatprep.subr.mxu0 0.0
    %v8639 = vand.u32 %v32, 4294901760
    %v8640 = vsub.f32 %v32, %v8639
    %v8641 = vand.u32 %v8640, 4294901760
    %v8642 = vsub.f32 %v8640, %v8641
    %v8643 = vand.u32 %v8642, 4294901760
    %8644 = vmatpush1.msra.mxu0 %v8643
    %8645 = vmatprep.subr.mxu0 0.0
    %8646 = vmatpush1.msra.mxu0 0.0
    %8647 = vmatprep.subr.mxu0 0.0
    %8648 = vmatpush1.msra.mxu0 0.0
    %8649 = vmatprep.subr.mxu0 0.0
    %8650 = vmatpush1.msra.mxu0 0.0
    %8651 = vmatprep.subr.mxu0 0.0
    %8652 = vmatpush1.msra.mxu0 0.0
    %8653 = vmatprep.subr.mxu0 0.0
    %8654 = vmatpush1.msra.mxu0 0.0
    %8655 = vmatprep.subr.mxu0 0.0
    %8656 = vmatpush1.msra.mxu0 0.0
    %8657 = vmatprep.subr.mxu0 0.0
    %8658 = vmatpush1.msra.mxu0 0.0
    %8659 = vmatprep.subr.mxu0 0.0
    %8660 = vmatpush1.msra.mxu0 0.0
    %8661 = vmatprep.subr.mxu0 0.0
    %8662 = vmatpush1.msra.mxu0 0.0
    %8663 = vmatprep.subr.mxu0 0.0
    %8664 = vmatpush1.msra.mxu0 0.0
    %8665 = vmatprep.subr.mxu0 0.0
    %8666 = vmatpush1.msra.mxu0 0.0
    %8667 = vmatprep.subr.mxu0 0.0
    %8668 = vmatpush1.msra.mxu0 0.0
    %8669 = vmatprep.subr.mxu0 0.0
    %8670 = vmatpush1.msra.mxu0 0.0
    %8671 = vmatprep.subr.mxu0 0.0
    %8672 = vmatpush1.msra.mxu0 0.0
    %8673 = vmatprep.subr.mxu0 0.0
    %8674 = vmatpush1.msra.mxu0 0.0
    %8675 = vmatprep.subr.mxu0 0.0
    %8676 = vmatpush1.msra.mxu0 0.0
    %8677 = vmatprep.subr.mxu0 0.0
    %8678 = vmatpush1.msra.mxu0 0.0
    %8679 = vmatprep.subr.mxu0 0.0
    %8680 = vmatpush1.msra.mxu0 0.0
    %8681 = vmatprep.subr.mxu0 0.0
    %8682 = vmatpush1.msra.mxu0 0.0
    %8683 = vmatprep.subr.mxu0 0.0
    %8684 = vmatpush1.msra.mxu0 0.0
    %8685 = vmatprep.subr.mxu0 0.0
    %8686 = vmatpush1.msra.mxu0 0.0
    %8687 = vmatprep.subr.mxu0 0.0
    %8688 = vmatpush1.msra.mxu0 0.0
    %8689 = vmatprep.subr.mxu0 0.0
    %8690 = vmatpush1.msra.mxu0 0.0
    %8691 = vmatprep.subr.mxu0 0.0
    %8692 = vmatpush1.msra.mxu0 0.0
    %8693 = vmatprep.subr.mxu0 0.0
    %8694 = vmatpush1.msra.mxu0 0.0
    %8695 = vmatprep.subr.mxu0 0.0
    %8696 = vmatpush1.msra.mxu0 0.0
    %8697 = vmatprep.subr.mxu0 0.0
    %8698 = vmatpush1.msra.mxu0 0.0
    %8699 = vmatprep.subr.mxu0 0.0
    %8700 = vmatpush1.msra.mxu0 0.0
    %8701 = vmatprep.subr.mxu0 0.0
    %8702 = vmatpush1.msra.mxu0 0.0
    %8703 = vmatprep.subr.mxu0 0.0
    %8704 = vmatpush1.msra.mxu0 0.0
    %8705 = vmatprep.mubr.f32.mxu0 0.0
    %v8706 = vand.u32 %v7632, 4294901760
    %8707 = vmatmul.mubr.f32.gmra.mrb[0].mxu0 %v8706
    %v8708 = vpop.f32.mrb[0].mxu0
    %v8709 = vadd.f32 %v8628, %v8708
    %v8710 = vpop.f32.mrb[0].mxu0
    %8711 = vdwg.mxu0
    %8712 = vmatprep.subr.mxu0 0.0
    %v8713 = vand.u32 %v31, 4294901760
    %v8714 = vsub.f32 %v31, %v8713
    %8715 = vmatpush1.msra.mxu0 %v8714
    %8716 = vmatprep.subr.mxu0 0.0
    %v8717 = vand.u32 %v32, 4294901760
    %v8718 = vsub.f32 %v32, %v8717
    %8719 = vmatpush1.msra.mxu0 %v8718
    %8720 = vmatprep.subr.mxu0 0.0
    %8721 = vmatpush1.msra.mxu0 0.0
    %8722 = vmatprep.subr.mxu0 0.0
    %8723 = vmatpush1.msra.mxu0 0.0
    %8724 = vmatprep.subr.mxu0 0.0
    %8725 = vmatpush1.msra.mxu0 0.0
    %8726 = vmatprep.subr.mxu0 0.0
    %8727 = vmatpush1.msra.mxu0 0.0
    %8728 = vmatprep.subr.mxu0 0.0
    %8729 = vmatpush1.msra.mxu0 0.0
    %8730 = vmatprep.subr.mxu0 0.0
    %8731 = vmatpush1.msra.mxu0 0.0
    %8732 = vmatprep.subr.mxu0 0.0
    %8733 = vmatpush1.msra.mxu0 0.0
    %8734 = vmatprep.subr.mxu0 0.0
    %8735 = vmatpush1.msra.mxu0 0.0
    %8736 = vmatprep.subr.mxu0 0.0
    %8737 = vmatpush1.msra.mxu0 0.0
    %8738 = vmatprep.subr.mxu0 0.0
    %8739 = vmatpush1.msra.mxu0 0.0
    %8740 = vmatprep.subr.mxu0 0.0
    %8741 = vmatpush1.msra.mxu0 0.0
    %8742 = vmatprep.subr.mxu0 0.0
    %8743 = vmatpush1.msra.mxu0 0.0
    %8744 = vmatprep.subr.mxu0 0.0
    %8745 = vmatpush1.msra.mxu0 0.0
    %8746 = vmatprep.subr.mxu0 0.0
    %8747 = vmatpush1.msra.mxu0 0.0
    %8748 = vmatprep.subr.mxu0 0.0
    %8749 = vmatpush1.msra.mxu0 0.0
    %8750 = vmatprep.subr.mxu0 0.0
    %8751 = vmatpush1.msra.mxu0 0.0
    %8752 = vmatprep.subr.mxu0 0.0
    %8753 = vmatpush1.msra.mxu0 0.0
    %8754 = vmatprep.subr.mxu0 0.0
    %8755 = vmatpush1.msra.mxu0 0.0
    %8756 = vmatprep.subr.mxu0 0.0
    %8757 = vmatpush1.msra.mxu0 0.0
    %8758 = vmatprep.subr.mxu0 0.0
    %8759 = vmatpush1.msra.mxu0 0.0
    %8760 = vmatprep.subr.mxu0 0.0
    %8761 = vmatpush1.msra.mxu0 0.0
    %8762 = vmatprep.subr.mxu0 0.0
    %8763 = vmatpush1.msra.mxu0 0.0
    %8764 = vmatprep.subr.mxu0 0.0
    %8765 = vmatpush1.msra.mxu0 0.0
    %8766 = vmatprep.subr.mxu0 0.0
    %8767 = vmatpush1.msra.mxu0 0.0
    %8768 = vmatprep.subr.mxu0 0.0
    %8769 = vmatpush1.msra.mxu0 0.0
    %8770 = vmatprep.subr.mxu0 0.0
    %8771 = vmatpush1.msra.mxu0 0.0
    %8772 = vmatprep.subr.mxu0 0.0
    %8773 = vmatpush1.msra.mxu0 0.0
    %8774 = vmatprep.subr.mxu0 0.0
    %8775 = vmatpush1.msra.mxu0 0.0
    %8776 = vmatprep.subr.mxu0 0.0
    %8777 = vmatpush1.msra.mxu0 0.0
    %8778 = vmatprep.subr.mxu0 0.0
    %8779 = vmatpush1.msra.mxu0 0.0
    %8780 = vmatprep.mubr.f32.mxu0 0.0
    %v8781 = vand.u32 %v7632, 4294901760
    %v8782 = vsub.f32 %v7632, %v8781
    %8783 = vmatmul.mubr.f32.gmra.mrb[0].mxu0 %v8782
    %v8784 = vpop.f32.mrb[0].mxu0
    %v8785 = vadd.f32 %v8709, %v8784
    %v8786 = vpop.f32.mrb[0].mxu0
    %8787 = vdwg.mxu0
    %8788 = vmatprep.subr.mxu0 0.0
    %v8789 = vand.u32 %v31, 4294901760
    %8790 = vmatpush1.msra.mxu0 %v8789
    %8791 = vmatprep.subr.mxu0 0.0
    %v8792 = vand.u32 %v32, 4294901760
    %8793 = vmatpush1.msra.mxu0 %v8792
    %8794 = vmatprep.subr.mxu0 0.0
    %8795 = vmatpush1.msra.mxu0 0.0
    %8796 = vmatprep.subr.mxu0 0.0
    %8797 = vmatpush1.msra.mxu0 0.0
    %8798 = vmatprep.subr.mxu0 0.0
    %8799 = vmatpush1.msra.mxu0 0.0
    %8800 = vmatprep.subr.mxu0 0.0
    %8801 = vmatpush1.msra.mxu0 0.0
    %8802 = vmatprep.subr.mxu0 0.0
    %8803 = vmatpush1.msra.mxu0 0.0
    %8804 = vmatprep.subr.mxu0 0.0
    %8805 = vmatpush1.msra.mxu0 0.0
    %8806 = vmatprep.subr.mxu0 0.0
    %8807 = vmatpush1.msra.mxu0 0.0
    %8808 = vmatprep.subr.mxu0 0.0
    %8809 = vmatpush1.msra.mxu0 0.0
    %8810 = vmatprep.subr.mxu0 0.0
    %8811 = vmatpush1.msra.mxu0 0.0
    %8812 = vmatprep.subr.mxu0 0.0
    %8813 = vmatpush1.msra.mxu0 0.0
    %8814 = vmatprep.subr.mxu0 0.0
    %8815 = vmatpush1.msra.mxu0 0.0
    %8816 = vmatprep.subr.mxu0 0.0
    %8817 = vmatpush1.msra.mxu0 0.0
    %8818 = vmatprep.subr.mxu0 0.0
    %8819 = vmatpush1.msra.mxu0 0.0
    %8820 = vmatprep.subr.mxu0 0.0
    %8821 = vmatpush1.msra.mxu0 0.0
    %8822 = vmatprep.subr.mxu0 0.0
    %8823 = vmatpush1.msra.mxu0 0.0
    %8824 = vmatprep.subr.mxu0 0.0
    %8825 = vmatpush1.msra.mxu0 0.0
    %8826 = vmatprep.subr.mxu0 0.0
    %8827 = vmatpush1.msra.mxu0 0.0
    %8828 = vmatprep.subr.mxu0 0.0
    %8829 = vmatpush1.msra.mxu0 0.0
    %8830 = vmatprep.subr.mxu0 0.0
    %8831 = vmatpush1.msra.mxu0 0.0
    %8832 = vmatprep.subr.mxu0 0.0
    %8833 = vmatpush1.msra.mxu0 0.0
    %8834 = vmatprep.subr.mxu0 0.0
    %8835 = vmatpush1.msra.mxu0 0.0
    %8836 = vmatprep.subr.mxu0 0.0
    %8837 = vmatpush1.msra.mxu0 0.0
    %8838 = vmatprep.subr.mxu0 0.0
    %8839 = vmatpush1.msra.mxu0 0.0
    %8840 = vmatprep.subr.mxu0 0.0
    %8841 = vmatpush1.msra.mxu0 0.0
    %8842 = vmatprep.subr.mxu0 0.0
    %8843 = vmatpush1.msra.mxu0 0.0
    %8844 = vmatprep.subr.mxu0 0.0
    %8845 = vmatpush1.msra.mxu0 0.0
    %8846 = vmatprep.subr.mxu0 0.0
    %8847 = vmatpush1.msra.mxu0 0.0
    %8848 = vmatprep.subr.mxu0 0.0
    %8849 = vmatpush1.msra.mxu0 0.0
    %8850 = vmatprep.subr.mxu0 0.0
    %8851 = vmatpush1.msra.mxu0 0.0
    %8852 = vmatprep.subr.mxu0 0.0
    %8853 = vmatpush1.msra.mxu0 0.0
    %8854 = vmatprep.mubr.f32.mxu0 0.0
    %v8855 = vand.u32 %v7632, 4294901760
    %v8856 = vsub.f32 %v7632, %v8855
    %v8857 = vand.u32 %v8856, 4294901760
    %8858 = vmatmul.mubr.f32.gmra.mrb[0].mxu0 %v8857
    %v8859 = vpop.f32.mrb[0].mxu0
    %v8860 = vadd.f32 %v8785, %v8859
    %v8861 = vpop.f32.mrb[0].mxu0
    %8862 = vdwg.mxu0
    %8863 = vmatprep.subr.mxu0 0.0
    %v8864 = vand.u32 %v31, 4294901760
    %v8865 = vsub.f32 %v31, %v8864
    %v8866 = vand.u32 %v8865, 4294901760
    %8867 = vmatpush1.msra.mxu0 %v8866
    %8868 = vmatprep.subr.mxu0 0.0
    %v8869 = vand.u32 %v32, 4294901760
    %v8870 = vsub.f32 %v32, %v8869
    %v8871 = vand.u32 %v8870, 4294901760
    %8872 = vmatpush1.msra.mxu0 %v8871
    %8873 = vmatprep.subr.mxu0 0.0
    %8874 = vmatpush1.msra.mxu0 0.0
    %8875 = vmatprep.subr.mxu0 0.0
    %8876 = vmatpush1.msra.mxu0 0.0
    %8877 = vmatprep.subr.mxu0 0.0
    %8878 = vmatpush1.msra.mxu0 0.0
    %8879 = vmatprep.subr.mxu0 0.0
    %8880 = vmatpush1.msra.mxu0 0.0
    %8881 = vmatprep.subr.mxu0 0.0
    %8882 = vmatpush1.msra.mxu0 0.0
    %8883 = vmatprep.subr.mxu0 0.0
    %8884 = vmatpush1.msra.mxu0 0.0
    %8885 = vmatprep.subr.mxu0 0.0
    %8886 = vmatpush1.msra.mxu0 0.0
    %8887 = vmatprep.subr.mxu0 0.0
    %8888 = vmatpush1.msra.mxu0 0.0
    %8889 = vmatprep.subr.mxu0 0.0
    %8890 = vmatpush1.msra.mxu0 0.0
    %8891 = vmatprep.subr.mxu0 0.0
    %8892 = vmatpush1.msra.mxu0 0.0
    %8893 = vmatprep.subr.mxu0 0.0
    %8894 = vmatpush1.msra.mxu0 0.0
    %8895 = vmatprep.subr.mxu0 0.0
    %8896 = vmatpush1.msra.mxu0 0.0
    %8897 = vmatprep.subr.mxu0 0.0
    %8898 = vmatpush1.msra.mxu0 0.0
    %8899 = vmatprep.subr.mxu0 0.0
    %8900 = vmatpush1.msra.mxu0 0.0
    %8901 = vmatprep.subr.mxu0 0.0
    %8902 = vmatpush1.msra.mxu0 0.0
    %8903 = vmatprep.subr.mxu0 0.0
    %8904 = vmatpush1.msra.mxu0 0.0
    %8905 = vmatprep.subr.mxu0 0.0
    %8906 = vmatpush1.msra.mxu0 0.0
    %8907 = vmatprep.subr.mxu0 0.0
    %8908 = vmatpush1.msra.mxu0 0.0
    %8909 = vmatprep.subr.mxu0 0.0
    %8910 = vmatpush1.msra.mxu0 0.0
    %8911 = vmatprep.subr.mxu0 0.0
    %8912 = vmatpush1.msra.mxu0 0.0
    %8913 = vmatprep.subr.mxu0 0.0
    %8914 = vmatpush1.msra.mxu0 0.0
    %8915 = vmatprep.subr.mxu0 0.0
    %8916 = vmatpush1.msra.mxu0 0.0
    %8917 = vmatprep.subr.mxu0 0.0
    %8918 = vmatpush1.msra.mxu0 0.0
    %8919 = vmatprep.subr.mxu0 0.0
    %8920 = vmatpush1.msra.mxu0 0.0
    %8921 = vmatprep.subr.mxu0 0.0
    %8922 = vmatpush1.msra.mxu0 0.0
    %8923 = vmatprep.subr.mxu0 0.0
    %8924 = vmatpush1.msra.mxu0 0.0
    %8925 = vmatprep.subr.mxu0 0.0
    %8926 = vmatpush1.msra.mxu0 0.0
    %8927 = vmatprep.subr.mxu0 0.0
    %8928 = vmatpush1.msra.mxu0 0.0
    %8929 = vmatprep.subr.mxu0 0.0
    %8930 = vmatpush1.msra.mxu0 0.0
    %8931 = vmatprep.subr.mxu0 0.0
    %8932 = vmatpush1.msra.mxu0 0.0
    %8933 = vmatprep.mubr.f32.mxu0 0.0
    %v8934 = vand.u32 %v7632, 4294901760
    %8935 = vmatmul.mubr.f32.gmra.mrb[0].mxu0 %v8934
    %v8936 = vpop.f32.mrb[0].mxu0
    %v8937 = vadd.f32 %v8860, %v8936
    %v8938 = vpop.f32.mrb[0].mxu0
    %8939 = vdwg.mxu0
    %8940 = vmatprep.subr.mxu0 0.0
    %v8941 = vand.u32 %v31, 4294901760
    %8942 = vmatpush1.msra.mxu0 %v8941
    %8943 = vmatprep.subr.mxu0 0.0
    %v8944 = vand.u32 %v32, 4294901760
    %8945 = vmatpush1.msra.mxu0 %v8944
    %8946 = vmatprep.subr.mxu0 0.0
    %8947 = vmatpush1.msra.mxu0 0.0
    %8948 = vmatprep.subr.mxu0 0.0
    %8949 = vmatpush1.msra.mxu0 0.0
    %8950 = vmatprep.subr.mxu0 0.0
    %8951 = vmatpush1.msra.mxu0 0.0
    %8952 = vmatprep.subr.mxu0 0.0
    %8953 = vmatpush1.msra.mxu0 0.0
    %8954 = vmatprep.subr.mxu0 0.0
    %8955 = vmatpush1.msra.mxu0 0.0
    %8956 = vmatprep.subr.mxu0 0.0
    %8957 = vmatpush1.msra.mxu0 0.0
    %8958 = vmatprep.subr.mxu0 0.0
    %8959 = vmatpush1.msra.mxu0 0.0
    %8960 = vmatprep.subr.mxu0 0.0
    %8961 = vmatpush1.msra.mxu0 0.0
    %8962 = vmatprep.subr.mxu0 0.0
    %8963 = vmatpush1.msra.mxu0 0.0
    %8964 = vmatprep.subr.mxu0 0.0
    %8965 = vmatpush1.msra.mxu0 0.0
    %8966 = vmatprep.subr.mxu0 0.0
    %8967 = vmatpush1.msra.mxu0 0.0
    %8968 = vmatprep.subr.mxu0 0.0
    %8969 = vmatpush1.msra.mxu0 0.0
    %8970 = vmatprep.subr.mxu0 0.0
    %8971 = vmatpush1.msra.mxu0 0.0
    %8972 = vmatprep.subr.mxu0 0.0
    %8973 = vmatpush1.msra.mxu0 0.0
    %8974 = vmatprep.subr.mxu0 0.0
    %8975 = vmatpush1.msra.mxu0 0.0
    %8976 = vmatprep.subr.mxu0 0.0
    %8977 = vmatpush1.msra.mxu0 0.0
    %8978 = vmatprep.subr.mxu0 0.0
    %8979 = vmatpush1.msra.mxu0 0.0
    %8980 = vmatprep.subr.mxu0 0.0
    %8981 = vmatpush1.msra.mxu0 0.0
    %8982 = vmatprep.subr.mxu0 0.0
    %8983 = vmatpush1.msra.mxu0 0.0
    %8984 = vmatprep.subr.mxu0 0.0
    %8985 = vmatpush1.msra.mxu0 0.0
    %8986 = vmatprep.subr.mxu0 0.0
    %8987 = vmatpush1.msra.mxu0 0.0
    %8988 = vmatprep.subr.mxu0 0.0
    %8989 = vmatpush1.msra.mxu0 0.0
    %8990 = vmatprep.subr.mxu0 0.0
    %8991 = vmatpush1.msra.mxu0 0.0
    %8992 = vmatprep.subr.mxu0 0.0
    %8993 = vmatpush1.msra.mxu0 0.0
    %8994 = vmatprep.subr.mxu0 0.0
    %8995 = vmatpush1.msra.mxu0 0.0
    %8996 = vmatprep.subr.mxu0 0.0
    %8997 = vmatpush1.msra.mxu0 0.0
    %8998 = vmatprep.subr.mxu0 0.0
    %8999 = vmatpush1.msra.mxu0 0.0
    %9000 = vmatprep.subr.mxu0 0.0
    %9001 = vmatpush1.msra.mxu0 0.0
    %9002 = vmatprep.subr.mxu0 0.0
    %9003 = vmatpush1.msra.mxu0 0.0
    %9004 = vmatprep.subr.mxu0 0.0
    %9005 = vmatpush1.msra.mxu0 0.0
    %9006 = vmatprep.mubr.f32.mxu0 0.0
    %v9007 = vand.u32 %v7632, 4294901760
    %9008 = vmatmul.mubr.f32.gmra.mrb[0].mxu0 %v9007
    %v9009 = vpop.f32.mrb[0].mxu0
    %v9010 = vadd.f32 %v8937, %v9009
    %v9011 = vpop.f32.mrb[0].mxu0
    %9012 = vdwg.mxu0
    %v9013 = vmax.f32 %v8553, %v9010
    %v9014 = vsel %vm1028, %v9013, %v8090
    %v9016 = vcombine.high %v9014, %v9014
    %v9018 = vunpack.c.l.s4 1966171168
    %v9019 = vunpack.c.0.s8 %v9018
    %v9020 = vlaneseq
    %v9021 = vshrl.u32 %v9020, 7
    %v9022 = vsub.s32 %v9019, %v9021
    %v9023 = vrot.slane %v9014, %v9022
    %v9025 = vunpack.c.l.s4 1966171168
    %v9026 = vunpack.c.0.s8 %v9025
    %v9027 = vlaneseq
    %v9028 = vshrl.u32 %v9027, 7
    %v9029 = vsub.s32 %v9026, %v9028
    %v9030 = vrot.slane %v9016, %v9029
    %v9031 = vcombine.high %v9023, %v9023
    %v9032 = vcombine.high %v9030, %v9030
    %v9034 = vunpack.c.l.s4 1966171168
    %v9035 = vunpack.c.0.s8 %v9034
    %v9036 = vlaneseq
    %v9037 = vshrl.u32 %v9036, 7
    %v9038 = vsub.s32 %v9035, %v9037
    %v9039 = vrot.slane %v9023, %v9038
    %v9041 = vunpack.c.l.s4 1966171168
    %v9042 = vunpack.c.0.s8 %v9041
    %v9043 = vlaneseq
    %v9044 = vshrl.u32 %v9043, 7
    %v9045 = vsub.s32 %v9042, %v9044
    %v9046 = vrot.slane %v9030, %v9045
    %v9048 = vunpack.c.l.s4 1966171168
    %v9049 = vunpack.c.0.s8 %v9048
    %v9050 = vlaneseq
    %v9051 = vshrl.u32 %v9050, 7
    %v9052 = vsub.s32 %v9049, %v9051
    %v9053 = vrot.slane %v9031, %v9052
    %v9055 = vunpack.c.l.s4 1966171168
    %v9056 = vunpack.c.0.s8 %v9055
    %v9057 = vlaneseq
    %v9058 = vshrl.u32 %v9057, 7
    %v9059 = vsub.s32 %v9056, %v9058
    %v9060 = vrot.slane %v9032, %v9059
    %v9061 = vcombine.high %v9039, %v9039
    %v9062 = vcombine.high %v9046, %v9046
    %v9063 = vcombine.high %v9053, %v9053
    %v9064 = vcombine.high %v9060, %v9060
    %9073 = vst.msk [vmem:[%s2 + $0x5] sm:$0x1] %vm1549, %v9039
    %9074 = vst.msk [vmem:[%s2 + $0xd] sm:$0x1] %vm1549, %v9053
    %9075 = vst.msk [vmem:[%s2 + $0x15] sm:$0x1] %vm1549, %v9061
    %9076 = vst.msk [vmem:[%s2 + $0x1d] sm:$0x1] %vm1549, %v9063
    %9077 = vst.msk [vmem:[%s2 + $0x25] sm:$0x1] %vm1549, %v9046
    %9078 = vst.msk [vmem:[%s2 + $0x2d] sm:$0x1] %vm1549, %v9060
    %9079 = vst.msk [vmem:[%s2 + $0x35] sm:$0x1] %vm1549, %v9062
    %9080 = vst.msk [vmem:[%s2 + $0x3d] sm:$0x1] %vm1549, %v9064
    // Predicated region
    $region14: #{_lambda_.1} parent=1 // pred_check
      _
    $region15: #{_lambda_.1} parent=1 // pred_check_branch
      %9082 = sbr.rel (0) target = $region17
    $region16: #{_lambda_.1} parent=1 // pred_region
      _
    $region17: #{_lambda_.1} parent=1 // pred_fallthru
      _
    // Predicated region
    $region18: #{_lambda_.1} parent=1 // pred_check
      _
    $region19: #{_lambda_.1} parent=1 // pred_check_branch
      %9084 = sbr.rel (0) target = $region21
    $region20: #{_lambda_.1} parent=1 // pred_region
      _
    $region21: #{_lambda_.1} parent=1 // pred_fallthru
      _
    %9085 = vsyncpa [#allocation3], 1

</llo_original>
